<compile_context>
chip_gen: v5e
topology: v5e:2x2
jax: 0.10.0
libtpu: 0.0.40
codegen_flags: <defaults>
</compile_context>

<pallas_src>
import jax
import jax.numpy as jnp
from jax import lax
from jax.experimental import pallas as pl
from jax.experimental.pallas import tpu as pltpu

K = 7     # effective combined kernel size
PAD = 3   # combined padding


def _atrous_kernel(x_ref, w_ref, b_ref, o_ref, patch_ref):
    # x_ref:     (1, 1, tH + 2*PAD, W + 2*PAD, Cin)  bf16 halo row-tile
    # w_ref:     (K*K*Cin, Cout)                     bf16 effective 7x7 weights
    # b_ref:     (1, Cout)                           f32 combined bias
    # o_ref:     (1, 1, tH*W, Cout)                  f32 output slab
    # patch_ref: (tH, W, K*K*Cin)                    bf16 im2col scratch (VMEM)
    tH = x_ref.shape[2] - 2 * PAD
    W = x_ref.shape[3] - 2 * PAD
    Cin = x_ref.shape[4]

    # im2col: 49 shifted-window copies into the lane-grouped scratch.  Each
    # copy is a direct (tH, W, Cin) slice -> slice store (no per-tap flatten of
    # a strided slice).  Every iteration is an independent load->store pair
    # (no live accumulator), so the static unroll keeps register pressure flat
    # and lets the scheduler software-pipeline the copies.
    for ky in range(K):
        for kx in range(K):
            tap = ky * K + kx
            patch_ref[:, :, tap * Cin:(tap + 1) * Cin] = (
                x_ref[0, 0, ky:ky + tH, kx:kx + W, :])

    # One deep MXU contraction: (tH*W, 49*Cin) @ (49*Cin, Cout), f32 accumulate.
    # The flatten collapses (tH, W) -> tH*W on the dense scratch only (W is a
    # multiple of the sublane tile, so this is layout-free).
    patch = patch_ref[...].reshape(tH * W, K * K * Cin)
    acc = jnp.dot(patch, w_ref[...], preferred_element_type=jnp.float32)
    acc = acc + b_ref[...]                       # single bias epilogue pass
    o_ref[...] = acc.reshape(o_ref.shape).astype(o_ref.dtype)


def _effective_weights(w1, w3, w5):
    """Scatter the three OIHW branch kernels into one (K, K, Cin, Cout) kernel."""
    Cout, Cin = w1.shape[0], w1.shape[1]

    def to_hwio(w):  # OIHW -> HWIO
        return jnp.transpose(w, (2, 3, 1, 0))

    w_eff = jnp.zeros((K, K, Cin, Cout), jnp.float32)
    w_eff = w_eff.at[3, 3].add(to_hwio(w1)[0, 0])
    w3h = to_hwio(w3)
    for ky in range(3):
        for kx in range(3):
            w_eff = w_eff.at[3 * ky, 3 * kx].add(w3h[ky, kx])   # dilation 3
    w5h = to_hwio(w5)
    for ky in range(5):
        for kx in range(5):
            w_eff = w_eff.at[1 + ky, 1 + kx].add(w5h[ky, kx])
    return w_eff


def atrous_conv(x_nchw, w1, b1, w3, b3, w5, b5, *, tile_h=None):
    """x_nchw: (N, Cin, H, W); weights in PyTorch OIHW layout, biases (Cout,)."""
    N, Cin, H, W = x_nchw.shape
    Cout = w1.shape[0]

    # Branch weights rounded to bf16 (the precision the MXU sees), combined in
    # f32, then the effective kernel is stored bf16 in ky-major/kx/ci order so
    # it matches the im2col lane grouping.
    rb = lambda a: a.astype(jnp.bfloat16).astype(jnp.float32)
    w_eff = _effective_weights(rb(w1), rb(w3), rb(w5))
    w_eff = w_eff.reshape(K * K * Cin, Cout).astype(jnp.bfloat16)
    b_eff = (b1 + b3 + b5).astype(jnp.float32).reshape(1, Cout)

    # Row-tile size: bounds VMEM by the tile and provides a second parallel
    # grid axis (v7x has two TensorCores).
    if tile_h is None or H % tile_h != 0:
        want = tile_h if tile_h is not None else 64
        tile_h = 1
        for cand in range(min(H, want), 0, -1):
            if H % cand == 0:
                tile_h = cand
                break
    n_tiles = H // tile_h

    # NCHW -> NHWC in bf16 (half the f32 HBM traffic), zero-pad spatially by 3
    # (PyTorch default zero padding), then cut overlapping halo row tiles:
    # (N, n_tiles, tile_h + 2*PAD, W + 2*PAD, Cin).  Blocked indexing only.
    # NOTE: the halo duplication could be removed with a pl.Element / manual
    # DMA halo index map; kept Blocked here for robustness.
    x = jnp.transpose(x_nchw.astype(jnp.bfloat16), (0, 2, 3, 1))
    x_pad = jnp.pad(x, ((0, 0), (PAD, PAD), (PAD, PAD), (0, 0)))
    x_tiles = jnp.stack(
        [x_pad[:, t * tile_h: t * tile_h + tile_h + 2 * PAD]
         for t in range(n_tiles)],
        axis=1)

    # Explicit VMEM budget sized to the actual (double-buffered) blocks.
    in_blk = (tile_h + 2 * PAD) * (W + 2 * PAD) * Cin * 2        # bf16
    w_blk = K * K * Cin * Cout * 2                               # bf16
    out_blk = tile_h * W * Cout * 4                              # f32
    patch_blk = tile_h * W * K * K * Cin * 2                     # bf16 scratch
    need = 2 * (in_blk + w_blk + out_blk) + patch_blk + 4 * Cout
    vmem_limit = int(min(max(2 * need + (1 << 20), 16 * 1024 * 1024),
                         64 * 1024 * 1024))

    out = pl.pallas_call(
        _atrous_kernel,
        out_shape=jax.ShapeDtypeStruct((N, n_tiles, tile_h * W, Cout),
                                       jnp.float32),
        grid_spec=pltpu.PrefetchScalarGridSpec(
            num_scalar_prefetch=0,
            grid=(N, n_tiles),
            in_specs=[
                pl.BlockSpec((1, 1, tile_h + 2 * PAD, W + 2 * PAD, Cin),
                             lambda n, t: (n, t, 0, 0, 0)),
                pl.BlockSpec((K * K * Cin, Cout), lambda n, t: (0, 0)),
                pl.BlockSpec((1, Cout), lambda n, t: (0, 0)),
            ],
            out_specs=pl.BlockSpec((1, 1, tile_h * W, Cout),
                                   lambda n, t: (n, t, 0, 0)),
            scratch_shapes=[pltpu.VMEM((tile_h, W, K * K * Cin), jnp.bfloat16)],
        ),
        compiler_params=pltpu.CompilerParams(
            dimension_semantics=("parallel", "parallel"),
            vmem_limit_bytes=vmem_limit),
    )(x_tiles, w_eff, b_eff)

    out = out.reshape(N, H, W, Cout)         # (n, t, h_in_tile*W, c) -> (n, h, w, c)
    return jnp.transpose(out, (0, 3, 1, 2))  # back to NCHW


def _reference(x, w1, b1, w3, b3, w5, b5):
    """The original three-branch module, in f32 (precision=HIGHEST)."""
    dn = ("NCHW", "OIHW", "NCHW")
    hp = lax.Precision.HIGHEST
    y1 = lax.conv_general_dilated(x, w1, (1, 1), [(0, 0), (0, 0)],
                                  dimension_numbers=dn, precision=hp)
    y3 = lax.conv_general_dilated(x, w3, (1, 1), [(3, 3), (3, 3)],
                                  rhs_dilation=(3, 3), dimension_numbers=dn,
                                  precision=hp)
    y5 = lax.conv_general_dilated(x, w5, (1, 1), [(2, 2), (2, 2)],
                                  dimension_numbers=dn, precision=hp)
    return y1 + y3 + y5 + (b1 + b3 + b5)[None, :, None, None]


if __name__ == "__main__":
    key = jax.random.PRNGKey(0)
    kx_, k1w, k1b, k3w, k3b, k5w, k5b = jax.random.split(key, 7)

    N, Cin, Cout, H, W = 2, 4, 4, 16, 16
    x = jax.random.normal(kx_, (N, Cin, H, W), jnp.float32)

    # PyTorch Conv2d parameter shapes: OIHW weights + per-branch bias.
    w1 = jax.random.normal(k1w, (Cout, Cin, 1, 1), jnp.float32) * 0.1
    b1 = jax.random.normal(k1b, (Cout,), jnp.float32) * 0.1
    w3 = jax.random.normal(k3w, (Cout, Cin, 3, 3), jnp.float32) * 0.1
    b3 = jax.random.normal(k3b, (Cout,), jnp.float32) * 0.1
    w5 = jax.random.normal(k5w, (Cout, Cin, 5, 5), jnp.float32) * 0.1
    b5 = jax.random.normal(k5b, (Cout,), jnp.float32) * 0.1

    # tile_h=8 -> grid (N=2, row_tiles=2): exercises the halo tiling and the
    # two-axis parallel grid even at this small test shape.
    out = jax.block_until_ready(
        atrous_conv(x, w1, b1, w3, b3, w5, b5, tile_h=8))
    assert out.shape == (N, Cout, H, W)

    # Reference: the three-branch module evaluated on the same bf16-rounded
    # activations / weights the kernel feeds to the MXU (f32 accumulation).
    rb = lambda a: a.astype(jnp.bfloat16).astype(jnp.float32)
    ref = jax.block_until_ready(
        _reference(rb(x), rb(w1), b1, rb(w3), b3, rb(w5), b5))
    err = float(jnp.max(jnp.abs(out - ref)))
    assert err < 2e-2, f"max abs err = {err}"

    print("KERNEL_OK")
</pallas_src>

<mosaic_0001>
module attributes {stable_mosaic.version = 11 : i64} {
  func.func @_atrous_kernel(%arg0: i32, %arg1: i32, %arg2: memref<1x1x14x22x4xbf16, #tpu.memory_space<vmem>>, %arg3: memref<196x4xbf16, #tpu.memory_space<vmem>>, %arg4: memref<1x4xf32, #tpu.memory_space<vmem>>, %arg5: memref<1x1x128x4xf32, #tpu.memory_space<vmem>>, %arg6: memref<8x16x196xbf16, #tpu.memory_space<vmem>>) attributes {dimension_semantics = [#tpu.dimension_semantics<parallel>, #tpu.dimension_semantics<parallel>], iteration_bounds = array<i64: 2, 2>, scalar_prefetch = 0 : i64, scratch_operands = 1 : i64, tpu.core_type = #tpu.core_type<tc>, window_params = [{transform_indices = @transform_0, window_bounds = array<i64: 1, 1, 14, 22, 4>}, {pipeline_mode = #tpu.pipeline_mode<synchronous>, transform_indices = @transform_1, window_bounds = array<i64: 196, 4>}, {pipeline_mode = #tpu.pipeline_mode<synchronous>, transform_indices = @transform_2, window_bounds = array<i64: 1, 4>}, {transform_indices = @transform_3, window_bounds = array<i64: 1, 1, 128, 4>}]} {
    %c0 = arith.constant 0 : index
    %c0_0 = arith.constant 0 : index
    %c0_1 = arith.constant 0 : index
    %c0_2 = arith.constant 0 : index
    %c0_3 = arith.constant 0 : index
    %0 = vector.load %arg2[%c0, %c0_0, %c0_1, %c0_2, %c0_3] : memref<1x1x14x22x4xbf16, #tpu.memory_space<vmem>>, vector<1x1x8x16x4xbf16>
    %1 = vector.shape_cast %0 : vector<1x1x8x16x4xbf16> to vector<8x16x4xbf16>
    %c0_4 = arith.constant 0 : index
    %c0_5 = arith.constant 0 : index
    %c0_6 = arith.constant 0 : index
    %2 = vector.load %arg6[%c0_4, %c0_5, %c0_6] : memref<8x16x196xbf16, #tpu.memory_space<vmem>>, vector<8x16x4xbf16>
    tpu.vector_store %arg6[%c0_4, %c0_5, %c0_6], %1 {strides = array<i32>} : memref<8x16x196xbf16, #tpu.memory_space<vmem>>, vector<8x16x4xbf16>,
    %c0_7 = arith.constant 0 : index
    %c0_8 = arith.constant 0 : index
    %c0_9 = arith.constant 0 : index
    %c1 = arith.constant 1 : index
    %c0_10 = arith.constant 0 : index
    %3 = vector.load %arg2[%c0_7, %c0_8, %c0_9, %c1, %c0_10] : memref<1x1x14x22x4xbf16, #tpu.memory_space<vmem>>, vector<1x1x8x16x4xbf16>
    %4 = vector.shape_cast %3 : vector<1x1x8x16x4xbf16> to vector<8x16x4xbf16>
    %c0_11 = arith.constant 0 : index
    %c0_12 = arith.constant 0 : index
    %c4 = arith.constant 4 : index
    %5 = vector.load %arg6[%c0_11, %c0_12, %c4] : memref<8x16x196xbf16, #tpu.memory_space<vmem>>, vector<8x16x4xbf16>
    tpu.vector_store %arg6[%c0_11, %c0_12, %c4], %4 {strides = array<i32>} : memref<8x16x196xbf16, #tpu.memory_space<vmem>>, vector<8x16x4xbf16>,
    %c0_13 = arith.constant 0 : index
    %c0_14 = arith.constant 0 : index
    %c0_15 = arith.constant 0 : index
    %c2 = arith.constant 2 : index
    %c0_16 = arith.constant 0 : index
    %6 = vector.load %arg2[%c0_13, %c0_14, %c0_15, %c2, %c0_16] : memref<1x1x14x22x4xbf16, #tpu.memory_space<vmem>>, vector<1x1x8x16x4xbf16>
    %7 = vector.shape_cast %6 : vector<1x1x8x16x4xbf16> to vector<8x16x4xbf16>
    %c0_17 = arith.constant 0 : index
    %c0_18 = arith.constant 0 : index
    %c8 = arith.constant 8 : index
    %8 = vector.load %arg6[%c0_17, %c0_18, %c8] : memref<8x16x196xbf16, #tpu.memory_space<vmem>>, vector<8x16x4xbf16>
    tpu.vector_store %arg6[%c0_17, %c0_18, %c8], %7 {strides = array<i32>} : memref<8x16x196xbf16, #tpu.memory_space<vmem>>, vector<8x16x4xbf16>,
    %c0_19 = arith.constant 0 : index
    %c0_20 = arith.constant 0 : index
    %c0_21 = arith.constant 0 : index
    %c3 = arith.constant 3 : index
    %c0_22 = arith.constant 0 : index
    %9 = vector.load %arg2[%c0_19, %c0_20, %c0_21, %c3, %c0_22] : memref<1x1x14x22x4xbf16, #tpu.memory_space<vmem>>, vector<1x1x8x16x4xbf16>
    %10 = vector.shape_cast %9 : vector<1x1x8x16x4xbf16> to vector<8x16x4xbf16>
    %c0_23 = arith.constant 0 : index
    %c0_24 = arith.constant 0 : index
    %c12 = arith.constant 12 : index
    %11 = vector.load %arg6[%c0_23, %c0_24, %c12] : memref<8x16x196xbf16, #tpu.memory_space<vmem>>, vector<8x16x4xbf16>
    tpu.vector_store %arg6[%c0_23, %c0_24, %c12], %10 {strides = array<i32>} : memref<8x16x196xbf16, #tpu.memory_space<vmem>>, vector<8x16x4xbf16>,
    %c0_25 = arith.constant 0 : index
    %c0_26 = arith.constant 0 : index
    %c0_27 = arith.constant 0 : index
    %c4_28 = arith.constant 4 : index
    %c0_29 = arith.constant 0 : index
    %12 = vector.load %arg2[%c0_25, %c0_26, %c0_27, %c4_28, %c0_29] : memref<1x1x14x22x4xbf16, #tpu.memory_space<vmem>>, vector<1x1x8x16x4xbf16>
    %13 = vector.shape_cast %12 : vector<1x1x8x16x4xbf16> to vector<8x16x4xbf16>
    %c0_30 = arith.constant 0 : index
    %c0_31 = arith.constant 0 : index
    %c16 = arith.constant 16 : index
    %14 = vector.load %arg6[%c0_30, %c0_31, %c16] : memref<8x16x196xbf16, #tpu.memory_space<vmem>>, vector<8x16x4xbf16>
    tpu.vector_store %arg6[%c0_30, %c0_31, %c16], %13 {strides = array<i32>} : memref<8x16x196xbf16, #tpu.memory_space<vmem>>, vector<8x16x4xbf16>,
    %c0_32 = arith.constant 0 : index
    %c0_33 = arith.constant 0 : index
    %c0_34 = arith.constant 0 : index
    %c5 = arith.constant 5 : index
    %c0_35 = arith.constant 0 : index
    %15 = vector.load %arg2[%c0_32, %c0_33, %c0_34, %c5, %c0_35] : memref<1x1x14x22x4xbf16, #tpu.memory_space<vmem>>, vector<1x1x8x16x4xbf16>
    %16 = vector.shape_cast %15 : vector<1x1x8x16x4xbf16> to vector<8x16x4xbf16>
    %c0_36 = arith.constant 0 : index
    %c0_37 = arith.constant 0 : index
    %c20 = arith.constant 20 : index
    %17 = vector.load %arg6[%c0_36, %c0_37, %c20] : memref<8x16x196xbf16, #tpu.memory_space<vmem>>, vector<8x16x4xbf16>
    tpu.vector_store %arg6[%c0_36, %c0_37, %c20], %16 {strides = array<i32>} : memref<8x16x196xbf16, #tpu.memory_space<vmem>>, vector<8x16x4xbf16>,
    %c0_38 = arith.constant 0 : index
    %c0_39 = arith.constant 0 : index
    %c0_40 = arith.constant 0 : index
    %c6 = arith.constant 6 : index
    %c0_41 = arith.constant 0 : index
    %18 = vector.load %arg2[%c0_38, %c0_39, %c0_40, %c6, %c0_41] : memref<1x1x14x22x4xbf16, #tpu.memory_space<vmem>>, vector<1x1x8x16x4xbf16>
    %19 = vector.shape_cast %18 : vector<1x1x8x16x4xbf16> to vector<8x16x4xbf16>
    %c0_42 = arith.constant 0 : index
    %c0_43 = arith.constant 0 : index
    %c24 = arith.constant 24 : index
    %20 = vector.load %arg6[%c0_42, %c0_43, %c24] : memref<8x16x196xbf16, #tpu.memory_space<vmem>>, vector<8x16x4xbf16>
    tpu.vector_store %arg6[%c0_42, %c0_43, %c24], %19 {strides = array<i32>} : memref<8x16x196xbf16, #tpu.memory_space<vmem>>, vector<8x16x4xbf16>,
    %c0_44 = arith.constant 0 : index
    %c0_45 = arith.constant 0 : index
    %c1_46 = arith.constant 1 : index
    %c0_47 = arith.constant 0 : index
    %c0_48 = arith.constant 0 : index
    %21 = vector.load %arg2[%c0_44, %c0_45, %c1_46, %c0_47, %c0_48] : memref<1x1x14x22x4xbf16, #tpu.memory_space<vmem>>, vector<1x1x8x16x4xbf16>
    %22 = vector.shape_cast %21 : vector<1x1x8x16x4xbf16> to vector<8x16x4xbf16>
    %c0_49 = arith.constant 0 : index
    %c0_50 = arith.constant 0 : index
    %c28 = arith.constant 28 : index
    %23 = vector.load %arg6[%c0_49, %c0_50, %c28] : memref<8x16x196xbf16, #tpu.memory_space<vmem>>, vector<8x16x4xbf16>
    tpu.vector_store %arg6[%c0_49, %c0_50, %c28], %22 {strides = array<i32>} : memref<8x16x196xbf16, #tpu.memory_space<vmem>>, vector<8x16x4xbf16>,
    %c0_51 = arith.constant 0 : index
    %c0_52 = arith.constant 0 : index
    %c1_53 = arith.constant 1 : index
    %c1_54 = arith.constant 1 : index
    %c0_55 = arith.constant 0 : index
    %24 = vector.load %arg2[%c0_51, %c0_52, %c1_53, %c1_54, %c0_55] : memref<1x1x14x22x4xbf16, #tpu.memory_space<vmem>>, vector<1x1x8x16x4xbf16>
    %25 = vector.shape_cast %24 : vector<1x1x8x16x4xbf16> to vector<8x16x4xbf16>
    %c0_56 = arith.constant 0 : index
    %c0_57 = arith.constant 0 : index
    %c32 = arith.constant 32 : index
    %26 = vector.load %arg6[%c0_56, %c0_57, %c32] : memref<8x16x196xbf16, #tpu.memory_space<vmem>>, vector<8x16x4xbf16>
    tpu.vector_store %arg6[%c0_56, %c0_57, %c32], %25 {strides = array<i32>} : memref<8x16x196xbf16, #tpu.memory_space<vmem>>, vector<8x16x4xbf16>,
    %c0_58 = arith.constant 0 : index
    %c0_59 = arith.constant 0 : index
    %c1_60 = arith.constant 1 : index
    %c2_61 = arith.constant 2 : index
    %c0_62 = arith.constant 0 : index
    %27 = vector.load %arg2[%c0_58, %c0_59, %c1_60, %c2_61, %c0_62] : memref<1x1x14x22x4xbf16, #tpu.memory_space<vmem>>, vector<1x1x8x16x4xbf16>
    %28 = vector.shape_cast %27 : vector<1x1x8x16x4xbf16> to vector<8x16x4xbf16>
    %c0_63 = arith.constant 0 : index
    %c0_64 = arith.constant 0 : index
    %c36 = arith.constant 36 : index
    %29 = vector.load %arg6[%c0_63, %c0_64, %c36] : memref<8x16x196xbf16, #tpu.memory_space<vmem>>, vector<8x16x4xbf16>
    tpu.vector_store %arg6[%c0_63, %c0_64, %c36], %28 {strides = array<i32>} : memref<8x16x196xbf16, #tpu.memory_space<vmem>>, vector<8x16x4xbf16>,
    %c0_65 = arith.constant 0 : index
    %c0_66 = arith.constant 0 : index
    %c1_67 = arith.constant 1 : index
    %c3_68 = arith.constant 3 : index
    %c0_69 = arith.constant 0 : index
    %30 = vector.load %arg2[%c0_65, %c0_66, %c1_67, %c3_68, %c0_69] : memref<1x1x14x22x4xbf16, #tpu.memory_space<vmem>>, vector<1x1x8x16x4xbf16>
    %31 = vector.shape_cast %30 : vector<1x1x8x16x4xbf16> to vector<8x16x4xbf16>
    %c0_70 = arith.constant 0 : index
    %c0_71 = arith.constant 0 : index
    %c40 = arith.constant 40 : index
    %32 = vector.load %arg6[%c0_70, %c0_71, %c40] : memref<8x16x196xbf16, #tpu.memory_space<vmem>>, vector<8x16x4xbf16>
    tpu.vector_store %arg6[%c0_70, %c0_71, %c40], %31 {strides = array<i32>} : memref<8x16x196xbf16, #tpu.memory_space<vmem>>, vector<8x16x4xbf16>,
    %c0_72 = arith.constant 0 : index
    %c0_73 = arith.constant 0 : index
    %c1_74 = arith.constant 1 : index
    %c4_75 = arith.constant 4 : index
    %c0_76 = arith.constant 0 : index
    %33 = vector.load %arg2[%c0_72, %c0_73, %c1_74, %c4_75, %c0_76] : memref<1x1x14x22x4xbf16, #tpu.memory_space<vmem>>, vector<1x1x8x16x4xbf16>
    %34 = vector.shape_cast %33 : vector<1x1x8x16x4xbf16> to vector<8x16x4xbf16>
    %c0_77 = arith.constant 0 : index
    %c0_78 = arith.constant 0 : index
    %c44 = arith.constant 44 : index
    %35 = vector.load %arg6[%c0_77, %c0_78, %c44] : memref<8x16x196xbf16, #tpu.memory_space<vmem>>, vector<8x16x4xbf16>
    tpu.vector_store %arg6[%c0_77, %c0_78, %c44], %34 {strides = array<i32>} : memref<8x16x196xbf16, #tpu.memory_space<vmem>>, vector<8x16x4xbf16>,
    %c0_79 = arith.constant 0 : index
    %c0_80 = arith.constant 0 : index
    %c1_81 = arith.constant 1 : index
    %c5_82 = arith.constant 5 : index
    %c0_83 = arith.constant 0 : index
    %36 = vector.load %arg2[%c0_79, %c0_80, %c1_81, %c5_82, %c0_83] : memref<1x1x14x22x4xbf16, #tpu.memory_space<vmem>>, vector<1x1x8x16x4xbf16>
    %37 = vector.shape_cast %36 : vector<1x1x8x16x4xbf16> to vector<8x16x4xbf16>
    %c0_84 = arith.constant 0 : index
    %c0_85 = arith.constant 0 : index
    %c48 = arith.constant 48 : index
    %38 = vector.load %arg6[%c0_84, %c0_85, %c48] : memref<8x16x196xbf16, #tpu.memory_space<vmem>>, vector<8x16x4xbf16>
    tpu.vector_store %arg6[%c0_84, %c0_85, %c48], %37 {strides = array<i32>} : memref<8x16x196xbf16, #tpu.memory_space<vmem>>, vector<8x16x4xbf16>,
    %c0_86 = arith.constant 0 : index
    %c0_87 = arith.constant 0 : index
    %c1_88 = arith.constant 1 : index
    %c6_89 = arith.constant 6 : index
    %c0_90 = arith.constant 0 : index
    %39 = vector.load %arg2[%c0_86, %c0_87, %c1_88, %c6_89, %c0_90] : memref<1x1x14x22x4xbf16, #tpu.memory_space<vmem>>, vector<1x1x8x16x4xbf16>
    %40 = vector.shape_cast %39 : vector<1x1x8x16x4xbf16> to vector<8x16x4xbf16>
    %c0_91 = arith.constant 0 : index
    %c0_92 = arith.constant 0 : index
    %c52 = arith.constant 52 : index
    %41 = vector.load %arg6[%c0_91, %c0_92, %c52] : memref<8x16x196xbf16, #tpu.memory_space<vmem>>, vector<8x16x4xbf16>
    tpu.vector_store %arg6[%c0_91, %c0_92, %c52], %40 {strides = array<i32>} : memref<8x16x196xbf16, #tpu.memory_space<vmem>>, vector<8x16x4xbf16>,
    %c0_93 = arith.constant 0 : index
    %c0_94 = arith.constant 0 : index
    %c2_95 = arith.constant 2 : index
    %c0_96 = arith.constant 0 : index
    %c0_97 = arith.constant 0 : index
    %42 = vector.load %arg2[%c0_93, %c0_94, %c2_95, %c0_96, %c0_97] : memref<1x1x14x22x4xbf16, #tpu.memory_space<vmem>>, vector<1x1x8x16x4xbf16>
    %43 = vector.shape_cast %42 : vector<1x1x8x16x4xbf16> to vector<8x16x4xbf16>
    %c0_98 = arith.constant 0 : index
    %c0_99 = arith.constant 0 : index
    %c56 = arith.constant 56 : index
    %44 = vector.load %arg6[%c0_98, %c0_99, %c56] : memref<8x16x196xbf16, #tpu.memory_space<vmem>>, vector<8x16x4xbf16>
    tpu.vector_store %arg6[%c0_98, %c0_99, %c56], %43 {strides = array<i32>} : memref<8x16x196xbf16, #tpu.memory_space<vmem>>, vector<8x16x4xbf16>,
    %c0_100 = arith.constant 0 : index
    %c0_101 = arith.constant 0 : index
    %c2_102 = arith.constant 2 : index
    %c1_103 = arith.constant 1 : index
    %c0_104 = arith.constant 0 : index
    %45 = vector.load %arg2[%c0_100, %c0_101, %c2_102, %c1_103, %c0_104] : memref<1x1x14x22x4xbf16, #tpu.memory_space<vmem>>, vector<1x1x8x16x4xbf16>
    %46 = vector.shape_cast %45 : vector<1x1x8x16x4xbf16> to vector<8x16x4xbf16>
    %c0_105 = arith.constant 0 : index
    %c0_106 = arith.constant 0 : index
    %c60 = arith.constant 60 : index
    %47 = vector.load %arg6[%c0_105, %c0_106, %c60] : memref<8x16x196xbf16, #tpu.memory_space<vmem>>, vector<8x16x4xbf16>
    tpu.vector_store %arg6[%c0_105, %c0_106, %c60], %46 {strides = array<i32>} : memref<8x16x196xbf16, #tpu.memory_space<vmem>>, vector<8x16x4xbf16>,
    %c0_107 = arith.constant 0 : index
    %c0_108 = arith.constant 0 : index
    %c2_109 = arith.constant 2 : index
    %c2_110 = arith.constant 2 : index
    %c0_111 = arith.constant 0 : index
    %48 = vector.load %arg2[%c0_107, %c0_108, %c2_109, %c2_110, %c0_111] : memref<1x1x14x22x4xbf16, #tpu.memory_space<vmem>>, vector<1x1x8x16x4xbf16>
    %49 = vector.shape_cast %48 : vector<1x1x8x16x4xbf16> to vector<8x16x4xbf16>
    %c0_112 = arith.constant 0 : index
    %c0_113 = arith.constant 0 : index
    %c64 = arith.constant 64 : index
    %50 = vector.load %arg6[%c0_112, %c0_113, %c64] : memref<8x16x196xbf16, #tpu.memory_space<vmem>>, vector<8x16x4xbf16>
    tpu.vector_store %arg6[%c0_112, %c0_113, %c64], %49 {strides = array<i32>} : memref<8x16x196xbf16, #tpu.memory_space<vmem>>, vector<8x16x4xbf16>,
    %c0_114 = arith.constant 0 : index
    %c0_115 = arith.constant 0 : index
    %c2_116 = arith.constant 2 : index
    %c3_117 = arith.constant 3 : index
    %c0_118 = arith.constant 0 : index
    %51 = vector.load %arg2[%c0_114, %c0_115, %c2_116, %c3_117, %c0_118] : memref<1x1x14x22x4xbf16, #tpu.memory_space<vmem>>, vector<1x1x8x16x4xbf16>
    %52 = vector.shape_cast %51 : vector<1x1x8x16x4xbf16> to vector<8x16x4xbf16>
    %c0_119 = arith.constant 0 : index
    %c0_120 = arith.constant 0 : index
    %c68 = arith.constant 68 : index
    %53 = vector.load %arg6[%c0_119, %c0_120, %c68] : memref<8x16x196xbf16, #tpu.memory_space<vmem>>, vector<8x16x4xbf16>
    tpu.vector_store %arg6[%c0_119, %c0_120, %c68], %52 {strides = array<i32>} : memref<8x16x196xbf16, #tpu.memory_space<vmem>>, vector<8x16x4xbf16>,
    %c0_121 = arith.constant 0 : index
    %c0_122 = arith.constant 0 : index
    %c2_123 = arith.constant 2 : index
    %c4_124 = arith.constant 4 : index
    %c0_125 = arith.constant 0 : index
    %54 = vector.load %arg2[%c0_121, %c0_122, %c2_123, %c4_124, %c0_125] : memref<1x1x14x22x4xbf16, #tpu.memory_space<vmem>>, vector<1x1x8x16x4xbf16>
    %55 = vector.shape_cast %54 : vector<1x1x8x16x4xbf16> to vector<8x16x4xbf16>
    %c0_126 = arith.constant 0 : index
    %c0_127 = arith.constant 0 : index
    %c72 = arith.constant 72 : index
    %56 = vector.load %arg6[%c0_126, %c0_127, %c72] : memref<8x16x196xbf16, #tpu.memory_space<vmem>>, vector<8x16x4xbf16>
    tpu.vector_store %arg6[%c0_126, %c0_127, %c72], %55 {strides = array<i32>} : memref<8x16x196xbf16, #tpu.memory_space<vmem>>, vector<8x16x4xbf16>,
    %c0_128 = arith.constant 0 : index
    %c0_129 = arith.constant 0 : index
    %c2_130 = arith.constant 2 : index
    %c5_131 = arith.constant 5 : index
    %c0_132 = arith.constant 0 : index
    %57 = vector.load %arg2[%c0_128, %c0_129, %c2_130, %c5_131, %c0_132] : memref<1x1x14x22x4xbf16, #tpu.memory_space<vmem>>, vector<1x1x8x16x4xbf16>
    %58 = vector.shape_cast %57 : vector<1x1x8x16x4xbf16> to vector<8x16x4xbf16>
    %c0_133 = arith.constant 0 : index
    %c0_134 = arith.constant 0 : index
    %c76 = arith.constant 76 : index
    %59 = vector.load %arg6[%c0_133, %c0_134, %c76] : memref<8x16x196xbf16, #tpu.memory_space<vmem>>, vector<8x16x4xbf16>
    tpu.vector_store %arg6[%c0_133, %c0_134, %c76], %58 {strides = array<i32>} : memref<8x16x196xbf16, #tpu.memory_space<vmem>>, vector<8x16x4xbf16>,
    %c0_135 = arith.constant 0 : index
    %c0_136 = arith.constant 0 : index
    %c2_137 = arith.constant 2 : index
    %c6_138 = arith.constant 6 : index
    %c0_139 = arith.constant 0 : index
    %60 = vector.load %arg2[%c0_135, %c0_136, %c2_137, %c6_138, %c0_139] : memref<1x1x14x22x4xbf16, #tpu.memory_space<vmem>>, vector<1x1x8x16x4xbf16>
    %61 = vector.shape_cast %60 : vector<1x1x8x16x4xbf16> to vector<8x16x4xbf16>
    %c0_140 = arith.constant 0 : index
    %c0_141 = arith.constant 0 : index
    %c80 = arith.constant 80 : index
    %62 = vector.load %arg6[%c0_140, %c0_141, %c80] : memref<8x16x196xbf16, #tpu.memory_space<vmem>>, vector<8x16x4xbf16>
    tpu.vector_store %arg6[%c0_140, %c0_141, %c80], %61 {strides = array<i32>} : memref<8x16x196xbf16, #tpu.memory_space<vmem>>, vector<8x16x4xbf16>,
    %c0_142 = arith.constant 0 : index
    %c0_143 = arith.constant 0 : index
    %c3_144 = arith.constant 3 : index
    %c0_145 = arith.constant 0 : index
    %c0_146 = arith.constant 0 : index
    %63 = vector.load %arg2[%c0_142, %c0_143, %c3_144, %c0_145, %c0_146] : memref<1x1x14x22x4xbf16, #tpu.memory_space<vmem>>, vector<1x1x8x16x4xbf16>
    %64 = vector.shape_cast %63 : vector<1x1x8x16x4xbf16> to vector<8x16x4xbf16>
    %c0_147 = arith.constant 0 : index
    %c0_148 = arith.constant 0 : index
    %c84 = arith.constant 84 : index
    %65 = vector.load %arg6[%c0_147, %c0_148, %c84] : memref<8x16x196xbf16, #tpu.memory_space<vmem>>, vector<8x16x4xbf16>
    tpu.vector_store %arg6[%c0_147, %c0_148, %c84], %64 {strides = array<i32>} : memref<8x16x196xbf16, #tpu.memory_space<vmem>>, vector<8x16x4xbf16>,
    %c0_149 = arith.constant 0 : index
    %c0_150 = arith.constant 0 : index
    %c3_151 = arith.constant 3 : index
    %c1_152 = arith.constant 1 : index
    %c0_153 = arith.constant 0 : index
    %66 = vector.load %arg2[%c0_149, %c0_150, %c3_151, %c1_152, %c0_153] : memref<1x1x14x22x4xbf16, #tpu.memory_space<vmem>>, vector<1x1x8x16x4xbf16>
    %67 = vector.shape_cast %66 : vector<1x1x8x16x4xbf16> to vector<8x16x4xbf16>
    %c0_154 = arith.constant 0 : index
    %c0_155 = arith.constant 0 : index
    %c88 = arith.constant 88 : index
    %68 = vector.load %arg6[%c0_154, %c0_155, %c88] : memref<8x16x196xbf16, #tpu.memory_space<vmem>>, vector<8x16x4xbf16>
    tpu.vector_store %arg6[%c0_154, %c0_155, %c88], %67 {strides = array<i32>} : memref<8x16x196xbf16, #tpu.memory_space<vmem>>, vector<8x16x4xbf16>,
    %c0_156 = arith.constant 0 : index
    %c0_157 = arith.constant 0 : index
    %c3_158 = arith.constant 3 : index
    %c2_159 = arith.constant 2 : index
    %c0_160 = arith.constant 0 : index
    %69 = vector.load %arg2[%c0_156, %c0_157, %c3_158, %c2_159, %c0_160] : memref<1x1x14x22x4xbf16, #tpu.memory_space<vmem>>, vector<1x1x8x16x4xbf16>
    %70 = vector.shape_cast %69 : vector<1x1x8x16x4xbf16> to vector<8x16x4xbf16>
    %c0_161 = arith.constant 0 : index
    %c0_162 = arith.constant 0 : index
    %c92 = arith.constant 92 : index
    %71 = vector.load %arg6[%c0_161, %c0_162, %c92] : memref<8x16x196xbf16, #tpu.memory_space<vmem>>, vector<8x16x4xbf16>
    tpu.vector_store %arg6[%c0_161, %c0_162, %c92], %70 {strides = array<i32>} : memref<8x16x196xbf16, #tpu.memory_space<vmem>>, vector<8x16x4xbf16>,
    %c0_163 = arith.constant 0 : index
    %c0_164 = arith.constant 0 : index
    %c3_165 = arith.constant 3 : index
    %c3_166 = arith.constant 3 : index
    %c0_167 = arith.constant 0 : index
    %72 = vector.load %arg2[%c0_163, %c0_164, %c3_165, %c3_166, %c0_167] : memref<1x1x14x22x4xbf16, #tpu.memory_space<vmem>>, vector<1x1x8x16x4xbf16>
    %73 = vector.shape_cast %72 : vector<1x1x8x16x4xbf16> to vector<8x16x4xbf16>
    %c0_168 = arith.constant 0 : index
    %c0_169 = arith.constant 0 : index
    %c96 = arith.constant 96 : index
    %74 = vector.load %arg6[%c0_168, %c0_169, %c96] : memref<8x16x196xbf16, #tpu.memory_space<vmem>>, vector<8x16x4xbf16>
    tpu.vector_store %arg6[%c0_168, %c0_169, %c96], %73 {strides = array<i32>} : memref<8x16x196xbf16, #tpu.memory_space<vmem>>, vector<8x16x4xbf16>,
    %c0_170 = arith.constant 0 : index
    %c0_171 = arith.constant 0 : index
    %c3_172 = arith.constant 3 : index
    %c4_173 = arith.constant 4 : index
    %c0_174 = arith.constant 0 : index
    %75 = vector.load %arg2[%c0_170, %c0_171, %c3_172, %c4_173, %c0_174] : memref<1x1x14x22x4xbf16, #tpu.memory_space<vmem>>, vector<1x1x8x16x4xbf16>
    %76 = vector.shape_cast %75 : vector<1x1x8x16x4xbf16> to vector<8x16x4xbf16>
    %c0_175 = arith.constant 0 : index
    %c0_176 = arith.constant 0 : index
    %c100 = arith.constant 100 : index
    %77 = vector.load %arg6[%c0_175, %c0_176, %c100] : memref<8x16x196xbf16, #tpu.memory_space<vmem>>, vector<8x16x4xbf16>
    tpu.vector_store %arg6[%c0_175, %c0_176, %c100], %76 {strides = array<i32>} : memref<8x16x196xbf16, #tpu.memory_space<vmem>>, vector<8x16x4xbf16>,
    %c0_177 = arith.constant 0 : index
    %c0_178 = arith.constant 0 : index
    %c3_179 = arith.constant 3 : index
    %c5_180 = arith.constant 5 : index
    %c0_181 = arith.constant 0 : index
    %78 = vector.load %arg2[%c0_177, %c0_178, %c3_179, %c5_180, %c0_181] : memref<1x1x14x22x4xbf16, #tpu.memory_space<vmem>>, vector<1x1x8x16x4xbf16>
    %79 = vector.shape_cast %78 : vector<1x1x8x16x4xbf16> to vector<8x16x4xbf16>
    %c0_182 = arith.constant 0 : index
    %c0_183 = arith.constant 0 : index
    %c104 = arith.constant 104 : index
    %80 = vector.load %arg6[%c0_182, %c0_183, %c104] : memref<8x16x196xbf16, #tpu.memory_space<vmem>>, vector<8x16x4xbf16>
    tpu.vector_store %arg6[%c0_182, %c0_183, %c104], %79 {strides = array<i32>} : memref<8x16x196xbf16, #tpu.memory_space<vmem>>, vector<8x16x4xbf16>,
    %c0_184 = arith.constant 0 : index
    %c0_185 = arith.constant 0 : index
    %c3_186 = arith.constant 3 : index
    %c6_187 = arith.constant 6 : index
    %c0_188 = arith.constant 0 : index
    %81 = vector.load %arg2[%c0_184, %c0_185, %c3_186, %c6_187, %c0_188] : memref<1x1x14x22x4xbf16, #tpu.memory_space<vmem>>, vector<1x1x8x16x4xbf16>
    %82 = vector.shape_cast %81 : vector<1x1x8x16x4xbf16> to vector<8x16x4xbf16>
    %c0_189 = arith.constant 0 : index
    %c0_190 = arith.constant 0 : index
    %c108 = arith.constant 108 : index
    %83 = vector.load %arg6[%c0_189, %c0_190, %c108] : memref<8x16x196xbf16, #tpu.memory_space<vmem>>, vector<8x16x4xbf16>
    tpu.vector_store %arg6[%c0_189, %c0_190, %c108], %82 {strides = array<i32>} : memref<8x16x196xbf16, #tpu.memory_space<vmem>>, vector<8x16x4xbf16>,
    %c0_191 = arith.constant 0 : index
    %c0_192 = arith.constant 0 : index
    %c4_193 = arith.constant 4 : index
    %c0_194 = arith.constant 0 : index
    %c0_195 = arith.constant 0 : index
    %84 = vector.load %arg2[%c0_191, %c0_192, %c4_193, %c0_194, %c0_195] : memref<1x1x14x22x4xbf16, #tpu.memory_space<vmem>>, vector<1x1x8x16x4xbf16>
    %85 = vector.shape_cast %84 : vector<1x1x8x16x4xbf16> to vector<8x16x4xbf16>
    %c0_196 = arith.constant 0 : index
    %c0_197 = arith.constant 0 : index
    %c112 = arith.constant 112 : index
    %86 = vector.load %arg6[%c0_196, %c0_197, %c112] : memref<8x16x196xbf16, #tpu.memory_space<vmem>>, vector<8x16x4xbf16>
    tpu.vector_store %arg6[%c0_196, %c0_197, %c112], %85 {strides = array<i32>} : memref<8x16x196xbf16, #tpu.memory_space<vmem>>, vector<8x16x4xbf16>,
    %c0_198 = arith.constant 0 : index
    %c0_199 = arith.constant 0 : index
    %c4_200 = arith.constant 4 : index
    %c1_201 = arith.constant 1 : index
    %c0_202 = arith.constant 0 : index
    %87 = vector.load %arg2[%c0_198, %c0_199, %c4_200, %c1_201, %c0_202] : memref<1x1x14x22x4xbf16, #tpu.memory_space<vmem>>, vector<1x1x8x16x4xbf16>
    %88 = vector.shape_cast %87 : vector<1x1x8x16x4xbf16> to vector<8x16x4xbf16>
    %c0_203 = arith.constant 0 : index
    %c0_204 = arith.constant 0 : index
    %c116 = arith.constant 116 : index
    %89 = vector.load %arg6[%c0_203, %c0_204, %c116] : memref<8x16x196xbf16, #tpu.memory_space<vmem>>, vector<8x16x4xbf16>
    tpu.vector_store %arg6[%c0_203, %c0_204, %c116], %88 {strides = array<i32>} : memref<8x16x196xbf16, #tpu.memory_space<vmem>>, vector<8x16x4xbf16>,
    %c0_205 = arith.constant 0 : index
    %c0_206 = arith.constant 0 : index
    %c4_207 = arith.constant 4 : index
    %c2_208 = arith.constant 2 : index
    %c0_209 = arith.constant 0 : index
    %90 = vector.load %arg2[%c0_205, %c0_206, %c4_207, %c2_208, %c0_209] : memref<1x1x14x22x4xbf16, #tpu.memory_space<vmem>>, vector<1x1x8x16x4xbf16>
    %91 = vector.shape_cast %90 : vector<1x1x8x16x4xbf16> to vector<8x16x4xbf16>
    %c0_210 = arith.constant 0 : index
    %c0_211 = arith.constant 0 : index
    %c120 = arith.constant 120 : index
    %92 = vector.load %arg6[%c0_210, %c0_211, %c120] : memref<8x16x196xbf16, #tpu.memory_space<vmem>>, vector<8x16x4xbf16>
    tpu.vector_store %arg6[%c0_210, %c0_211, %c120], %91 {strides = array<i32>} : memref<8x16x196xbf16, #tpu.memory_space<vmem>>, vector<8x16x4xbf16>,
    %c0_212 = arith.constant 0 : index
    %c0_213 = arith.constant 0 : index
    %c4_214 = arith.constant 4 : index
    %c3_215 = arith.constant 3 : index
    %c0_216 = arith.constant 0 : index
    %93 = vector.load %arg2[%c0_212, %c0_213, %c4_214, %c3_215, %c0_216] : memref<1x1x14x22x4xbf16, #tpu.memory_space<vmem>>, vector<1x1x8x16x4xbf16>
    %94 = vector.shape_cast %93 : vector<1x1x8x16x4xbf16> to vector<8x16x4xbf16>
    %c0_217 = arith.constant 0 : index
    %c0_218 = arith.constant 0 : index
    %c124 = arith.constant 124 : index
    %95 = vector.load %arg6[%c0_217, %c0_218, %c124] : memref<8x16x196xbf16, #tpu.memory_space<vmem>>, vector<8x16x4xbf16>
    tpu.vector_store %arg6[%c0_217, %c0_218, %c124], %94 {strides = array<i32>} : memref<8x16x196xbf16, #tpu.memory_space<vmem>>, vector<8x16x4xbf16>,
    %c0_219 = arith.constant 0 : index
    %c0_220 = arith.constant 0 : index
    %c4_221 = arith.constant 4 : index
    %c4_222 = arith.constant 4 : index
    %c0_223 = arith.constant 0 : index
    %96 = vector.load %arg2[%c0_219, %c0_220, %c4_221, %c4_222, %c0_223] : memref<1x1x14x22x4xbf16, #tpu.memory_space<vmem>>, vector<1x1x8x16x4xbf16>
    %97 = vector.shape_cast %96 : vector<1x1x8x16x4xbf16> to vector<8x16x4xbf16>
    %c0_224 = arith.constant 0 : index
    %c0_225 = arith.constant 0 : index
    %c128 = arith.constant 128 : index
    %98 = vector.load %arg6[%c0_224, %c0_225, %c128] : memref<8x16x196xbf16, #tpu.memory_space<vmem>>, vector<8x16x4xbf16>
    tpu.vector_store %arg6[%c0_224, %c0_225, %c128], %97 {strides = array<i32>} : memref<8x16x196xbf16, #tpu.memory_space<vmem>>, vector<8x16x4xbf16>,
    %c0_226 = arith.constant 0 : index
    %c0_227 = arith.constant 0 : index
    %c4_228 = arith.constant 4 : index
    %c5_229 = arith.constant 5 : index
    %c0_230 = arith.constant 0 : index
    %99 = vector.load %arg2[%c0_226, %c0_227, %c4_228, %c5_229, %c0_230] : memref<1x1x14x22x4xbf16, #tpu.memory_space<vmem>>, vector<1x1x8x16x4xbf16>
    %100 = vector.shape_cast %99 : vector<1x1x8x16x4xbf16> to vector<8x16x4xbf16>
    %c0_231 = arith.constant 0 : index
    %c0_232 = arith.constant 0 : index
    %c132 = arith.constant 132 : index
    %101 = vector.load %arg6[%c0_231, %c0_232, %c132] : memref<8x16x196xbf16, #tpu.memory_space<vmem>>, vector<8x16x4xbf16>
    tpu.vector_store %arg6[%c0_231, %c0_232, %c132], %100 {strides = array<i32>} : memref<8x16x196xbf16, #tpu.memory_space<vmem>>, vector<8x16x4xbf16>,
    %c0_233 = arith.constant 0 : index
    %c0_234 = arith.constant 0 : index
    %c4_235 = arith.constant 4 : index
    %c6_236 = arith.constant 6 : index
    %c0_237 = arith.constant 0 : index
    %102 = vector.load %arg2[%c0_233, %c0_234, %c4_235, %c6_236, %c0_237] : memref<1x1x14x22x4xbf16, #tpu.memory_space<vmem>>, vector<1x1x8x16x4xbf16>
    %103 = vector.shape_cast %102 : vector<1x1x8x16x4xbf16> to vector<8x16x4xbf16>
    %c0_238 = arith.constant 0 : index
    %c0_239 = arith.constant 0 : index
    %c136 = arith.constant 136 : index
    %104 = vector.load %arg6[%c0_238, %c0_239, %c136] : memref<8x16x196xbf16, #tpu.memory_space<vmem>>, vector<8x16x4xbf16>
    tpu.vector_store %arg6[%c0_238, %c0_239, %c136], %103 {strides = array<i32>} : memref<8x16x196xbf16, #tpu.memory_space<vmem>>, vector<8x16x4xbf16>,
    %c0_240 = arith.constant 0 : index
    %c0_241 = arith.constant 0 : index
    %c5_242 = arith.constant 5 : index
    %c0_243 = arith.constant 0 : index
    %c0_244 = arith.constant 0 : index
    %105 = vector.load %arg2[%c0_240, %c0_241, %c5_242, %c0_243, %c0_244] : memref<1x1x14x22x4xbf16, #tpu.memory_space<vmem>>, vector<1x1x8x16x4xbf16>
    %106 = vector.shape_cast %105 : vector<1x1x8x16x4xbf16> to vector<8x16x4xbf16>
    %c0_245 = arith.constant 0 : index
    %c0_246 = arith.constant 0 : index
    %c140 = arith.constant 140 : index
    %107 = vector.load %arg6[%c0_245, %c0_246, %c140] : memref<8x16x196xbf16, #tpu.memory_space<vmem>>, vector<8x16x4xbf16>
    tpu.vector_store %arg6[%c0_245, %c0_246, %c140], %106 {strides = array<i32>} : memref<8x16x196xbf16, #tpu.memory_space<vmem>>, vector<8x16x4xbf16>,
    %c0_247 = arith.constant 0 : index
    %c0_248 = arith.constant 0 : index
    %c5_249 = arith.constant 5 : index
    %c1_250 = arith.constant 1 : index
    %c0_251 = arith.constant 0 : index
    %108 = vector.load %arg2[%c0_247, %c0_248, %c5_249, %c1_250, %c0_251] : memref<1x1x14x22x4xbf16, #tpu.memory_space<vmem>>, vector<1x1x8x16x4xbf16>
    %109 = vector.shape_cast %108 : vector<1x1x8x16x4xbf16> to vector<8x16x4xbf16>
    %c0_252 = arith.constant 0 : index
    %c0_253 = arith.constant 0 : index
    %c144 = arith.constant 144 : index
    %110 = vector.load %arg6[%c0_252, %c0_253, %c144] : memref<8x16x196xbf16, #tpu.memory_space<vmem>>, vector<8x16x4xbf16>
    tpu.vector_store %arg6[%c0_252, %c0_253, %c144], %109 {strides = array<i32>} : memref<8x16x196xbf16, #tpu.memory_space<vmem>>, vector<8x16x4xbf16>,
    %c0_254 = arith.constant 0 : index
    %c0_255 = arith.constant 0 : index
    %c5_256 = arith.constant 5 : index
    %c2_257 = arith.constant 2 : index
    %c0_258 = arith.constant 0 : index
    %111 = vector.load %arg2[%c0_254, %c0_255, %c5_256, %c2_257, %c0_258] : memref<1x1x14x22x4xbf16, #tpu.memory_space<vmem>>, vector<1x1x8x16x4xbf16>
    %112 = vector.shape_cast %111 : vector<1x1x8x16x4xbf16> to vector<8x16x4xbf16>
    %c0_259 = arith.constant 0 : index
    %c0_260 = arith.constant 0 : index
    %c148 = arith.constant 148 : index
    %113 = vector.load %arg6[%c0_259, %c0_260, %c148] : memref<8x16x196xbf16, #tpu.memory_space<vmem>>, vector<8x16x4xbf16>
    tpu.vector_store %arg6[%c0_259, %c0_260, %c148], %112 {strides = array<i32>} : memref<8x16x196xbf16, #tpu.memory_space<vmem>>, vector<8x16x4xbf16>,
    %c0_261 = arith.constant 0 : index
    %c0_262 = arith.constant 0 : index
    %c5_263 = arith.constant 5 : index
    %c3_264 = arith.constant 3 : index
    %c0_265 = arith.constant 0 : index
    %114 = vector.load %arg2[%c0_261, %c0_262, %c5_263, %c3_264, %c0_265] : memref<1x1x14x22x4xbf16, #tpu.memory_space<vmem>>, vector<1x1x8x16x4xbf16>
    %115 = vector.shape_cast %114 : vector<1x1x8x16x4xbf16> to vector<8x16x4xbf16>
    %c0_266 = arith.constant 0 : index
    %c0_267 = arith.constant 0 : index
    %c152 = arith.constant 152 : index
    %116 = vector.load %arg6[%c0_266, %c0_267, %c152] : memref<8x16x196xbf16, #tpu.memory_space<vmem>>, vector<8x16x4xbf16>
    tpu.vector_store %arg6[%c0_266, %c0_267, %c152], %115 {strides = array<i32>} : memref<8x16x196xbf16, #tpu.memory_space<vmem>>, vector<8x16x4xbf16>,
    %c0_268 = arith.constant 0 : index
    %c0_269 = arith.constant 0 : index
    %c5_270 = arith.constant 5 : index
    %c4_271 = arith.constant 4 : index
    %c0_272 = arith.constant 0 : index
    %117 = vector.load %arg2[%c0_268, %c0_269, %c5_270, %c4_271, %c0_272] : memref<1x1x14x22x4xbf16, #tpu.memory_space<vmem>>, vector<1x1x8x16x4xbf16>
    %118 = vector.shape_cast %117 : vector<1x1x8x16x4xbf16> to vector<8x16x4xbf16>
    %c0_273 = arith.constant 0 : index
    %c0_274 = arith.constant 0 : index
    %c156 = arith.constant 156 : index
    %119 = vector.load %arg6[%c0_273, %c0_274, %c156] : memref<8x16x196xbf16, #tpu.memory_space<vmem>>, vector<8x16x4xbf16>
    tpu.vector_store %arg6[%c0_273, %c0_274, %c156], %118 {strides = array<i32>} : memref<8x16x196xbf16, #tpu.memory_space<vmem>>, vector<8x16x4xbf16>,
    %c0_275 = arith.constant 0 : index
    %c0_276 = arith.constant 0 : index
    %c5_277 = arith.constant 5 : index
    %c5_278 = arith.constant 5 : index
    %c0_279 = arith.constant 0 : index
    %120 = vector.load %arg2[%c0_275, %c0_276, %c5_277, %c5_278, %c0_279] : memref<1x1x14x22x4xbf16, #tpu.memory_space<vmem>>, vector<1x1x8x16x4xbf16>
    %121 = vector.shape_cast %120 : vector<1x1x8x16x4xbf16> to vector<8x16x4xbf16>
    %c0_280 = arith.constant 0 : index
    %c0_281 = arith.constant 0 : index
    %c160 = arith.constant 160 : index
    %122 = vector.load %arg6[%c0_280, %c0_281, %c160] : memref<8x16x196xbf16, #tpu.memory_space<vmem>>, vector<8x16x4xbf16>
    tpu.vector_store %arg6[%c0_280, %c0_281, %c160], %121 {strides = array<i32>} : memref<8x16x196xbf16, #tpu.memory_space<vmem>>, vector<8x16x4xbf16>,
    %c0_282 = arith.constant 0 : index
    %c0_283 = arith.constant 0 : index
    %c5_284 = arith.constant 5 : index
    %c6_285 = arith.constant 6 : index
    %c0_286 = arith.constant 0 : index
    %123 = vector.load %arg2[%c0_282, %c0_283, %c5_284, %c6_285, %c0_286] : memref<1x1x14x22x4xbf16, #tpu.memory_space<vmem>>, vector<1x1x8x16x4xbf16>
    %124 = vector.shape_cast %123 : vector<1x1x8x16x4xbf16> to vector<8x16x4xbf16>
    %c0_287 = arith.constant 0 : index
    %c0_288 = arith.constant 0 : index
    %c164 = arith.constant 164 : index
    %125 = vector.load %arg6[%c0_287, %c0_288, %c164] : memref<8x16x196xbf16, #tpu.memory_space<vmem>>, vector<8x16x4xbf16>
    tpu.vector_store %arg6[%c0_287, %c0_288, %c164], %124 {strides = array<i32>} : memref<8x16x196xbf16, #tpu.memory_space<vmem>>, vector<8x16x4xbf16>,
    %c0_289 = arith.constant 0 : index
    %c0_290 = arith.constant 0 : index
    %c6_291 = arith.constant 6 : index
    %c0_292 = arith.constant 0 : index
    %c0_293 = arith.constant 0 : index
    %126 = vector.load %arg2[%c0_289, %c0_290, %c6_291, %c0_292, %c0_293] : memref<1x1x14x22x4xbf16, #tpu.memory_space<vmem>>, vector<1x1x8x16x4xbf16>
    %127 = vector.shape_cast %126 : vector<1x1x8x16x4xbf16> to vector<8x16x4xbf16>
    %c0_294 = arith.constant 0 : index
    %c0_295 = arith.constant 0 : index
    %c168 = arith.constant 168 : index
    %128 = vector.load %arg6[%c0_294, %c0_295, %c168] : memref<8x16x196xbf16, #tpu.memory_space<vmem>>, vector<8x16x4xbf16>
    tpu.vector_store %arg6[%c0_294, %c0_295, %c168], %127 {strides = array<i32>} : memref<8x16x196xbf16, #tpu.memory_space<vmem>>, vector<8x16x4xbf16>,
    %c0_296 = arith.constant 0 : index
    %c0_297 = arith.constant 0 : index
    %c6_298 = arith.constant 6 : index
    %c1_299 = arith.constant 1 : index
    %c0_300 = arith.constant 0 : index
    %129 = vector.load %arg2[%c0_296, %c0_297, %c6_298, %c1_299, %c0_300] : memref<1x1x14x22x4xbf16, #tpu.memory_space<vmem>>, vector<1x1x8x16x4xbf16>
    %130 = vector.shape_cast %129 : vector<1x1x8x16x4xbf16> to vector<8x16x4xbf16>
    %c0_301 = arith.constant 0 : index
    %c0_302 = arith.constant 0 : index
    %c172 = arith.constant 172 : index
    %131 = vector.load %arg6[%c0_301, %c0_302, %c172] : memref<8x16x196xbf16, #tpu.memory_space<vmem>>, vector<8x16x4xbf16>
    tpu.vector_store %arg6[%c0_301, %c0_302, %c172], %130 {strides = array<i32>} : memref<8x16x196xbf16, #tpu.memory_space<vmem>>, vector<8x16x4xbf16>,
    %c0_303 = arith.constant 0 : index
    %c0_304 = arith.constant 0 : index
    %c6_305 = arith.constant 6 : index
    %c2_306 = arith.constant 2 : index
    %c0_307 = arith.constant 0 : index
    %132 = vector.load %arg2[%c0_303, %c0_304, %c6_305, %c2_306, %c0_307] : memref<1x1x14x22x4xbf16, #tpu.memory_space<vmem>>, vector<1x1x8x16x4xbf16>
    %133 = vector.shape_cast %132 : vector<1x1x8x16x4xbf16> to vector<8x16x4xbf16>
    %c0_308 = arith.constant 0 : index
    %c0_309 = arith.constant 0 : index
    %c176 = arith.constant 176 : index
    %134 = vector.load %arg6[%c0_308, %c0_309, %c176] : memref<8x16x196xbf16, #tpu.memory_space<vmem>>, vector<8x16x4xbf16>
    tpu.vector_store %arg6[%c0_308, %c0_309, %c176], %133 {strides = array<i32>} : memref<8x16x196xbf16, #tpu.memory_space<vmem>>, vector<8x16x4xbf16>,
    %c0_310 = arith.constant 0 : index
    %c0_311 = arith.constant 0 : index
    %c6_312 = arith.constant 6 : index
    %c3_313 = arith.constant 3 : index
    %c0_314 = arith.constant 0 : index
    %135 = vector.load %arg2[%c0_310, %c0_311, %c6_312, %c3_313, %c0_314] : memref<1x1x14x22x4xbf16, #tpu.memory_space<vmem>>, vector<1x1x8x16x4xbf16>
    %136 = vector.shape_cast %135 : vector<1x1x8x16x4xbf16> to vector<8x16x4xbf16>
    %c0_315 = arith.constant 0 : index
    %c0_316 = arith.constant 0 : index
    %c180 = arith.constant 180 : index
    %137 = vector.load %arg6[%c0_315, %c0_316, %c180] : memref<8x16x196xbf16, #tpu.memory_space<vmem>>, vector<8x16x4xbf16>
    tpu.vector_store %arg6[%c0_315, %c0_316, %c180], %136 {strides = array<i32>} : memref<8x16x196xbf16, #tpu.memory_space<vmem>>, vector<8x16x4xbf16>,
    %c0_317 = arith.constant 0 : index
    %c0_318 = arith.constant 0 : index
    %c6_319 = arith.constant 6 : index
    %c4_320 = arith.constant 4 : index
    %c0_321 = arith.constant 0 : index
    %138 = vector.load %arg2[%c0_317, %c0_318, %c6_319, %c4_320, %c0_321] : memref<1x1x14x22x4xbf16, #tpu.memory_space<vmem>>, vector<1x1x8x16x4xbf16>
    %139 = vector.shape_cast %138 : vector<1x1x8x16x4xbf16> to vector<8x16x4xbf16>
    %c0_322 = arith.constant 0 : index
    %c0_323 = arith.constant 0 : index
    %c184 = arith.constant 184 : index
    %140 = vector.load %arg6[%c0_322, %c0_323, %c184] : memref<8x16x196xbf16, #tpu.memory_space<vmem>>, vector<8x16x4xbf16>
    tpu.vector_store %arg6[%c0_322, %c0_323, %c184], %139 {strides = array<i32>} : memref<8x16x196xbf16, #tpu.memory_space<vmem>>, vector<8x16x4xbf16>,
    %c0_324 = arith.constant 0 : index
    %c0_325 = arith.constant 0 : index
    %c6_326 = arith.constant 6 : index
    %c5_327 = arith.constant 5 : index
    %c0_328 = arith.constant 0 : index
    %141 = vector.load %arg2[%c0_324, %c0_325, %c6_326, %c5_327, %c0_328] : memref<1x1x14x22x4xbf16, #tpu.memory_space<vmem>>, vector<1x1x8x16x4xbf16>
    %142 = vector.shape_cast %141 : vector<1x1x8x16x4xbf16> to vector<8x16x4xbf16>
    %c0_329 = arith.constant 0 : index
    %c0_330 = arith.constant 0 : index
    %c188 = arith.constant 188 : index
    %143 = vector.load %arg6[%c0_329, %c0_330, %c188] : memref<8x16x196xbf16, #tpu.memory_space<vmem>>, vector<8x16x4xbf16>
    tpu.vector_store %arg6[%c0_329, %c0_330, %c188], %142 {strides = array<i32>} : memref<8x16x196xbf16, #tpu.memory_space<vmem>>, vector<8x16x4xbf16>,
    %c0_331 = arith.constant 0 : index
    %c0_332 = arith.constant 0 : index
    %c6_333 = arith.constant 6 : index
    %c6_334 = arith.constant 6 : index
    %c0_335 = arith.constant 0 : index
    %144 = vector.load %arg2[%c0_331, %c0_332, %c6_333, %c6_334, %c0_335] : memref<1x1x14x22x4xbf16, #tpu.memory_space<vmem>>, vector<1x1x8x16x4xbf16>
    %145 = vector.shape_cast %144 : vector<1x1x8x16x4xbf16> to vector<8x16x4xbf16>
    %c0_336 = arith.constant 0 : index
    %c0_337 = arith.constant 0 : index
    %c192 = arith.constant 192 : index
    %146 = vector.load %arg6[%c0_336, %c0_337, %c192] : memref<8x16x196xbf16, #tpu.memory_space<vmem>>, vector<8x16x4xbf16>
    tpu.vector_store %arg6[%c0_336, %c0_337, %c192], %145 {strides = array<i32>} : memref<8x16x196xbf16, #tpu.memory_space<vmem>>, vector<8x16x4xbf16>,
    %c0_338 = arith.constant 0 : index
    %c0_339 = arith.constant 0 : index
    %c0_340 = arith.constant 0 : index
    %147 = vector.load %arg6[%c0_338, %c0_339, %c0_340] : memref<8x16x196xbf16, #tpu.memory_space<vmem>>, vector<8x16x196xbf16>
    %148 = vector.shape_cast %147 : vector<8x16x196xbf16> to vector<128x196xbf16>
    %c0_341 = arith.constant 0 : index
    %c0_342 = arith.constant 0 : index
    %149 = vector.load %arg3[%c0_341, %c0_342] : memref<196x4xbf16, #tpu.memory_space<vmem>>, vector<196x4xbf16>
    %cst = arith.constant dense<0.000000e+00> : vector<128x4xf32>
    %150 = tpu.matmul %148, %149, %cst {dimension_numbers = #tpu.dot_dimension_numbers<[1], [0], [0], [1], [0, 0, 1, 1], [], []>} : vector<128x196xbf16>, vector<196x4xbf16>, vector<128x4xf32> -> vector<128x4xf32>
    %c0_343 = arith.constant 0 : index
    %c0_344 = arith.constant 0 : index
    %151 = vector.load %arg4[%c0_343, %c0_344] : memref<1x4xf32, #tpu.memory_space<vmem>>, vector<1x4xf32>
    %152 = vector.broadcast %151 : vector<1x4xf32> to vector<128x4xf32>
    %153 = arith.addf %150, %152 : vector<128x4xf32>
    %154 = vector.shape_cast %153 : vector<128x4xf32> to vector<1x1x128x4xf32>
    %c0_345 = arith.constant 0 : index
    %c0_346 = arith.constant 0 : index
    %c0_347 = arith.constant 0 : index
    %c0_348 = arith.constant 0 : index
    %155 = vector.load %arg5[%c0_345, %c0_346, %c0_347, %c0_348] : memref<1x1x128x4xf32, #tpu.memory_space<vmem>>, vector<1x1x128x4xf32>
    tpu.vector_store %arg5[%c0_345, %c0_346, %c0_347, %c0_348], %154 {strides = array<i32>} : memref<1x1x128x4xf32, #tpu.memory_space<vmem>>, vector<1x1x128x4xf32>,
    return
  }
  func.func @transform_0(%arg0: i32, %arg1: i32) -> (i32, i32, i32, i32, i32) {
    %c0_i32 = arith.constant 0 : i32
    %c0_i32_0 = arith.constant 0 : i32
    %c0_i32_1 = arith.constant 0 : i32
    %c0_i32_2 = arith.constant 0 : i32
    return %arg0, %arg1, %c0_i32, %c0_i32_0, %c0_i32_1 : i32, i32, i32, i32, i32
  }
  func.func @transform_1(%arg0: i32, %arg1: i32) -> (i32, i32) {
    %c0_i32 = arith.constant 0 : i32
    %c0_i32_0 = arith.constant 0 : i32
    %c0_i32_1 = arith.constant 0 : i32
    return %c0_i32, %c0_i32_0 : i32, i32
  }
  func.func @transform_2(%arg0: i32, %arg1: i32) -> (i32, i32) {
    %c0_i32 = arith.constant 0 : i32
    %c0_i32_0 = arith.constant 0 : i32
    %c0_i32_1 = arith.constant 0 : i32
    return %c0_i32, %c0_i32_0 : i32, i32
  }
  func.func @transform_3(%arg0: i32, %arg1: i32) -> (i32, i32, i32, i32) {
    %c0_i32 = arith.constant 0 : i32
    %c0_i32_0 = arith.constant 0 : i32
    %c0_i32_1 = arith.constant 0 : i32
    return %arg0, %arg1, %c0_i32, %c0_i32_0 : i32, i32, i32, i32
  }
}

</mosaic_0001>

<llo_original>
// kernel: tpu_custom_call.1
$region0: #{tpu_custom_call.1}
  #allocation0 [shape = 'u32[]', space=smem, size = 0x4, offset = 0x4, fixed_abs, tag = 'smem constant byte address 0x4 - core index']
  #allocation1 [shape = 'u32[72,128]{1,0:T(1,128)}', space=vmem, size = 0x9000, scoped, tag = 'internal scratch']
  #allocation2 [shape = 'bf16[8,16,196]{2,1,0:T(8,128)(2,1)}', space=vmem, size = 0x10000, scoped, tag = 'scratch operand']
  %s0 = inlined_call_operand.vmem [shape: bf16[2,2,14,22,4], index: 0, kind: input, shape index: {}]
  %s1 = inlined_call_operand.vmem [shape: bf16[196,4], index: 1, kind: input, shape index: {}]
  %s2 = inlined_call_operand.vmem [shape: f32[1,4], index: 2, kind: input, shape index: {}]
  %s3 = inlined_call_operand.vmem [shape: f32[2,2,128,4], index: 3, kind: output, shape index: {}]
  %s4 = sld [smem:[#allocation0]]
  $region45: #{tpu_custom_call.1} parent=0
    _
  %s6 = ssub.s32 1, %s4
  %s7 = scalar_select 0, %s6, %s4
  loop: start=0, step=1, limit=6
  $region2: #{tpu_custom_call.1} parent=0 // loop_pre_header
    _
  $region3: #{tpu_custom_call.1} parent=0 // loop_header
    %s9 = sphi 0, %s13
    %p10 = scmp.ge.s32.totalorder %s9, 6
    %s16 = sphi 0, %s28
    %s17 = sphi 0, %s24
    %s18 = sphi 0, %s16
    %s19 = sphi 0, %s17
    %s20 = sphi 0, %s18
    %s21 = sphi 0, %s19
    %s33 = sphi 0, %s35
    %s36 = sphi 0, %s33
    %s37 = sphi 0, %s36
    %s53 = sphi 0, %s37
    %s57 = sphi 0, %s57
    %s59 = sphi 0, %s57
    %s60 = sphi 0, %s59
    %s74 = sphi 0, %s60
    %s78 = sphi 0, %s78
    %s80 = sphi 0, %s78
    %s81 = sphi 0, %s80
    %s95 = sphi 0, %s81
    %s103 = sphi 0, %s105
    %s106 = sphi 0, %s103
    %s107 = sphi 0, %s106
    %s123 = sphi 0, %s107
  $region4: #{tpu_custom_call.1} parent=0 // loop_header_branch
    %12 = sbr.rel (%p10) target = $region8
  $region5: #{tpu_custom_call.1} parent=0 // loop_body
    %s14 = ssub.s32 %s9, 1
    %s15 = ssub.s32 %s9, 2
    %s22 = sadd.s32 1, %s17
    %p23 = scmp.ge.s32.totalorder %s22, 2
    %s24 = scalar_select %p23, 0, %s22
    %s25 = sadd.s32 1, %s16
    %s26 = scalar_select %p23, %s25, %s16
    %p27 = scmp.ge.s32.totalorder %s26, 2
    %s28 = scalar_select %p27, 0, %s26
    %s29 = ssub.s32 %s16, %s28
    %s30 = ssub.s32 %s17, %s24
    %s31 = sor.u32 %s29, %s30
    %p32 = scmp.eq.s32.totalorder %s31, 0
    %s34 = sadd.s32 %s33, 1
    %s35 = scalar_select %p32, %s33, %s34
    %p38 = pneg %p32
    %p39 = scmp.eq.s32.totalorder %s9, 3
    %p40 = por %p38, %p39
    %p41 = scmp.ne.s32.totalorder %s33, %s36
    %p42 = scmp.eq.s32.totalorder %s9, 0
    %p43 = por %p41, %p42
    %p44 = scmp.ne.s32.totalorder %s33, %s36
    %p45 = scmp.eq.s32.totalorder %s14, 3
    %p46 = por %p44, %p45
    %p47 = scmp.ne.s32.totalorder %s36, %s37
    %p48 = scmp.eq.s32.totalorder %s14, 0
    %p49 = por %p47, %p48
    %p50 = scmp.ne.s32.totalorder %s36, %s37
    %p51 = scmp.eq.s32.totalorder %s15, 3
    %p52 = por %p50, %p51
    %p54 = scmp.ne.s32.totalorder %s37, %s53
    %p55 = scmp.eq.s32.totalorder %s15, 0
    %p56 = por %p54, %p55
    %s58 = sadd.s32 %s57, 1
    %p61 = scmp.eq.s32.totalorder %s9, 3
    %p62 = scmp.ne.s32.totalorder %s57, %s59
    %p63 = scmp.eq.s32.totalorder %s9, 0
    %p64 = por %p62, %p63
    %p65 = scmp.ne.s32.totalorder %s57, %s59
    %p66 = scmp.eq.s32.totalorder %s14, 3
    %p67 = por %p65, %p66
    %p68 = scmp.ne.s32.totalorder %s59, %s60
    %p69 = scmp.eq.s32.totalorder %s14, 0
    %p70 = por %p68, %p69
    %p71 = scmp.ne.s32.totalorder %s59, %s60
    %p72 = scmp.eq.s32.totalorder %s15, 3
    %p73 = por %p71, %p72
    %p75 = scmp.ne.s32.totalorder %s60, %s74
    %p76 = scmp.eq.s32.totalorder %s15, 0
    %p77 = por %p75, %p76
    %s79 = sadd.s32 %s78, 1
    %p82 = scmp.eq.s32.totalorder %s9, 3
    %p83 = scmp.ne.s32.totalorder %s78, %s80
    %p84 = scmp.eq.s32.totalorder %s9, 0
    %p85 = por %p83, %p84
    %p86 = scmp.ne.s32.totalorder %s78, %s80
    %p87 = scmp.eq.s32.totalorder %s14, 3
    %p88 = por %p86, %p87
    %p89 = scmp.ne.s32.totalorder %s80, %s81
    %p90 = scmp.eq.s32.totalorder %s14, 0
    %p91 = por %p89, %p90
    %p92 = scmp.ne.s32.totalorder %s80, %s81
    %p93 = scmp.eq.s32.totalorder %s15, 3
    %p94 = por %p92, %p93
    %p96 = scmp.ne.s32.totalorder %s81, %s95
    %p97 = scmp.eq.s32.totalorder %s15, 0
    %p98 = por %p96, %p97
    %s99 = ssub.s32 %s16, %s28
    %s100 = ssub.s32 %s17, %s24
    %s101 = sor.u32 %s99, %s100
    %p102 = scmp.eq.s32.totalorder %s101, 0
    %s104 = sadd.s32 %s103, 1
    %s105 = scalar_select %p102, %s103, %s104
    %p108 = pneg %p102
    %p109 = scmp.eq.s32.totalorder %s9, 3
    %p110 = por %p108, %p109
    %p111 = scmp.ne.s32.totalorder %s103, %s106
    %p112 = scmp.eq.s32.totalorder %s9, 0
    %p113 = por %p111, %p112
    %p114 = scmp.ne.s32.totalorder %s103, %s106
    %p115 = scmp.eq.s32.totalorder %s14, 3
    %p116 = por %p114, %p115
    %p117 = scmp.ne.s32.totalorder %s106, %s107
    %p118 = scmp.eq.s32.totalorder %s14, 0
    %p119 = por %p117, %p118
    %p120 = scmp.ne.s32.totalorder %s106, %s107
    %p121 = scmp.eq.s32.totalorder %s15, 3
    %p122 = por %p120, %p121
    %p124 = scmp.ne.s32.totalorder %s107, %s123
    %p125 = scmp.eq.s32.totalorder %s15, 0
    %p126 = por %p124, %p125
    %p127 = scmp.le.s32.totalorder 1, %s9
    %p128 = scmp.lt.s32.totalorder %s9, 5
    %p129 = pnand %p127, %p128
    %p130 = pneg %p129
    // Predicated region
    $region9: #{tpu_custom_call.1} parent=5 // pred_check
      _
    $region10: #{tpu_custom_call.1} parent=5 // pred_check_branch
      %132 = sbr.rel (%p129) target = $region12
    $region11: #{tpu_custom_call.1} parent=5 // pred_region
      %s133 = ssub.s32 %s9, 1
      // Predicated region
      $region13: #{tpu_custom_call.1} parent=11 // pred_check
        %p134 = pneg %p70
      $region14: #{tpu_custom_call.1} parent=11 // pred_check_branch
        %136 = sbr.rel (%p134) target = $region16
      $region15: #{tpu_custom_call.1} parent=11 // pred_region
        _
      $region16: #{tpu_custom_call.1} parent=11 // pred_fallthru
        _
      // Predicated region
      $region17: #{tpu_custom_call.1} parent=11 // pred_check
        %p137 = pneg %p91
      $region18: #{tpu_custom_call.1} parent=11 // pred_check_branch
        %139 = sbr.rel (%p137) target = $region20
      $region19: #{tpu_custom_call.1} parent=11 // pred_region
        _
      $region20: #{tpu_custom_call.1} parent=11 // pred_fallthru
        _
    $region12: #{tpu_custom_call.1} parent=5 // pred_fallthru
      _
    %p140 = scmp.lt.s32.totalorder %s9, 4
    // Predicated region
    $region21: #{tpu_custom_call.1} parent=5 // pred_check
      %p141 = pneg %p140
    $region22: #{tpu_custom_call.1} parent=5 // pred_check_branch
      %143 = sbr.rel (%p141) target = $region24
    $region23: #{tpu_custom_call.1} parent=5 // pred_region
      // Predicated region
      $region25: #{tpu_custom_call.1} parent=23 // pred_check
        %p144 = pneg %p43
      $region26: #{tpu_custom_call.1} parent=23 // pred_check_branch
        %146 = sbr.rel (%p144) target = $region28
      $region27: #{tpu_custom_call.1} parent=23 // pred_region
        %p147 = scmp.lt.s32.totalorder %s16, 1
        %s148 = scalar_select %p147, %s16, 1
        %p149 = scmp.lt.s32.totalorder %s17, 1
        %s150 = scalar_select %p149, %s17, 1
        %s151 = smul.addr %s150, 42
        %s152 = smul.addr %s148, 84
        %s153 = sadd.s32 %s151, %s152
        %s154 = smul.addr %s153, 4
        %s155 = scalar_lea.vmem %s0, %s154
      $region28: #{tpu_custom_call.1} parent=23 // pred_fallthru
        _
    $region24: #{tpu_custom_call.1} parent=5 // pred_fallthru
      _
    %p156 = scmp.le.s32.totalorder 1, %s9
    %p157 = scmp.lt.s32.totalorder %s9, 5
    %p158 = pnand %p156, %p157
    %p159 = pneg %p158
    // Predicated region
    $region29: #{tpu_custom_call.1} parent=5 // pred_check
      _
    $region30: #{tpu_custom_call.1} parent=5 // pred_check_branch
      %161 = sbr.rel (%p158) target = $region32
    $region31: #{tpu_custom_call.1} parent=5 // pred_region
      %s162 = ssub.s32 %s9, 1
      %p163 = scmp.lt.s32.totalorder %s18, 1
      %s164 = scalar_select %p163, %s18, 1
      %p165 = scmp.lt.s32.totalorder %s19, 1
      %s166 = scalar_select %p165, %s19, 1
      %s167 = smul.addr %s166, 42
      %s168 = smul.addr %s164, 84
      %s169 = sadd.s32 %s167, %s168
      %s170 = smul.addr %s169, 4
      %s171 = scalar_lea.vmem %s0, %s170
      %p172 = pneg %p49
      %p173 = pneg %p46
      %p174 = pneg %p70
      %p175 = pneg %p67
      %p176 = pneg %p91
      %p177 = pneg %p88
      %p178 = pneg %p119
      %p179 = pneg %p116
      %p180 = scmp.lt.s32.totalorder %s18, 1
      %s181 = scalar_select %p180, %s18, 1
      %p182 = scmp.lt.s32.totalorder %s19, 1
      %s183 = scalar_select %p182, %s19, 1
      %s184 = smul.addr %s183, 16
      %s185 = smul.addr %s181, 32
      %s186 = sadd.s32 %s184, %s185
      %s187 = smul.addr %s186, 8
      %s188 = scalar_lea.vmem %s3, %s187
      %p189 = scmp.lt.s32.totalorder %s18, 1
      %s190 = scalar_select %p189, %s18, 1
      %p191 = scmp.lt.s32.totalorder %s19, 1
      %s192 = scalar_select %p191, %s19, 1
      %s193 = smul.addr %s192, 42
      %s194 = smul.addr %s190, 84
      %s195 = sadd.s32 %s193, %s194
      %s196 = smul.addr %s195, 4
      %s197 = scalar_lea.vmem %s0, %s196
      %p198 = scmp.lt.s32.totalorder %s18, 1
      %s199 = scalar_select %p198, %s18, 1
      %p200 = scmp.lt.s32.totalorder %s19, 1
      %s201 = scalar_select %p200, %s19, 1
      %s202 = smul.addr %s201, 16
      %s203 = smul.addr %s199, 32
      %s204 = sadd.s32 %s202, %s203
      %s205 = smul.addr %s204, 8
      %s206 = scalar_lea.vmem %s3, %s205
      %v208 = vld [vmem:[%s197] sm:$0xf]
      %v209 = vld [vmem:[%s197 + $0x4] sm:$0xf]
      %v210 = vld [vmem:[%s197 + $0xc] sm:$0xf]
      %v211 = vld [vmem:[%s197 + $0x10] sm:$0xf]
      %v212 = vld [vmem:[%s197 + $0x18] sm:$0xf]
      %v213 = vld [vmem:[%s197 + $0x1c] sm:$0xf]
      %v214 = vld [vmem:[%s197 + $0x24] sm:$0xf]
      %v215 = vld [vmem:[%s197 + $0x28] sm:$0xf]
      %v216 = vld [vmem:[%s197 + $0x30] sm:$0xf]
      %v217 = vld [vmem:[%s197 + $0x34] sm:$0xf]
      %v218 = vld [vmem:[%s197 + $0x3c] sm:$0xf]
      %v219 = vld [vmem:[%s197 + $0x40] sm:$0xf]
      %v220 = vld [vmem:[%s197 + $0x48] sm:$0xf]
      %v221 = vld [vmem:[%s197 + $0x4c] sm:$0xf]
      %v222 = vld [vmem:[%s197 + $0x54] sm:$0xf]
      %v223 = vld [vmem:[%s197 + $0x58] sm:$0xf]
      %vm224 = vcmask 27648
      %225 = vst.msk [vmem:[#allocation2] sm:$0xf] %vm224, %v208
      %226 = vst.msk [vmem:[#allocation2 + $0x8] sm:$0xf] %vm224, %v209
      %227 = vst.msk [vmem:[#allocation2 + $0x10] sm:$0xf] %vm224, %v210
      %228 = vst.msk [vmem:[#allocation2 + $0x18] sm:$0xf] %vm224, %v211
      %229 = vst.msk [vmem:[#allocation2 + $0x20] sm:$0xf] %vm224, %v212
      %230 = vst.msk [vmem:[#allocation2 + $0x28] sm:$0xf] %vm224, %v213
      %231 = vst.msk [vmem:[#allocation2 + $0x30] sm:$0xf] %vm224, %v214
      %232 = vst.msk [vmem:[#allocation2 + $0x38] sm:$0xf] %vm224, %v215
      %233 = vst.msk [vmem:[#allocation2 + $0x40] sm:$0xf] %vm224, %v216
      %234 = vst.msk [vmem:[#allocation2 + $0x48] sm:$0xf] %vm224, %v217
      %235 = vst.msk [vmem:[#allocation2 + $0x50] sm:$0xf] %vm224, %v218
      %236 = vst.msk [vmem:[#allocation2 + $0x58] sm:$0xf] %vm224, %v219
      %237 = vst.msk [vmem:[#allocation2 + $0x60] sm:$0xf] %vm224, %v220
      %238 = vst.msk [vmem:[#allocation2 + $0x68] sm:$0xf] %vm224, %v221
      %239 = vst.msk [vmem:[#allocation2 + $0x70] sm:$0xf] %vm224, %v222
      %240 = vst.msk [vmem:[#allocation2 + $0x78] sm:$0xf] %vm224, %v223
      %v241 = vld [vmem:[%s197] sm:$0xf]
      %v242 = vld [vmem:[%s197 + $0x4] sm:$0xf]
      %v243 = vld [vmem:[%s197 + $0x8] sm:$0x1]
      %v244 = vld [vmem:[%s197 + $0xc] sm:$0xf]
      %v245 = vld [vmem:[%s197 + $0x10] sm:$0xf]
      %v246 = vld [vmem:[%s197 + $0x14] sm:$0x1]
      %v247 = vld [vmem:[%s197 + $0x18] sm:$0xf]
      %v248 = vld [vmem:[%s197 + $0x1c] sm:$0xf]
      %v249 = vld [vmem:[%s197 + $0x20] sm:$0x1]
      %v250 = vld [vmem:[%s197 + $0x24] sm:$0xf]
      %v251 = vld [vmem:[%s197 + $0x28] sm:$0xf]
      %v252 = vld [vmem:[%s197 + $0x2c] sm:$0x1]
      %v253 = vld [vmem:[%s197 + $0x30] sm:$0xf]
      %v254 = vld [vmem:[%s197 + $0x34] sm:$0xf]
      %v255 = vld [vmem:[%s197 + $0x38] sm:$0x1]
      %v256 = vld [vmem:[%s197 + $0x3c] sm:$0xf]
      %v257 = vld [vmem:[%s197 + $0x40] sm:$0xf]
      %v258 = vld [vmem:[%s197 + $0x44] sm:$0x1]
      %v259 = vld [vmem:[%s197 + $0x48] sm:$0xf]
      %v260 = vld [vmem:[%s197 + $0x4c] sm:$0xf]
      %v261 = vld [vmem:[%s197 + $0x50] sm:$0x1]
      %v262 = vld [vmem:[%s197 + $0x54] sm:$0xf]
      %v263 = vld [vmem:[%s197 + $0x58] sm:$0xf]
      %v264 = vld [vmem:[%s197 + $0x5c] sm:$0x1]
      %vm265 = vsmask.f32 3328
      %vm266 = vsmask.f32 7440
      %vm267 = vmor %vm265, %vm266
      %v269 = vshrl.u32 %v241, 16
      %v271 = vrot.slane %v269, 4
      %v272 = vshll.u32 %v241, 16
      %v274 = vrot.slane %v272, 5
      %v275 = vor.u32 %v271, %v274
      %v276 = vrot.slane %v275, 4
      %v278 = vshll.u32 %v242, 16
      %v280 = vrot.slane %v278, 5
      %v281 = vsel %vm267, %v276, %v280
      %v282 = vshrl.u32 %v242, 16
      %v284 = vrot.slane %v282, 4
      %v285 = vor.u32 %v284, %v280
      %v286 = vrot.slane %v285, 4
      %v288 = vshll.u32 %v243, 16
      %v290 = vrot.slane %v288, 5
      %v291 = vsel %vm267, %v286, %v290
      %v293 = vshrl.u32 %v244, 16
      %v295 = vrot.slane %v293, 4
      %v296 = vshll.u32 %v244, 16
      %v298 = vrot.slane %v296, 5
      %v299 = vor.u32 %v295, %v298
      %v300 = vrot.slane %v299, 4
      %v302 = vshll.u32 %v245, 16
      %v304 = vrot.slane %v302, 5
      %v305 = vsel %vm267, %v300, %v304
      %v306 = vshrl.u32 %v245, 16
      %v308 = vrot.slane %v306, 4
      %v309 = vor.u32 %v308, %v304
      %v310 = vrot.slane %v309, 4
      %v312 = vshll.u32 %v246, 16
      %v314 = vrot.slane %v312, 5
      %v315 = vsel %vm267, %v310, %v314
      %v317 = vshrl.u32 %v247, 16
      %v319 = vrot.slane %v317, 4
      %v320 = vshll.u32 %v247, 16
      %v322 = vrot.slane %v320, 5
      %v323 = vor.u32 %v319, %v322
      %v324 = vrot.slane %v323, 4
      %v326 = vshll.u32 %v248, 16
      %v328 = vrot.slane %v326, 5
      %v329 = vsel %vm267, %v324, %v328
      %v330 = vshrl.u32 %v248, 16
      %v332 = vrot.slane %v330, 4
      %v333 = vor.u32 %v332, %v328
      %v334 = vrot.slane %v333, 4
      %v336 = vshll.u32 %v249, 16
      %v338 = vrot.slane %v336, 5
      %v339 = vsel %vm267, %v334, %v338
      %v341 = vshrl.u32 %v250, 16
      %v343 = vrot.slane %v341, 4
      %v344 = vshll.u32 %v250, 16
      %v346 = vrot.slane %v344, 5
      %v347 = vor.u32 %v343, %v346
      %v348 = vrot.slane %v347, 4
      %v350 = vshll.u32 %v251, 16
      %v352 = vrot.slane %v350, 5
      %v353 = vsel %vm267, %v348, %v352
      %v354 = vshrl.u32 %v251, 16
      %v356 = vrot.slane %v354, 4
      %v357 = vor.u32 %v356, %v352
      %v358 = vrot.slane %v357, 4
      %v360 = vshll.u32 %v252, 16
      %v362 = vrot.slane %v360, 5
      %v363 = vsel %vm267, %v358, %v362
      %v365 = vshrl.u32 %v253, 16
      %v367 = vrot.slane %v365, 4
      %v368 = vshll.u32 %v253, 16
      %v370 = vrot.slane %v368, 5
      %v371 = vor.u32 %v367, %v370
      %v372 = vrot.slane %v371, 4
      %v374 = vshll.u32 %v254, 16
      %v376 = vrot.slane %v374, 5
      %v377 = vsel %vm267, %v372, %v376
      %v378 = vshrl.u32 %v254, 16
      %v380 = vrot.slane %v378, 4
      %v381 = vor.u32 %v380, %v376
      %v382 = vrot.slane %v381, 4
      %v384 = vshll.u32 %v255, 16
      %v386 = vrot.slane %v384, 5
      %v387 = vsel %vm267, %v382, %v386
      %v389 = vshrl.u32 %v256, 16
      %v391 = vrot.slane %v389, 4
      %v392 = vshll.u32 %v256, 16
      %v394 = vrot.slane %v392, 5
      %v395 = vor.u32 %v391, %v394
      %v396 = vrot.slane %v395, 4
      %v398 = vshll.u32 %v257, 16
      %v400 = vrot.slane %v398, 5
      %v401 = vsel %vm267, %v396, %v400
      %v402 = vshrl.u32 %v257, 16
      %v404 = vrot.slane %v402, 4
      %v405 = vor.u32 %v404, %v400
      %v406 = vrot.slane %v405, 4
      %v408 = vshll.u32 %v258, 16
      %v410 = vrot.slane %v408, 5
      %v411 = vsel %vm267, %v406, %v410
      %v413 = vshrl.u32 %v259, 16
      %v415 = vrot.slane %v413, 4
      %v416 = vshll.u32 %v259, 16
      %v418 = vrot.slane %v416, 5
      %v419 = vor.u32 %v415, %v418
      %v420 = vrot.slane %v419, 4
      %v422 = vshll.u32 %v260, 16
      %v424 = vrot.slane %v422, 5
      %v425 = vsel %vm267, %v420, %v424
      %v426 = vshrl.u32 %v260, 16
      %v428 = vrot.slane %v426, 4
      %v429 = vor.u32 %v428, %v424
      %v430 = vrot.slane %v429, 4
      %v432 = vshll.u32 %v261, 16
      %v434 = vrot.slane %v432, 5
      %v435 = vsel %vm267, %v430, %v434
      %v437 = vshrl.u32 %v262, 16
      %v439 = vrot.slane %v437, 4
      %v440 = vshll.u32 %v262, 16
      %v442 = vrot.slane %v440, 5
      %v443 = vor.u32 %v439, %v442
      %v444 = vrot.slane %v443, 4
      %v446 = vshll.u32 %v263, 16
      %v448 = vrot.slane %v446, 5
      %v449 = vsel %vm267, %v444, %v448
      %v450 = vshrl.u32 %v263, 16
      %v452 = vrot.slane %v450, 4
      %v453 = vor.u32 %v452, %v448
      %v454 = vrot.slane %v453, 4
      %v456 = vshll.u32 %v264, 16
      %v458 = vrot.slane %v456, 5
      %v459 = vsel %vm267, %v454, %v458
      %460 = vrot.lane.b32.xlu0 %v281, 4
      %v461 = vpop.permute.xlu0 %460
      %462 = vrot.lane.b32.xlu0 %v291, 4
      %v463 = vpop.permute.xlu0 %462
      %464 = vrot.lane.b32.xlu0 %v305, 4
      %v465 = vpop.permute.xlu0 %464
      %466 = vrot.lane.b32.xlu0 %v315, 4
      %v467 = vpop.permute.xlu0 %466
      %468 = vrot.lane.b32.xlu0 %v329, 4
      %v469 = vpop.permute.xlu0 %468
      %470 = vrot.lane.b32.xlu0 %v339, 4
      %v471 = vpop.permute.xlu0 %470
      %472 = vrot.lane.b32.xlu0 %v353, 4
      %v473 = vpop.permute.xlu0 %472
      %474 = vrot.lane.b32.xlu0 %v363, 4
      %v475 = vpop.permute.xlu0 %474
      %476 = vrot.lane.b32.xlu0 %v377, 4
      %v477 = vpop.permute.xlu0 %476
      %478 = vrot.lane.b32.xlu0 %v387, 4
      %v479 = vpop.permute.xlu0 %478
      %480 = vrot.lane.b32.xlu0 %v401, 4
      %v481 = vpop.permute.xlu0 %480
      %482 = vrot.lane.b32.xlu0 %v411, 4
      %v483 = vpop.permute.xlu0 %482
      %484 = vrot.lane.b32.xlu0 %v425, 4
      %v485 = vpop.permute.xlu0 %484
      %486 = vrot.lane.b32.xlu0 %v435, 4
      %v487 = vpop.permute.xlu0 %486
      %488 = vrot.lane.b32.xlu0 %v449, 4
      %v489 = vpop.permute.xlu0 %488
      %490 = vrot.lane.b32.xlu0 %v459, 4
      %v491 = vpop.permute.xlu0 %490
      %vm508 = vcmask 60448
      %509 = vst.msk [vmem:[#allocation2] sm:$0xf] %vm508, %v461
      %510 = vst.msk [vmem:[#allocation2 + $0x8] sm:$0xf] %vm508, %v463
      %511 = vst.msk [vmem:[#allocation2 + $0x10] sm:$0xf] %vm508, %v465
      %512 = vst.msk [vmem:[#allocation2 + $0x18] sm:$0xf] %vm508, %v467
      %513 = vst.msk [vmem:[#allocation2 + $0x20] sm:$0xf] %vm508, %v469
      %514 = vst.msk [vmem:[#allocation2 + $0x28] sm:$0xf] %vm508, %v471
      %515 = vst.msk [vmem:[#allocation2 + $0x30] sm:$0xf] %vm508, %v473
      %516 = vst.msk [vmem:[#allocation2 + $0x38] sm:$0xf] %vm508, %v475
      %517 = vst.msk [vmem:[#allocation2 + $0x40] sm:$0xf] %vm508, %v477
      %518 = vst.msk [vmem:[#allocation2 + $0x48] sm:$0xf] %vm508, %v479
      %519 = vst.msk [vmem:[#allocation2 + $0x50] sm:$0xf] %vm508, %v481
      %520 = vst.msk [vmem:[#allocation2 + $0x58] sm:$0xf] %vm508, %v483
      %521 = vst.msk [vmem:[#allocation2 + $0x60] sm:$0xf] %vm508, %v485
      %522 = vst.msk [vmem:[#allocation2 + $0x68] sm:$0xf] %vm508, %v487
      %523 = vst.msk [vmem:[#allocation2 + $0x70] sm:$0xf] %vm508, %v489
      %524 = vst.msk [vmem:[#allocation2 + $0x78] sm:$0xf] %vm508, %v491
      %v525 = vld [vmem:[%s197] sm:$0xe]
      %v526 = vld [vmem:[%s197 + $0x4] sm:$0xf]
      %v527 = vld [vmem:[%s197 + $0x8] sm:$0x1]
      %v528 = vld [vmem:[%s197 + $0xc] sm:$0xe]
      %v529 = vld [vmem:[%s197 + $0x10] sm:$0xf]
      %v530 = vld [vmem:[%s197 + $0x14] sm:$0x1]
      %v531 = vld [vmem:[%s197 + $0x18] sm:$0xe]
      %v532 = vld [vmem:[%s197 + $0x1c] sm:$0xf]
      %v533 = vld [vmem:[%s197 + $0x20] sm:$0x1]
      %v534 = vld [vmem:[%s197 + $0x24] sm:$0xe]
      %v535 = vld [vmem:[%s197 + $0x28] sm:$0xf]
      %v536 = vld [vmem:[%s197 + $0x2c] sm:$0x1]
      %v537 = vld [vmem:[%s197 + $0x30] sm:$0xe]
      %v538 = vld [vmem:[%s197 + $0x34] sm:$0xf]
      %v539 = vld [vmem:[%s197 + $0x38] sm:$0x1]
      %v540 = vld [vmem:[%s197 + $0x3c] sm:$0xe]
      %v541 = vld [vmem:[%s197 + $0x40] sm:$0xf]
      %v542 = vld [vmem:[%s197 + $0x44] sm:$0x1]
      %v543 = vld [vmem:[%s197 + $0x48] sm:$0xe]
      %v544 = vld [vmem:[%s197 + $0x4c] sm:$0xf]
      %v545 = vld [vmem:[%s197 + $0x50] sm:$0x1]
      %v546 = vld [vmem:[%s197 + $0x54] sm:$0xe]
      %v547 = vld [vmem:[%s197 + $0x58] sm:$0xf]
      %v548 = vld [vmem:[%s197 + $0x5c] sm:$0x1]
      %vm573 = vcmask 1042432
      %vm574 = vcmask 1046532
      %vm575 = vmor %vm573, %vm574
      %v576 = vrot.slane %v525, 5
      %v577 = vrot.slane %v576, 4
      %v578 = vrot.slane %v526, 5
      %v579 = vsel %vm575, %v577, %v578
      %v580 = vrot.slane %v578, 4
      %v581 = vrot.slane %v527, 5
      %v582 = vsel %vm575, %v580, %v581
      %v583 = vrot.slane %v528, 5
      %v584 = vrot.slane %v583, 4
      %v585 = vrot.slane %v529, 5
      %v586 = vsel %vm575, %v584, %v585
      %v587 = vrot.slane %v585, 4
      %v588 = vrot.slane %v530, 5
      %v589 = vsel %vm575, %v587, %v588
      %v590 = vrot.slane %v531, 5
      %v591 = vrot.slane %v590, 4
      %v592 = vrot.slane %v532, 5
      %v593 = vsel %vm575, %v591, %v592
      %v594 = vrot.slane %v592, 4
      %v595 = vrot.slane %v533, 5
      %v596 = vsel %vm575, %v594, %v595
      %v597 = vrot.slane %v534, 5
      %v598 = vrot.slane %v597, 4
      %v599 = vrot.slane %v535, 5
      %v600 = vsel %vm575, %v598, %v599
      %v601 = vrot.slane %v599, 4
      %v602 = vrot.slane %v536, 5
      %v603 = vsel %vm575, %v601, %v602
      %v604 = vrot.slane %v537, 5
      %v605 = vrot.slane %v604, 4
      %v606 = vrot.slane %v538, 5
      %v607 = vsel %vm575, %v605, %v606
      %v608 = vrot.slane %v606, 4
      %v609 = vrot.slane %v539, 5
      %v610 = vsel %vm575, %v608, %v609
      %v611 = vrot.slane %v540, 5
      %v612 = vrot.slane %v611, 4
      %v613 = vrot.slane %v541, 5
      %v614 = vsel %vm575, %v612, %v613
      %v615 = vrot.slane %v613, 4
      %v616 = vrot.slane %v542, 5
      %v617 = vsel %vm575, %v615, %v616
      %v618 = vrot.slane %v543, 5
      %v619 = vrot.slane %v618, 4
      %v620 = vrot.slane %v544, 5
      %v621 = vsel %vm575, %v619, %v620
      %v622 = vrot.slane %v620, 4
      %v623 = vrot.slane %v545, 5
      %v624 = vsel %vm575, %v622, %v623
      %v625 = vrot.slane %v546, 5
      %v626 = vrot.slane %v625, 4
      %v627 = vrot.slane %v547, 5
      %v628 = vsel %vm575, %v626, %v627
      %v629 = vrot.slane %v627, 4
      %v630 = vrot.slane %v548, 5
      %v631 = vsel %vm575, %v629, %v630
      %632 = vrot.lane.b32.xlu0 %v579, 8
      %v633 = vpop.permute.xlu0 %632
      %634 = vrot.lane.b32.xlu0 %v582, 8
      %v635 = vpop.permute.xlu0 %634
      %636 = vrot.lane.b32.xlu0 %v586, 8
      %v637 = vpop.permute.xlu0 %636
      %638 = vrot.lane.b32.xlu0 %v589, 8
      %v639 = vpop.permute.xlu0 %638
      %640 = vrot.lane.b32.xlu0 %v593, 8
      %v641 = vpop.permute.xlu0 %640
      %642 = vrot.lane.b32.xlu0 %v596, 8
      %v643 = vpop.permute.xlu0 %642
      %644 = vrot.lane.b32.xlu0 %v600, 8
      %v645 = vpop.permute.xlu0 %644
      %646 = vrot.lane.b32.xlu0 %v603, 8
      %v647 = vpop.permute.xlu0 %646
      %648 = vrot.lane.b32.xlu0 %v607, 8
      %v649 = vpop.permute.xlu0 %648
      %650 = vrot.lane.b32.xlu0 %v610, 8
      %v651 = vpop.permute.xlu0 %650
      %652 = vrot.lane.b32.xlu0 %v614, 8
      %v653 = vpop.permute.xlu0 %652
      %654 = vrot.lane.b32.xlu0 %v617, 8
      %v655 = vpop.permute.xlu0 %654
      %656 = vrot.lane.b32.xlu0 %v621, 8
      %v657 = vpop.permute.xlu0 %656
      %658 = vrot.lane.b32.xlu0 %v624, 8
      %v659 = vpop.permute.xlu0 %658
      %660 = vrot.lane.b32.xlu0 %v628, 8
      %v661 = vpop.permute.xlu0 %660
      %662 = vrot.lane.b32.xlu0 %v631, 8
      %v663 = vpop.permute.xlu0 %662
      %vm680 = vcmask 93248
      %681 = vst.msk [vmem:[#allocation2] sm:$0xf] %vm680, %v633
      %682 = vst.msk [vmem:[#allocation2 + $0x8] sm:$0xf] %vm680, %v635
      %683 = vst.msk [vmem:[#allocation2 + $0x10] sm:$0xf] %vm680, %v637
      %684 = vst.msk [vmem:[#allocation2 + $0x18] sm:$0xf] %vm680, %v639
      %685 = vst.msk [vmem:[#allocation2 + $0x20] sm:$0xf] %vm680, %v641
      %686 = vst.msk [vmem:[#allocation2 + $0x28] sm:$0xf] %vm680, %v643
      %687 = vst.msk [vmem:[#allocation2 + $0x30] sm:$0xf] %vm680, %v645
      %688 = vst.msk [vmem:[#allocation2 + $0x38] sm:$0xf] %vm680, %v647
      %689 = vst.msk [vmem:[#allocation2 + $0x40] sm:$0xf] %vm680, %v649
      %690 = vst.msk [vmem:[#allocation2 + $0x48] sm:$0xf] %vm680, %v651
      %691 = vst.msk [vmem:[#allocation2 + $0x50] sm:$0xf] %vm680, %v653
      %692 = vst.msk [vmem:[#allocation2 + $0x58] sm:$0xf] %vm680, %v655
      %693 = vst.msk [vmem:[#allocation2 + $0x60] sm:$0xf] %vm680, %v657
      %694 = vst.msk [vmem:[#allocation2 + $0x68] sm:$0xf] %vm680, %v659
      %695 = vst.msk [vmem:[#allocation2 + $0x70] sm:$0xf] %vm680, %v661
      %696 = vst.msk [vmem:[#allocation2 + $0x78] sm:$0xf] %vm680, %v663
      %v697 = vld [vmem:[%s197] sm:$0xe]
      %v698 = vld [vmem:[%s197 + $0x4] sm:$0xf]
      %v699 = vld [vmem:[%s197 + $0x8] sm:$0x3]
      %v700 = vld [vmem:[%s197 + $0xc] sm:$0xe]
      %v701 = vld [vmem:[%s197 + $0x10] sm:$0xf]
      %v702 = vld [vmem:[%s197 + $0x14] sm:$0x3]
      %v703 = vld [vmem:[%s197 + $0x18] sm:$0xe]
      %v704 = vld [vmem:[%s197 + $0x1c] sm:$0xf]
      %v705 = vld [vmem:[%s197 + $0x20] sm:$0x3]
      %v706 = vld [vmem:[%s197 + $0x24] sm:$0xe]
      %v707 = vld [vmem:[%s197 + $0x28] sm:$0xf]
      %v708 = vld [vmem:[%s197 + $0x2c] sm:$0x3]
      %v709 = vld [vmem:[%s197 + $0x30] sm:$0xe]
      %v710 = vld [vmem:[%s197 + $0x34] sm:$0xf]
      %v711 = vld [vmem:[%s197 + $0x38] sm:$0x3]
      %v712 = vld [vmem:[%s197 + $0x3c] sm:$0xe]
      %v713 = vld [vmem:[%s197 + $0x40] sm:$0xf]
      %v714 = vld [vmem:[%s197 + $0x44] sm:$0x3]
      %v715 = vld [vmem:[%s197 + $0x48] sm:$0xe]
      %v716 = vld [vmem:[%s197 + $0x4c] sm:$0xf]
      %v717 = vld [vmem:[%s197 + $0x50] sm:$0x3]
      %v718 = vld [vmem:[%s197 + $0x54] sm:$0xe]
      %v719 = vld [vmem:[%s197 + $0x58] sm:$0xf]
      %v720 = vld [vmem:[%s197 + $0x5c] sm:$0x3]
      %vm721 = vsmask.f32 2304
      %vm722 = vsmask.f32 6416
      %vm723 = vmor %vm721, %vm722
      %v725 = vshrl.u32 %v697, 16
      %v727 = vrot.slane %v725, 5
      %v728 = vshll.u32 %v697, 16
      %v730 = vrot.slane %v728, 6
      %v731 = vor.u32 %v727, %v730
      %v732 = vrot.slane %v731, 4
      %v734 = vshrl.u32 %v698, 16
      %v736 = vrot.slane %v734, 5
      %v737 = vshll.u32 %v698, 16
      %v739 = vrot.slane %v737, 6
      %v740 = vor.u32 %v736, %v739
      %v741 = vsel %vm723, %v732, %v740
      %v742 = vrot.slane %v740, 4
      %v744 = vshrl.u32 %v699, 16
      %v746 = vrot.slane %v744, 5
      %v747 = vshll.u32 %v699, 16
      %v749 = vrot.slane %v747, 6
      %v750 = vor.u32 %v746, %v749
      %v751 = vsel %vm723, %v742, %v750
      %v753 = vshrl.u32 %v700, 16
      %v755 = vrot.slane %v753, 5
      %v756 = vshll.u32 %v700, 16
      %v758 = vrot.slane %v756, 6
      %v759 = vor.u32 %v755, %v758
      %v760 = vrot.slane %v759, 4
      %v762 = vshrl.u32 %v701, 16
      %v764 = vrot.slane %v762, 5
      %v765 = vshll.u32 %v701, 16
      %v767 = vrot.slane %v765, 6
      %v768 = vor.u32 %v764, %v767
      %v769 = vsel %vm723, %v760, %v768
      %v770 = vrot.slane %v768, 4
      %v772 = vshrl.u32 %v702, 16
      %v774 = vrot.slane %v772, 5
      %v775 = vshll.u32 %v702, 16
      %v777 = vrot.slane %v775, 6
      %v778 = vor.u32 %v774, %v777
      %v779 = vsel %vm723, %v770, %v778
      %v781 = vshrl.u32 %v703, 16
      %v783 = vrot.slane %v781, 5
      %v784 = vshll.u32 %v703, 16
      %v786 = vrot.slane %v784, 6
      %v787 = vor.u32 %v783, %v786
      %v788 = vrot.slane %v787, 4
      %v790 = vshrl.u32 %v704, 16
      %v792 = vrot.slane %v790, 5
      %v793 = vshll.u32 %v704, 16
      %v795 = vrot.slane %v793, 6
      %v796 = vor.u32 %v792, %v795
      %v797 = vsel %vm723, %v788, %v796
      %v798 = vrot.slane %v796, 4
      %v800 = vshrl.u32 %v705, 16
      %v802 = vrot.slane %v800, 5
      %v803 = vshll.u32 %v705, 16
      %v805 = vrot.slane %v803, 6
      %v806 = vor.u32 %v802, %v805
      %v807 = vsel %vm723, %v798, %v806
      %v809 = vshrl.u32 %v706, 16
      %v811 = vrot.slane %v809, 5
      %v812 = vshll.u32 %v706, 16
      %v814 = vrot.slane %v812, 6
      %v815 = vor.u32 %v811, %v814
      %v816 = vrot.slane %v815, 4
      %v818 = vshrl.u32 %v707, 16
      %v820 = vrot.slane %v818, 5
      %v821 = vshll.u32 %v707, 16
      %v823 = vrot.slane %v821, 6
      %v824 = vor.u32 %v820, %v823
      %v825 = vsel %vm723, %v816, %v824
      %v826 = vrot.slane %v824, 4
      %v828 = vshrl.u32 %v708, 16
      %v830 = vrot.slane %v828, 5
      %v831 = vshll.u32 %v708, 16
      %v833 = vrot.slane %v831, 6
      %v834 = vor.u32 %v830, %v833
      %v835 = vsel %vm723, %v826, %v834
      %v837 = vshrl.u32 %v709, 16
      %v839 = vrot.slane %v837, 5
      %v840 = vshll.u32 %v709, 16
      %v842 = vrot.slane %v840, 6
      %v843 = vor.u32 %v839, %v842
      %v844 = vrot.slane %v843, 4
      %v846 = vshrl.u32 %v710, 16
      %v848 = vrot.slane %v846, 5
      %v849 = vshll.u32 %v710, 16
      %v851 = vrot.slane %v849, 6
      %v852 = vor.u32 %v848, %v851
      %v853 = vsel %vm723, %v844, %v852
      %v854 = vrot.slane %v852, 4
      %v856 = vshrl.u32 %v711, 16
      %v858 = vrot.slane %v856, 5
      %v859 = vshll.u32 %v711, 16
      %v861 = vrot.slane %v859, 6
      %v862 = vor.u32 %v858, %v861
      %v863 = vsel %vm723, %v854, %v862
      %v865 = vshrl.u32 %v712, 16
      %v867 = vrot.slane %v865, 5
      %v868 = vshll.u32 %v712, 16
      %v870 = vrot.slane %v868, 6
      %v871 = vor.u32 %v867, %v870
      %v872 = vrot.slane %v871, 4
      %v874 = vshrl.u32 %v713, 16
      %v876 = vrot.slane %v874, 5
      %v877 = vshll.u32 %v713, 16
      %v879 = vrot.slane %v877, 6
      %v880 = vor.u32 %v876, %v879
      %v881 = vsel %vm723, %v872, %v880
      %v882 = vrot.slane %v880, 4
      %v884 = vshrl.u32 %v714, 16
      %v886 = vrot.slane %v884, 5
      %v887 = vshll.u32 %v714, 16
      %v889 = vrot.slane %v887, 6
      %v890 = vor.u32 %v886, %v889
      %v891 = vsel %vm723, %v882, %v890
      %v893 = vshrl.u32 %v715, 16
      %v895 = vrot.slane %v893, 5
      %v896 = vshll.u32 %v715, 16
      %v898 = vrot.slane %v896, 6
      %v899 = vor.u32 %v895, %v898
      %v900 = vrot.slane %v899, 4
      %v902 = vshrl.u32 %v716, 16
      %v904 = vrot.slane %v902, 5
      %v905 = vshll.u32 %v716, 16
      %v907 = vrot.slane %v905, 6
      %v908 = vor.u32 %v904, %v907
      %v909 = vsel %vm723, %v900, %v908
      %v910 = vrot.slane %v908, 4
      %v912 = vshrl.u32 %v717, 16
      %v914 = vrot.slane %v912, 5
      %v915 = vshll.u32 %v717, 16
      %v917 = vrot.slane %v915, 6
      %v918 = vor.u32 %v914, %v917
      %v919 = vsel %vm723, %v910, %v918
      %v921 = vshrl.u32 %v718, 16
      %v923 = vrot.slane %v921, 5
      %v924 = vshll.u32 %v718, 16
      %v926 = vrot.slane %v924, 6
      %v927 = vor.u32 %v923, %v926
      %v928 = vrot.slane %v927, 4
      %v930 = vshrl.u32 %v719, 16
      %v932 = vrot.slane %v930, 5
      %v933 = vshll.u32 %v719, 16
      %v935 = vrot.slane %v933, 6
      %v936 = vor.u32 %v932, %v935
      %v937 = vsel %vm723, %v928, %v936
      %v938 = vrot.slane %v936, 4
      %v940 = vshrl.u32 %v720, 16
      %v942 = vrot.slane %v940, 5
      %v943 = vshll.u32 %v720, 16
      %v945 = vrot.slane %v943, 6
      %v946 = vor.u32 %v942, %v945
      %v947 = vsel %vm723, %v938, %v946
      %948 = vrot.lane.b32.xlu0 %v741, 12
      %v949 = vpop.permute.xlu0 %948
      %950 = vrot.lane.b32.xlu0 %v751, 12
      %v951 = vpop.permute.xlu0 %950
      %952 = vrot.lane.b32.xlu0 %v769, 12
      %v953 = vpop.permute.xlu0 %952
      %954 = vrot.lane.b32.xlu0 %v779, 12
      %v955 = vpop.permute.xlu0 %954
      %956 = vrot.lane.b32.xlu0 %v797, 12
      %v957 = vpop.permute.xlu0 %956
      %958 = vrot.lane.b32.xlu0 %v807, 12
      %v959 = vpop.permute.xlu0 %958
      %960 = vrot.lane.b32.xlu0 %v825, 12
      %v961 = vpop.permute.xlu0 %960
      %962 = vrot.lane.b32.xlu0 %v835, 12
      %v963 = vpop.permute.xlu0 %962
      %964 = vrot.lane.b32.xlu0 %v853, 12
      %v965 = vpop.permute.xlu0 %964
      %966 = vrot.lane.b32.xlu0 %v863, 12
      %v967 = vpop.permute.xlu0 %966
      %968 = vrot.lane.b32.xlu0 %v881, 12
      %v969 = vpop.permute.xlu0 %968
      %970 = vrot.lane.b32.xlu0 %v891, 12
      %v971 = vpop.permute.xlu0 %970
      %972 = vrot.lane.b32.xlu0 %v909, 12
      %v973 = vpop.permute.xlu0 %972
      %974 = vrot.lane.b32.xlu0 %v919, 12
      %v975 = vpop.permute.xlu0 %974
      %976 = vrot.lane.b32.xlu0 %v937, 12
      %v977 = vpop.permute.xlu0 %976
      %978 = vrot.lane.b32.xlu0 %v947, 12
      %v979 = vpop.permute.xlu0 %978
      %vm996 = vcmask 126048
      %997 = vst.msk [vmem:[#allocation2] sm:$0xf] %vm996, %v949
      %998 = vst.msk [vmem:[#allocation2 + $0x8] sm:$0xf] %vm996, %v951
      %999 = vst.msk [vmem:[#allocation2 + $0x10] sm:$0xf] %vm996, %v953
      %1000 = vst.msk [vmem:[#allocation2 + $0x18] sm:$0xf] %vm996, %v955
      %1001 = vst.msk [vmem:[#allocation2 + $0x20] sm:$0xf] %vm996, %v957
      %1002 = vst.msk [vmem:[#allocation2 + $0x28] sm:$0xf] %vm996, %v959
      %1003 = vst.msk [vmem:[#allocation2 + $0x30] sm:$0xf] %vm996, %v961
      %1004 = vst.msk [vmem:[#allocation2 + $0x38] sm:$0xf] %vm996, %v963
      %1005 = vst.msk [vmem:[#allocation2 + $0x40] sm:$0xf] %vm996, %v965
      %1006 = vst.msk [vmem:[#allocation2 + $0x48] sm:$0xf] %vm996, %v967
      %1007 = vst.msk [vmem:[#allocation2 + $0x50] sm:$0xf] %vm996, %v969
      %1008 = vst.msk [vmem:[#allocation2 + $0x58] sm:$0xf] %vm996, %v971
      %1009 = vst.msk [vmem:[#allocation2 + $0x60] sm:$0xf] %vm996, %v973
      %1010 = vst.msk [vmem:[#allocation2 + $0x68] sm:$0xf] %vm996, %v975
      %1011 = vst.msk [vmem:[#allocation2 + $0x70] sm:$0xf] %vm996, %v977
      %1012 = vst.msk [vmem:[#allocation2 + $0x78] sm:$0xf] %vm996, %v979
      %v1013 = vld [vmem:[%s197] sm:$0xc]
      %v1014 = vld [vmem:[%s197 + $0x4] sm:$0xf]
      %v1015 = vld [vmem:[%s197 + $0x8] sm:$0x3]
      %v1016 = vld [vmem:[%s197 + $0xc] sm:$0xc]
      %v1017 = vld [vmem:[%s197 + $0x10] sm:$0xf]
      %v1018 = vld [vmem:[%s197 + $0x14] sm:$0x3]
      %v1019 = vld [vmem:[%s197 + $0x18] sm:$0xc]
      %v1020 = vld [vmem:[%s197 + $0x1c] sm:$0xf]
      %v1021 = vld [vmem:[%s197 + $0x20] sm:$0x3]
      %v1022 = vld [vmem:[%s197 + $0x24] sm:$0xc]
      %v1023 = vld [vmem:[%s197 + $0x28] sm:$0xf]
      %v1024 = vld [vmem:[%s197 + $0x2c] sm:$0x3]
      %v1025 = vld [vmem:[%s197 + $0x30] sm:$0xc]
      %v1026 = vld [vmem:[%s197 + $0x34] sm:$0xf]
      %v1027 = vld [vmem:[%s197 + $0x38] sm:$0x3]
      %v1028 = vld [vmem:[%s197 + $0x3c] sm:$0xc]
      %v1029 = vld [vmem:[%s197 + $0x40] sm:$0xf]
      %v1030 = vld [vmem:[%s197 + $0x44] sm:$0x3]
      %v1031 = vld [vmem:[%s197 + $0x48] sm:$0xc]
      %v1032 = vld [vmem:[%s197 + $0x4c] sm:$0xf]
      %v1033 = vld [vmem:[%s197 + $0x50] sm:$0x3]
      %v1034 = vld [vmem:[%s197 + $0x54] sm:$0xc]
      %v1035 = vld [vmem:[%s197 + $0x58] sm:$0xf]
      %v1036 = vld [vmem:[%s197 + $0x5c] sm:$0x3]
      %vm1061 = vcmask 1041408
      %vm1062 = vcmask 1045508
      %vm1063 = vmor %vm1061, %vm1062
      %v1064 = vrot.slane %v1013, 6
      %v1065 = vrot.slane %v1064, 4
      %v1066 = vrot.slane %v1014, 6
      %v1067 = vsel %vm1063, %v1065, %v1066
      %v1068 = vrot.slane %v1066, 4
      %v1069 = vrot.slane %v1015, 6
      %v1070 = vsel %vm1063, %v1068, %v1069
      %v1071 = vrot.slane %v1016, 6
      %v1072 = vrot.slane %v1071, 4
      %v1073 = vrot.slane %v1017, 6
      %v1074 = vsel %vm1063, %v1072, %v1073
      %v1075 = vrot.slane %v1073, 4
      %v1076 = vrot.slane %v1018, 6
      %v1077 = vsel %vm1063, %v1075, %v1076
      %v1078 = vrot.slane %v1019, 6
      %v1079 = vrot.slane %v1078, 4
      %v1080 = vrot.slane %v1020, 6
      %v1081 = vsel %vm1063, %v1079, %v1080
      %v1082 = vrot.slane %v1080, 4
      %v1083 = vrot.slane %v1021, 6
      %v1084 = vsel %vm1063, %v1082, %v1083
      %v1085 = vrot.slane %v1022, 6
      %v1086 = vrot.slane %v1085, 4
      %v1087 = vrot.slane %v1023, 6
      %v1088 = vsel %vm1063, %v1086, %v1087
      %v1089 = vrot.slane %v1087, 4
      %v1090 = vrot.slane %v1024, 6
      %v1091 = vsel %vm1063, %v1089, %v1090
      %v1092 = vrot.slane %v1025, 6
      %v1093 = vrot.slane %v1092, 4
      %v1094 = vrot.slane %v1026, 6
      %v1095 = vsel %vm1063, %v1093, %v1094
      %v1096 = vrot.slane %v1094, 4
      %v1097 = vrot.slane %v1027, 6
      %v1098 = vsel %vm1063, %v1096, %v1097
      %v1099 = vrot.slane %v1028, 6
      %v1100 = vrot.slane %v1099, 4
      %v1101 = vrot.slane %v1029, 6
      %v1102 = vsel %vm1063, %v1100, %v1101
      %v1103 = vrot.slane %v1101, 4
      %v1104 = vrot.slane %v1030, 6
      %v1105 = vsel %vm1063, %v1103, %v1104
      %v1106 = vrot.slane %v1031, 6
      %v1107 = vrot.slane %v1106, 4
      %v1108 = vrot.slane %v1032, 6
      %v1109 = vsel %vm1063, %v1107, %v1108
      %v1110 = vrot.slane %v1108, 4
      %v1111 = vrot.slane %v1033, 6
      %v1112 = vsel %vm1063, %v1110, %v1111
      %v1113 = vrot.slane %v1034, 6
      %v1114 = vrot.slane %v1113, 4
      %v1115 = vrot.slane %v1035, 6
      %v1116 = vsel %vm1063, %v1114, %v1115
      %v1117 = vrot.slane %v1115, 4
      %v1118 = vrot.slane %v1036, 6
      %v1119 = vsel %vm1063, %v1117, %v1118
      %1120 = vrot.lane.b32.xlu0 %v1067, 16
      %v1121 = vpop.permute.xlu0 %1120
      %1122 = vrot.lane.b32.xlu0 %v1070, 16
      %v1123 = vpop.permute.xlu0 %1122
      %1124 = vrot.lane.b32.xlu0 %v1074, 16
      %v1125 = vpop.permute.xlu0 %1124
      %1126 = vrot.lane.b32.xlu0 %v1077, 16
      %v1127 = vpop.permute.xlu0 %1126
      %1128 = vrot.lane.b32.xlu0 %v1081, 16
      %v1129 = vpop.permute.xlu0 %1128
      %1130 = vrot.lane.b32.xlu0 %v1084, 16
      %v1131 = vpop.permute.xlu0 %1130
      %1132 = vrot.lane.b32.xlu0 %v1088, 16
      %v1133 = vpop.permute.xlu0 %1132
      %1134 = vrot.lane.b32.xlu0 %v1091, 16
      %v1135 = vpop.permute.xlu0 %1134
      %1136 = vrot.lane.b32.xlu0 %v1095, 16
      %v1137 = vpop.permute.xlu0 %1136
      %1138 = vrot.lane.b32.xlu0 %v1098, 16
      %v1139 = vpop.permute.xlu0 %1138
      %1140 = vrot.lane.b32.xlu0 %v1102, 16
      %v1141 = vpop.permute.xlu0 %1140
      %1142 = vrot.lane.b32.xlu0 %v1105, 16
      %v1143 = vpop.permute.xlu0 %1142
      %1144 = vrot.lane.b32.xlu0 %v1109, 16
      %v1145 = vpop.permute.xlu0 %1144
      %1146 = vrot.lane.b32.xlu0 %v1112, 16
      %v1147 = vpop.permute.xlu0 %1146
      %1148 = vrot.lane.b32.xlu0 %v1116, 16
      %v1149 = vpop.permute.xlu0 %1148
      %1150 = vrot.lane.b32.xlu0 %v1119, 16
      %v1151 = vpop.permute.xlu0 %1150
      %vm1168 = vcmask 158848
      %1169 = vst.msk [vmem:[#allocation2] sm:$0xf] %vm1168, %v1121
      %1170 = vst.msk [vmem:[#allocation2 + $0x8] sm:$0xf] %vm1168, %v1123
      %1171 = vst.msk [vmem:[#allocation2 + $0x10] sm:$0xf] %vm1168, %v1125
      %1172 = vst.msk [vmem:[#allocation2 + $0x18] sm:$0xf] %vm1168, %v1127
      %1173 = vst.msk [vmem:[#allocation2 + $0x20] sm:$0xf] %vm1168, %v1129
      %1174 = vst.msk [vmem:[#allocation2 + $0x28] sm:$0xf] %vm1168, %v1131
      %1175 = vst.msk [vmem:[#allocation2 + $0x30] sm:$0xf] %vm1168, %v1133
      %1176 = vst.msk [vmem:[#allocation2 + $0x38] sm:$0xf] %vm1168, %v1135
      %1177 = vst.msk [vmem:[#allocation2 + $0x40] sm:$0xf] %vm1168, %v1137
      %1178 = vst.msk [vmem:[#allocation2 + $0x48] sm:$0xf] %vm1168, %v1139
      %1179 = vst.msk [vmem:[#allocation2 + $0x50] sm:$0xf] %vm1168, %v1141
      %1180 = vst.msk [vmem:[#allocation2 + $0x58] sm:$0xf] %vm1168, %v1143
      %1181 = vst.msk [vmem:[#allocation2 + $0x60] sm:$0xf] %vm1168, %v1145
      %1182 = vst.msk [vmem:[#allocation2 + $0x68] sm:$0xf] %vm1168, %v1147
      %1183 = vst.msk [vmem:[#allocation2 + $0x70] sm:$0xf] %vm1168, %v1149
      %1184 = vst.msk [vmem:[#allocation2 + $0x78] sm:$0xf] %vm1168, %v1151
      %v1185 = vld [vmem:[%s197] sm:$0xc]
      %v1186 = vld [vmem:[%s197 + $0x4] sm:$0xf]
      %v1187 = vld [vmem:[%s197 + $0x8] sm:$0x7]
      %v1188 = vld [vmem:[%s197 + $0xc] sm:$0xc]
      %v1189 = vld [vmem:[%s197 + $0x10] sm:$0xf]
      %v1190 = vld [vmem:[%s197 + $0x14] sm:$0x7]
      %v1191 = vld [vmem:[%s197 + $0x18] sm:$0xc]
      %v1192 = vld [vmem:[%s197 + $0x1c] sm:$0xf]
      %v1193 = vld [vmem:[%s197 + $0x20] sm:$0x7]
      %v1194 = vld [vmem:[%s197 + $0x24] sm:$0xc]
      %v1195 = vld [vmem:[%s197 + $0x28] sm:$0xf]
      %v1196 = vld [vmem:[%s197 + $0x2c] sm:$0x7]
      %v1197 = vld [vmem:[%s197 + $0x30] sm:$0xc]
      %v1198 = vld [vmem:[%s197 + $0x34] sm:$0xf]
      %v1199 = vld [vmem:[%s197 + $0x38] sm:$0x7]
      %v1200 = vld [vmem:[%s197 + $0x3c] sm:$0xc]
      %v1201 = vld [vmem:[%s197 + $0x40] sm:$0xf]
      %v1202 = vld [vmem:[%s197 + $0x44] sm:$0x7]
      %v1203 = vld [vmem:[%s197 + $0x48] sm:$0xc]
      %v1204 = vld [vmem:[%s197 + $0x4c] sm:$0xf]
      %v1205 = vld [vmem:[%s197 + $0x50] sm:$0x7]
      %v1206 = vld [vmem:[%s197 + $0x54] sm:$0xc]
      %v1207 = vld [vmem:[%s197 + $0x58] sm:$0xf]
      %v1208 = vld [vmem:[%s197 + $0x5c] sm:$0x7]
      %vm1209 = vsmask.f32 1280
      %vm1210 = vsmask.f32 5392
      %vm1211 = vmor %vm1209, %vm1210
      %v1213 = vshrl.u32 %v1185, 16
      %v1215 = vrot.slane %v1213, 6
      %v1216 = vshll.u32 %v1185, 16
      %v1218 = vrot.slane %v1216, 7
      %v1219 = vor.u32 %v1215, %v1218
      %v1220 = vrot.slane %v1219, 4
      %v1222 = vshrl.u32 %v1186, 16
      %v1224 = vrot.slane %v1222, 6
      %v1225 = vshll.u32 %v1186, 16
      %v1227 = vrot.slane %v1225, 7
      %v1228 = vor.u32 %v1224, %v1227
      %v1229 = vsel %vm1211, %v1220, %v1228
      %v1230 = vrot.slane %v1228, 4
      %v1232 = vshrl.u32 %v1187, 16
      %v1234 = vrot.slane %v1232, 6
      %v1235 = vshll.u32 %v1187, 16
      %v1237 = vrot.slane %v1235, 7
      %v1238 = vor.u32 %v1234, %v1237
      %v1239 = vsel %vm1211, %v1230, %v1238
      %v1241 = vshrl.u32 %v1188, 16
      %v1243 = vrot.slane %v1241, 6
      %v1244 = vshll.u32 %v1188, 16
      %v1246 = vrot.slane %v1244, 7
      %v1247 = vor.u32 %v1243, %v1246
      %v1248 = vrot.slane %v1247, 4
      %v1250 = vshrl.u32 %v1189, 16
      %v1252 = vrot.slane %v1250, 6
      %v1253 = vshll.u32 %v1189, 16
      %v1255 = vrot.slane %v1253, 7
      %v1256 = vor.u32 %v1252, %v1255
      %v1257 = vsel %vm1211, %v1248, %v1256
      %v1258 = vrot.slane %v1256, 4
      %v1260 = vshrl.u32 %v1190, 16
      %v1262 = vrot.slane %v1260, 6
      %v1263 = vshll.u32 %v1190, 16
      %v1265 = vrot.slane %v1263, 7
      %v1266 = vor.u32 %v1262, %v1265
      %v1267 = vsel %vm1211, %v1258, %v1266
      %v1269 = vshrl.u32 %v1191, 16
      %v1271 = vrot.slane %v1269, 6
      %v1272 = vshll.u32 %v1191, 16
      %v1274 = vrot.slane %v1272, 7
      %v1275 = vor.u32 %v1271, %v1274
      %v1276 = vrot.slane %v1275, 4
      %v1278 = vshrl.u32 %v1192, 16
      %v1280 = vrot.slane %v1278, 6
      %v1281 = vshll.u32 %v1192, 16
      %v1283 = vrot.slane %v1281, 7
      %v1284 = vor.u32 %v1280, %v1283
      %v1285 = vsel %vm1211, %v1276, %v1284
      %v1286 = vrot.slane %v1284, 4
      %v1288 = vshrl.u32 %v1193, 16
      %v1290 = vrot.slane %v1288, 6
      %v1291 = vshll.u32 %v1193, 16
      %v1293 = vrot.slane %v1291, 7
      %v1294 = vor.u32 %v1290, %v1293
      %v1295 = vsel %vm1211, %v1286, %v1294
      %v1297 = vshrl.u32 %v1194, 16
      %v1299 = vrot.slane %v1297, 6
      %v1300 = vshll.u32 %v1194, 16
      %v1302 = vrot.slane %v1300, 7
      %v1303 = vor.u32 %v1299, %v1302
      %v1304 = vrot.slane %v1303, 4
      %v1306 = vshrl.u32 %v1195, 16
      %v1308 = vrot.slane %v1306, 6
      %v1309 = vshll.u32 %v1195, 16
      %v1311 = vrot.slane %v1309, 7
      %v1312 = vor.u32 %v1308, %v1311
      %v1313 = vsel %vm1211, %v1304, %v1312
      %v1314 = vrot.slane %v1312, 4
      %v1316 = vshrl.u32 %v1196, 16
      %v1318 = vrot.slane %v1316, 6
      %v1319 = vshll.u32 %v1196, 16
      %v1321 = vrot.slane %v1319, 7
      %v1322 = vor.u32 %v1318, %v1321
      %v1323 = vsel %vm1211, %v1314, %v1322
      %v1325 = vshrl.u32 %v1197, 16
      %v1327 = vrot.slane %v1325, 6
      %v1328 = vshll.u32 %v1197, 16
      %v1330 = vrot.slane %v1328, 7
      %v1331 = vor.u32 %v1327, %v1330
      %v1332 = vrot.slane %v1331, 4
      %v1334 = vshrl.u32 %v1198, 16
      %v1336 = vrot.slane %v1334, 6
      %v1337 = vshll.u32 %v1198, 16
      %v1339 = vrot.slane %v1337, 7
      %v1340 = vor.u32 %v1336, %v1339
      %v1341 = vsel %vm1211, %v1332, %v1340
      %v1342 = vrot.slane %v1340, 4
      %v1344 = vshrl.u32 %v1199, 16
      %v1346 = vrot.slane %v1344, 6
      %v1347 = vshll.u32 %v1199, 16
      %v1349 = vrot.slane %v1347, 7
      %v1350 = vor.u32 %v1346, %v1349
      %v1351 = vsel %vm1211, %v1342, %v1350
      %v1353 = vshrl.u32 %v1200, 16
      %v1355 = vrot.slane %v1353, 6
      %v1356 = vshll.u32 %v1200, 16
      %v1358 = vrot.slane %v1356, 7
      %v1359 = vor.u32 %v1355, %v1358
      %v1360 = vrot.slane %v1359, 4
      %v1362 = vshrl.u32 %v1201, 16
      %v1364 = vrot.slane %v1362, 6
      %v1365 = vshll.u32 %v1201, 16
      %v1367 = vrot.slane %v1365, 7
      %v1368 = vor.u32 %v1364, %v1367
      %v1369 = vsel %vm1211, %v1360, %v1368
      %v1370 = vrot.slane %v1368, 4
      %v1372 = vshrl.u32 %v1202, 16
      %v1374 = vrot.slane %v1372, 6
      %v1375 = vshll.u32 %v1202, 16
      %v1377 = vrot.slane %v1375, 7
      %v1378 = vor.u32 %v1374, %v1377
      %v1379 = vsel %vm1211, %v1370, %v1378
      %v1381 = vshrl.u32 %v1203, 16
      %v1383 = vrot.slane %v1381, 6
      %v1384 = vshll.u32 %v1203, 16
      %v1386 = vrot.slane %v1384, 7
      %v1387 = vor.u32 %v1383, %v1386
      %v1388 = vrot.slane %v1387, 4
      %v1390 = vshrl.u32 %v1204, 16
      %v1392 = vrot.slane %v1390, 6
      %v1393 = vshll.u32 %v1204, 16
      %v1395 = vrot.slane %v1393, 7
      %v1396 = vor.u32 %v1392, %v1395
      %v1397 = vsel %vm1211, %v1388, %v1396
      %v1398 = vrot.slane %v1396, 4
      %v1400 = vshrl.u32 %v1205, 16
      %v1402 = vrot.slane %v1400, 6
      %v1403 = vshll.u32 %v1205, 16
      %v1405 = vrot.slane %v1403, 7
      %v1406 = vor.u32 %v1402, %v1405
      %v1407 = vsel %vm1211, %v1398, %v1406
      %v1409 = vshrl.u32 %v1206, 16
      %v1411 = vrot.slane %v1409, 6
      %v1412 = vshll.u32 %v1206, 16
      %v1414 = vrot.slane %v1412, 7
      %v1415 = vor.u32 %v1411, %v1414
      %v1416 = vrot.slane %v1415, 4
      %v1418 = vshrl.u32 %v1207, 16
      %v1420 = vrot.slane %v1418, 6
      %v1421 = vshll.u32 %v1207, 16
      %v1423 = vrot.slane %v1421, 7
      %v1424 = vor.u32 %v1420, %v1423
      %v1425 = vsel %vm1211, %v1416, %v1424
      %v1426 = vrot.slane %v1424, 4
      %v1428 = vshrl.u32 %v1208, 16
      %v1430 = vrot.slane %v1428, 6
      %v1431 = vshll.u32 %v1208, 16
      %v1433 = vrot.slane %v1431, 7
      %v1434 = vor.u32 %v1430, %v1433
      %v1435 = vsel %vm1211, %v1426, %v1434
      %1436 = vrot.lane.b32.xlu0 %v1229, 20
      %v1437 = vpop.permute.xlu0 %1436
      %1438 = vrot.lane.b32.xlu0 %v1239, 20
      %v1439 = vpop.permute.xlu0 %1438
      %1440 = vrot.lane.b32.xlu0 %v1257, 20
      %v1441 = vpop.permute.xlu0 %1440
      %1442 = vrot.lane.b32.xlu0 %v1267, 20
      %v1443 = vpop.permute.xlu0 %1442
      %1444 = vrot.lane.b32.xlu0 %v1285, 20
      %v1445 = vpop.permute.xlu0 %1444
      %1446 = vrot.lane.b32.xlu0 %v1295, 20
      %v1447 = vpop.permute.xlu0 %1446
      %1448 = vrot.lane.b32.xlu0 %v1313, 20
      %v1449 = vpop.permute.xlu0 %1448
      %1450 = vrot.lane.b32.xlu0 %v1323, 20
      %v1451 = vpop.permute.xlu0 %1450
      %1452 = vrot.lane.b32.xlu0 %v1341, 20
      %v1453 = vpop.permute.xlu0 %1452
      %1454 = vrot.lane.b32.xlu0 %v1351, 20
      %v1455 = vpop.permute.xlu0 %1454
      %1456 = vrot.lane.b32.xlu0 %v1369, 20
      %v1457 = vpop.permute.xlu0 %1456
      %1458 = vrot.lane.b32.xlu0 %v1379, 20
      %v1459 = vpop.permute.xlu0 %1458
      %1460 = vrot.lane.b32.xlu0 %v1397, 20
      %v1461 = vpop.permute.xlu0 %1460
      %1462 = vrot.lane.b32.xlu0 %v1407, 20
      %v1463 = vpop.permute.xlu0 %1462
      %1464 = vrot.lane.b32.xlu0 %v1425, 20
      %v1465 = vpop.permute.xlu0 %1464
      %1466 = vrot.lane.b32.xlu0 %v1435, 20
      %v1467 = vpop.permute.xlu0 %1466
      %vm1484 = vcmask 191648
      %1485 = vst.msk [vmem:[#allocation2] sm:$0xf] %vm1484, %v1437
      %1486 = vst.msk [vmem:[#allocation2 + $0x8] sm:$0xf] %vm1484, %v1439
      %1487 = vst.msk [vmem:[#allocation2 + $0x10] sm:$0xf] %vm1484, %v1441
      %1488 = vst.msk [vmem:[#allocation2 + $0x18] sm:$0xf] %vm1484, %v1443
      %1489 = vst.msk [vmem:[#allocation2 + $0x20] sm:$0xf] %vm1484, %v1445
      %1490 = vst.msk [vmem:[#allocation2 + $0x28] sm:$0xf] %vm1484, %v1447
      %1491 = vst.msk [vmem:[#allocation2 + $0x30] sm:$0xf] %vm1484, %v1449
      %1492 = vst.msk [vmem:[#allocation2 + $0x38] sm:$0xf] %vm1484, %v1451
      %1493 = vst.msk [vmem:[#allocation2 + $0x40] sm:$0xf] %vm1484, %v1453
      %1494 = vst.msk [vmem:[#allocation2 + $0x48] sm:$0xf] %vm1484, %v1455
      %1495 = vst.msk [vmem:[#allocation2 + $0x50] sm:$0xf] %vm1484, %v1457
      %1496 = vst.msk [vmem:[#allocation2 + $0x58] sm:$0xf] %vm1484, %v1459
      %1497 = vst.msk [vmem:[#allocation2 + $0x60] sm:$0xf] %vm1484, %v1461
      %1498 = vst.msk [vmem:[#allocation2 + $0x68] sm:$0xf] %vm1484, %v1463
      %1499 = vst.msk [vmem:[#allocation2 + $0x70] sm:$0xf] %vm1484, %v1465
      %1500 = vst.msk [vmem:[#allocation2 + $0x78] sm:$0xf] %vm1484, %v1467
      %v1501 = vld [vmem:[%s197] sm:$0x8]
      %v1502 = vld [vmem:[%s197 + $0x4] sm:$0xf]
      %v1503 = vld [vmem:[%s197 + $0x8] sm:$0x7]
      %v1504 = vld [vmem:[%s197 + $0xc] sm:$0x8]
      %v1505 = vld [vmem:[%s197 + $0x10] sm:$0xf]
      %v1506 = vld [vmem:[%s197 + $0x14] sm:$0x7]
      %v1507 = vld [vmem:[%s197 + $0x18] sm:$0x8]
      %v1508 = vld [vmem:[%s197 + $0x1c] sm:$0xf]
      %v1509 = vld [vmem:[%s197 + $0x20] sm:$0x7]
      %v1510 = vld [vmem:[%s197 + $0x24] sm:$0x8]
      %v1511 = vld [vmem:[%s197 + $0x28] sm:$0xf]
      %v1512 = vld [vmem:[%s197 + $0x2c] sm:$0x7]
      %v1513 = vld [vmem:[%s197 + $0x30] sm:$0x8]
      %v1514 = vld [vmem:[%s197 + $0x34] sm:$0xf]
      %v1515 = vld [vmem:[%s197 + $0x38] sm:$0x7]
      %v1516 = vld [vmem:[%s197 + $0x3c] sm:$0x8]
      %v1517 = vld [vmem:[%s197 + $0x40] sm:$0xf]
      %v1518 = vld [vmem:[%s197 + $0x44] sm:$0x7]
      %v1519 = vld [vmem:[%s197 + $0x48] sm:$0x8]
      %v1520 = vld [vmem:[%s197 + $0x4c] sm:$0xf]
      %v1521 = vld [vmem:[%s197 + $0x50] sm:$0x7]
      %v1522 = vld [vmem:[%s197 + $0x54] sm:$0x8]
      %v1523 = vld [vmem:[%s197 + $0x58] sm:$0xf]
      %v1524 = vld [vmem:[%s197 + $0x5c] sm:$0x7]
      %vm1549 = vcmask 1040384
      %vm1550 = vcmask 1044484
      %vm1551 = vmor %vm1549, %vm1550
      %v1552 = vrot.slane %v1501, 7
      %v1553 = vrot.slane %v1552, 4
      %v1554 = vrot.slane %v1502, 7
      %v1555 = vsel %vm1551, %v1553, %v1554
      %v1556 = vrot.slane %v1554, 4
      %v1557 = vrot.slane %v1503, 7
      %v1558 = vsel %vm1551, %v1556, %v1557
      %v1559 = vrot.slane %v1504, 7
      %v1560 = vrot.slane %v1559, 4
      %v1561 = vrot.slane %v1505, 7
      %v1562 = vsel %vm1551, %v1560, %v1561
      %v1563 = vrot.slane %v1561, 4
      %v1564 = vrot.slane %v1506, 7
      %v1565 = vsel %vm1551, %v1563, %v1564
      %v1566 = vrot.slane %v1507, 7
      %v1567 = vrot.slane %v1566, 4
      %v1568 = vrot.slane %v1508, 7
      %v1569 = vsel %vm1551, %v1567, %v1568
      %v1570 = vrot.slane %v1568, 4
      %v1571 = vrot.slane %v1509, 7
      %v1572 = vsel %vm1551, %v1570, %v1571
      %v1573 = vrot.slane %v1510, 7
      %v1574 = vrot.slane %v1573, 4
      %v1575 = vrot.slane %v1511, 7
      %v1576 = vsel %vm1551, %v1574, %v1575
      %v1577 = vrot.slane %v1575, 4
      %v1578 = vrot.slane %v1512, 7
      %v1579 = vsel %vm1551, %v1577, %v1578
      %v1580 = vrot.slane %v1513, 7
      %v1581 = vrot.slane %v1580, 4
      %v1582 = vrot.slane %v1514, 7
      %v1583 = vsel %vm1551, %v1581, %v1582
      %v1584 = vrot.slane %v1582, 4
      %v1585 = vrot.slane %v1515, 7
      %v1586 = vsel %vm1551, %v1584, %v1585
      %v1587 = vrot.slane %v1516, 7
      %v1588 = vrot.slane %v1587, 4
      %v1589 = vrot.slane %v1517, 7
      %v1590 = vsel %vm1551, %v1588, %v1589
      %v1591 = vrot.slane %v1589, 4
      %v1592 = vrot.slane %v1518, 7
      %v1593 = vsel %vm1551, %v1591, %v1592
      %v1594 = vrot.slane %v1519, 7
      %v1595 = vrot.slane %v1594, 4
      %v1596 = vrot.slane %v1520, 7
      %v1597 = vsel %vm1551, %v1595, %v1596
      %v1598 = vrot.slane %v1596, 4
      %v1599 = vrot.slane %v1521, 7
      %v1600 = vsel %vm1551, %v1598, %v1599
      %v1601 = vrot.slane %v1522, 7
      %v1602 = vrot.slane %v1601, 4
      %v1603 = vrot.slane %v1523, 7
      %v1604 = vsel %vm1551, %v1602, %v1603
      %v1605 = vrot.slane %v1603, 4
      %v1606 = vrot.slane %v1524, 7
      %v1607 = vsel %vm1551, %v1605, %v1606
      %1608 = vrot.lane.b32.xlu0 %v1555, 24
      %v1609 = vpop.permute.xlu0 %1608
      %1610 = vrot.lane.b32.xlu0 %v1558, 24
      %v1611 = vpop.permute.xlu0 %1610
      %1612 = vrot.lane.b32.xlu0 %v1562, 24
      %v1613 = vpop.permute.xlu0 %1612
      %1614 = vrot.lane.b32.xlu0 %v1565, 24
      %v1615 = vpop.permute.xlu0 %1614
      %1616 = vrot.lane.b32.xlu0 %v1569, 24
      %v1617 = vpop.permute.xlu0 %1616
      %1618 = vrot.lane.b32.xlu0 %v1572, 24
      %v1619 = vpop.permute.xlu0 %1618
      %1620 = vrot.lane.b32.xlu0 %v1576, 24
      %v1621 = vpop.permute.xlu0 %1620
      %1622 = vrot.lane.b32.xlu0 %v1579, 24
      %v1623 = vpop.permute.xlu0 %1622
      %1624 = vrot.lane.b32.xlu0 %v1583, 24
      %v1625 = vpop.permute.xlu0 %1624
      %1626 = vrot.lane.b32.xlu0 %v1586, 24
      %v1627 = vpop.permute.xlu0 %1626
      %1628 = vrot.lane.b32.xlu0 %v1590, 24
      %v1629 = vpop.permute.xlu0 %1628
      %1630 = vrot.lane.b32.xlu0 %v1593, 24
      %v1631 = vpop.permute.xlu0 %1630
      %1632 = vrot.lane.b32.xlu0 %v1597, 24
      %v1633 = vpop.permute.xlu0 %1632
      %1634 = vrot.lane.b32.xlu0 %v1600, 24
      %v1635 = vpop.permute.xlu0 %1634
      %1636 = vrot.lane.b32.xlu0 %v1604, 24
      %v1637 = vpop.permute.xlu0 %1636
      %1638 = vrot.lane.b32.xlu0 %v1607, 24
      %v1639 = vpop.permute.xlu0 %1638
      %vm1656 = vcmask 224448
      %1657 = vst.msk [vmem:[#allocation2] sm:$0xf] %vm1656, %v1609
      %1658 = vst.msk [vmem:[#allocation2 + $0x8] sm:$0xf] %vm1656, %v1611
      %1659 = vst.msk [vmem:[#allocation2 + $0x10] sm:$0xf] %vm1656, %v1613
      %1660 = vst.msk [vmem:[#allocation2 + $0x18] sm:$0xf] %vm1656, %v1615
      %1661 = vst.msk [vmem:[#allocation2 + $0x20] sm:$0xf] %vm1656, %v1617
      %1662 = vst.msk [vmem:[#allocation2 + $0x28] sm:$0xf] %vm1656, %v1619
      %1663 = vst.msk [vmem:[#allocation2 + $0x30] sm:$0xf] %vm1656, %v1621
      %1664 = vst.msk [vmem:[#allocation2 + $0x38] sm:$0xf] %vm1656, %v1623
      %1665 = vst.msk [vmem:[#allocation2 + $0x40] sm:$0xf] %vm1656, %v1625
      %1666 = vst.msk [vmem:[#allocation2 + $0x48] sm:$0xf] %vm1656, %v1627
      %1667 = vst.msk [vmem:[#allocation2 + $0x50] sm:$0xf] %vm1656, %v1629
      %1668 = vst.msk [vmem:[#allocation2 + $0x58] sm:$0xf] %vm1656, %v1631
      %1669 = vst.msk [vmem:[#allocation2 + $0x60] sm:$0xf] %vm1656, %v1633
      %1670 = vst.msk [vmem:[#allocation2 + $0x68] sm:$0xf] %vm1656, %v1635
      %1671 = vst.msk [vmem:[#allocation2 + $0x70] sm:$0xf] %vm1656, %v1637
      %1672 = vst.msk [vmem:[#allocation2 + $0x78] sm:$0xf] %vm1656, %v1639
      %s1673 = scalar_lea.vmem %s197, 12
      %v1674 = vld [vmem:[%s1673] sm:$0xf]
      %v1675 = vld [vmem:[%s1673 + $0x4] sm:$0xf]
      %v1676 = vld [vmem:[%s1673 + $0xc] sm:$0xf]
      %v1677 = vld [vmem:[%s1673 + $0x10] sm:$0xf]
      %v1678 = vld [vmem:[%s1673 + $0x18] sm:$0xf]
      %v1679 = vld [vmem:[%s1673 + $0x1c] sm:$0xf]
      %v1680 = vld [vmem:[%s1673 + $0x24] sm:$0xf]
      %v1681 = vld [vmem:[%s1673 + $0x28] sm:$0xf]
      %v1682 = vld [vmem:[%s1673 + $0x30] sm:$0xf]
      %v1683 = vld [vmem:[%s1673 + $0x34] sm:$0xf]
      %v1684 = vld [vmem:[%s1673 + $0x3c] sm:$0xf]
      %v1685 = vld [vmem:[%s1673 + $0x40] sm:$0xf]
      %v1686 = vld [vmem:[%s1673 + $0x48] sm:$0xf]
      %v1687 = vld [vmem:[%s1673 + $0x4c] sm:$0xf]
      %v1688 = vld [vmem:[%s1673 + $0x54] sm:$0xf]
      %v1689 = vld [vmem:[%s1673 + $0x58] sm:$0xf]
      %1706 = vrot.lane.b32.xlu0 %v1674, 28
      %v1707 = vpop.permute.xlu0 %1706
      %1708 = vrot.lane.b32.xlu0 %v1675, 28
      %v1709 = vpop.permute.xlu0 %1708
      %1710 = vrot.lane.b32.xlu0 %v1676, 28
      %v1711 = vpop.permute.xlu0 %1710
      %1712 = vrot.lane.b32.xlu0 %v1677, 28
      %v1713 = vpop.permute.xlu0 %1712
      %1714 = vrot.lane.b32.xlu0 %v1678, 28
      %v1715 = vpop.permute.xlu0 %1714
      %1716 = vrot.lane.b32.xlu0 %v1679, 28
      %v1717 = vpop.permute.xlu0 %1716
      %1718 = vrot.lane.b32.xlu0 %v1680, 28
      %v1719 = vpop.permute.xlu0 %1718
      %1720 = vrot.lane.b32.xlu0 %v1681, 28
      %v1721 = vpop.permute.xlu0 %1720
      %1722 = vrot.lane.b32.xlu0 %v1682, 28
      %v1723 = vpop.permute.xlu0 %1722
      %1724 = vrot.lane.b32.xlu0 %v1683, 28
      %v1725 = vpop.permute.xlu0 %1724
      %1726 = vrot.lane.b32.xlu0 %v1684, 28
      %v1727 = vpop.permute.xlu0 %1726
      %1728 = vrot.lane.b32.xlu0 %v1685, 28
      %v1729 = vpop.permute.xlu0 %1728
      %1730 = vrot.lane.b32.xlu0 %v1686, 28
      %v1731 = vpop.permute.xlu0 %1730
      %1732 = vrot.lane.b32.xlu0 %v1687, 28
      %v1733 = vpop.permute.xlu0 %1732
      %1734 = vrot.lane.b32.xlu0 %v1688, 28
      %v1735 = vpop.permute.xlu0 %1734
      %1736 = vrot.lane.b32.xlu0 %v1689, 28
      %v1737 = vpop.permute.xlu0 %1736
      %vm1754 = vcmask 257248
      %1755 = vst.msk [vmem:[#allocation2] sm:$0xf] %vm1754, %v1707
      %1756 = vst.msk [vmem:[#allocation2 + $0x8] sm:$0xf] %vm1754, %v1709
      %1757 = vst.msk [vmem:[#allocation2 + $0x10] sm:$0xf] %vm1754, %v1711
      %1758 = vst.msk [vmem:[#allocation2 + $0x18] sm:$0xf] %vm1754, %v1713
      %1759 = vst.msk [vmem:[#allocation2 + $0x20] sm:$0xf] %vm1754, %v1715
      %1760 = vst.msk [vmem:[#allocation2 + $0x28] sm:$0xf] %vm1754, %v1717
      %1761 = vst.msk [vmem:[#allocation2 + $0x30] sm:$0xf] %vm1754, %v1719
      %1762 = vst.msk [vmem:[#allocation2 + $0x38] sm:$0xf] %vm1754, %v1721
      %1763 = vst.msk [vmem:[#allocation2 + $0x40] sm:$0xf] %vm1754, %v1723
      %1764 = vst.msk [vmem:[#allocation2 + $0x48] sm:$0xf] %vm1754, %v1725
      %1765 = vst.msk [vmem:[#allocation2 + $0x50] sm:$0xf] %vm1754, %v1727
      %1766 = vst.msk [vmem:[#allocation2 + $0x58] sm:$0xf] %vm1754, %v1729
      %1767 = vst.msk [vmem:[#allocation2 + $0x60] sm:$0xf] %vm1754, %v1731
      %1768 = vst.msk [vmem:[#allocation2 + $0x68] sm:$0xf] %vm1754, %v1733
      %1769 = vst.msk [vmem:[#allocation2 + $0x70] sm:$0xf] %vm1754, %v1735
      %1770 = vst.msk [vmem:[#allocation2 + $0x78] sm:$0xf] %vm1754, %v1737
      %v1771 = vld [vmem:[%s1673] sm:$0xf]
      %v1772 = vld [vmem:[%s1673 + $0x4] sm:$0xf]
      %v1773 = vld [vmem:[%s1673 + $0x8] sm:$0x1]
      %v1774 = vld [vmem:[%s1673 + $0xc] sm:$0xf]
      %v1775 = vld [vmem:[%s1673 + $0x10] sm:$0xf]
      %v1776 = vld [vmem:[%s1673 + $0x14] sm:$0x1]
      %v1777 = vld [vmem:[%s1673 + $0x18] sm:$0xf]
      %v1778 = vld [vmem:[%s1673 + $0x1c] sm:$0xf]
      %v1779 = vld [vmem:[%s1673 + $0x20] sm:$0x1]
      %v1780 = vld [vmem:[%s1673 + $0x24] sm:$0xf]
      %v1781 = vld [vmem:[%s1673 + $0x28] sm:$0xf]
      %v1782 = vld [vmem:[%s1673 + $0x2c] sm:$0x1]
      %v1783 = vld [vmem:[%s1673 + $0x30] sm:$0xf]
      %v1784 = vld [vmem:[%s1673 + $0x34] sm:$0xf]
      %v1785 = vld [vmem:[%s1673 + $0x38] sm:$0x1]
      %v1786 = vld [vmem:[%s1673 + $0x3c] sm:$0xf]
      %v1787 = vld [vmem:[%s1673 + $0x40] sm:$0xf]
      %v1788 = vld [vmem:[%s1673 + $0x44] sm:$0x1]
      %v1789 = vld [vmem:[%s1673 + $0x48] sm:$0xf]
      %v1790 = vld [vmem:[%s1673 + $0x4c] sm:$0xf]
      %v1791 = vld [vmem:[%s1673 + $0x50] sm:$0x1]
      %v1792 = vld [vmem:[%s1673 + $0x54] sm:$0xf]
      %v1793 = vld [vmem:[%s1673 + $0x58] sm:$0xf]
      %v1794 = vld [vmem:[%s1673 + $0x5c] sm:$0x1]
      %v1796 = vshrl.u32 %v1771, 16
      %v1798 = vrot.slane %v1796, 4
      %v1799 = vshll.u32 %v1771, 16
      %v1801 = vrot.slane %v1799, 5
      %v1802 = vor.u32 %v1798, %v1801
      %v1803 = vrot.slane %v1802, 4
      %v1805 = vshll.u32 %v1772, 16
      %v1807 = vrot.slane %v1805, 5
      %v1808 = vsel %vm267, %v1803, %v1807
      %v1809 = vshrl.u32 %v1772, 16
      %v1811 = vrot.slane %v1809, 4
      %v1812 = vor.u32 %v1811, %v1807
      %v1813 = vrot.slane %v1812, 4
      %v1815 = vshll.u32 %v1773, 16
      %v1817 = vrot.slane %v1815, 5
      %v1818 = vsel %vm267, %v1813, %v1817
      %v1820 = vshrl.u32 %v1774, 16
      %v1822 = vrot.slane %v1820, 4
      %v1823 = vshll.u32 %v1774, 16
      %v1825 = vrot.slane %v1823, 5
      %v1826 = vor.u32 %v1822, %v1825
      %v1827 = vrot.slane %v1826, 4
      %v1829 = vshll.u32 %v1775, 16
      %v1831 = vrot.slane %v1829, 5
      %v1832 = vsel %vm267, %v1827, %v1831
      %v1833 = vshrl.u32 %v1775, 16
      %v1835 = vrot.slane %v1833, 4
      %v1836 = vor.u32 %v1835, %v1831
      %v1837 = vrot.slane %v1836, 4
      %v1839 = vshll.u32 %v1776, 16
      %v1841 = vrot.slane %v1839, 5
      %v1842 = vsel %vm267, %v1837, %v1841
      %v1844 = vshrl.u32 %v1777, 16
      %v1846 = vrot.slane %v1844, 4
      %v1847 = vshll.u32 %v1777, 16
      %v1849 = vrot.slane %v1847, 5
      %v1850 = vor.u32 %v1846, %v1849
      %v1851 = vrot.slane %v1850, 4
      %v1853 = vshll.u32 %v1778, 16
      %v1855 = vrot.slane %v1853, 5
      %v1856 = vsel %vm267, %v1851, %v1855
      %v1857 = vshrl.u32 %v1778, 16
      %v1859 = vrot.slane %v1857, 4
      %v1860 = vor.u32 %v1859, %v1855
      %v1861 = vrot.slane %v1860, 4
      %v1863 = vshll.u32 %v1779, 16
      %v1865 = vrot.slane %v1863, 5
      %v1866 = vsel %vm267, %v1861, %v1865
      %v1868 = vshrl.u32 %v1780, 16
      %v1870 = vrot.slane %v1868, 4
      %v1871 = vshll.u32 %v1780, 16
      %v1873 = vrot.slane %v1871, 5
      %v1874 = vor.u32 %v1870, %v1873
      %v1875 = vrot.slane %v1874, 4
      %v1877 = vshll.u32 %v1781, 16
      %v1879 = vrot.slane %v1877, 5
      %v1880 = vsel %vm267, %v1875, %v1879
      %v1881 = vshrl.u32 %v1781, 16
      %v1883 = vrot.slane %v1881, 4
      %v1884 = vor.u32 %v1883, %v1879
      %v1885 = vrot.slane %v1884, 4
      %v1887 = vshll.u32 %v1782, 16
      %v1889 = vrot.slane %v1887, 5
      %v1890 = vsel %vm267, %v1885, %v1889
      %v1892 = vshrl.u32 %v1783, 16
      %v1894 = vrot.slane %v1892, 4
      %v1895 = vshll.u32 %v1783, 16
      %v1897 = vrot.slane %v1895, 5
      %v1898 = vor.u32 %v1894, %v1897
      %v1899 = vrot.slane %v1898, 4
      %v1901 = vshll.u32 %v1784, 16
      %v1903 = vrot.slane %v1901, 5
      %v1904 = vsel %vm267, %v1899, %v1903
      %v1905 = vshrl.u32 %v1784, 16
      %v1907 = vrot.slane %v1905, 4
      %v1908 = vor.u32 %v1907, %v1903
      %v1909 = vrot.slane %v1908, 4
      %v1911 = vshll.u32 %v1785, 16
      %v1913 = vrot.slane %v1911, 5
      %v1914 = vsel %vm267, %v1909, %v1913
      %v1916 = vshrl.u32 %v1786, 16
      %v1918 = vrot.slane %v1916, 4
      %v1919 = vshll.u32 %v1786, 16
      %v1921 = vrot.slane %v1919, 5
      %v1922 = vor.u32 %v1918, %v1921
      %v1923 = vrot.slane %v1922, 4
      %v1925 = vshll.u32 %v1787, 16
      %v1927 = vrot.slane %v1925, 5
      %v1928 = vsel %vm267, %v1923, %v1927
      %v1929 = vshrl.u32 %v1787, 16
      %v1931 = vrot.slane %v1929, 4
      %v1932 = vor.u32 %v1931, %v1927
      %v1933 = vrot.slane %v1932, 4
      %v1935 = vshll.u32 %v1788, 16
      %v1937 = vrot.slane %v1935, 5
      %v1938 = vsel %vm267, %v1933, %v1937
      %v1940 = vshrl.u32 %v1789, 16
      %v1942 = vrot.slane %v1940, 4
      %v1943 = vshll.u32 %v1789, 16
      %v1945 = vrot.slane %v1943, 5
      %v1946 = vor.u32 %v1942, %v1945
      %v1947 = vrot.slane %v1946, 4
      %v1949 = vshll.u32 %v1790, 16
      %v1951 = vrot.slane %v1949, 5
      %v1952 = vsel %vm267, %v1947, %v1951
      %v1953 = vshrl.u32 %v1790, 16
      %v1955 = vrot.slane %v1953, 4
      %v1956 = vor.u32 %v1955, %v1951
      %v1957 = vrot.slane %v1956, 4
      %v1959 = vshll.u32 %v1791, 16
      %v1961 = vrot.slane %v1959, 5
      %v1962 = vsel %vm267, %v1957, %v1961
      %v1964 = vshrl.u32 %v1792, 16
      %v1966 = vrot.slane %v1964, 4
      %v1967 = vshll.u32 %v1792, 16
      %v1969 = vrot.slane %v1967, 5
      %v1970 = vor.u32 %v1966, %v1969
      %v1971 = vrot.slane %v1970, 4
      %v1973 = vshll.u32 %v1793, 16
      %v1975 = vrot.slane %v1973, 5
      %v1976 = vsel %vm267, %v1971, %v1975
      %v1977 = vshrl.u32 %v1793, 16
      %v1979 = vrot.slane %v1977, 4
      %v1980 = vor.u32 %v1979, %v1975
      %v1981 = vrot.slane %v1980, 4
      %v1983 = vshll.u32 %v1794, 16
      %v1985 = vrot.slane %v1983, 5
      %v1986 = vsel %vm267, %v1981, %v1985
      %1987 = vrot.lane.b32.xlu0 %v1808, 32
      %v1988 = vpop.permute.xlu0 %1987
      %1989 = vrot.lane.b32.xlu0 %v1818, 32
      %v1990 = vpop.permute.xlu0 %1989
      %1991 = vrot.lane.b32.xlu0 %v1832, 32
      %v1992 = vpop.permute.xlu0 %1991
      %1993 = vrot.lane.b32.xlu0 %v1842, 32
      %v1994 = vpop.permute.xlu0 %1993
      %1995 = vrot.lane.b32.xlu0 %v1856, 32
      %v1996 = vpop.permute.xlu0 %1995
      %1997 = vrot.lane.b32.xlu0 %v1866, 32
      %v1998 = vpop.permute.xlu0 %1997
      %1999 = vrot.lane.b32.xlu0 %v1880, 32
      %v2000 = vpop.permute.xlu0 %1999
      %2001 = vrot.lane.b32.xlu0 %v1890, 32
      %v2002 = vpop.permute.xlu0 %2001
      %2003 = vrot.lane.b32.xlu0 %v1904, 32
      %v2004 = vpop.permute.xlu0 %2003
      %2005 = vrot.lane.b32.xlu0 %v1914, 32
      %v2006 = vpop.permute.xlu0 %2005
      %2007 = vrot.lane.b32.xlu0 %v1928, 32
      %v2008 = vpop.permute.xlu0 %2007
      %2009 = vrot.lane.b32.xlu0 %v1938, 32
      %v2010 = vpop.permute.xlu0 %2009
      %2011 = vrot.lane.b32.xlu0 %v1952, 32
      %v2012 = vpop.permute.xlu0 %2011
      %2013 = vrot.lane.b32.xlu0 %v1962, 32
      %v2014 = vpop.permute.xlu0 %2013
      %2015 = vrot.lane.b32.xlu0 %v1976, 32
      %v2016 = vpop.permute.xlu0 %2015
      %2017 = vrot.lane.b32.xlu0 %v1986, 32
      %v2018 = vpop.permute.xlu0 %2017
      %vm2035 = vcmask 290048
      %2036 = vst.msk [vmem:[#allocation2] sm:$0xf] %vm2035, %v1988
      %2037 = vst.msk [vmem:[#allocation2 + $0x8] sm:$0xf] %vm2035, %v1990
      %2038 = vst.msk [vmem:[#allocation2 + $0x10] sm:$0xf] %vm2035, %v1992
      %2039 = vst.msk [vmem:[#allocation2 + $0x18] sm:$0xf] %vm2035, %v1994
      %2040 = vst.msk [vmem:[#allocation2 + $0x20] sm:$0xf] %vm2035, %v1996
      %2041 = vst.msk [vmem:[#allocation2 + $0x28] sm:$0xf] %vm2035, %v1998
      %2042 = vst.msk [vmem:[#allocation2 + $0x30] sm:$0xf] %vm2035, %v2000
      %2043 = vst.msk [vmem:[#allocation2 + $0x38] sm:$0xf] %vm2035, %v2002
      %2044 = vst.msk [vmem:[#allocation2 + $0x40] sm:$0xf] %vm2035, %v2004
      %2045 = vst.msk [vmem:[#allocation2 + $0x48] sm:$0xf] %vm2035, %v2006
      %2046 = vst.msk [vmem:[#allocation2 + $0x50] sm:$0xf] %vm2035, %v2008
      %2047 = vst.msk [vmem:[#allocation2 + $0x58] sm:$0xf] %vm2035, %v2010
      %2048 = vst.msk [vmem:[#allocation2 + $0x60] sm:$0xf] %vm2035, %v2012
      %2049 = vst.msk [vmem:[#allocation2 + $0x68] sm:$0xf] %vm2035, %v2014
      %2050 = vst.msk [vmem:[#allocation2 + $0x70] sm:$0xf] %vm2035, %v2016
      %2051 = vst.msk [vmem:[#allocation2 + $0x78] sm:$0xf] %vm2035, %v2018
      %v2052 = vld [vmem:[%s1673] sm:$0xe]
      %v2053 = vld [vmem:[%s1673 + $0x4] sm:$0xf]
      %v2054 = vld [vmem:[%s1673 + $0x8] sm:$0x1]
      %v2055 = vld [vmem:[%s1673 + $0xc] sm:$0xe]
      %v2056 = vld [vmem:[%s1673 + $0x10] sm:$0xf]
      %v2057 = vld [vmem:[%s1673 + $0x14] sm:$0x1]
      %v2058 = vld [vmem:[%s1673 + $0x18] sm:$0xe]
      %v2059 = vld [vmem:[%s1673 + $0x1c] sm:$0xf]
      %v2060 = vld [vmem:[%s1673 + $0x20] sm:$0x1]
      %v2061 = vld [vmem:[%s1673 + $0x24] sm:$0xe]
      %v2062 = vld [vmem:[%s1673 + $0x28] sm:$0xf]
      %v2063 = vld [vmem:[%s1673 + $0x2c] sm:$0x1]
      %v2064 = vld [vmem:[%s1673 + $0x30] sm:$0xe]
      %v2065 = vld [vmem:[%s1673 + $0x34] sm:$0xf]
      %v2066 = vld [vmem:[%s1673 + $0x38] sm:$0x1]
      %v2067 = vld [vmem:[%s1673 + $0x3c] sm:$0xe]
      %v2068 = vld [vmem:[%s1673 + $0x40] sm:$0xf]
      %v2069 = vld [vmem:[%s1673 + $0x44] sm:$0x1]
      %v2070 = vld [vmem:[%s1673 + $0x48] sm:$0xe]
      %v2071 = vld [vmem:[%s1673 + $0x4c] sm:$0xf]
      %v2072 = vld [vmem:[%s1673 + $0x50] sm:$0x1]
      %v2073 = vld [vmem:[%s1673 + $0x54] sm:$0xe]
      %v2074 = vld [vmem:[%s1673 + $0x58] sm:$0xf]
      %v2075 = vld [vmem:[%s1673 + $0x5c] sm:$0x1]
      %v2100 = vrot.slane %v2052, 5
      %v2101 = vrot.slane %v2100, 4
      %v2102 = vrot.slane %v2053, 5
      %v2103 = vsel %vm575, %v2101, %v2102
      %v2104 = vrot.slane %v2102, 4
      %v2105 = vrot.slane %v2054, 5
      %v2106 = vsel %vm575, %v2104, %v2105
      %v2107 = vrot.slane %v2055, 5
      %v2108 = vrot.slane %v2107, 4
      %v2109 = vrot.slane %v2056, 5
      %v2110 = vsel %vm575, %v2108, %v2109
      %v2111 = vrot.slane %v2109, 4
      %v2112 = vrot.slane %v2057, 5
      %v2113 = vsel %vm575, %v2111, %v2112
      %v2114 = vrot.slane %v2058, 5
      %v2115 = vrot.slane %v2114, 4
      %v2116 = vrot.slane %v2059, 5
      %v2117 = vsel %vm575, %v2115, %v2116
      %v2118 = vrot.slane %v2116, 4
      %v2119 = vrot.slane %v2060, 5
      %v2120 = vsel %vm575, %v2118, %v2119
      %v2121 = vrot.slane %v2061, 5
      %v2122 = vrot.slane %v2121, 4
      %v2123 = vrot.slane %v2062, 5
      %v2124 = vsel %vm575, %v2122, %v2123
      %v2125 = vrot.slane %v2123, 4
      %v2126 = vrot.slane %v2063, 5
      %v2127 = vsel %vm575, %v2125, %v2126
      %v2128 = vrot.slane %v2064, 5
      %v2129 = vrot.slane %v2128, 4
      %v2130 = vrot.slane %v2065, 5
      %v2131 = vsel %vm575, %v2129, %v2130
      %v2132 = vrot.slane %v2130, 4
      %v2133 = vrot.slane %v2066, 5
      %v2134 = vsel %vm575, %v2132, %v2133
      %v2135 = vrot.slane %v2067, 5
      %v2136 = vrot.slane %v2135, 4
      %v2137 = vrot.slane %v2068, 5
      %v2138 = vsel %vm575, %v2136, %v2137
      %v2139 = vrot.slane %v2137, 4
      %v2140 = vrot.slane %v2069, 5
      %v2141 = vsel %vm575, %v2139, %v2140
      %v2142 = vrot.slane %v2070, 5
      %v2143 = vrot.slane %v2142, 4
      %v2144 = vrot.slane %v2071, 5
      %v2145 = vsel %vm575, %v2143, %v2144
      %v2146 = vrot.slane %v2144, 4
      %v2147 = vrot.slane %v2072, 5
      %v2148 = vsel %vm575, %v2146, %v2147
      %v2149 = vrot.slane %v2073, 5
      %v2150 = vrot.slane %v2149, 4
      %v2151 = vrot.slane %v2074, 5
      %v2152 = vsel %vm575, %v2150, %v2151
      %v2153 = vrot.slane %v2151, 4
      %v2154 = vrot.slane %v2075, 5
      %v2155 = vsel %vm575, %v2153, %v2154
      %2156 = vrot.lane.b32.xlu0 %v2103, 36
      %v2157 = vpop.permute.xlu0 %2156
      %2158 = vrot.lane.b32.xlu0 %v2106, 36
      %v2159 = vpop.permute.xlu0 %2158
      %2160 = vrot.lane.b32.xlu0 %v2110, 36
      %v2161 = vpop.permute.xlu0 %2160
      %2162 = vrot.lane.b32.xlu0 %v2113, 36
      %v2163 = vpop.permute.xlu0 %2162
      %2164 = vrot.lane.b32.xlu0 %v2117, 36
      %v2165 = vpop.permute.xlu0 %2164
      %2166 = vrot.lane.b32.xlu0 %v2120, 36
      %v2167 = vpop.permute.xlu0 %2166
      %2168 = vrot.lane.b32.xlu0 %v2124, 36
      %v2169 = vpop.permute.xlu0 %2168
      %2170 = vrot.lane.b32.xlu0 %v2127, 36
      %v2171 = vpop.permute.xlu0 %2170
      %2172 = vrot.lane.b32.xlu0 %v2131, 36
      %v2173 = vpop.permute.xlu0 %2172
      %2174 = vrot.lane.b32.xlu0 %v2134, 36
      %v2175 = vpop.permute.xlu0 %2174
      %2176 = vrot.lane.b32.xlu0 %v2138, 36
      %v2177 = vpop.permute.xlu0 %2176
      %2178 = vrot.lane.b32.xlu0 %v2141, 36
      %v2179 = vpop.permute.xlu0 %2178
      %2180 = vrot.lane.b32.xlu0 %v2145, 36
      %v2181 = vpop.permute.xlu0 %2180
      %2182 = vrot.lane.b32.xlu0 %v2148, 36
      %v2183 = vpop.permute.xlu0 %2182
      %2184 = vrot.lane.b32.xlu0 %v2152, 36
      %v2185 = vpop.permute.xlu0 %2184
      %2186 = vrot.lane.b32.xlu0 %v2155, 36
      %v2187 = vpop.permute.xlu0 %2186
      %vm2204 = vcmask 322848
      %2205 = vst.msk [vmem:[#allocation2] sm:$0xf] %vm2204, %v2157
      %2206 = vst.msk [vmem:[#allocation2 + $0x8] sm:$0xf] %vm2204, %v2159
      %2207 = vst.msk [vmem:[#allocation2 + $0x10] sm:$0xf] %vm2204, %v2161
      %2208 = vst.msk [vmem:[#allocation2 + $0x18] sm:$0xf] %vm2204, %v2163
      %2209 = vst.msk [vmem:[#allocation2 + $0x20] sm:$0xf] %vm2204, %v2165
      %2210 = vst.msk [vmem:[#allocation2 + $0x28] sm:$0xf] %vm2204, %v2167
      %2211 = vst.msk [vmem:[#allocation2 + $0x30] sm:$0xf] %vm2204, %v2169
      %2212 = vst.msk [vmem:[#allocation2 + $0x38] sm:$0xf] %vm2204, %v2171
      %2213 = vst.msk [vmem:[#allocation2 + $0x40] sm:$0xf] %vm2204, %v2173
      %2214 = vst.msk [vmem:[#allocation2 + $0x48] sm:$0xf] %vm2204, %v2175
      %2215 = vst.msk [vmem:[#allocation2 + $0x50] sm:$0xf] %vm2204, %v2177
      %2216 = vst.msk [vmem:[#allocation2 + $0x58] sm:$0xf] %vm2204, %v2179
      %2217 = vst.msk [vmem:[#allocation2 + $0x60] sm:$0xf] %vm2204, %v2181
      %2218 = vst.msk [vmem:[#allocation2 + $0x68] sm:$0xf] %vm2204, %v2183
      %2219 = vst.msk [vmem:[#allocation2 + $0x70] sm:$0xf] %vm2204, %v2185
      %2220 = vst.msk [vmem:[#allocation2 + $0x78] sm:$0xf] %vm2204, %v2187
      %v2221 = vld [vmem:[%s1673] sm:$0xe]
      %v2222 = vld [vmem:[%s1673 + $0x4] sm:$0xf]
      %v2223 = vld [vmem:[%s1673 + $0x8] sm:$0x3]
      %v2224 = vld [vmem:[%s1673 + $0xc] sm:$0xe]
      %v2225 = vld [vmem:[%s1673 + $0x10] sm:$0xf]
      %v2226 = vld [vmem:[%s1673 + $0x14] sm:$0x3]
      %v2227 = vld [vmem:[%s1673 + $0x18] sm:$0xe]
      %v2228 = vld [vmem:[%s1673 + $0x1c] sm:$0xf]
      %v2229 = vld [vmem:[%s1673 + $0x20] sm:$0x3]
      %v2230 = vld [vmem:[%s1673 + $0x24] sm:$0xe]
      %v2231 = vld [vmem:[%s1673 + $0x28] sm:$0xf]
      %v2232 = vld [vmem:[%s1673 + $0x2c] sm:$0x3]
      %v2233 = vld [vmem:[%s1673 + $0x30] sm:$0xe]
      %v2234 = vld [vmem:[%s1673 + $0x34] sm:$0xf]
      %v2235 = vld [vmem:[%s1673 + $0x38] sm:$0x3]
      %v2236 = vld [vmem:[%s1673 + $0x3c] sm:$0xe]
      %v2237 = vld [vmem:[%s1673 + $0x40] sm:$0xf]
      %v2238 = vld [vmem:[%s1673 + $0x44] sm:$0x3]
      %v2239 = vld [vmem:[%s1673 + $0x48] sm:$0xe]
      %v2240 = vld [vmem:[%s1673 + $0x4c] sm:$0xf]
      %v2241 = vld [vmem:[%s1673 + $0x50] sm:$0x3]
      %v2242 = vld [vmem:[%s1673 + $0x54] sm:$0xe]
      %v2243 = vld [vmem:[%s1673 + $0x58] sm:$0xf]
      %v2244 = vld [vmem:[%s1673 + $0x5c] sm:$0x3]
      %v2246 = vshrl.u32 %v2221, 16
      %v2248 = vrot.slane %v2246, 5
      %v2249 = vshll.u32 %v2221, 16
      %v2251 = vrot.slane %v2249, 6
      %v2252 = vor.u32 %v2248, %v2251
      %v2253 = vrot.slane %v2252, 4
      %v2255 = vshrl.u32 %v2222, 16
      %v2257 = vrot.slane %v2255, 5
      %v2258 = vshll.u32 %v2222, 16
      %v2260 = vrot.slane %v2258, 6
      %v2261 = vor.u32 %v2257, %v2260
      %v2262 = vsel %vm723, %v2253, %v2261
      %v2263 = vrot.slane %v2261, 4
      %v2265 = vshrl.u32 %v2223, 16
      %v2267 = vrot.slane %v2265, 5
      %v2268 = vshll.u32 %v2223, 16
      %v2270 = vrot.slane %v2268, 6
      %v2271 = vor.u32 %v2267, %v2270
      %v2272 = vsel %vm723, %v2263, %v2271
      %v2274 = vshrl.u32 %v2224, 16
      %v2276 = vrot.slane %v2274, 5
      %v2277 = vshll.u32 %v2224, 16
      %v2279 = vrot.slane %v2277, 6
      %v2280 = vor.u32 %v2276, %v2279
      %v2281 = vrot.slane %v2280, 4
      %v2283 = vshrl.u32 %v2225, 16
      %v2285 = vrot.slane %v2283, 5
      %v2286 = vshll.u32 %v2225, 16
      %v2288 = vrot.slane %v2286, 6
      %v2289 = vor.u32 %v2285, %v2288
      %v2290 = vsel %vm723, %v2281, %v2289
      %v2291 = vrot.slane %v2289, 4
      %v2293 = vshrl.u32 %v2226, 16
      %v2295 = vrot.slane %v2293, 5
      %v2296 = vshll.u32 %v2226, 16
      %v2298 = vrot.slane %v2296, 6
      %v2299 = vor.u32 %v2295, %v2298
      %v2300 = vsel %vm723, %v2291, %v2299
      %v2302 = vshrl.u32 %v2227, 16
      %v2304 = vrot.slane %v2302, 5
      %v2305 = vshll.u32 %v2227, 16
      %v2307 = vrot.slane %v2305, 6
      %v2308 = vor.u32 %v2304, %v2307
      %v2309 = vrot.slane %v2308, 4
      %v2311 = vshrl.u32 %v2228, 16
      %v2313 = vrot.slane %v2311, 5
      %v2314 = vshll.u32 %v2228, 16
      %v2316 = vrot.slane %v2314, 6
      %v2317 = vor.u32 %v2313, %v2316
      %v2318 = vsel %vm723, %v2309, %v2317
      %v2319 = vrot.slane %v2317, 4
      %v2321 = vshrl.u32 %v2229, 16
      %v2323 = vrot.slane %v2321, 5
      %v2324 = vshll.u32 %v2229, 16
      %v2326 = vrot.slane %v2324, 6
      %v2327 = vor.u32 %v2323, %v2326
      %v2328 = vsel %vm723, %v2319, %v2327
      %v2330 = vshrl.u32 %v2230, 16
      %v2332 = vrot.slane %v2330, 5
      %v2333 = vshll.u32 %v2230, 16
      %v2335 = vrot.slane %v2333, 6
      %v2336 = vor.u32 %v2332, %v2335
      %v2337 = vrot.slane %v2336, 4
      %v2339 = vshrl.u32 %v2231, 16
      %v2341 = vrot.slane %v2339, 5
      %v2342 = vshll.u32 %v2231, 16
      %v2344 = vrot.slane %v2342, 6
      %v2345 = vor.u32 %v2341, %v2344
      %v2346 = vsel %vm723, %v2337, %v2345
      %v2347 = vrot.slane %v2345, 4
      %v2349 = vshrl.u32 %v2232, 16
      %v2351 = vrot.slane %v2349, 5
      %v2352 = vshll.u32 %v2232, 16
      %v2354 = vrot.slane %v2352, 6
      %v2355 = vor.u32 %v2351, %v2354
      %v2356 = vsel %vm723, %v2347, %v2355
      %v2358 = vshrl.u32 %v2233, 16
      %v2360 = vrot.slane %v2358, 5
      %v2361 = vshll.u32 %v2233, 16
      %v2363 = vrot.slane %v2361, 6
      %v2364 = vor.u32 %v2360, %v2363
      %v2365 = vrot.slane %v2364, 4
      %v2367 = vshrl.u32 %v2234, 16
      %v2369 = vrot.slane %v2367, 5
      %v2370 = vshll.u32 %v2234, 16
      %v2372 = vrot.slane %v2370, 6
      %v2373 = vor.u32 %v2369, %v2372
      %v2374 = vsel %vm723, %v2365, %v2373
      %v2375 = vrot.slane %v2373, 4
      %v2377 = vshrl.u32 %v2235, 16
      %v2379 = vrot.slane %v2377, 5
      %v2380 = vshll.u32 %v2235, 16
      %v2382 = vrot.slane %v2380, 6
      %v2383 = vor.u32 %v2379, %v2382
      %v2384 = vsel %vm723, %v2375, %v2383
      %v2386 = vshrl.u32 %v2236, 16
      %v2388 = vrot.slane %v2386, 5
      %v2389 = vshll.u32 %v2236, 16
      %v2391 = vrot.slane %v2389, 6
      %v2392 = vor.u32 %v2388, %v2391
      %v2393 = vrot.slane %v2392, 4
      %v2395 = vshrl.u32 %v2237, 16
      %v2397 = vrot.slane %v2395, 5
      %v2398 = vshll.u32 %v2237, 16
      %v2400 = vrot.slane %v2398, 6
      %v2401 = vor.u32 %v2397, %v2400
      %v2402 = vsel %vm723, %v2393, %v2401
      %v2403 = vrot.slane %v2401, 4
      %v2405 = vshrl.u32 %v2238, 16
      %v2407 = vrot.slane %v2405, 5
      %v2408 = vshll.u32 %v2238, 16
      %v2410 = vrot.slane %v2408, 6
      %v2411 = vor.u32 %v2407, %v2410
      %v2412 = vsel %vm723, %v2403, %v2411
      %v2414 = vshrl.u32 %v2239, 16
      %v2416 = vrot.slane %v2414, 5
      %v2417 = vshll.u32 %v2239, 16
      %v2419 = vrot.slane %v2417, 6
      %v2420 = vor.u32 %v2416, %v2419
      %v2421 = vrot.slane %v2420, 4
      %v2423 = vshrl.u32 %v2240, 16
      %v2425 = vrot.slane %v2423, 5
      %v2426 = vshll.u32 %v2240, 16
      %v2428 = vrot.slane %v2426, 6
      %v2429 = vor.u32 %v2425, %v2428
      %v2430 = vsel %vm723, %v2421, %v2429
      %v2431 = vrot.slane %v2429, 4
      %v2433 = vshrl.u32 %v2241, 16
      %v2435 = vrot.slane %v2433, 5
      %v2436 = vshll.u32 %v2241, 16
      %v2438 = vrot.slane %v2436, 6
      %v2439 = vor.u32 %v2435, %v2438
      %v2440 = vsel %vm723, %v2431, %v2439
      %v2442 = vshrl.u32 %v2242, 16
      %v2444 = vrot.slane %v2442, 5
      %v2445 = vshll.u32 %v2242, 16
      %v2447 = vrot.slane %v2445, 6
      %v2448 = vor.u32 %v2444, %v2447
      %v2449 = vrot.slane %v2448, 4
      %v2451 = vshrl.u32 %v2243, 16
      %v2453 = vrot.slane %v2451, 5
      %v2454 = vshll.u32 %v2243, 16
      %v2456 = vrot.slane %v2454, 6
      %v2457 = vor.u32 %v2453, %v2456
      %v2458 = vsel %vm723, %v2449, %v2457
      %v2459 = vrot.slane %v2457, 4
      %v2461 = vshrl.u32 %v2244, 16
      %v2463 = vrot.slane %v2461, 5
      %v2464 = vshll.u32 %v2244, 16
      %v2466 = vrot.slane %v2464, 6
      %v2467 = vor.u32 %v2463, %v2466
      %v2468 = vsel %vm723, %v2459, %v2467
      %2469 = vrot.lane.b32.xlu0 %v2262, 40
      %v2470 = vpop.permute.xlu0 %2469
      %2471 = vrot.lane.b32.xlu0 %v2272, 40
      %v2472 = vpop.permute.xlu0 %2471
      %2473 = vrot.lane.b32.xlu0 %v2290, 40
      %v2474 = vpop.permute.xlu0 %2473
      %2475 = vrot.lane.b32.xlu0 %v2300, 40
      %v2476 = vpop.permute.xlu0 %2475
      %2477 = vrot.lane.b32.xlu0 %v2318, 40
      %v2478 = vpop.permute.xlu0 %2477
      %2479 = vrot.lane.b32.xlu0 %v2328, 40
      %v2480 = vpop.permute.xlu0 %2479
      %2481 = vrot.lane.b32.xlu0 %v2346, 40
      %v2482 = vpop.permute.xlu0 %2481
      %2483 = vrot.lane.b32.xlu0 %v2356, 40
      %v2484 = vpop.permute.xlu0 %2483
      %2485 = vrot.lane.b32.xlu0 %v2374, 40
      %v2486 = vpop.permute.xlu0 %2485
      %2487 = vrot.lane.b32.xlu0 %v2384, 40
      %v2488 = vpop.permute.xlu0 %2487
      %2489 = vrot.lane.b32.xlu0 %v2402, 40
      %v2490 = vpop.permute.xlu0 %2489
      %2491 = vrot.lane.b32.xlu0 %v2412, 40
      %v2492 = vpop.permute.xlu0 %2491
      %2493 = vrot.lane.b32.xlu0 %v2430, 40
      %v2494 = vpop.permute.xlu0 %2493
      %2495 = vrot.lane.b32.xlu0 %v2440, 40
      %v2496 = vpop.permute.xlu0 %2495
      %2497 = vrot.lane.b32.xlu0 %v2458, 40
      %v2498 = vpop.permute.xlu0 %2497
      %2499 = vrot.lane.b32.xlu0 %v2468, 40
      %v2500 = vpop.permute.xlu0 %2499
      %vm2517 = vcmask 355648
      %2518 = vst.msk [vmem:[#allocation2] sm:$0xf] %vm2517, %v2470
      %2519 = vst.msk [vmem:[#allocation2 + $0x8] sm:$0xf] %vm2517, %v2472
      %2520 = vst.msk [vmem:[#allocation2 + $0x10] sm:$0xf] %vm2517, %v2474
      %2521 = vst.msk [vmem:[#allocation2 + $0x18] sm:$0xf] %vm2517, %v2476
      %2522 = vst.msk [vmem:[#allocation2 + $0x20] sm:$0xf] %vm2517, %v2478
      %2523 = vst.msk [vmem:[#allocation2 + $0x28] sm:$0xf] %vm2517, %v2480
      %2524 = vst.msk [vmem:[#allocation2 + $0x30] sm:$0xf] %vm2517, %v2482
      %2525 = vst.msk [vmem:[#allocation2 + $0x38] sm:$0xf] %vm2517, %v2484
      %2526 = vst.msk [vmem:[#allocation2 + $0x40] sm:$0xf] %vm2517, %v2486
      %2527 = vst.msk [vmem:[#allocation2 + $0x48] sm:$0xf] %vm2517, %v2488
      %2528 = vst.msk [vmem:[#allocation2 + $0x50] sm:$0xf] %vm2517, %v2490
      %2529 = vst.msk [vmem:[#allocation2 + $0x58] sm:$0xf] %vm2517, %v2492
      %2530 = vst.msk [vmem:[#allocation2 + $0x60] sm:$0xf] %vm2517, %v2494
      %2531 = vst.msk [vmem:[#allocation2 + $0x68] sm:$0xf] %vm2517, %v2496
      %2532 = vst.msk [vmem:[#allocation2 + $0x70] sm:$0xf] %vm2517, %v2498
      %2533 = vst.msk [vmem:[#allocation2 + $0x78] sm:$0xf] %vm2517, %v2500
      %v2534 = vld [vmem:[%s1673] sm:$0xc]
      %v2535 = vld [vmem:[%s1673 + $0x4] sm:$0xf]
      %v2536 = vld [vmem:[%s1673 + $0x8] sm:$0x3]
      %v2537 = vld [vmem:[%s1673 + $0xc] sm:$0xc]
      %v2538 = vld [vmem:[%s1673 + $0x10] sm:$0xf]
      %v2539 = vld [vmem:[%s1673 + $0x14] sm:$0x3]
      %v2540 = vld [vmem:[%s1673 + $0x18] sm:$0xc]
      %v2541 = vld [vmem:[%s1673 + $0x1c] sm:$0xf]
      %v2542 = vld [vmem:[%s1673 + $0x20] sm:$0x3]
      %v2543 = vld [vmem:[%s1673 + $0x24] sm:$0xc]
      %v2544 = vld [vmem:[%s1673 + $0x28] sm:$0xf]
      %v2545 = vld [vmem:[%s1673 + $0x2c] sm:$0x3]
      %v2546 = vld [vmem:[%s1673 + $0x30] sm:$0xc]
      %v2547 = vld [vmem:[%s1673 + $0x34] sm:$0xf]
      %v2548 = vld [vmem:[%s1673 + $0x38] sm:$0x3]
      %v2549 = vld [vmem:[%s1673 + $0x3c] sm:$0xc]
      %v2550 = vld [vmem:[%s1673 + $0x40] sm:$0xf]
      %v2551 = vld [vmem:[%s1673 + $0x44] sm:$0x3]
      %v2552 = vld [vmem:[%s1673 + $0x48] sm:$0xc]
      %v2553 = vld [vmem:[%s1673 + $0x4c] sm:$0xf]
      %v2554 = vld [vmem:[%s1673 + $0x50] sm:$0x3]
      %v2555 = vld [vmem:[%s1673 + $0x54] sm:$0xc]
      %v2556 = vld [vmem:[%s1673 + $0x58] sm:$0xf]
      %v2557 = vld [vmem:[%s1673 + $0x5c] sm:$0x3]
      %v2582 = vrot.slane %v2534, 6
      %v2583 = vrot.slane %v2582, 4
      %v2584 = vrot.slane %v2535, 6
      %v2585 = vsel %vm1063, %v2583, %v2584
      %v2586 = vrot.slane %v2584, 4
      %v2587 = vrot.slane %v2536, 6
      %v2588 = vsel %vm1063, %v2586, %v2587
      %v2589 = vrot.slane %v2537, 6
      %v2590 = vrot.slane %v2589, 4
      %v2591 = vrot.slane %v2538, 6
      %v2592 = vsel %vm1063, %v2590, %v2591
      %v2593 = vrot.slane %v2591, 4
      %v2594 = vrot.slane %v2539, 6
      %v2595 = vsel %vm1063, %v2593, %v2594
      %v2596 = vrot.slane %v2540, 6
      %v2597 = vrot.slane %v2596, 4
      %v2598 = vrot.slane %v2541, 6
      %v2599 = vsel %vm1063, %v2597, %v2598
      %v2600 = vrot.slane %v2598, 4
      %v2601 = vrot.slane %v2542, 6
      %v2602 = vsel %vm1063, %v2600, %v2601
      %v2603 = vrot.slane %v2543, 6
      %v2604 = vrot.slane %v2603, 4
      %v2605 = vrot.slane %v2544, 6
      %v2606 = vsel %vm1063, %v2604, %v2605
      %v2607 = vrot.slane %v2605, 4
      %v2608 = vrot.slane %v2545, 6
      %v2609 = vsel %vm1063, %v2607, %v2608
      %v2610 = vrot.slane %v2546, 6
      %v2611 = vrot.slane %v2610, 4
      %v2612 = vrot.slane %v2547, 6
      %v2613 = vsel %vm1063, %v2611, %v2612
      %v2614 = vrot.slane %v2612, 4
      %v2615 = vrot.slane %v2548, 6
      %v2616 = vsel %vm1063, %v2614, %v2615
      %v2617 = vrot.slane %v2549, 6
      %v2618 = vrot.slane %v2617, 4
      %v2619 = vrot.slane %v2550, 6
      %v2620 = vsel %vm1063, %v2618, %v2619
      %v2621 = vrot.slane %v2619, 4
      %v2622 = vrot.slane %v2551, 6
      %v2623 = vsel %vm1063, %v2621, %v2622
      %v2624 = vrot.slane %v2552, 6
      %v2625 = vrot.slane %v2624, 4
      %v2626 = vrot.slane %v2553, 6
      %v2627 = vsel %vm1063, %v2625, %v2626
      %v2628 = vrot.slane %v2626, 4
      %v2629 = vrot.slane %v2554, 6
      %v2630 = vsel %vm1063, %v2628, %v2629
      %v2631 = vrot.slane %v2555, 6
      %v2632 = vrot.slane %v2631, 4
      %v2633 = vrot.slane %v2556, 6
      %v2634 = vsel %vm1063, %v2632, %v2633
      %v2635 = vrot.slane %v2633, 4
      %v2636 = vrot.slane %v2557, 6
      %v2637 = vsel %vm1063, %v2635, %v2636
      %2638 = vrot.lane.b32.xlu0 %v2585, 44
      %v2639 = vpop.permute.xlu0 %2638
      %2640 = vrot.lane.b32.xlu0 %v2588, 44
      %v2641 = vpop.permute.xlu0 %2640
      %2642 = vrot.lane.b32.xlu0 %v2592, 44
      %v2643 = vpop.permute.xlu0 %2642
      %2644 = vrot.lane.b32.xlu0 %v2595, 44
      %v2645 = vpop.permute.xlu0 %2644
      %2646 = vrot.lane.b32.xlu0 %v2599, 44
      %v2647 = vpop.permute.xlu0 %2646
      %2648 = vrot.lane.b32.xlu0 %v2602, 44
      %v2649 = vpop.permute.xlu0 %2648
      %2650 = vrot.lane.b32.xlu0 %v2606, 44
      %v2651 = vpop.permute.xlu0 %2650
      %2652 = vrot.lane.b32.xlu0 %v2609, 44
      %v2653 = vpop.permute.xlu0 %2652
      %2654 = vrot.lane.b32.xlu0 %v2613, 44
      %v2655 = vpop.permute.xlu0 %2654
      %2656 = vrot.lane.b32.xlu0 %v2616, 44
      %v2657 = vpop.permute.xlu0 %2656
      %2658 = vrot.lane.b32.xlu0 %v2620, 44
      %v2659 = vpop.permute.xlu0 %2658
      %2660 = vrot.lane.b32.xlu0 %v2623, 44
      %v2661 = vpop.permute.xlu0 %2660
      %2662 = vrot.lane.b32.xlu0 %v2627, 44
      %v2663 = vpop.permute.xlu0 %2662
      %2664 = vrot.lane.b32.xlu0 %v2630, 44
      %v2665 = vpop.permute.xlu0 %2664
      %2666 = vrot.lane.b32.xlu0 %v2634, 44
      %v2667 = vpop.permute.xlu0 %2666
      %2668 = vrot.lane.b32.xlu0 %v2637, 44
      %v2669 = vpop.permute.xlu0 %2668
      %vm2686 = vcmask 388448
      %2687 = vst.msk [vmem:[#allocation2] sm:$0xf] %vm2686, %v2639
      %2688 = vst.msk [vmem:[#allocation2 + $0x8] sm:$0xf] %vm2686, %v2641
      %2689 = vst.msk [vmem:[#allocation2 + $0x10] sm:$0xf] %vm2686, %v2643
      %2690 = vst.msk [vmem:[#allocation2 + $0x18] sm:$0xf] %vm2686, %v2645
      %2691 = vst.msk [vmem:[#allocation2 + $0x20] sm:$0xf] %vm2686, %v2647
      %2692 = vst.msk [vmem:[#allocation2 + $0x28] sm:$0xf] %vm2686, %v2649
      %2693 = vst.msk [vmem:[#allocation2 + $0x30] sm:$0xf] %vm2686, %v2651
      %2694 = vst.msk [vmem:[#allocation2 + $0x38] sm:$0xf] %vm2686, %v2653
      %2695 = vst.msk [vmem:[#allocation2 + $0x40] sm:$0xf] %vm2686, %v2655
      %2696 = vst.msk [vmem:[#allocation2 + $0x48] sm:$0xf] %vm2686, %v2657
      %2697 = vst.msk [vmem:[#allocation2 + $0x50] sm:$0xf] %vm2686, %v2659
      %2698 = vst.msk [vmem:[#allocation2 + $0x58] sm:$0xf] %vm2686, %v2661
      %2699 = vst.msk [vmem:[#allocation2 + $0x60] sm:$0xf] %vm2686, %v2663
      %2700 = vst.msk [vmem:[#allocation2 + $0x68] sm:$0xf] %vm2686, %v2665
      %2701 = vst.msk [vmem:[#allocation2 + $0x70] sm:$0xf] %vm2686, %v2667
      %2702 = vst.msk [vmem:[#allocation2 + $0x78] sm:$0xf] %vm2686, %v2669
      %v2703 = vld [vmem:[%s1673] sm:$0xc]
      %v2704 = vld [vmem:[%s1673 + $0x4] sm:$0xf]
      %v2705 = vld [vmem:[%s1673 + $0x8] sm:$0x7]
      %v2706 = vld [vmem:[%s1673 + $0xc] sm:$0xc]
      %v2707 = vld [vmem:[%s1673 + $0x10] sm:$0xf]
      %v2708 = vld [vmem:[%s1673 + $0x14] sm:$0x7]
      %v2709 = vld [vmem:[%s1673 + $0x18] sm:$0xc]
      %v2710 = vld [vmem:[%s1673 + $0x1c] sm:$0xf]
      %v2711 = vld [vmem:[%s1673 + $0x20] sm:$0x7]
      %v2712 = vld [vmem:[%s1673 + $0x24] sm:$0xc]
      %v2713 = vld [vmem:[%s1673 + $0x28] sm:$0xf]
      %v2714 = vld [vmem:[%s1673 + $0x2c] sm:$0x7]
      %v2715 = vld [vmem:[%s1673 + $0x30] sm:$0xc]
      %v2716 = vld [vmem:[%s1673 + $0x34] sm:$0xf]
      %v2717 = vld [vmem:[%s1673 + $0x38] sm:$0x7]
      %v2718 = vld [vmem:[%s1673 + $0x3c] sm:$0xc]
      %v2719 = vld [vmem:[%s1673 + $0x40] sm:$0xf]
      %v2720 = vld [vmem:[%s1673 + $0x44] sm:$0x7]
      %v2721 = vld [vmem:[%s1673 + $0x48] sm:$0xc]
      %v2722 = vld [vmem:[%s1673 + $0x4c] sm:$0xf]
      %v2723 = vld [vmem:[%s1673 + $0x50] sm:$0x7]
      %v2724 = vld [vmem:[%s1673 + $0x54] sm:$0xc]
      %v2725 = vld [vmem:[%s1673 + $0x58] sm:$0xf]
      %v2726 = vld [vmem:[%s1673 + $0x5c] sm:$0x7]
      %v2728 = vshrl.u32 %v2703, 16
      %v2730 = vrot.slane %v2728, 6
      %v2731 = vshll.u32 %v2703, 16
      %v2733 = vrot.slane %v2731, 7
      %v2734 = vor.u32 %v2730, %v2733
      %v2735 = vrot.slane %v2734, 4
      %v2737 = vshrl.u32 %v2704, 16
      %v2739 = vrot.slane %v2737, 6
      %v2740 = vshll.u32 %v2704, 16
      %v2742 = vrot.slane %v2740, 7
      %v2743 = vor.u32 %v2739, %v2742
      %v2744 = vsel %vm1211, %v2735, %v2743
      %v2745 = vrot.slane %v2743, 4
      %v2747 = vshrl.u32 %v2705, 16
      %v2749 = vrot.slane %v2747, 6
      %v2750 = vshll.u32 %v2705, 16
      %v2752 = vrot.slane %v2750, 7
      %v2753 = vor.u32 %v2749, %v2752
      %v2754 = vsel %vm1211, %v2745, %v2753
      %v2756 = vshrl.u32 %v2706, 16
      %v2758 = vrot.slane %v2756, 6
      %v2759 = vshll.u32 %v2706, 16
      %v2761 = vrot.slane %v2759, 7
      %v2762 = vor.u32 %v2758, %v2761
      %v2763 = vrot.slane %v2762, 4
      %v2765 = vshrl.u32 %v2707, 16
      %v2767 = vrot.slane %v2765, 6
      %v2768 = vshll.u32 %v2707, 16
      %v2770 = vrot.slane %v2768, 7
      %v2771 = vor.u32 %v2767, %v2770
      %v2772 = vsel %vm1211, %v2763, %v2771
      %v2773 = vrot.slane %v2771, 4
      %v2775 = vshrl.u32 %v2708, 16
      %v2777 = vrot.slane %v2775, 6
      %v2778 = vshll.u32 %v2708, 16
      %v2780 = vrot.slane %v2778, 7
      %v2781 = vor.u32 %v2777, %v2780
      %v2782 = vsel %vm1211, %v2773, %v2781
      %v2784 = vshrl.u32 %v2709, 16
      %v2786 = vrot.slane %v2784, 6
      %v2787 = vshll.u32 %v2709, 16
      %v2789 = vrot.slane %v2787, 7
      %v2790 = vor.u32 %v2786, %v2789
      %v2791 = vrot.slane %v2790, 4
      %v2793 = vshrl.u32 %v2710, 16
      %v2795 = vrot.slane %v2793, 6
      %v2796 = vshll.u32 %v2710, 16
      %v2798 = vrot.slane %v2796, 7
      %v2799 = vor.u32 %v2795, %v2798
      %v2800 = vsel %vm1211, %v2791, %v2799
      %v2801 = vrot.slane %v2799, 4
      %v2803 = vshrl.u32 %v2711, 16
      %v2805 = vrot.slane %v2803, 6
      %v2806 = vshll.u32 %v2711, 16
      %v2808 = vrot.slane %v2806, 7
      %v2809 = vor.u32 %v2805, %v2808
      %v2810 = vsel %vm1211, %v2801, %v2809
      %v2812 = vshrl.u32 %v2712, 16
      %v2814 = vrot.slane %v2812, 6
      %v2815 = vshll.u32 %v2712, 16
      %v2817 = vrot.slane %v2815, 7
      %v2818 = vor.u32 %v2814, %v2817
      %v2819 = vrot.slane %v2818, 4
      %v2821 = vshrl.u32 %v2713, 16
      %v2823 = vrot.slane %v2821, 6
      %v2824 = vshll.u32 %v2713, 16
      %v2826 = vrot.slane %v2824, 7
      %v2827 = vor.u32 %v2823, %v2826
      %v2828 = vsel %vm1211, %v2819, %v2827
      %v2829 = vrot.slane %v2827, 4
      %v2831 = vshrl.u32 %v2714, 16
      %v2833 = vrot.slane %v2831, 6
      %v2834 = vshll.u32 %v2714, 16
      %v2836 = vrot.slane %v2834, 7
      %v2837 = vor.u32 %v2833, %v2836
      %v2838 = vsel %vm1211, %v2829, %v2837
      %v2840 = vshrl.u32 %v2715, 16
      %v2842 = vrot.slane %v2840, 6
      %v2843 = vshll.u32 %v2715, 16
      %v2845 = vrot.slane %v2843, 7
      %v2846 = vor.u32 %v2842, %v2845
      %v2847 = vrot.slane %v2846, 4
      %v2849 = vshrl.u32 %v2716, 16
      %v2851 = vrot.slane %v2849, 6
      %v2852 = vshll.u32 %v2716, 16
      %v2854 = vrot.slane %v2852, 7
      %v2855 = vor.u32 %v2851, %v2854
      %v2856 = vsel %vm1211, %v2847, %v2855
      %v2857 = vrot.slane %v2855, 4
      %v2859 = vshrl.u32 %v2717, 16
      %v2861 = vrot.slane %v2859, 6
      %v2862 = vshll.u32 %v2717, 16
      %v2864 = vrot.slane %v2862, 7
      %v2865 = vor.u32 %v2861, %v2864
      %v2866 = vsel %vm1211, %v2857, %v2865
      %v2868 = vshrl.u32 %v2718, 16
      %v2870 = vrot.slane %v2868, 6
      %v2871 = vshll.u32 %v2718, 16
      %v2873 = vrot.slane %v2871, 7
      %v2874 = vor.u32 %v2870, %v2873
      %v2875 = vrot.slane %v2874, 4
      %v2877 = vshrl.u32 %v2719, 16
      %v2879 = vrot.slane %v2877, 6
      %v2880 = vshll.u32 %v2719, 16
      %v2882 = vrot.slane %v2880, 7
      %v2883 = vor.u32 %v2879, %v2882
      %v2884 = vsel %vm1211, %v2875, %v2883
      %v2885 = vrot.slane %v2883, 4
      %v2887 = vshrl.u32 %v2720, 16
      %v2889 = vrot.slane %v2887, 6
      %v2890 = vshll.u32 %v2720, 16
      %v2892 = vrot.slane %v2890, 7
      %v2893 = vor.u32 %v2889, %v2892
      %v2894 = vsel %vm1211, %v2885, %v2893
      %v2896 = vshrl.u32 %v2721, 16
      %v2898 = vrot.slane %v2896, 6
      %v2899 = vshll.u32 %v2721, 16
      %v2901 = vrot.slane %v2899, 7
      %v2902 = vor.u32 %v2898, %v2901
      %v2903 = vrot.slane %v2902, 4
      %v2905 = vshrl.u32 %v2722, 16
      %v2907 = vrot.slane %v2905, 6
      %v2908 = vshll.u32 %v2722, 16
      %v2910 = vrot.slane %v2908, 7
      %v2911 = vor.u32 %v2907, %v2910
      %v2912 = vsel %vm1211, %v2903, %v2911
      %v2913 = vrot.slane %v2911, 4
      %v2915 = vshrl.u32 %v2723, 16
      %v2917 = vrot.slane %v2915, 6
      %v2918 = vshll.u32 %v2723, 16
      %v2920 = vrot.slane %v2918, 7
      %v2921 = vor.u32 %v2917, %v2920
      %v2922 = vsel %vm1211, %v2913, %v2921
      %v2924 = vshrl.u32 %v2724, 16
      %v2926 = vrot.slane %v2924, 6
      %v2927 = vshll.u32 %v2724, 16
      %v2929 = vrot.slane %v2927, 7
      %v2930 = vor.u32 %v2926, %v2929
      %v2931 = vrot.slane %v2930, 4
      %v2933 = vshrl.u32 %v2725, 16
      %v2935 = vrot.slane %v2933, 6
      %v2936 = vshll.u32 %v2725, 16
      %v2938 = vrot.slane %v2936, 7
      %v2939 = vor.u32 %v2935, %v2938
      %v2940 = vsel %vm1211, %v2931, %v2939
      %v2941 = vrot.slane %v2939, 4
      %v2943 = vshrl.u32 %v2726, 16
      %v2945 = vrot.slane %v2943, 6
      %v2946 = vshll.u32 %v2726, 16
      %v2948 = vrot.slane %v2946, 7
      %v2949 = vor.u32 %v2945, %v2948
      %v2950 = vsel %vm1211, %v2941, %v2949
      %2951 = vrot.lane.b32.xlu0 %v2744, 48
      %v2952 = vpop.permute.xlu0 %2951
      %2953 = vrot.lane.b32.xlu0 %v2754, 48
      %v2954 = vpop.permute.xlu0 %2953
      %2955 = vrot.lane.b32.xlu0 %v2772, 48
      %v2956 = vpop.permute.xlu0 %2955
      %2957 = vrot.lane.b32.xlu0 %v2782, 48
      %v2958 = vpop.permute.xlu0 %2957
      %2959 = vrot.lane.b32.xlu0 %v2800, 48
      %v2960 = vpop.permute.xlu0 %2959
      %2961 = vrot.lane.b32.xlu0 %v2810, 48
      %v2962 = vpop.permute.xlu0 %2961
      %2963 = vrot.lane.b32.xlu0 %v2828, 48
      %v2964 = vpop.permute.xlu0 %2963
      %2965 = vrot.lane.b32.xlu0 %v2838, 48
      %v2966 = vpop.permute.xlu0 %2965
      %2967 = vrot.lane.b32.xlu0 %v2856, 48
      %v2968 = vpop.permute.xlu0 %2967
      %2969 = vrot.lane.b32.xlu0 %v2866, 48
      %v2970 = vpop.permute.xlu0 %2969
      %2971 = vrot.lane.b32.xlu0 %v2884, 48
      %v2972 = vpop.permute.xlu0 %2971
      %2973 = vrot.lane.b32.xlu0 %v2894, 48
      %v2974 = vpop.permute.xlu0 %2973
      %2975 = vrot.lane.b32.xlu0 %v2912, 48
      %v2976 = vpop.permute.xlu0 %2975
      %2977 = vrot.lane.b32.xlu0 %v2922, 48
      %v2978 = vpop.permute.xlu0 %2977
      %2979 = vrot.lane.b32.xlu0 %v2940, 48
      %v2980 = vpop.permute.xlu0 %2979
      %2981 = vrot.lane.b32.xlu0 %v2950, 48
      %v2982 = vpop.permute.xlu0 %2981
      %vm2999 = vcmask 421248
      %3000 = vst.msk [vmem:[#allocation2] sm:$0xf] %vm2999, %v2952
      %3001 = vst.msk [vmem:[#allocation2 + $0x8] sm:$0xf] %vm2999, %v2954
      %3002 = vst.msk [vmem:[#allocation2 + $0x10] sm:$0xf] %vm2999, %v2956
      %3003 = vst.msk [vmem:[#allocation2 + $0x18] sm:$0xf] %vm2999, %v2958
      %3004 = vst.msk [vmem:[#allocation2 + $0x20] sm:$0xf] %vm2999, %v2960
      %3005 = vst.msk [vmem:[#allocation2 + $0x28] sm:$0xf] %vm2999, %v2962
      %3006 = vst.msk [vmem:[#allocation2 + $0x30] sm:$0xf] %vm2999, %v2964
      %3007 = vst.msk [vmem:[#allocation2 + $0x38] sm:$0xf] %vm2999, %v2966
      %3008 = vst.msk [vmem:[#allocation2 + $0x40] sm:$0xf] %vm2999, %v2968
      %3009 = vst.msk [vmem:[#allocation2 + $0x48] sm:$0xf] %vm2999, %v2970
      %3010 = vst.msk [vmem:[#allocation2 + $0x50] sm:$0xf] %vm2999, %v2972
      %3011 = vst.msk [vmem:[#allocation2 + $0x58] sm:$0xf] %vm2999, %v2974
      %3012 = vst.msk [vmem:[#allocation2 + $0x60] sm:$0xf] %vm2999, %v2976
      %3013 = vst.msk [vmem:[#allocation2 + $0x68] sm:$0xf] %vm2999, %v2978
      %3014 = vst.msk [vmem:[#allocation2 + $0x70] sm:$0xf] %vm2999, %v2980
      %3015 = vst.msk [vmem:[#allocation2 + $0x78] sm:$0xf] %vm2999, %v2982
      %v3016 = vld [vmem:[%s1673] sm:$0x8]
      %v3017 = vld [vmem:[%s1673 + $0x4] sm:$0xf]
      %v3018 = vld [vmem:[%s1673 + $0x8] sm:$0x7]
      %v3019 = vld [vmem:[%s1673 + $0xc] sm:$0x8]
      %v3020 = vld [vmem:[%s1673 + $0x10] sm:$0xf]
      %v3021 = vld [vmem:[%s1673 + $0x14] sm:$0x7]
      %v3022 = vld [vmem:[%s1673 + $0x18] sm:$0x8]
      %v3023 = vld [vmem:[%s1673 + $0x1c] sm:$0xf]
      %v3024 = vld [vmem:[%s1673 + $0x20] sm:$0x7]
      %v3025 = vld [vmem:[%s1673 + $0x24] sm:$0x8]
      %v3026 = vld [vmem:[%s1673 + $0x28] sm:$0xf]
      %v3027 = vld [vmem:[%s1673 + $0x2c] sm:$0x7]
      %v3028 = vld [vmem:[%s1673 + $0x30] sm:$0x8]
      %v3029 = vld [vmem:[%s1673 + $0x34] sm:$0xf]
      %v3030 = vld [vmem:[%s1673 + $0x38] sm:$0x7]
      %v3031 = vld [vmem:[%s1673 + $0x3c] sm:$0x8]
      %v3032 = vld [vmem:[%s1673 + $0x40] sm:$0xf]
      %v3033 = vld [vmem:[%s1673 + $0x44] sm:$0x7]
      %v3034 = vld [vmem:[%s1673 + $0x48] sm:$0x8]
      %v3035 = vld [vmem:[%s1673 + $0x4c] sm:$0xf]
      %v3036 = vld [vmem:[%s1673 + $0x50] sm:$0x7]
      %v3037 = vld [vmem:[%s1673 + $0x54] sm:$0x8]
      %v3038 = vld [vmem:[%s1673 + $0x58] sm:$0xf]
      %v3039 = vld [vmem:[%s1673 + $0x5c] sm:$0x7]
      %v3064 = vrot.slane %v3016, 7
      %v3065 = vrot.slane %v3064, 4
      %v3066 = vrot.slane %v3017, 7
      %v3067 = vsel %vm1551, %v3065, %v3066
      %v3068 = vrot.slane %v3066, 4
      %v3069 = vrot.slane %v3018, 7
      %v3070 = vsel %vm1551, %v3068, %v3069
      %v3071 = vrot.slane %v3019, 7
      %v3072 = vrot.slane %v3071, 4
      %v3073 = vrot.slane %v3020, 7
      %v3074 = vsel %vm1551, %v3072, %v3073
      %v3075 = vrot.slane %v3073, 4
      %v3076 = vrot.slane %v3021, 7
      %v3077 = vsel %vm1551, %v3075, %v3076
      %v3078 = vrot.slane %v3022, 7
      %v3079 = vrot.slane %v3078, 4
      %v3080 = vrot.slane %v3023, 7
      %v3081 = vsel %vm1551, %v3079, %v3080
      %v3082 = vrot.slane %v3080, 4
      %v3083 = vrot.slane %v3024, 7
      %v3084 = vsel %vm1551, %v3082, %v3083
      %v3085 = vrot.slane %v3025, 7
      %v3086 = vrot.slane %v3085, 4
      %v3087 = vrot.slane %v3026, 7
      %v3088 = vsel %vm1551, %v3086, %v3087
      %v3089 = vrot.slane %v3087, 4
      %v3090 = vrot.slane %v3027, 7
      %v3091 = vsel %vm1551, %v3089, %v3090
      %v3092 = vrot.slane %v3028, 7
      %v3093 = vrot.slane %v3092, 4
      %v3094 = vrot.slane %v3029, 7
      %v3095 = vsel %vm1551, %v3093, %v3094
      %v3096 = vrot.slane %v3094, 4
      %v3097 = vrot.slane %v3030, 7
      %v3098 = vsel %vm1551, %v3096, %v3097
      %v3099 = vrot.slane %v3031, 7
      %v3100 = vrot.slane %v3099, 4
      %v3101 = vrot.slane %v3032, 7
      %v3102 = vsel %vm1551, %v3100, %v3101
      %v3103 = vrot.slane %v3101, 4
      %v3104 = vrot.slane %v3033, 7
      %v3105 = vsel %vm1551, %v3103, %v3104
      %v3106 = vrot.slane %v3034, 7
      %v3107 = vrot.slane %v3106, 4
      %v3108 = vrot.slane %v3035, 7
      %v3109 = vsel %vm1551, %v3107, %v3108
      %v3110 = vrot.slane %v3108, 4
      %v3111 = vrot.slane %v3036, 7
      %v3112 = vsel %vm1551, %v3110, %v3111
      %v3113 = vrot.slane %v3037, 7
      %v3114 = vrot.slane %v3113, 4
      %v3115 = vrot.slane %v3038, 7
      %v3116 = vsel %vm1551, %v3114, %v3115
      %v3117 = vrot.slane %v3115, 4
      %v3118 = vrot.slane %v3039, 7
      %v3119 = vsel %vm1551, %v3117, %v3118
      %3120 = vrot.lane.b32.xlu0 %v3067, 52
      %v3121 = vpop.permute.xlu0 %3120
      %3122 = vrot.lane.b32.xlu0 %v3070, 52
      %v3123 = vpop.permute.xlu0 %3122
      %3124 = vrot.lane.b32.xlu0 %v3074, 52
      %v3125 = vpop.permute.xlu0 %3124
      %3126 = vrot.lane.b32.xlu0 %v3077, 52
      %v3127 = vpop.permute.xlu0 %3126
      %3128 = vrot.lane.b32.xlu0 %v3081, 52
      %v3129 = vpop.permute.xlu0 %3128
      %3130 = vrot.lane.b32.xlu0 %v3084, 52
      %v3131 = vpop.permute.xlu0 %3130
      %3132 = vrot.lane.b32.xlu0 %v3088, 52
      %v3133 = vpop.permute.xlu0 %3132
      %3134 = vrot.lane.b32.xlu0 %v3091, 52
      %v3135 = vpop.permute.xlu0 %3134
      %3136 = vrot.lane.b32.xlu0 %v3095, 52
      %v3137 = vpop.permute.xlu0 %3136
      %3138 = vrot.lane.b32.xlu0 %v3098, 52
      %v3139 = vpop.permute.xlu0 %3138
      %3140 = vrot.lane.b32.xlu0 %v3102, 52
      %v3141 = vpop.permute.xlu0 %3140
      %3142 = vrot.lane.b32.xlu0 %v3105, 52
      %v3143 = vpop.permute.xlu0 %3142
      %3144 = vrot.lane.b32.xlu0 %v3109, 52
      %v3145 = vpop.permute.xlu0 %3144
      %3146 = vrot.lane.b32.xlu0 %v3112, 52
      %v3147 = vpop.permute.xlu0 %3146
      %3148 = vrot.lane.b32.xlu0 %v3116, 52
      %v3149 = vpop.permute.xlu0 %3148
      %3150 = vrot.lane.b32.xlu0 %v3119, 52
      %v3151 = vpop.permute.xlu0 %3150
      %vm3168 = vcmask 454048
      %3169 = vst.msk [vmem:[#allocation2] sm:$0xf] %vm3168, %v3121
      %3170 = vst.msk [vmem:[#allocation2 + $0x8] sm:$0xf] %vm3168, %v3123
      %3171 = vst.msk [vmem:[#allocation2 + $0x10] sm:$0xf] %vm3168, %v3125
      %3172 = vst.msk [vmem:[#allocation2 + $0x18] sm:$0xf] %vm3168, %v3127
      %3173 = vst.msk [vmem:[#allocation2 + $0x20] sm:$0xf] %vm3168, %v3129
      %3174 = vst.msk [vmem:[#allocation2 + $0x28] sm:$0xf] %vm3168, %v3131
      %3175 = vst.msk [vmem:[#allocation2 + $0x30] sm:$0xf] %vm3168, %v3133
      %3176 = vst.msk [vmem:[#allocation2 + $0x38] sm:$0xf] %vm3168, %v3135
      %3177 = vst.msk [vmem:[#allocation2 + $0x40] sm:$0xf] %vm3168, %v3137
      %3178 = vst.msk [vmem:[#allocation2 + $0x48] sm:$0xf] %vm3168, %v3139
      %3179 = vst.msk [vmem:[#allocation2 + $0x50] sm:$0xf] %vm3168, %v3141
      %3180 = vst.msk [vmem:[#allocation2 + $0x58] sm:$0xf] %vm3168, %v3143
      %3181 = vst.msk [vmem:[#allocation2 + $0x60] sm:$0xf] %vm3168, %v3145
      %3182 = vst.msk [vmem:[#allocation2 + $0x68] sm:$0xf] %vm3168, %v3147
      %3183 = vst.msk [vmem:[#allocation2 + $0x70] sm:$0xf] %vm3168, %v3149
      %3184 = vst.msk [vmem:[#allocation2 + $0x78] sm:$0xf] %vm3168, %v3151
      %s3185 = scalar_lea.vmem %s197, 24
      %v3186 = vld [vmem:[%s3185] sm:$0xf]
      %v3187 = vld [vmem:[%s3185 + $0x4] sm:$0xf]
      %v3188 = vld [vmem:[%s3185 + $0xc] sm:$0xf]
      %v3189 = vld [vmem:[%s3185 + $0x10] sm:$0xf]
      %v3190 = vld [vmem:[%s3185 + $0x18] sm:$0xf]
      %v3191 = vld [vmem:[%s3185 + $0x1c] sm:$0xf]
      %v3192 = vld [vmem:[%s3185 + $0x24] sm:$0xf]
      %v3193 = vld [vmem:[%s3185 + $0x28] sm:$0xf]
      %v3194 = vld [vmem:[%s3185 + $0x30] sm:$0xf]
      %v3195 = vld [vmem:[%s3185 + $0x34] sm:$0xf]
      %v3196 = vld [vmem:[%s3185 + $0x3c] sm:$0xf]
      %v3197 = vld [vmem:[%s3185 + $0x40] sm:$0xf]
      %v3198 = vld [vmem:[%s3185 + $0x48] sm:$0xf]
      %v3199 = vld [vmem:[%s3185 + $0x4c] sm:$0xf]
      %v3200 = vld [vmem:[%s3185 + $0x54] sm:$0xf]
      %v3201 = vld [vmem:[%s3185 + $0x58] sm:$0xf]
      %3218 = vrot.lane.b32.xlu0 %v3186, 56
      %v3219 = vpop.permute.xlu0 %3218
      %3220 = vrot.lane.b32.xlu0 %v3187, 56
      %v3221 = vpop.permute.xlu0 %3220
      %3222 = vrot.lane.b32.xlu0 %v3188, 56
      %v3223 = vpop.permute.xlu0 %3222
      %3224 = vrot.lane.b32.xlu0 %v3189, 56
      %v3225 = vpop.permute.xlu0 %3224
      %3226 = vrot.lane.b32.xlu0 %v3190, 56
      %v3227 = vpop.permute.xlu0 %3226
      %3228 = vrot.lane.b32.xlu0 %v3191, 56
      %v3229 = vpop.permute.xlu0 %3228
      %3230 = vrot.lane.b32.xlu0 %v3192, 56
      %v3231 = vpop.permute.xlu0 %3230
      %3232 = vrot.lane.b32.xlu0 %v3193, 56
      %v3233 = vpop.permute.xlu0 %3232
      %3234 = vrot.lane.b32.xlu0 %v3194, 56
      %v3235 = vpop.permute.xlu0 %3234
      %3236 = vrot.lane.b32.xlu0 %v3195, 56
      %v3237 = vpop.permute.xlu0 %3236
      %3238 = vrot.lane.b32.xlu0 %v3196, 56
      %v3239 = vpop.permute.xlu0 %3238
      %3240 = vrot.lane.b32.xlu0 %v3197, 56
      %v3241 = vpop.permute.xlu0 %3240
      %3242 = vrot.lane.b32.xlu0 %v3198, 56
      %v3243 = vpop.permute.xlu0 %3242
      %3244 = vrot.lane.b32.xlu0 %v3199, 56
      %v3245 = vpop.permute.xlu0 %3244
      %3246 = vrot.lane.b32.xlu0 %v3200, 56
      %v3247 = vpop.permute.xlu0 %3246
      %3248 = vrot.lane.b32.xlu0 %v3201, 56
      %v3249 = vpop.permute.xlu0 %3248
      %vm3266 = vcmask 486848
      %3267 = vst.msk [vmem:[#allocation2] sm:$0xf] %vm3266, %v3219
      %3268 = vst.msk [vmem:[#allocation2 + $0x8] sm:$0xf] %vm3266, %v3221
      %3269 = vst.msk [vmem:[#allocation2 + $0x10] sm:$0xf] %vm3266, %v3223
      %3270 = vst.msk [vmem:[#allocation2 + $0x18] sm:$0xf] %vm3266, %v3225
      %3271 = vst.msk [vmem:[#allocation2 + $0x20] sm:$0xf] %vm3266, %v3227
      %3272 = vst.msk [vmem:[#allocation2 + $0x28] sm:$0xf] %vm3266, %v3229
      %3273 = vst.msk [vmem:[#allocation2 + $0x30] sm:$0xf] %vm3266, %v3231
      %3274 = vst.msk [vmem:[#allocation2 + $0x38] sm:$0xf] %vm3266, %v3233
      %3275 = vst.msk [vmem:[#allocation2 + $0x40] sm:$0xf] %vm3266, %v3235
      %3276 = vst.msk [vmem:[#allocation2 + $0x48] sm:$0xf] %vm3266, %v3237
      %3277 = vst.msk [vmem:[#allocation2 + $0x50] sm:$0xf] %vm3266, %v3239
      %3278 = vst.msk [vmem:[#allocation2 + $0x58] sm:$0xf] %vm3266, %v3241
      %3279 = vst.msk [vmem:[#allocation2 + $0x60] sm:$0xf] %vm3266, %v3243
      %3280 = vst.msk [vmem:[#allocation2 + $0x68] sm:$0xf] %vm3266, %v3245
      %3281 = vst.msk [vmem:[#allocation2 + $0x70] sm:$0xf] %vm3266, %v3247
      %3282 = vst.msk [vmem:[#allocation2 + $0x78] sm:$0xf] %vm3266, %v3249
      %v3283 = vld [vmem:[%s3185] sm:$0xf]
      %v3284 = vld [vmem:[%s3185 + $0x4] sm:$0xf]
      %v3285 = vld [vmem:[%s3185 + $0x8] sm:$0x1]
      %v3286 = vld [vmem:[%s3185 + $0xc] sm:$0xf]
      %v3287 = vld [vmem:[%s3185 + $0x10] sm:$0xf]
      %v3288 = vld [vmem:[%s3185 + $0x14] sm:$0x1]
      %v3289 = vld [vmem:[%s3185 + $0x18] sm:$0xf]
      %v3290 = vld [vmem:[%s3185 + $0x1c] sm:$0xf]
      %v3291 = vld [vmem:[%s3185 + $0x20] sm:$0x1]
      %v3292 = vld [vmem:[%s3185 + $0x24] sm:$0xf]
      %v3293 = vld [vmem:[%s3185 + $0x28] sm:$0xf]
      %v3294 = vld [vmem:[%s3185 + $0x2c] sm:$0x1]
      %v3295 = vld [vmem:[%s3185 + $0x30] sm:$0xf]
      %v3296 = vld [vmem:[%s3185 + $0x34] sm:$0xf]
      %v3297 = vld [vmem:[%s3185 + $0x38] sm:$0x1]
      %v3298 = vld [vmem:[%s3185 + $0x3c] sm:$0xf]
      %v3299 = vld [vmem:[%s3185 + $0x40] sm:$0xf]
      %v3300 = vld [vmem:[%s3185 + $0x44] sm:$0x1]
      %v3301 = vld [vmem:[%s3185 + $0x48] sm:$0xf]
      %v3302 = vld [vmem:[%s3185 + $0x4c] sm:$0xf]
      %v3303 = vld [vmem:[%s3185 + $0x50] sm:$0x1]
      %v3304 = vld [vmem:[%s3185 + $0x54] sm:$0xf]
      %v3305 = vld [vmem:[%s3185 + $0x58] sm:$0xf]
      %v3306 = vld [vmem:[%s3185 + $0x5c] sm:$0x1]
      %v3308 = vshrl.u32 %v3283, 16
      %v3310 = vrot.slane %v3308, 4
      %v3311 = vshll.u32 %v3283, 16
      %v3313 = vrot.slane %v3311, 5
      %v3314 = vor.u32 %v3310, %v3313
      %v3315 = vrot.slane %v3314, 4
      %v3317 = vshll.u32 %v3284, 16
      %v3319 = vrot.slane %v3317, 5
      %v3320 = vsel %vm267, %v3315, %v3319
      %v3321 = vshrl.u32 %v3284, 16
      %v3323 = vrot.slane %v3321, 4
      %v3324 = vor.u32 %v3323, %v3319
      %v3325 = vrot.slane %v3324, 4
      %v3327 = vshll.u32 %v3285, 16
      %v3329 = vrot.slane %v3327, 5
      %v3330 = vsel %vm267, %v3325, %v3329
      %v3332 = vshrl.u32 %v3286, 16
      %v3334 = vrot.slane %v3332, 4
      %v3335 = vshll.u32 %v3286, 16
      %v3337 = vrot.slane %v3335, 5
      %v3338 = vor.u32 %v3334, %v3337
      %v3339 = vrot.slane %v3338, 4
      %v3341 = vshll.u32 %v3287, 16
      %v3343 = vrot.slane %v3341, 5
      %v3344 = vsel %vm267, %v3339, %v3343
      %v3345 = vshrl.u32 %v3287, 16
      %v3347 = vrot.slane %v3345, 4
      %v3348 = vor.u32 %v3347, %v3343
      %v3349 = vrot.slane %v3348, 4
      %v3351 = vshll.u32 %v3288, 16
      %v3353 = vrot.slane %v3351, 5
      %v3354 = vsel %vm267, %v3349, %v3353
      %v3356 = vshrl.u32 %v3289, 16
      %v3358 = vrot.slane %v3356, 4
      %v3359 = vshll.u32 %v3289, 16
      %v3361 = vrot.slane %v3359, 5
      %v3362 = vor.u32 %v3358, %v3361
      %v3363 = vrot.slane %v3362, 4
      %v3365 = vshll.u32 %v3290, 16
      %v3367 = vrot.slane %v3365, 5
      %v3368 = vsel %vm267, %v3363, %v3367
      %v3369 = vshrl.u32 %v3290, 16
      %v3371 = vrot.slane %v3369, 4
      %v3372 = vor.u32 %v3371, %v3367
      %v3373 = vrot.slane %v3372, 4
      %v3375 = vshll.u32 %v3291, 16
      %v3377 = vrot.slane %v3375, 5
      %v3378 = vsel %vm267, %v3373, %v3377
      %v3380 = vshrl.u32 %v3292, 16
      %v3382 = vrot.slane %v3380, 4
      %v3383 = vshll.u32 %v3292, 16
      %v3385 = vrot.slane %v3383, 5
      %v3386 = vor.u32 %v3382, %v3385
      %v3387 = vrot.slane %v3386, 4
      %v3389 = vshll.u32 %v3293, 16
      %v3391 = vrot.slane %v3389, 5
      %v3392 = vsel %vm267, %v3387, %v3391
      %v3393 = vshrl.u32 %v3293, 16
      %v3395 = vrot.slane %v3393, 4
      %v3396 = vor.u32 %v3395, %v3391
      %v3397 = vrot.slane %v3396, 4
      %v3399 = vshll.u32 %v3294, 16
      %v3401 = vrot.slane %v3399, 5
      %v3402 = vsel %vm267, %v3397, %v3401
      %v3404 = vshrl.u32 %v3295, 16
      %v3406 = vrot.slane %v3404, 4
      %v3407 = vshll.u32 %v3295, 16
      %v3409 = vrot.slane %v3407, 5
      %v3410 = vor.u32 %v3406, %v3409
      %v3411 = vrot.slane %v3410, 4
      %v3413 = vshll.u32 %v3296, 16
      %v3415 = vrot.slane %v3413, 5
      %v3416 = vsel %vm267, %v3411, %v3415
      %v3417 = vshrl.u32 %v3296, 16
      %v3419 = vrot.slane %v3417, 4
      %v3420 = vor.u32 %v3419, %v3415
      %v3421 = vrot.slane %v3420, 4
      %v3423 = vshll.u32 %v3297, 16
      %v3425 = vrot.slane %v3423, 5
      %v3426 = vsel %vm267, %v3421, %v3425
      %v3428 = vshrl.u32 %v3298, 16
      %v3430 = vrot.slane %v3428, 4
      %v3431 = vshll.u32 %v3298, 16
      %v3433 = vrot.slane %v3431, 5
      %v3434 = vor.u32 %v3430, %v3433
      %v3435 = vrot.slane %v3434, 4
      %v3437 = vshll.u32 %v3299, 16
      %v3439 = vrot.slane %v3437, 5
      %v3440 = vsel %vm267, %v3435, %v3439
      %v3441 = vshrl.u32 %v3299, 16
      %v3443 = vrot.slane %v3441, 4
      %v3444 = vor.u32 %v3443, %v3439
      %v3445 = vrot.slane %v3444, 4
      %v3447 = vshll.u32 %v3300, 16
      %v3449 = vrot.slane %v3447, 5
      %v3450 = vsel %vm267, %v3445, %v3449
      %v3452 = vshrl.u32 %v3301, 16
      %v3454 = vrot.slane %v3452, 4
      %v3455 = vshll.u32 %v3301, 16
      %v3457 = vrot.slane %v3455, 5
      %v3458 = vor.u32 %v3454, %v3457
      %v3459 = vrot.slane %v3458, 4
      %v3461 = vshll.u32 %v3302, 16
      %v3463 = vrot.slane %v3461, 5
      %v3464 = vsel %vm267, %v3459, %v3463
      %v3465 = vshrl.u32 %v3302, 16
      %v3467 = vrot.slane %v3465, 4
      %v3468 = vor.u32 %v3467, %v3463
      %v3469 = vrot.slane %v3468, 4
      %v3471 = vshll.u32 %v3303, 16
      %v3473 = vrot.slane %v3471, 5
      %v3474 = vsel %vm267, %v3469, %v3473
      %v3476 = vshrl.u32 %v3304, 16
      %v3478 = vrot.slane %v3476, 4
      %v3479 = vshll.u32 %v3304, 16
      %v3481 = vrot.slane %v3479, 5
      %v3482 = vor.u32 %v3478, %v3481
      %v3483 = vrot.slane %v3482, 4
      %v3485 = vshll.u32 %v3305, 16
      %v3487 = vrot.slane %v3485, 5
      %v3488 = vsel %vm267, %v3483, %v3487
      %v3489 = vshrl.u32 %v3305, 16
      %v3491 = vrot.slane %v3489, 4
      %v3492 = vor.u32 %v3491, %v3487
      %v3493 = vrot.slane %v3492, 4
      %v3495 = vshll.u32 %v3306, 16
      %v3497 = vrot.slane %v3495, 5
      %v3498 = vsel %vm267, %v3493, %v3497
      %3499 = vrot.lane.b32.xlu0 %v3320, 60
      %v3500 = vpop.permute.xlu0 %3499
      %3501 = vrot.lane.b32.xlu0 %v3330, 60
      %v3502 = vpop.permute.xlu0 %3501
      %3503 = vrot.lane.b32.xlu0 %v3344, 60
      %v3504 = vpop.permute.xlu0 %3503
      %3505 = vrot.lane.b32.xlu0 %v3354, 60
      %v3506 = vpop.permute.xlu0 %3505
      %3507 = vrot.lane.b32.xlu0 %v3368, 60
      %v3508 = vpop.permute.xlu0 %3507
      %3509 = vrot.lane.b32.xlu0 %v3378, 60
      %v3510 = vpop.permute.xlu0 %3509
      %3511 = vrot.lane.b32.xlu0 %v3392, 60
      %v3512 = vpop.permute.xlu0 %3511
      %3513 = vrot.lane.b32.xlu0 %v3402, 60
      %v3514 = vpop.permute.xlu0 %3513
      %3515 = vrot.lane.b32.xlu0 %v3416, 60
      %v3516 = vpop.permute.xlu0 %3515
      %3517 = vrot.lane.b32.xlu0 %v3426, 60
      %v3518 = vpop.permute.xlu0 %3517
      %3519 = vrot.lane.b32.xlu0 %v3440, 60
      %v3520 = vpop.permute.xlu0 %3519
      %3521 = vrot.lane.b32.xlu0 %v3450, 60
      %v3522 = vpop.permute.xlu0 %3521
      %3523 = vrot.lane.b32.xlu0 %v3464, 60
      %v3524 = vpop.permute.xlu0 %3523
      %3525 = vrot.lane.b32.xlu0 %v3474, 60
      %v3526 = vpop.permute.xlu0 %3525
      %3527 = vrot.lane.b32.xlu0 %v3488, 60
      %v3528 = vpop.permute.xlu0 %3527
      %3529 = vrot.lane.b32.xlu0 %v3498, 60
      %v3530 = vpop.permute.xlu0 %3529
      %vm3547 = vcmask 519648
      %3548 = vst.msk [vmem:[#allocation2] sm:$0xf] %vm3547, %v3500
      %3549 = vst.msk [vmem:[#allocation2 + $0x8] sm:$0xf] %vm3547, %v3502
      %3550 = vst.msk [vmem:[#allocation2 + $0x10] sm:$0xf] %vm3547, %v3504
      %3551 = vst.msk [vmem:[#allocation2 + $0x18] sm:$0xf] %vm3547, %v3506
      %3552 = vst.msk [vmem:[#allocation2 + $0x20] sm:$0xf] %vm3547, %v3508
      %3553 = vst.msk [vmem:[#allocation2 + $0x28] sm:$0xf] %vm3547, %v3510
      %3554 = vst.msk [vmem:[#allocation2 + $0x30] sm:$0xf] %vm3547, %v3512
      %3555 = vst.msk [vmem:[#allocation2 + $0x38] sm:$0xf] %vm3547, %v3514
      %3556 = vst.msk [vmem:[#allocation2 + $0x40] sm:$0xf] %vm3547, %v3516
      %3557 = vst.msk [vmem:[#allocation2 + $0x48] sm:$0xf] %vm3547, %v3518
      %3558 = vst.msk [vmem:[#allocation2 + $0x50] sm:$0xf] %vm3547, %v3520
      %3559 = vst.msk [vmem:[#allocation2 + $0x58] sm:$0xf] %vm3547, %v3522
      %3560 = vst.msk [vmem:[#allocation2 + $0x60] sm:$0xf] %vm3547, %v3524
      %3561 = vst.msk [vmem:[#allocation2 + $0x68] sm:$0xf] %vm3547, %v3526
      %3562 = vst.msk [vmem:[#allocation2 + $0x70] sm:$0xf] %vm3547, %v3528
      %3563 = vst.msk [vmem:[#allocation2 + $0x78] sm:$0xf] %vm3547, %v3530
      %v3564 = vld [vmem:[%s3185] sm:$0xe]
      %v3565 = vld [vmem:[%s3185 + $0x4] sm:$0xf]
      %v3566 = vld [vmem:[%s3185 + $0x8] sm:$0x1]
      %v3567 = vld [vmem:[%s3185 + $0xc] sm:$0xe]
      %v3568 = vld [vmem:[%s3185 + $0x10] sm:$0xf]
      %v3569 = vld [vmem:[%s3185 + $0x14] sm:$0x1]
      %v3570 = vld [vmem:[%s3185 + $0x18] sm:$0xe]
      %v3571 = vld [vmem:[%s3185 + $0x1c] sm:$0xf]
      %v3572 = vld [vmem:[%s3185 + $0x20] sm:$0x1]
      %v3573 = vld [vmem:[%s3185 + $0x24] sm:$0xe]
      %v3574 = vld [vmem:[%s3185 + $0x28] sm:$0xf]
      %v3575 = vld [vmem:[%s3185 + $0x2c] sm:$0x1]
      %v3576 = vld [vmem:[%s3185 + $0x30] sm:$0xe]
      %v3577 = vld [vmem:[%s3185 + $0x34] sm:$0xf]
      %v3578 = vld [vmem:[%s3185 + $0x38] sm:$0x1]
      %v3579 = vld [vmem:[%s3185 + $0x3c] sm:$0xe]
      %v3580 = vld [vmem:[%s3185 + $0x40] sm:$0xf]
      %v3581 = vld [vmem:[%s3185 + $0x44] sm:$0x1]
      %v3582 = vld [vmem:[%s3185 + $0x48] sm:$0xe]
      %v3583 = vld [vmem:[%s3185 + $0x4c] sm:$0xf]
      %v3584 = vld [vmem:[%s3185 + $0x50] sm:$0x1]
      %v3585 = vld [vmem:[%s3185 + $0x54] sm:$0xe]
      %v3586 = vld [vmem:[%s3185 + $0x58] sm:$0xf]
      %v3587 = vld [vmem:[%s3185 + $0x5c] sm:$0x1]
      %v3612 = vrot.slane %v3564, 5
      %v3613 = vrot.slane %v3612, 4
      %v3614 = vrot.slane %v3565, 5
      %v3615 = vsel %vm575, %v3613, %v3614
      %v3616 = vrot.slane %v3614, 4
      %v3617 = vrot.slane %v3566, 5
      %v3618 = vsel %vm575, %v3616, %v3617
      %v3619 = vrot.slane %v3567, 5
      %v3620 = vrot.slane %v3619, 4
      %v3621 = vrot.slane %v3568, 5
      %v3622 = vsel %vm575, %v3620, %v3621
      %v3623 = vrot.slane %v3621, 4
      %v3624 = vrot.slane %v3569, 5
      %v3625 = vsel %vm575, %v3623, %v3624
      %v3626 = vrot.slane %v3570, 5
      %v3627 = vrot.slane %v3626, 4
      %v3628 = vrot.slane %v3571, 5
      %v3629 = vsel %vm575, %v3627, %v3628
      %v3630 = vrot.slane %v3628, 4
      %v3631 = vrot.slane %v3572, 5
      %v3632 = vsel %vm575, %v3630, %v3631
      %v3633 = vrot.slane %v3573, 5
      %v3634 = vrot.slane %v3633, 4
      %v3635 = vrot.slane %v3574, 5
      %v3636 = vsel %vm575, %v3634, %v3635
      %v3637 = vrot.slane %v3635, 4
      %v3638 = vrot.slane %v3575, 5
      %v3639 = vsel %vm575, %v3637, %v3638
      %v3640 = vrot.slane %v3576, 5
      %v3641 = vrot.slane %v3640, 4
      %v3642 = vrot.slane %v3577, 5
      %v3643 = vsel %vm575, %v3641, %v3642
      %v3644 = vrot.slane %v3642, 4
      %v3645 = vrot.slane %v3578, 5
      %v3646 = vsel %vm575, %v3644, %v3645
      %v3647 = vrot.slane %v3579, 5
      %v3648 = vrot.slane %v3647, 4
      %v3649 = vrot.slane %v3580, 5
      %v3650 = vsel %vm575, %v3648, %v3649
      %v3651 = vrot.slane %v3649, 4
      %v3652 = vrot.slane %v3581, 5
      %v3653 = vsel %vm575, %v3651, %v3652
      %v3654 = vrot.slane %v3582, 5
      %v3655 = vrot.slane %v3654, 4
      %v3656 = vrot.slane %v3583, 5
      %v3657 = vsel %vm575, %v3655, %v3656
      %v3658 = vrot.slane %v3656, 4
      %v3659 = vrot.slane %v3584, 5
      %v3660 = vsel %vm575, %v3658, %v3659
      %v3661 = vrot.slane %v3585, 5
      %v3662 = vrot.slane %v3661, 4
      %v3663 = vrot.slane %v3586, 5
      %v3664 = vsel %vm575, %v3662, %v3663
      %v3665 = vrot.slane %v3663, 4
      %v3666 = vrot.slane %v3587, 5
      %v3667 = vsel %vm575, %v3665, %v3666
      %3668 = vrot.lane.b32.xlu0 %v3615, 64
      %v3669 = vpop.permute.xlu0 %3668
      %3670 = vrot.lane.b32.xlu0 %v3618, 64
      %v3671 = vpop.permute.xlu0 %3670
      %3672 = vrot.lane.b32.xlu0 %v3622, 64
      %v3673 = vpop.permute.xlu0 %3672
      %3674 = vrot.lane.b32.xlu0 %v3625, 64
      %v3675 = vpop.permute.xlu0 %3674
      %3676 = vrot.lane.b32.xlu0 %v3629, 64
      %v3677 = vpop.permute.xlu0 %3676
      %3678 = vrot.lane.b32.xlu0 %v3632, 64
      %v3679 = vpop.permute.xlu0 %3678
      %3680 = vrot.lane.b32.xlu0 %v3636, 64
      %v3681 = vpop.permute.xlu0 %3680
      %3682 = vrot.lane.b32.xlu0 %v3639, 64
      %v3683 = vpop.permute.xlu0 %3682
      %3684 = vrot.lane.b32.xlu0 %v3643, 64
      %v3685 = vpop.permute.xlu0 %3684
      %3686 = vrot.lane.b32.xlu0 %v3646, 64
      %v3687 = vpop.permute.xlu0 %3686
      %3688 = vrot.lane.b32.xlu0 %v3650, 64
      %v3689 = vpop.permute.xlu0 %3688
      %3690 = vrot.lane.b32.xlu0 %v3653, 64
      %v3691 = vpop.permute.xlu0 %3690
      %3692 = vrot.lane.b32.xlu0 %v3657, 64
      %v3693 = vpop.permute.xlu0 %3692
      %3694 = vrot.lane.b32.xlu0 %v3660, 64
      %v3695 = vpop.permute.xlu0 %3694
      %3696 = vrot.lane.b32.xlu0 %v3664, 64
      %v3697 = vpop.permute.xlu0 %3696
      %3698 = vrot.lane.b32.xlu0 %v3667, 64
      %v3699 = vpop.permute.xlu0 %3698
      %vm3716 = vcmask 552448
      %3717 = vst.msk [vmem:[#allocation2] sm:$0xf] %vm3716, %v3669
      %3718 = vst.msk [vmem:[#allocation2 + $0x8] sm:$0xf] %vm3716, %v3671
      %3719 = vst.msk [vmem:[#allocation2 + $0x10] sm:$0xf] %vm3716, %v3673
      %3720 = vst.msk [vmem:[#allocation2 + $0x18] sm:$0xf] %vm3716, %v3675
      %3721 = vst.msk [vmem:[#allocation2 + $0x20] sm:$0xf] %vm3716, %v3677
      %3722 = vst.msk [vmem:[#allocation2 + $0x28] sm:$0xf] %vm3716, %v3679
      %3723 = vst.msk [vmem:[#allocation2 + $0x30] sm:$0xf] %vm3716, %v3681
      %3724 = vst.msk [vmem:[#allocation2 + $0x38] sm:$0xf] %vm3716, %v3683
      %3725 = vst.msk [vmem:[#allocation2 + $0x40] sm:$0xf] %vm3716, %v3685
      %3726 = vst.msk [vmem:[#allocation2 + $0x48] sm:$0xf] %vm3716, %v3687
      %3727 = vst.msk [vmem:[#allocation2 + $0x50] sm:$0xf] %vm3716, %v3689
      %3728 = vst.msk [vmem:[#allocation2 + $0x58] sm:$0xf] %vm3716, %v3691
      %3729 = vst.msk [vmem:[#allocation2 + $0x60] sm:$0xf] %vm3716, %v3693
      %3730 = vst.msk [vmem:[#allocation2 + $0x68] sm:$0xf] %vm3716, %v3695
      %3731 = vst.msk [vmem:[#allocation2 + $0x70] sm:$0xf] %vm3716, %v3697
      %3732 = vst.msk [vmem:[#allocation2 + $0x78] sm:$0xf] %vm3716, %v3699
      %v3733 = vld [vmem:[%s3185] sm:$0xe]
      %v3734 = vld [vmem:[%s3185 + $0x4] sm:$0xf]
      %v3735 = vld [vmem:[%s3185 + $0x8] sm:$0x3]
      %v3736 = vld [vmem:[%s3185 + $0xc] sm:$0xe]
      %v3737 = vld [vmem:[%s3185 + $0x10] sm:$0xf]
      %v3738 = vld [vmem:[%s3185 + $0x14] sm:$0x3]
      %v3739 = vld [vmem:[%s3185 + $0x18] sm:$0xe]
      %v3740 = vld [vmem:[%s3185 + $0x1c] sm:$0xf]
      %v3741 = vld [vmem:[%s3185 + $0x20] sm:$0x3]
      %v3742 = vld [vmem:[%s3185 + $0x24] sm:$0xe]
      %v3743 = vld [vmem:[%s3185 + $0x28] sm:$0xf]
      %v3744 = vld [vmem:[%s3185 + $0x2c] sm:$0x3]
      %v3745 = vld [vmem:[%s3185 + $0x30] sm:$0xe]
      %v3746 = vld [vmem:[%s3185 + $0x34] sm:$0xf]
      %v3747 = vld [vmem:[%s3185 + $0x38] sm:$0x3]
      %v3748 = vld [vmem:[%s3185 + $0x3c] sm:$0xe]
      %v3749 = vld [vmem:[%s3185 + $0x40] sm:$0xf]
      %v3750 = vld [vmem:[%s3185 + $0x44] sm:$0x3]
      %v3751 = vld [vmem:[%s3185 + $0x48] sm:$0xe]
      %v3752 = vld [vmem:[%s3185 + $0x4c] sm:$0xf]
      %v3753 = vld [vmem:[%s3185 + $0x50] sm:$0x3]
      %v3754 = vld [vmem:[%s3185 + $0x54] sm:$0xe]
      %v3755 = vld [vmem:[%s3185 + $0x58] sm:$0xf]
      %v3756 = vld [vmem:[%s3185 + $0x5c] sm:$0x3]
      %v3758 = vshrl.u32 %v3733, 16
      %v3760 = vrot.slane %v3758, 5
      %v3761 = vshll.u32 %v3733, 16
      %v3763 = vrot.slane %v3761, 6
      %v3764 = vor.u32 %v3760, %v3763
      %v3765 = vrot.slane %v3764, 4
      %v3767 = vshrl.u32 %v3734, 16
      %v3769 = vrot.slane %v3767, 5
      %v3770 = vshll.u32 %v3734, 16
      %v3772 = vrot.slane %v3770, 6
      %v3773 = vor.u32 %v3769, %v3772
      %v3774 = vsel %vm723, %v3765, %v3773
      %v3775 = vrot.slane %v3773, 4
      %v3777 = vshrl.u32 %v3735, 16
      %v3779 = vrot.slane %v3777, 5
      %v3780 = vshll.u32 %v3735, 16
      %v3782 = vrot.slane %v3780, 6
      %v3783 = vor.u32 %v3779, %v3782
      %v3784 = vsel %vm723, %v3775, %v3783
      %v3786 = vshrl.u32 %v3736, 16
      %v3788 = vrot.slane %v3786, 5
      %v3789 = vshll.u32 %v3736, 16
      %v3791 = vrot.slane %v3789, 6
      %v3792 = vor.u32 %v3788, %v3791
      %v3793 = vrot.slane %v3792, 4
      %v3795 = vshrl.u32 %v3737, 16
      %v3797 = vrot.slane %v3795, 5
      %v3798 = vshll.u32 %v3737, 16
      %v3800 = vrot.slane %v3798, 6
      %v3801 = vor.u32 %v3797, %v3800
      %v3802 = vsel %vm723, %v3793, %v3801
      %v3803 = vrot.slane %v3801, 4
      %v3805 = vshrl.u32 %v3738, 16
      %v3807 = vrot.slane %v3805, 5
      %v3808 = vshll.u32 %v3738, 16
      %v3810 = vrot.slane %v3808, 6
      %v3811 = vor.u32 %v3807, %v3810
      %v3812 = vsel %vm723, %v3803, %v3811
      %v3814 = vshrl.u32 %v3739, 16
      %v3816 = vrot.slane %v3814, 5
      %v3817 = vshll.u32 %v3739, 16
      %v3819 = vrot.slane %v3817, 6
      %v3820 = vor.u32 %v3816, %v3819
      %v3821 = vrot.slane %v3820, 4
      %v3823 = vshrl.u32 %v3740, 16
      %v3825 = vrot.slane %v3823, 5
      %v3826 = vshll.u32 %v3740, 16
      %v3828 = vrot.slane %v3826, 6
      %v3829 = vor.u32 %v3825, %v3828
      %v3830 = vsel %vm723, %v3821, %v3829
      %v3831 = vrot.slane %v3829, 4
      %v3833 = vshrl.u32 %v3741, 16
      %v3835 = vrot.slane %v3833, 5
      %v3836 = vshll.u32 %v3741, 16
      %v3838 = vrot.slane %v3836, 6
      %v3839 = vor.u32 %v3835, %v3838
      %v3840 = vsel %vm723, %v3831, %v3839
      %v3842 = vshrl.u32 %v3742, 16
      %v3844 = vrot.slane %v3842, 5
      %v3845 = vshll.u32 %v3742, 16
      %v3847 = vrot.slane %v3845, 6
      %v3848 = vor.u32 %v3844, %v3847
      %v3849 = vrot.slane %v3848, 4
      %v3851 = vshrl.u32 %v3743, 16
      %v3853 = vrot.slane %v3851, 5
      %v3854 = vshll.u32 %v3743, 16
      %v3856 = vrot.slane %v3854, 6
      %v3857 = vor.u32 %v3853, %v3856
      %v3858 = vsel %vm723, %v3849, %v3857
      %v3859 = vrot.slane %v3857, 4
      %v3861 = vshrl.u32 %v3744, 16
      %v3863 = vrot.slane %v3861, 5
      %v3864 = vshll.u32 %v3744, 16
      %v3866 = vrot.slane %v3864, 6
      %v3867 = vor.u32 %v3863, %v3866
      %v3868 = vsel %vm723, %v3859, %v3867
      %v3870 = vshrl.u32 %v3745, 16
      %v3872 = vrot.slane %v3870, 5
      %v3873 = vshll.u32 %v3745, 16
      %v3875 = vrot.slane %v3873, 6
      %v3876 = vor.u32 %v3872, %v3875
      %v3877 = vrot.slane %v3876, 4
      %v3879 = vshrl.u32 %v3746, 16
      %v3881 = vrot.slane %v3879, 5
      %v3882 = vshll.u32 %v3746, 16
      %v3884 = vrot.slane %v3882, 6
      %v3885 = vor.u32 %v3881, %v3884
      %v3886 = vsel %vm723, %v3877, %v3885
      %v3887 = vrot.slane %v3885, 4
      %v3889 = vshrl.u32 %v3747, 16
      %v3891 = vrot.slane %v3889, 5
      %v3892 = vshll.u32 %v3747, 16
      %v3894 = vrot.slane %v3892, 6
      %v3895 = vor.u32 %v3891, %v3894
      %v3896 = vsel %vm723, %v3887, %v3895
      %v3898 = vshrl.u32 %v3748, 16
      %v3900 = vrot.slane %v3898, 5
      %v3901 = vshll.u32 %v3748, 16
      %v3903 = vrot.slane %v3901, 6
      %v3904 = vor.u32 %v3900, %v3903
      %v3905 = vrot.slane %v3904, 4
      %v3907 = vshrl.u32 %v3749, 16
      %v3909 = vrot.slane %v3907, 5
      %v3910 = vshll.u32 %v3749, 16
      %v3912 = vrot.slane %v3910, 6
      %v3913 = vor.u32 %v3909, %v3912
      %v3914 = vsel %vm723, %v3905, %v3913
      %v3915 = vrot.slane %v3913, 4
      %v3917 = vshrl.u32 %v3750, 16
      %v3919 = vrot.slane %v3917, 5
      %v3920 = vshll.u32 %v3750, 16
      %v3922 = vrot.slane %v3920, 6
      %v3923 = vor.u32 %v3919, %v3922
      %v3924 = vsel %vm723, %v3915, %v3923
      %v3926 = vshrl.u32 %v3751, 16
      %v3928 = vrot.slane %v3926, 5
      %v3929 = vshll.u32 %v3751, 16
      %v3931 = vrot.slane %v3929, 6
      %v3932 = vor.u32 %v3928, %v3931
      %v3933 = vrot.slane %v3932, 4
      %v3935 = vshrl.u32 %v3752, 16
      %v3937 = vrot.slane %v3935, 5
      %v3938 = vshll.u32 %v3752, 16
      %v3940 = vrot.slane %v3938, 6
      %v3941 = vor.u32 %v3937, %v3940
      %v3942 = vsel %vm723, %v3933, %v3941
      %v3943 = vrot.slane %v3941, 4
      %v3945 = vshrl.u32 %v3753, 16
      %v3947 = vrot.slane %v3945, 5
      %v3948 = vshll.u32 %v3753, 16
      %v3950 = vrot.slane %v3948, 6
      %v3951 = vor.u32 %v3947, %v3950
      %v3952 = vsel %vm723, %v3943, %v3951
      %v3954 = vshrl.u32 %v3754, 16
      %v3956 = vrot.slane %v3954, 5
      %v3957 = vshll.u32 %v3754, 16
      %v3959 = vrot.slane %v3957, 6
      %v3960 = vor.u32 %v3956, %v3959
      %v3961 = vrot.slane %v3960, 4
      %v3963 = vshrl.u32 %v3755, 16
      %v3965 = vrot.slane %v3963, 5
      %v3966 = vshll.u32 %v3755, 16
      %v3968 = vrot.slane %v3966, 6
      %v3969 = vor.u32 %v3965, %v3968
      %v3970 = vsel %vm723, %v3961, %v3969
      %v3971 = vrot.slane %v3969, 4
      %v3973 = vshrl.u32 %v3756, 16
      %v3975 = vrot.slane %v3973, 5
      %v3976 = vshll.u32 %v3756, 16
      %v3978 = vrot.slane %v3976, 6
      %v3979 = vor.u32 %v3975, %v3978
      %v3980 = vsel %vm723, %v3971, %v3979
      %3981 = vrot.lane.b32.xlu0 %v3774, 68
      %v3982 = vpop.permute.xlu0 %3981
      %3983 = vrot.lane.b32.xlu0 %v3784, 68
      %v3984 = vpop.permute.xlu0 %3983
      %3985 = vrot.lane.b32.xlu0 %v3802, 68
      %v3986 = vpop.permute.xlu0 %3985
      %3987 = vrot.lane.b32.xlu0 %v3812, 68
      %v3988 = vpop.permute.xlu0 %3987
      %3989 = vrot.lane.b32.xlu0 %v3830, 68
      %v3990 = vpop.permute.xlu0 %3989
      %3991 = vrot.lane.b32.xlu0 %v3840, 68
      %v3992 = vpop.permute.xlu0 %3991
      %3993 = vrot.lane.b32.xlu0 %v3858, 68
      %v3994 = vpop.permute.xlu0 %3993
      %3995 = vrot.lane.b32.xlu0 %v3868, 68
      %v3996 = vpop.permute.xlu0 %3995
      %3997 = vrot.lane.b32.xlu0 %v3886, 68
      %v3998 = vpop.permute.xlu0 %3997
      %3999 = vrot.lane.b32.xlu0 %v3896, 68
      %v4000 = vpop.permute.xlu0 %3999
      %4001 = vrot.lane.b32.xlu0 %v3914, 68
      %v4002 = vpop.permute.xlu0 %4001
      %4003 = vrot.lane.b32.xlu0 %v3924, 68
      %v4004 = vpop.permute.xlu0 %4003
      %4005 = vrot.lane.b32.xlu0 %v3942, 68
      %v4006 = vpop.permute.xlu0 %4005
      %4007 = vrot.lane.b32.xlu0 %v3952, 68
      %v4008 = vpop.permute.xlu0 %4007
      %4009 = vrot.lane.b32.xlu0 %v3970, 68
      %v4010 = vpop.permute.xlu0 %4009
      %4011 = vrot.lane.b32.xlu0 %v3980, 68
      %v4012 = vpop.permute.xlu0 %4011
      %vm4029 = vcmask 585248
      %4030 = vst.msk [vmem:[#allocation2] sm:$0xf] %vm4029, %v3982
      %4031 = vst.msk [vmem:[#allocation2 + $0x8] sm:$0xf] %vm4029, %v3984
      %4032 = vst.msk [vmem:[#allocation2 + $0x10] sm:$0xf] %vm4029, %v3986
      %4033 = vst.msk [vmem:[#allocation2 + $0x18] sm:$0xf] %vm4029, %v3988
      %4034 = vst.msk [vmem:[#allocation2 + $0x20] sm:$0xf] %vm4029, %v3990
      %4035 = vst.msk [vmem:[#allocation2 + $0x28] sm:$0xf] %vm4029, %v3992
      %4036 = vst.msk [vmem:[#allocation2 + $0x30] sm:$0xf] %vm4029, %v3994
      %4037 = vst.msk [vmem:[#allocation2 + $0x38] sm:$0xf] %vm4029, %v3996
      %4038 = vst.msk [vmem:[#allocation2 + $0x40] sm:$0xf] %vm4029, %v3998
      %4039 = vst.msk [vmem:[#allocation2 + $0x48] sm:$0xf] %vm4029, %v4000
      %4040 = vst.msk [vmem:[#allocation2 + $0x50] sm:$0xf] %vm4029, %v4002
      %4041 = vst.msk [vmem:[#allocation2 + $0x58] sm:$0xf] %vm4029, %v4004
      %4042 = vst.msk [vmem:[#allocation2 + $0x60] sm:$0xf] %vm4029, %v4006
      %4043 = vst.msk [vmem:[#allocation2 + $0x68] sm:$0xf] %vm4029, %v4008
      %4044 = vst.msk [vmem:[#allocation2 + $0x70] sm:$0xf] %vm4029, %v4010
      %4045 = vst.msk [vmem:[#allocation2 + $0x78] sm:$0xf] %vm4029, %v4012
      %v4046 = vld [vmem:[%s3185] sm:$0xc]
      %v4047 = vld [vmem:[%s3185 + $0x4] sm:$0xf]
      %v4048 = vld [vmem:[%s3185 + $0x8] sm:$0x3]
      %v4049 = vld [vmem:[%s3185 + $0xc] sm:$0xc]
      %v4050 = vld [vmem:[%s3185 + $0x10] sm:$0xf]
      %v4051 = vld [vmem:[%s3185 + $0x14] sm:$0x3]
      %v4052 = vld [vmem:[%s3185 + $0x18] sm:$0xc]
      %v4053 = vld [vmem:[%s3185 + $0x1c] sm:$0xf]
      %v4054 = vld [vmem:[%s3185 + $0x20] sm:$0x3]
      %v4055 = vld [vmem:[%s3185 + $0x24] sm:$0xc]
      %v4056 = vld [vmem:[%s3185 + $0x28] sm:$0xf]
      %v4057 = vld [vmem:[%s3185 + $0x2c] sm:$0x3]
      %v4058 = vld [vmem:[%s3185 + $0x30] sm:$0xc]
      %v4059 = vld [vmem:[%s3185 + $0x34] sm:$0xf]
      %v4060 = vld [vmem:[%s3185 + $0x38] sm:$0x3]
      %v4061 = vld [vmem:[%s3185 + $0x3c] sm:$0xc]
      %v4062 = vld [vmem:[%s3185 + $0x40] sm:$0xf]
      %v4063 = vld [vmem:[%s3185 + $0x44] sm:$0x3]
      %v4064 = vld [vmem:[%s3185 + $0x48] sm:$0xc]
      %v4065 = vld [vmem:[%s3185 + $0x4c] sm:$0xf]
      %v4066 = vld [vmem:[%s3185 + $0x50] sm:$0x3]
      %v4067 = vld [vmem:[%s3185 + $0x54] sm:$0xc]
      %v4068 = vld [vmem:[%s3185 + $0x58] sm:$0xf]
      %v4069 = vld [vmem:[%s3185 + $0x5c] sm:$0x3]
      %v4094 = vrot.slane %v4046, 6
      %v4095 = vrot.slane %v4094, 4
      %v4096 = vrot.slane %v4047, 6
      %v4097 = vsel %vm1063, %v4095, %v4096
      %v4098 = vrot.slane %v4096, 4
      %v4099 = vrot.slane %v4048, 6
      %v4100 = vsel %vm1063, %v4098, %v4099
      %v4101 = vrot.slane %v4049, 6
      %v4102 = vrot.slane %v4101, 4
      %v4103 = vrot.slane %v4050, 6
      %v4104 = vsel %vm1063, %v4102, %v4103
      %v4105 = vrot.slane %v4103, 4
      %v4106 = vrot.slane %v4051, 6
      %v4107 = vsel %vm1063, %v4105, %v4106
      %v4108 = vrot.slane %v4052, 6
      %v4109 = vrot.slane %v4108, 4
      %v4110 = vrot.slane %v4053, 6
      %v4111 = vsel %vm1063, %v4109, %v4110
      %v4112 = vrot.slane %v4110, 4
      %v4113 = vrot.slane %v4054, 6
      %v4114 = vsel %vm1063, %v4112, %v4113
      %v4115 = vrot.slane %v4055, 6
      %v4116 = vrot.slane %v4115, 4
      %v4117 = vrot.slane %v4056, 6
      %v4118 = vsel %vm1063, %v4116, %v4117
      %v4119 = vrot.slane %v4117, 4
      %v4120 = vrot.slane %v4057, 6
      %v4121 = vsel %vm1063, %v4119, %v4120
      %v4122 = vrot.slane %v4058, 6
      %v4123 = vrot.slane %v4122, 4
      %v4124 = vrot.slane %v4059, 6
      %v4125 = vsel %vm1063, %v4123, %v4124
      %v4126 = vrot.slane %v4124, 4
      %v4127 = vrot.slane %v4060, 6
      %v4128 = vsel %vm1063, %v4126, %v4127
      %v4129 = vrot.slane %v4061, 6
      %v4130 = vrot.slane %v4129, 4
      %v4131 = vrot.slane %v4062, 6
      %v4132 = vsel %vm1063, %v4130, %v4131
      %v4133 = vrot.slane %v4131, 4
      %v4134 = vrot.slane %v4063, 6
      %v4135 = vsel %vm1063, %v4133, %v4134
      %v4136 = vrot.slane %v4064, 6
      %v4137 = vrot.slane %v4136, 4
      %v4138 = vrot.slane %v4065, 6
      %v4139 = vsel %vm1063, %v4137, %v4138
      %v4140 = vrot.slane %v4138, 4
      %v4141 = vrot.slane %v4066, 6
      %v4142 = vsel %vm1063, %v4140, %v4141
      %v4143 = vrot.slane %v4067, 6
      %v4144 = vrot.slane %v4143, 4
      %v4145 = vrot.slane %v4068, 6
      %v4146 = vsel %vm1063, %v4144, %v4145
      %v4147 = vrot.slane %v4145, 4
      %v4148 = vrot.slane %v4069, 6
      %v4149 = vsel %vm1063, %v4147, %v4148
      %4150 = vrot.lane.b32.xlu0 %v4097, 72
      %v4151 = vpop.permute.xlu0 %4150
      %4152 = vrot.lane.b32.xlu0 %v4100, 72
      %v4153 = vpop.permute.xlu0 %4152
      %4154 = vrot.lane.b32.xlu0 %v4104, 72
      %v4155 = vpop.permute.xlu0 %4154
      %4156 = vrot.lane.b32.xlu0 %v4107, 72
      %v4157 = vpop.permute.xlu0 %4156
      %4158 = vrot.lane.b32.xlu0 %v4111, 72
      %v4159 = vpop.permute.xlu0 %4158
      %4160 = vrot.lane.b32.xlu0 %v4114, 72
      %v4161 = vpop.permute.xlu0 %4160
      %4162 = vrot.lane.b32.xlu0 %v4118, 72
      %v4163 = vpop.permute.xlu0 %4162
      %4164 = vrot.lane.b32.xlu0 %v4121, 72
      %v4165 = vpop.permute.xlu0 %4164
      %4166 = vrot.lane.b32.xlu0 %v4125, 72
      %v4167 = vpop.permute.xlu0 %4166
      %4168 = vrot.lane.b32.xlu0 %v4128, 72
      %v4169 = vpop.permute.xlu0 %4168
      %4170 = vrot.lane.b32.xlu0 %v4132, 72
      %v4171 = vpop.permute.xlu0 %4170
      %4172 = vrot.lane.b32.xlu0 %v4135, 72
      %v4173 = vpop.permute.xlu0 %4172
      %4174 = vrot.lane.b32.xlu0 %v4139, 72
      %v4175 = vpop.permute.xlu0 %4174
      %4176 = vrot.lane.b32.xlu0 %v4142, 72
      %v4177 = vpop.permute.xlu0 %4176
      %4178 = vrot.lane.b32.xlu0 %v4146, 72
      %v4179 = vpop.permute.xlu0 %4178
      %4180 = vrot.lane.b32.xlu0 %v4149, 72
      %v4181 = vpop.permute.xlu0 %4180
      %vm4198 = vcmask 618048
      %4199 = vst.msk [vmem:[#allocation2] sm:$0xf] %vm4198, %v4151
      %4200 = vst.msk [vmem:[#allocation2 + $0x8] sm:$0xf] %vm4198, %v4153
      %4201 = vst.msk [vmem:[#allocation2 + $0x10] sm:$0xf] %vm4198, %v4155
      %4202 = vst.msk [vmem:[#allocation2 + $0x18] sm:$0xf] %vm4198, %v4157
      %4203 = vst.msk [vmem:[#allocation2 + $0x20] sm:$0xf] %vm4198, %v4159
      %4204 = vst.msk [vmem:[#allocation2 + $0x28] sm:$0xf] %vm4198, %v4161
      %4205 = vst.msk [vmem:[#allocation2 + $0x30] sm:$0xf] %vm4198, %v4163
      %4206 = vst.msk [vmem:[#allocation2 + $0x38] sm:$0xf] %vm4198, %v4165
      %4207 = vst.msk [vmem:[#allocation2 + $0x40] sm:$0xf] %vm4198, %v4167
      %4208 = vst.msk [vmem:[#allocation2 + $0x48] sm:$0xf] %vm4198, %v4169
      %4209 = vst.msk [vmem:[#allocation2 + $0x50] sm:$0xf] %vm4198, %v4171
      %4210 = vst.msk [vmem:[#allocation2 + $0x58] sm:$0xf] %vm4198, %v4173
      %4211 = vst.msk [vmem:[#allocation2 + $0x60] sm:$0xf] %vm4198, %v4175
      %4212 = vst.msk [vmem:[#allocation2 + $0x68] sm:$0xf] %vm4198, %v4177
      %4213 = vst.msk [vmem:[#allocation2 + $0x70] sm:$0xf] %vm4198, %v4179
      %4214 = vst.msk [vmem:[#allocation2 + $0x78] sm:$0xf] %vm4198, %v4181
      %v4215 = vld [vmem:[%s3185] sm:$0xc]
      %v4216 = vld [vmem:[%s3185 + $0x4] sm:$0xf]
      %v4217 = vld [vmem:[%s3185 + $0x8] sm:$0x7]
      %v4218 = vld [vmem:[%s3185 + $0xc] sm:$0xc]
      %v4219 = vld [vmem:[%s3185 + $0x10] sm:$0xf]
      %v4220 = vld [vmem:[%s3185 + $0x14] sm:$0x7]
      %v4221 = vld [vmem:[%s3185 + $0x18] sm:$0xc]
      %v4222 = vld [vmem:[%s3185 + $0x1c] sm:$0xf]
      %v4223 = vld [vmem:[%s3185 + $0x20] sm:$0x7]
      %v4224 = vld [vmem:[%s3185 + $0x24] sm:$0xc]
      %v4225 = vld [vmem:[%s3185 + $0x28] sm:$0xf]
      %v4226 = vld [vmem:[%s3185 + $0x2c] sm:$0x7]
      %v4227 = vld [vmem:[%s3185 + $0x30] sm:$0xc]
      %v4228 = vld [vmem:[%s3185 + $0x34] sm:$0xf]
      %v4229 = vld [vmem:[%s3185 + $0x38] sm:$0x7]
      %v4230 = vld [vmem:[%s3185 + $0x3c] sm:$0xc]
      %v4231 = vld [vmem:[%s3185 + $0x40] sm:$0xf]
      %v4232 = vld [vmem:[%s3185 + $0x44] sm:$0x7]
      %v4233 = vld [vmem:[%s3185 + $0x48] sm:$0xc]
      %v4234 = vld [vmem:[%s3185 + $0x4c] sm:$0xf]
      %v4235 = vld [vmem:[%s3185 + $0x50] sm:$0x7]
      %v4236 = vld [vmem:[%s3185 + $0x54] sm:$0xc]
      %v4237 = vld [vmem:[%s3185 + $0x58] sm:$0xf]
      %v4238 = vld [vmem:[%s3185 + $0x5c] sm:$0x7]
      %v4240 = vshrl.u32 %v4215, 16
      %v4242 = vrot.slane %v4240, 6
      %v4243 = vshll.u32 %v4215, 16
      %v4245 = vrot.slane %v4243, 7
      %v4246 = vor.u32 %v4242, %v4245
      %v4247 = vrot.slane %v4246, 4
      %v4249 = vshrl.u32 %v4216, 16
      %v4251 = vrot.slane %v4249, 6
      %v4252 = vshll.u32 %v4216, 16
      %v4254 = vrot.slane %v4252, 7
      %v4255 = vor.u32 %v4251, %v4254
      %v4256 = vsel %vm1211, %v4247, %v4255
      %v4257 = vrot.slane %v4255, 4
      %v4259 = vshrl.u32 %v4217, 16
      %v4261 = vrot.slane %v4259, 6
      %v4262 = vshll.u32 %v4217, 16
      %v4264 = vrot.slane %v4262, 7
      %v4265 = vor.u32 %v4261, %v4264
      %v4266 = vsel %vm1211, %v4257, %v4265
      %v4268 = vshrl.u32 %v4218, 16
      %v4270 = vrot.slane %v4268, 6
      %v4271 = vshll.u32 %v4218, 16
      %v4273 = vrot.slane %v4271, 7
      %v4274 = vor.u32 %v4270, %v4273
      %v4275 = vrot.slane %v4274, 4
      %v4277 = vshrl.u32 %v4219, 16
      %v4279 = vrot.slane %v4277, 6
      %v4280 = vshll.u32 %v4219, 16
      %v4282 = vrot.slane %v4280, 7
      %v4283 = vor.u32 %v4279, %v4282
      %v4284 = vsel %vm1211, %v4275, %v4283
      %v4285 = vrot.slane %v4283, 4
      %v4287 = vshrl.u32 %v4220, 16
      %v4289 = vrot.slane %v4287, 6
      %v4290 = vshll.u32 %v4220, 16
      %v4292 = vrot.slane %v4290, 7
      %v4293 = vor.u32 %v4289, %v4292
      %v4294 = vsel %vm1211, %v4285, %v4293
      %v4296 = vshrl.u32 %v4221, 16
      %v4298 = vrot.slane %v4296, 6
      %v4299 = vshll.u32 %v4221, 16
      %v4301 = vrot.slane %v4299, 7
      %v4302 = vor.u32 %v4298, %v4301
      %v4303 = vrot.slane %v4302, 4
      %v4305 = vshrl.u32 %v4222, 16
      %v4307 = vrot.slane %v4305, 6
      %v4308 = vshll.u32 %v4222, 16
      %v4310 = vrot.slane %v4308, 7
      %v4311 = vor.u32 %v4307, %v4310
      %v4312 = vsel %vm1211, %v4303, %v4311
      %v4313 = vrot.slane %v4311, 4
      %v4315 = vshrl.u32 %v4223, 16
      %v4317 = vrot.slane %v4315, 6
      %v4318 = vshll.u32 %v4223, 16
      %v4320 = vrot.slane %v4318, 7
      %v4321 = vor.u32 %v4317, %v4320
      %v4322 = vsel %vm1211, %v4313, %v4321
      %v4324 = vshrl.u32 %v4224, 16
      %v4326 = vrot.slane %v4324, 6
      %v4327 = vshll.u32 %v4224, 16
      %v4329 = vrot.slane %v4327, 7
      %v4330 = vor.u32 %v4326, %v4329
      %v4331 = vrot.slane %v4330, 4
      %v4333 = vshrl.u32 %v4225, 16
      %v4335 = vrot.slane %v4333, 6
      %v4336 = vshll.u32 %v4225, 16
      %v4338 = vrot.slane %v4336, 7
      %v4339 = vor.u32 %v4335, %v4338
      %v4340 = vsel %vm1211, %v4331, %v4339
      %v4341 = vrot.slane %v4339, 4
      %v4343 = vshrl.u32 %v4226, 16
      %v4345 = vrot.slane %v4343, 6
      %v4346 = vshll.u32 %v4226, 16
      %v4348 = vrot.slane %v4346, 7
      %v4349 = vor.u32 %v4345, %v4348
      %v4350 = vsel %vm1211, %v4341, %v4349
      %v4352 = vshrl.u32 %v4227, 16
      %v4354 = vrot.slane %v4352, 6
      %v4355 = vshll.u32 %v4227, 16
      %v4357 = vrot.slane %v4355, 7
      %v4358 = vor.u32 %v4354, %v4357
      %v4359 = vrot.slane %v4358, 4
      %v4361 = vshrl.u32 %v4228, 16
      %v4363 = vrot.slane %v4361, 6
      %v4364 = vshll.u32 %v4228, 16
      %v4366 = vrot.slane %v4364, 7
      %v4367 = vor.u32 %v4363, %v4366
      %v4368 = vsel %vm1211, %v4359, %v4367
      %v4369 = vrot.slane %v4367, 4
      %v4371 = vshrl.u32 %v4229, 16
      %v4373 = vrot.slane %v4371, 6
      %v4374 = vshll.u32 %v4229, 16
      %v4376 = vrot.slane %v4374, 7
      %v4377 = vor.u32 %v4373, %v4376
      %v4378 = vsel %vm1211, %v4369, %v4377
      %v4380 = vshrl.u32 %v4230, 16
      %v4382 = vrot.slane %v4380, 6
      %v4383 = vshll.u32 %v4230, 16
      %v4385 = vrot.slane %v4383, 7
      %v4386 = vor.u32 %v4382, %v4385
      %v4387 = vrot.slane %v4386, 4
      %v4389 = vshrl.u32 %v4231, 16
      %v4391 = vrot.slane %v4389, 6
      %v4392 = vshll.u32 %v4231, 16
      %v4394 = vrot.slane %v4392, 7
      %v4395 = vor.u32 %v4391, %v4394
      %v4396 = vsel %vm1211, %v4387, %v4395
      %v4397 = vrot.slane %v4395, 4
      %v4399 = vshrl.u32 %v4232, 16
      %v4401 = vrot.slane %v4399, 6
      %v4402 = vshll.u32 %v4232, 16
      %v4404 = vrot.slane %v4402, 7
      %v4405 = vor.u32 %v4401, %v4404
      %v4406 = vsel %vm1211, %v4397, %v4405
      %v4408 = vshrl.u32 %v4233, 16
      %v4410 = vrot.slane %v4408, 6
      %v4411 = vshll.u32 %v4233, 16
      %v4413 = vrot.slane %v4411, 7
      %v4414 = vor.u32 %v4410, %v4413
      %v4415 = vrot.slane %v4414, 4
      %v4417 = vshrl.u32 %v4234, 16
      %v4419 = vrot.slane %v4417, 6
      %v4420 = vshll.u32 %v4234, 16
      %v4422 = vrot.slane %v4420, 7
      %v4423 = vor.u32 %v4419, %v4422
      %v4424 = vsel %vm1211, %v4415, %v4423
      %v4425 = vrot.slane %v4423, 4
      %v4427 = vshrl.u32 %v4235, 16
      %v4429 = vrot.slane %v4427, 6
      %v4430 = vshll.u32 %v4235, 16
      %v4432 = vrot.slane %v4430, 7
      %v4433 = vor.u32 %v4429, %v4432
      %v4434 = vsel %vm1211, %v4425, %v4433
      %v4436 = vshrl.u32 %v4236, 16
      %v4438 = vrot.slane %v4436, 6
      %v4439 = vshll.u32 %v4236, 16
      %v4441 = vrot.slane %v4439, 7
      %v4442 = vor.u32 %v4438, %v4441
      %v4443 = vrot.slane %v4442, 4
      %v4445 = vshrl.u32 %v4237, 16
      %v4447 = vrot.slane %v4445, 6
      %v4448 = vshll.u32 %v4237, 16
      %v4450 = vrot.slane %v4448, 7
      %v4451 = vor.u32 %v4447, %v4450
      %v4452 = vsel %vm1211, %v4443, %v4451
      %v4453 = vrot.slane %v4451, 4
      %v4455 = vshrl.u32 %v4238, 16
      %v4457 = vrot.slane %v4455, 6
      %v4458 = vshll.u32 %v4238, 16
      %v4460 = vrot.slane %v4458, 7
      %v4461 = vor.u32 %v4457, %v4460
      %v4462 = vsel %vm1211, %v4453, %v4461
      %4463 = vrot.lane.b32.xlu0 %v4256, 76
      %v4464 = vpop.permute.xlu0 %4463
      %4465 = vrot.lane.b32.xlu0 %v4266, 76
      %v4466 = vpop.permute.xlu0 %4465
      %4467 = vrot.lane.b32.xlu0 %v4284, 76
      %v4468 = vpop.permute.xlu0 %4467
      %4469 = vrot.lane.b32.xlu0 %v4294, 76
      %v4470 = vpop.permute.xlu0 %4469
      %4471 = vrot.lane.b32.xlu0 %v4312, 76
      %v4472 = vpop.permute.xlu0 %4471
      %4473 = vrot.lane.b32.xlu0 %v4322, 76
      %v4474 = vpop.permute.xlu0 %4473
      %4475 = vrot.lane.b32.xlu0 %v4340, 76
      %v4476 = vpop.permute.xlu0 %4475
      %4477 = vrot.lane.b32.xlu0 %v4350, 76
      %v4478 = vpop.permute.xlu0 %4477
      %4479 = vrot.lane.b32.xlu0 %v4368, 76
      %v4480 = vpop.permute.xlu0 %4479
      %4481 = vrot.lane.b32.xlu0 %v4378, 76
      %v4482 = vpop.permute.xlu0 %4481
      %4483 = vrot.lane.b32.xlu0 %v4396, 76
      %v4484 = vpop.permute.xlu0 %4483
      %4485 = vrot.lane.b32.xlu0 %v4406, 76
      %v4486 = vpop.permute.xlu0 %4485
      %4487 = vrot.lane.b32.xlu0 %v4424, 76
      %v4488 = vpop.permute.xlu0 %4487
      %4489 = vrot.lane.b32.xlu0 %v4434, 76
      %v4490 = vpop.permute.xlu0 %4489
      %4491 = vrot.lane.b32.xlu0 %v4452, 76
      %v4492 = vpop.permute.xlu0 %4491
      %4493 = vrot.lane.b32.xlu0 %v4462, 76
      %v4494 = vpop.permute.xlu0 %4493
      %vm4511 = vcmask 650848
      %4512 = vst.msk [vmem:[#allocation2] sm:$0xf] %vm4511, %v4464
      %4513 = vst.msk [vmem:[#allocation2 + $0x8] sm:$0xf] %vm4511, %v4466
      %4514 = vst.msk [vmem:[#allocation2 + $0x10] sm:$0xf] %vm4511, %v4468
      %4515 = vst.msk [vmem:[#allocation2 + $0x18] sm:$0xf] %vm4511, %v4470
      %4516 = vst.msk [vmem:[#allocation2 + $0x20] sm:$0xf] %vm4511, %v4472
      %4517 = vst.msk [vmem:[#allocation2 + $0x28] sm:$0xf] %vm4511, %v4474
      %4518 = vst.msk [vmem:[#allocation2 + $0x30] sm:$0xf] %vm4511, %v4476
      %4519 = vst.msk [vmem:[#allocation2 + $0x38] sm:$0xf] %vm4511, %v4478
      %4520 = vst.msk [vmem:[#allocation2 + $0x40] sm:$0xf] %vm4511, %v4480
      %4521 = vst.msk [vmem:[#allocation2 + $0x48] sm:$0xf] %vm4511, %v4482
      %4522 = vst.msk [vmem:[#allocation2 + $0x50] sm:$0xf] %vm4511, %v4484
      %4523 = vst.msk [vmem:[#allocation2 + $0x58] sm:$0xf] %vm4511, %v4486
      %4524 = vst.msk [vmem:[#allocation2 + $0x60] sm:$0xf] %vm4511, %v4488
      %4525 = vst.msk [vmem:[#allocation2 + $0x68] sm:$0xf] %vm4511, %v4490
      %4526 = vst.msk [vmem:[#allocation2 + $0x70] sm:$0xf] %vm4511, %v4492
      %4527 = vst.msk [vmem:[#allocation2 + $0x78] sm:$0xf] %vm4511, %v4494
      %v4528 = vld [vmem:[%s3185] sm:$0x8]
      %v4529 = vld [vmem:[%s3185 + $0x4] sm:$0xf]
      %v4530 = vld [vmem:[%s3185 + $0x8] sm:$0x7]
      %v4531 = vld [vmem:[%s3185 + $0xc] sm:$0x8]
      %v4532 = vld [vmem:[%s3185 + $0x10] sm:$0xf]
      %v4533 = vld [vmem:[%s3185 + $0x14] sm:$0x7]
      %v4534 = vld [vmem:[%s3185 + $0x18] sm:$0x8]
      %v4535 = vld [vmem:[%s3185 + $0x1c] sm:$0xf]
      %v4536 = vld [vmem:[%s3185 + $0x20] sm:$0x7]
      %v4537 = vld [vmem:[%s3185 + $0x24] sm:$0x8]
      %v4538 = vld [vmem:[%s3185 + $0x28] sm:$0xf]
      %v4539 = vld [vmem:[%s3185 + $0x2c] sm:$0x7]
      %v4540 = vld [vmem:[%s3185 + $0x30] sm:$0x8]
      %v4541 = vld [vmem:[%s3185 + $0x34] sm:$0xf]
      %v4542 = vld [vmem:[%s3185 + $0x38] sm:$0x7]
      %v4543 = vld [vmem:[%s3185 + $0x3c] sm:$0x8]
      %v4544 = vld [vmem:[%s3185 + $0x40] sm:$0xf]
      %v4545 = vld [vmem:[%s3185 + $0x44] sm:$0x7]
      %v4546 = vld [vmem:[%s3185 + $0x48] sm:$0x8]
      %v4547 = vld [vmem:[%s3185 + $0x4c] sm:$0xf]
      %v4548 = vld [vmem:[%s3185 + $0x50] sm:$0x7]
      %v4549 = vld [vmem:[%s3185 + $0x54] sm:$0x8]
      %v4550 = vld [vmem:[%s3185 + $0x58] sm:$0xf]
      %v4551 = vld [vmem:[%s3185 + $0x5c] sm:$0x7]
      %v4576 = vrot.slane %v4528, 7
      %v4577 = vrot.slane %v4576, 4
      %v4578 = vrot.slane %v4529, 7
      %v4579 = vsel %vm1551, %v4577, %v4578
      %v4580 = vrot.slane %v4578, 4
      %v4581 = vrot.slane %v4530, 7
      %v4582 = vsel %vm1551, %v4580, %v4581
      %v4583 = vrot.slane %v4531, 7
      %v4584 = vrot.slane %v4583, 4
      %v4585 = vrot.slane %v4532, 7
      %v4586 = vsel %vm1551, %v4584, %v4585
      %v4587 = vrot.slane %v4585, 4
      %v4588 = vrot.slane %v4533, 7
      %v4589 = vsel %vm1551, %v4587, %v4588
      %v4590 = vrot.slane %v4534, 7
      %v4591 = vrot.slane %v4590, 4
      %v4592 = vrot.slane %v4535, 7
      %v4593 = vsel %vm1551, %v4591, %v4592
      %v4594 = vrot.slane %v4592, 4
      %v4595 = vrot.slane %v4536, 7
      %v4596 = vsel %vm1551, %v4594, %v4595
      %v4597 = vrot.slane %v4537, 7
      %v4598 = vrot.slane %v4597, 4
      %v4599 = vrot.slane %v4538, 7
      %v4600 = vsel %vm1551, %v4598, %v4599
      %v4601 = vrot.slane %v4599, 4
      %v4602 = vrot.slane %v4539, 7
      %v4603 = vsel %vm1551, %v4601, %v4602
      %v4604 = vrot.slane %v4540, 7
      %v4605 = vrot.slane %v4604, 4
      %v4606 = vrot.slane %v4541, 7
      %v4607 = vsel %vm1551, %v4605, %v4606
      %v4608 = vrot.slane %v4606, 4
      %v4609 = vrot.slane %v4542, 7
      %v4610 = vsel %vm1551, %v4608, %v4609
      %v4611 = vrot.slane %v4543, 7
      %v4612 = vrot.slane %v4611, 4
      %v4613 = vrot.slane %v4544, 7
      %v4614 = vsel %vm1551, %v4612, %v4613
      %v4615 = vrot.slane %v4613, 4
      %v4616 = vrot.slane %v4545, 7
      %v4617 = vsel %vm1551, %v4615, %v4616
      %v4618 = vrot.slane %v4546, 7
      %v4619 = vrot.slane %v4618, 4
      %v4620 = vrot.slane %v4547, 7
      %v4621 = vsel %vm1551, %v4619, %v4620
      %v4622 = vrot.slane %v4620, 4
      %v4623 = vrot.slane %v4548, 7
      %v4624 = vsel %vm1551, %v4622, %v4623
      %v4625 = vrot.slane %v4549, 7
      %v4626 = vrot.slane %v4625, 4
      %v4627 = vrot.slane %v4550, 7
      %v4628 = vsel %vm1551, %v4626, %v4627
      %v4629 = vrot.slane %v4627, 4
      %v4630 = vrot.slane %v4551, 7
      %v4631 = vsel %vm1551, %v4629, %v4630
      %4632 = vrot.lane.b32.xlu0 %v4579, 80
      %v4633 = vpop.permute.xlu0 %4632
      %4634 = vrot.lane.b32.xlu0 %v4582, 80
      %v4635 = vpop.permute.xlu0 %4634
      %4636 = vrot.lane.b32.xlu0 %v4586, 80
      %v4637 = vpop.permute.xlu0 %4636
      %4638 = vrot.lane.b32.xlu0 %v4589, 80
      %v4639 = vpop.permute.xlu0 %4638
      %4640 = vrot.lane.b32.xlu0 %v4593, 80
      %v4641 = vpop.permute.xlu0 %4640
      %4642 = vrot.lane.b32.xlu0 %v4596, 80
      %v4643 = vpop.permute.xlu0 %4642
      %4644 = vrot.lane.b32.xlu0 %v4600, 80
      %v4645 = vpop.permute.xlu0 %4644
      %4646 = vrot.lane.b32.xlu0 %v4603, 80
      %v4647 = vpop.permute.xlu0 %4646
      %4648 = vrot.lane.b32.xlu0 %v4607, 80
      %v4649 = vpop.permute.xlu0 %4648
      %4650 = vrot.lane.b32.xlu0 %v4610, 80
      %v4651 = vpop.permute.xlu0 %4650
      %4652 = vrot.lane.b32.xlu0 %v4614, 80
      %v4653 = vpop.permute.xlu0 %4652
      %4654 = vrot.lane.b32.xlu0 %v4617, 80
      %v4655 = vpop.permute.xlu0 %4654
      %4656 = vrot.lane.b32.xlu0 %v4621, 80
      %v4657 = vpop.permute.xlu0 %4656
      %4658 = vrot.lane.b32.xlu0 %v4624, 80
      %v4659 = vpop.permute.xlu0 %4658
      %4660 = vrot.lane.b32.xlu0 %v4628, 80
      %v4661 = vpop.permute.xlu0 %4660
      %4662 = vrot.lane.b32.xlu0 %v4631, 80
      %v4663 = vpop.permute.xlu0 %4662
      %vm4680 = vcmask 683648
      %4681 = vst.msk [vmem:[#allocation2] sm:$0xf] %vm4680, %v4633
      %4682 = vst.msk [vmem:[#allocation2 + $0x8] sm:$0xf] %vm4680, %v4635
      %4683 = vst.msk [vmem:[#allocation2 + $0x10] sm:$0xf] %vm4680, %v4637
      %4684 = vst.msk [vmem:[#allocation2 + $0x18] sm:$0xf] %vm4680, %v4639
      %4685 = vst.msk [vmem:[#allocation2 + $0x20] sm:$0xf] %vm4680, %v4641
      %4686 = vst.msk [vmem:[#allocation2 + $0x28] sm:$0xf] %vm4680, %v4643
      %4687 = vst.msk [vmem:[#allocation2 + $0x30] sm:$0xf] %vm4680, %v4645
      %4688 = vst.msk [vmem:[#allocation2 + $0x38] sm:$0xf] %vm4680, %v4647
      %4689 = vst.msk [vmem:[#allocation2 + $0x40] sm:$0xf] %vm4680, %v4649
      %4690 = vst.msk [vmem:[#allocation2 + $0x48] sm:$0xf] %vm4680, %v4651
      %4691 = vst.msk [vmem:[#allocation2 + $0x50] sm:$0xf] %vm4680, %v4653
      %4692 = vst.msk [vmem:[#allocation2 + $0x58] sm:$0xf] %vm4680, %v4655
      %4693 = vst.msk [vmem:[#allocation2 + $0x60] sm:$0xf] %vm4680, %v4657
      %4694 = vst.msk [vmem:[#allocation2 + $0x68] sm:$0xf] %vm4680, %v4659
      %4695 = vst.msk [vmem:[#allocation2 + $0x70] sm:$0xf] %vm4680, %v4661
      %4696 = vst.msk [vmem:[#allocation2 + $0x78] sm:$0xf] %vm4680, %v4663
      %s4697 = scalar_lea.vmem %s197, 36
      %v4698 = vld [vmem:[%s4697] sm:$0xf]
      %v4699 = vld [vmem:[%s4697 + $0x4] sm:$0xf]
      %v4700 = vld [vmem:[%s4697 + $0xc] sm:$0xf]
      %v4701 = vld [vmem:[%s4697 + $0x10] sm:$0xf]
      %v4702 = vld [vmem:[%s4697 + $0x18] sm:$0xf]
      %v4703 = vld [vmem:[%s4697 + $0x1c] sm:$0xf]
      %v4704 = vld [vmem:[%s4697 + $0x24] sm:$0xf]
      %v4705 = vld [vmem:[%s4697 + $0x28] sm:$0xf]
      %v4706 = vld [vmem:[%s4697 + $0x30] sm:$0xf]
      %v4707 = vld [vmem:[%s4697 + $0x34] sm:$0xf]
      %v4708 = vld [vmem:[%s4697 + $0x3c] sm:$0xf]
      %v4709 = vld [vmem:[%s4697 + $0x40] sm:$0xf]
      %v4710 = vld [vmem:[%s4697 + $0x48] sm:$0xf]
      %v4711 = vld [vmem:[%s4697 + $0x4c] sm:$0xf]
      %v4712 = vld [vmem:[%s4697 + $0x54] sm:$0xf]
      %v4713 = vld [vmem:[%s4697 + $0x58] sm:$0xf]
      %4730 = vrot.lane.b32.xlu0 %v4698, 84
      %v4731 = vpop.permute.xlu0 %4730
      %4732 = vrot.lane.b32.xlu0 %v4699, 84
      %v4733 = vpop.permute.xlu0 %4732
      %4734 = vrot.lane.b32.xlu0 %v4700, 84
      %v4735 = vpop.permute.xlu0 %4734
      %4736 = vrot.lane.b32.xlu0 %v4701, 84
      %v4737 = vpop.permute.xlu0 %4736
      %4738 = vrot.lane.b32.xlu0 %v4702, 84
      %v4739 = vpop.permute.xlu0 %4738
      %4740 = vrot.lane.b32.xlu0 %v4703, 84
      %v4741 = vpop.permute.xlu0 %4740
      %4742 = vrot.lane.b32.xlu0 %v4704, 84
      %v4743 = vpop.permute.xlu0 %4742
      %4744 = vrot.lane.b32.xlu0 %v4705, 84
      %v4745 = vpop.permute.xlu0 %4744
      %4746 = vrot.lane.b32.xlu0 %v4706, 84
      %v4747 = vpop.permute.xlu0 %4746
      %4748 = vrot.lane.b32.xlu0 %v4707, 84
      %v4749 = vpop.permute.xlu0 %4748
      %4750 = vrot.lane.b32.xlu0 %v4708, 84
      %v4751 = vpop.permute.xlu0 %4750
      %4752 = vrot.lane.b32.xlu0 %v4709, 84
      %v4753 = vpop.permute.xlu0 %4752
      %4754 = vrot.lane.b32.xlu0 %v4710, 84
      %v4755 = vpop.permute.xlu0 %4754
      %4756 = vrot.lane.b32.xlu0 %v4711, 84
      %v4757 = vpop.permute.xlu0 %4756
      %4758 = vrot.lane.b32.xlu0 %v4712, 84
      %v4759 = vpop.permute.xlu0 %4758
      %4760 = vrot.lane.b32.xlu0 %v4713, 84
      %v4761 = vpop.permute.xlu0 %4760
      %vm4778 = vcmask 716448
      %4779 = vst.msk [vmem:[#allocation2] sm:$0xf] %vm4778, %v4731
      %4780 = vst.msk [vmem:[#allocation2 + $0x8] sm:$0xf] %vm4778, %v4733
      %4781 = vst.msk [vmem:[#allocation2 + $0x10] sm:$0xf] %vm4778, %v4735
      %4782 = vst.msk [vmem:[#allocation2 + $0x18] sm:$0xf] %vm4778, %v4737
      %4783 = vst.msk [vmem:[#allocation2 + $0x20] sm:$0xf] %vm4778, %v4739
      %4784 = vst.msk [vmem:[#allocation2 + $0x28] sm:$0xf] %vm4778, %v4741
      %4785 = vst.msk [vmem:[#allocation2 + $0x30] sm:$0xf] %vm4778, %v4743
      %4786 = vst.msk [vmem:[#allocation2 + $0x38] sm:$0xf] %vm4778, %v4745
      %4787 = vst.msk [vmem:[#allocation2 + $0x40] sm:$0xf] %vm4778, %v4747
      %4788 = vst.msk [vmem:[#allocation2 + $0x48] sm:$0xf] %vm4778, %v4749
      %4789 = vst.msk [vmem:[#allocation2 + $0x50] sm:$0xf] %vm4778, %v4751
      %4790 = vst.msk [vmem:[#allocation2 + $0x58] sm:$0xf] %vm4778, %v4753
      %4791 = vst.msk [vmem:[#allocation2 + $0x60] sm:$0xf] %vm4778, %v4755
      %4792 = vst.msk [vmem:[#allocation2 + $0x68] sm:$0xf] %vm4778, %v4757
      %4793 = vst.msk [vmem:[#allocation2 + $0x70] sm:$0xf] %vm4778, %v4759
      %4794 = vst.msk [vmem:[#allocation2 + $0x78] sm:$0xf] %vm4778, %v4761
      %v4795 = vld [vmem:[%s4697] sm:$0xf]
      %v4796 = vld [vmem:[%s4697 + $0x4] sm:$0xf]
      %v4797 = vld [vmem:[%s4697 + $0x8] sm:$0x1]
      %v4798 = vld [vmem:[%s4697 + $0xc] sm:$0xf]
      %v4799 = vld [vmem:[%s4697 + $0x10] sm:$0xf]
      %v4800 = vld [vmem:[%s4697 + $0x14] sm:$0x1]
      %v4801 = vld [vmem:[%s4697 + $0x18] sm:$0xf]
      %v4802 = vld [vmem:[%s4697 + $0x1c] sm:$0xf]
      %v4803 = vld [vmem:[%s4697 + $0x20] sm:$0x1]
      %v4804 = vld [vmem:[%s4697 + $0x24] sm:$0xf]
      %v4805 = vld [vmem:[%s4697 + $0x28] sm:$0xf]
      %v4806 = vld [vmem:[%s4697 + $0x2c] sm:$0x1]
      %v4807 = vld [vmem:[%s4697 + $0x30] sm:$0xf]
      %v4808 = vld [vmem:[%s4697 + $0x34] sm:$0xf]
      %v4809 = vld [vmem:[%s4697 + $0x38] sm:$0x1]
      %v4810 = vld [vmem:[%s4697 + $0x3c] sm:$0xf]
      %v4811 = vld [vmem:[%s4697 + $0x40] sm:$0xf]
      %v4812 = vld [vmem:[%s4697 + $0x44] sm:$0x1]
      %v4813 = vld [vmem:[%s4697 + $0x48] sm:$0xf]
      %v4814 = vld [vmem:[%s4697 + $0x4c] sm:$0xf]
      %v4815 = vld [vmem:[%s4697 + $0x50] sm:$0x1]
      %v4816 = vld [vmem:[%s4697 + $0x54] sm:$0xf]
      %v4817 = vld [vmem:[%s4697 + $0x58] sm:$0xf]
      %v4818 = vld [vmem:[%s4697 + $0x5c] sm:$0x1]
      %v4820 = vshrl.u32 %v4795, 16
      %v4822 = vrot.slane %v4820, 4
      %v4823 = vshll.u32 %v4795, 16
      %v4825 = vrot.slane %v4823, 5
      %v4826 = vor.u32 %v4822, %v4825
      %v4827 = vrot.slane %v4826, 4
      %v4829 = vshll.u32 %v4796, 16
      %v4831 = vrot.slane %v4829, 5
      %v4832 = vsel %vm267, %v4827, %v4831
      %v4833 = vshrl.u32 %v4796, 16
      %v4835 = vrot.slane %v4833, 4
      %v4836 = vor.u32 %v4835, %v4831
      %v4837 = vrot.slane %v4836, 4
      %v4839 = vshll.u32 %v4797, 16
      %v4841 = vrot.slane %v4839, 5
      %v4842 = vsel %vm267, %v4837, %v4841
      %v4844 = vshrl.u32 %v4798, 16
      %v4846 = vrot.slane %v4844, 4
      %v4847 = vshll.u32 %v4798, 16
      %v4849 = vrot.slane %v4847, 5
      %v4850 = vor.u32 %v4846, %v4849
      %v4851 = vrot.slane %v4850, 4
      %v4853 = vshll.u32 %v4799, 16
      %v4855 = vrot.slane %v4853, 5
      %v4856 = vsel %vm267, %v4851, %v4855
      %v4857 = vshrl.u32 %v4799, 16
      %v4859 = vrot.slane %v4857, 4
      %v4860 = vor.u32 %v4859, %v4855
      %v4861 = vrot.slane %v4860, 4
      %v4863 = vshll.u32 %v4800, 16
      %v4865 = vrot.slane %v4863, 5
      %v4866 = vsel %vm267, %v4861, %v4865
      %v4868 = vshrl.u32 %v4801, 16
      %v4870 = vrot.slane %v4868, 4
      %v4871 = vshll.u32 %v4801, 16
      %v4873 = vrot.slane %v4871, 5
      %v4874 = vor.u32 %v4870, %v4873
      %v4875 = vrot.slane %v4874, 4
      %v4877 = vshll.u32 %v4802, 16
      %v4879 = vrot.slane %v4877, 5
      %v4880 = vsel %vm267, %v4875, %v4879
      %v4881 = vshrl.u32 %v4802, 16
      %v4883 = vrot.slane %v4881, 4
      %v4884 = vor.u32 %v4883, %v4879
      %v4885 = vrot.slane %v4884, 4
      %v4887 = vshll.u32 %v4803, 16
      %v4889 = vrot.slane %v4887, 5
      %v4890 = vsel %vm267, %v4885, %v4889
      %v4892 = vshrl.u32 %v4804, 16
      %v4894 = vrot.slane %v4892, 4
      %v4895 = vshll.u32 %v4804, 16
      %v4897 = vrot.slane %v4895, 5
      %v4898 = vor.u32 %v4894, %v4897
      %v4899 = vrot.slane %v4898, 4
      %v4901 = vshll.u32 %v4805, 16
      %v4903 = vrot.slane %v4901, 5
      %v4904 = vsel %vm267, %v4899, %v4903
      %v4905 = vshrl.u32 %v4805, 16
      %v4907 = vrot.slane %v4905, 4
      %v4908 = vor.u32 %v4907, %v4903
      %v4909 = vrot.slane %v4908, 4
      %v4911 = vshll.u32 %v4806, 16
      %v4913 = vrot.slane %v4911, 5
      %v4914 = vsel %vm267, %v4909, %v4913
      %v4916 = vshrl.u32 %v4807, 16
      %v4918 = vrot.slane %v4916, 4
      %v4919 = vshll.u32 %v4807, 16
      %v4921 = vrot.slane %v4919, 5
      %v4922 = vor.u32 %v4918, %v4921
      %v4923 = vrot.slane %v4922, 4
      %v4925 = vshll.u32 %v4808, 16
      %v4927 = vrot.slane %v4925, 5
      %v4928 = vsel %vm267, %v4923, %v4927
      %v4929 = vshrl.u32 %v4808, 16
      %v4931 = vrot.slane %v4929, 4
      %v4932 = vor.u32 %v4931, %v4927
      %v4933 = vrot.slane %v4932, 4
      %v4935 = vshll.u32 %v4809, 16
      %v4937 = vrot.slane %v4935, 5
      %v4938 = vsel %vm267, %v4933, %v4937
      %v4940 = vshrl.u32 %v4810, 16
      %v4942 = vrot.slane %v4940, 4
      %v4943 = vshll.u32 %v4810, 16
      %v4945 = vrot.slane %v4943, 5
      %v4946 = vor.u32 %v4942, %v4945
      %v4947 = vrot.slane %v4946, 4
      %v4949 = vshll.u32 %v4811, 16
      %v4951 = vrot.slane %v4949, 5
      %v4952 = vsel %vm267, %v4947, %v4951
      %v4953 = vshrl.u32 %v4811, 16
      %v4955 = vrot.slane %v4953, 4
      %v4956 = vor.u32 %v4955, %v4951
      %v4957 = vrot.slane %v4956, 4
      %v4959 = vshll.u32 %v4812, 16
      %v4961 = vrot.slane %v4959, 5
      %v4962 = vsel %vm267, %v4957, %v4961
      %v4964 = vshrl.u32 %v4813, 16
      %v4966 = vrot.slane %v4964, 4
      %v4967 = vshll.u32 %v4813, 16
      %v4969 = vrot.slane %v4967, 5
      %v4970 = vor.u32 %v4966, %v4969
      %v4971 = vrot.slane %v4970, 4
      %v4973 = vshll.u32 %v4814, 16
      %v4975 = vrot.slane %v4973, 5
      %v4976 = vsel %vm267, %v4971, %v4975
      %v4977 = vshrl.u32 %v4814, 16
      %v4979 = vrot.slane %v4977, 4
      %v4980 = vor.u32 %v4979, %v4975
      %v4981 = vrot.slane %v4980, 4
      %v4983 = vshll.u32 %v4815, 16
      %v4985 = vrot.slane %v4983, 5
      %v4986 = vsel %vm267, %v4981, %v4985
      %v4988 = vshrl.u32 %v4816, 16
      %v4990 = vrot.slane %v4988, 4
      %v4991 = vshll.u32 %v4816, 16
      %v4993 = vrot.slane %v4991, 5
      %v4994 = vor.u32 %v4990, %v4993
      %v4995 = vrot.slane %v4994, 4
      %v4997 = vshll.u32 %v4817, 16
      %v4999 = vrot.slane %v4997, 5
      %v5000 = vsel %vm267, %v4995, %v4999
      %v5001 = vshrl.u32 %v4817, 16
      %v5003 = vrot.slane %v5001, 4
      %v5004 = vor.u32 %v5003, %v4999
      %v5005 = vrot.slane %v5004, 4
      %v5007 = vshll.u32 %v4818, 16
      %v5009 = vrot.slane %v5007, 5
      %v5010 = vsel %vm267, %v5005, %v5009
      %5011 = vrot.lane.b32.xlu0 %v4832, 88
      %v5012 = vpop.permute.xlu0 %5011
      %5013 = vrot.lane.b32.xlu0 %v4842, 88
      %v5014 = vpop.permute.xlu0 %5013
      %5015 = vrot.lane.b32.xlu0 %v4856, 88
      %v5016 = vpop.permute.xlu0 %5015
      %5017 = vrot.lane.b32.xlu0 %v4866, 88
      %v5018 = vpop.permute.xlu0 %5017
      %5019 = vrot.lane.b32.xlu0 %v4880, 88
      %v5020 = vpop.permute.xlu0 %5019
      %5021 = vrot.lane.b32.xlu0 %v4890, 88
      %v5022 = vpop.permute.xlu0 %5021
      %5023 = vrot.lane.b32.xlu0 %v4904, 88
      %v5024 = vpop.permute.xlu0 %5023
      %5025 = vrot.lane.b32.xlu0 %v4914, 88
      %v5026 = vpop.permute.xlu0 %5025
      %5027 = vrot.lane.b32.xlu0 %v4928, 88
      %v5028 = vpop.permute.xlu0 %5027
      %5029 = vrot.lane.b32.xlu0 %v4938, 88
      %v5030 = vpop.permute.xlu0 %5029
      %5031 = vrot.lane.b32.xlu0 %v4952, 88
      %v5032 = vpop.permute.xlu0 %5031
      %5033 = vrot.lane.b32.xlu0 %v4962, 88
      %v5034 = vpop.permute.xlu0 %5033
      %5035 = vrot.lane.b32.xlu0 %v4976, 88
      %v5036 = vpop.permute.xlu0 %5035
      %5037 = vrot.lane.b32.xlu0 %v4986, 88
      %v5038 = vpop.permute.xlu0 %5037
      %5039 = vrot.lane.b32.xlu0 %v5000, 88
      %v5040 = vpop.permute.xlu0 %5039
      %5041 = vrot.lane.b32.xlu0 %v5010, 88
      %v5042 = vpop.permute.xlu0 %5041
      %vm5059 = vcmask 749248
      %5060 = vst.msk [vmem:[#allocation2] sm:$0xf] %vm5059, %v5012
      %5061 = vst.msk [vmem:[#allocation2 + $0x8] sm:$0xf] %vm5059, %v5014
      %5062 = vst.msk [vmem:[#allocation2 + $0x10] sm:$0xf] %vm5059, %v5016
      %5063 = vst.msk [vmem:[#allocation2 + $0x18] sm:$0xf] %vm5059, %v5018
      %5064 = vst.msk [vmem:[#allocation2 + $0x20] sm:$0xf] %vm5059, %v5020
      %5065 = vst.msk [vmem:[#allocation2 + $0x28] sm:$0xf] %vm5059, %v5022
      %5066 = vst.msk [vmem:[#allocation2 + $0x30] sm:$0xf] %vm5059, %v5024
      %5067 = vst.msk [vmem:[#allocation2 + $0x38] sm:$0xf] %vm5059, %v5026
      %5068 = vst.msk [vmem:[#allocation2 + $0x40] sm:$0xf] %vm5059, %v5028
      %5069 = vst.msk [vmem:[#allocation2 + $0x48] sm:$0xf] %vm5059, %v5030
      %5070 = vst.msk [vmem:[#allocation2 + $0x50] sm:$0xf] %vm5059, %v5032
      %5071 = vst.msk [vmem:[#allocation2 + $0x58] sm:$0xf] %vm5059, %v5034
      %5072 = vst.msk [vmem:[#allocation2 + $0x60] sm:$0xf] %vm5059, %v5036
      %5073 = vst.msk [vmem:[#allocation2 + $0x68] sm:$0xf] %vm5059, %v5038
      %5074 = vst.msk [vmem:[#allocation2 + $0x70] sm:$0xf] %vm5059, %v5040
      %5075 = vst.msk [vmem:[#allocation2 + $0x78] sm:$0xf] %vm5059, %v5042
      %v5076 = vld [vmem:[%s4697] sm:$0xe]
      %v5077 = vld [vmem:[%s4697 + $0x4] sm:$0xf]
      %v5078 = vld [vmem:[%s4697 + $0x8] sm:$0x1]
      %v5079 = vld [vmem:[%s4697 + $0xc] sm:$0xe]
      %v5080 = vld [vmem:[%s4697 + $0x10] sm:$0xf]
      %v5081 = vld [vmem:[%s4697 + $0x14] sm:$0x1]
      %v5082 = vld [vmem:[%s4697 + $0x18] sm:$0xe]
      %v5083 = vld [vmem:[%s4697 + $0x1c] sm:$0xf]
      %v5084 = vld [vmem:[%s4697 + $0x20] sm:$0x1]
      %v5085 = vld [vmem:[%s4697 + $0x24] sm:$0xe]
      %v5086 = vld [vmem:[%s4697 + $0x28] sm:$0xf]
      %v5087 = vld [vmem:[%s4697 + $0x2c] sm:$0x1]
      %v5088 = vld [vmem:[%s4697 + $0x30] sm:$0xe]
      %v5089 = vld [vmem:[%s4697 + $0x34] sm:$0xf]
      %v5090 = vld [vmem:[%s4697 + $0x38] sm:$0x1]
      %v5091 = vld [vmem:[%s4697 + $0x3c] sm:$0xe]
      %v5092 = vld [vmem:[%s4697 + $0x40] sm:$0xf]
      %v5093 = vld [vmem:[%s4697 + $0x44] sm:$0x1]
      %v5094 = vld [vmem:[%s4697 + $0x48] sm:$0xe]
      %v5095 = vld [vmem:[%s4697 + $0x4c] sm:$0xf]
      %v5096 = vld [vmem:[%s4697 + $0x50] sm:$0x1]
      %v5097 = vld [vmem:[%s4697 + $0x54] sm:$0xe]
      %v5098 = vld [vmem:[%s4697 + $0x58] sm:$0xf]
      %v5099 = vld [vmem:[%s4697 + $0x5c] sm:$0x1]
      %v5124 = vrot.slane %v5076, 5
      %v5125 = vrot.slane %v5124, 4
      %v5126 = vrot.slane %v5077, 5
      %v5127 = vsel %vm575, %v5125, %v5126
      %v5128 = vrot.slane %v5126, 4
      %v5129 = vrot.slane %v5078, 5
      %v5130 = vsel %vm575, %v5128, %v5129
      %v5131 = vrot.slane %v5079, 5
      %v5132 = vrot.slane %v5131, 4
      %v5133 = vrot.slane %v5080, 5
      %v5134 = vsel %vm575, %v5132, %v5133
      %v5135 = vrot.slane %v5133, 4
      %v5136 = vrot.slane %v5081, 5
      %v5137 = vsel %vm575, %v5135, %v5136
      %v5138 = vrot.slane %v5082, 5
      %v5139 = vrot.slane %v5138, 4
      %v5140 = vrot.slane %v5083, 5
      %v5141 = vsel %vm575, %v5139, %v5140
      %v5142 = vrot.slane %v5140, 4
      %v5143 = vrot.slane %v5084, 5
      %v5144 = vsel %vm575, %v5142, %v5143
      %v5145 = vrot.slane %v5085, 5
      %v5146 = vrot.slane %v5145, 4
      %v5147 = vrot.slane %v5086, 5
      %v5148 = vsel %vm575, %v5146, %v5147
      %v5149 = vrot.slane %v5147, 4
      %v5150 = vrot.slane %v5087, 5
      %v5151 = vsel %vm575, %v5149, %v5150
      %v5152 = vrot.slane %v5088, 5
      %v5153 = vrot.slane %v5152, 4
      %v5154 = vrot.slane %v5089, 5
      %v5155 = vsel %vm575, %v5153, %v5154
      %v5156 = vrot.slane %v5154, 4
      %v5157 = vrot.slane %v5090, 5
      %v5158 = vsel %vm575, %v5156, %v5157
      %v5159 = vrot.slane %v5091, 5
      %v5160 = vrot.slane %v5159, 4
      %v5161 = vrot.slane %v5092, 5
      %v5162 = vsel %vm575, %v5160, %v5161
      %v5163 = vrot.slane %v5161, 4
      %v5164 = vrot.slane %v5093, 5
      %v5165 = vsel %vm575, %v5163, %v5164
      %v5166 = vrot.slane %v5094, 5
      %v5167 = vrot.slane %v5166, 4
      %v5168 = vrot.slane %v5095, 5
      %v5169 = vsel %vm575, %v5167, %v5168
      %v5170 = vrot.slane %v5168, 4
      %v5171 = vrot.slane %v5096, 5
      %v5172 = vsel %vm575, %v5170, %v5171
      %v5173 = vrot.slane %v5097, 5
      %v5174 = vrot.slane %v5173, 4
      %v5175 = vrot.slane %v5098, 5
      %v5176 = vsel %vm575, %v5174, %v5175
      %v5177 = vrot.slane %v5175, 4
      %v5178 = vrot.slane %v5099, 5
      %v5179 = vsel %vm575, %v5177, %v5178
      %5180 = vrot.lane.b32.xlu0 %v5127, 92
      %v5181 = vpop.permute.xlu0 %5180
      %5182 = vrot.lane.b32.xlu0 %v5130, 92
      %v5183 = vpop.permute.xlu0 %5182
      %5184 = vrot.lane.b32.xlu0 %v5134, 92
      %v5185 = vpop.permute.xlu0 %5184
      %5186 = vrot.lane.b32.xlu0 %v5137, 92
      %v5187 = vpop.permute.xlu0 %5186
      %5188 = vrot.lane.b32.xlu0 %v5141, 92
      %v5189 = vpop.permute.xlu0 %5188
      %5190 = vrot.lane.b32.xlu0 %v5144, 92
      %v5191 = vpop.permute.xlu0 %5190
      %5192 = vrot.lane.b32.xlu0 %v5148, 92
      %v5193 = vpop.permute.xlu0 %5192
      %5194 = vrot.lane.b32.xlu0 %v5151, 92
      %v5195 = vpop.permute.xlu0 %5194
      %5196 = vrot.lane.b32.xlu0 %v5155, 92
      %v5197 = vpop.permute.xlu0 %5196
      %5198 = vrot.lane.b32.xlu0 %v5158, 92
      %v5199 = vpop.permute.xlu0 %5198
      %5200 = vrot.lane.b32.xlu0 %v5162, 92
      %v5201 = vpop.permute.xlu0 %5200
      %5202 = vrot.lane.b32.xlu0 %v5165, 92
      %v5203 = vpop.permute.xlu0 %5202
      %5204 = vrot.lane.b32.xlu0 %v5169, 92
      %v5205 = vpop.permute.xlu0 %5204
      %5206 = vrot.lane.b32.xlu0 %v5172, 92
      %v5207 = vpop.permute.xlu0 %5206
      %5208 = vrot.lane.b32.xlu0 %v5176, 92
      %v5209 = vpop.permute.xlu0 %5208
      %5210 = vrot.lane.b32.xlu0 %v5179, 92
      %v5211 = vpop.permute.xlu0 %5210
      %vm5228 = vcmask 782048
      %5229 = vst.msk [vmem:[#allocation2] sm:$0xf] %vm5228, %v5181
      %5230 = vst.msk [vmem:[#allocation2 + $0x8] sm:$0xf] %vm5228, %v5183
      %5231 = vst.msk [vmem:[#allocation2 + $0x10] sm:$0xf] %vm5228, %v5185
      %5232 = vst.msk [vmem:[#allocation2 + $0x18] sm:$0xf] %vm5228, %v5187
      %5233 = vst.msk [vmem:[#allocation2 + $0x20] sm:$0xf] %vm5228, %v5189
      %5234 = vst.msk [vmem:[#allocation2 + $0x28] sm:$0xf] %vm5228, %v5191
      %5235 = vst.msk [vmem:[#allocation2 + $0x30] sm:$0xf] %vm5228, %v5193
      %5236 = vst.msk [vmem:[#allocation2 + $0x38] sm:$0xf] %vm5228, %v5195
      %5237 = vst.msk [vmem:[#allocation2 + $0x40] sm:$0xf] %vm5228, %v5197
      %5238 = vst.msk [vmem:[#allocation2 + $0x48] sm:$0xf] %vm5228, %v5199
      %5239 = vst.msk [vmem:[#allocation2 + $0x50] sm:$0xf] %vm5228, %v5201
      %5240 = vst.msk [vmem:[#allocation2 + $0x58] sm:$0xf] %vm5228, %v5203
      %5241 = vst.msk [vmem:[#allocation2 + $0x60] sm:$0xf] %vm5228, %v5205
      %5242 = vst.msk [vmem:[#allocation2 + $0x68] sm:$0xf] %vm5228, %v5207
      %5243 = vst.msk [vmem:[#allocation2 + $0x70] sm:$0xf] %vm5228, %v5209
      %5244 = vst.msk [vmem:[#allocation2 + $0x78] sm:$0xf] %vm5228, %v5211
      %v5245 = vld [vmem:[%s4697] sm:$0xe]
      %v5246 = vld [vmem:[%s4697 + $0x4] sm:$0xf]
      %v5247 = vld [vmem:[%s4697 + $0x8] sm:$0x3]
      %v5248 = vld [vmem:[%s4697 + $0xc] sm:$0xe]
      %v5249 = vld [vmem:[%s4697 + $0x10] sm:$0xf]
      %v5250 = vld [vmem:[%s4697 + $0x14] sm:$0x3]
      %v5251 = vld [vmem:[%s4697 + $0x18] sm:$0xe]
      %v5252 = vld [vmem:[%s4697 + $0x1c] sm:$0xf]
      %v5253 = vld [vmem:[%s4697 + $0x20] sm:$0x3]
      %v5254 = vld [vmem:[%s4697 + $0x24] sm:$0xe]
      %v5255 = vld [vmem:[%s4697 + $0x28] sm:$0xf]
      %v5256 = vld [vmem:[%s4697 + $0x2c] sm:$0x3]
      %v5257 = vld [vmem:[%s4697 + $0x30] sm:$0xe]
      %v5258 = vld [vmem:[%s4697 + $0x34] sm:$0xf]
      %v5259 = vld [vmem:[%s4697 + $0x38] sm:$0x3]
      %v5260 = vld [vmem:[%s4697 + $0x3c] sm:$0xe]
      %v5261 = vld [vmem:[%s4697 + $0x40] sm:$0xf]
      %v5262 = vld [vmem:[%s4697 + $0x44] sm:$0x3]
      %v5263 = vld [vmem:[%s4697 + $0x48] sm:$0xe]
      %v5264 = vld [vmem:[%s4697 + $0x4c] sm:$0xf]
      %v5265 = vld [vmem:[%s4697 + $0x50] sm:$0x3]
      %v5266 = vld [vmem:[%s4697 + $0x54] sm:$0xe]
      %v5267 = vld [vmem:[%s4697 + $0x58] sm:$0xf]
      %v5268 = vld [vmem:[%s4697 + $0x5c] sm:$0x3]
      %v5270 = vshrl.u32 %v5245, 16
      %v5272 = vrot.slane %v5270, 5
      %v5273 = vshll.u32 %v5245, 16
      %v5275 = vrot.slane %v5273, 6
      %v5276 = vor.u32 %v5272, %v5275
      %v5277 = vrot.slane %v5276, 4
      %v5279 = vshrl.u32 %v5246, 16
      %v5281 = vrot.slane %v5279, 5
      %v5282 = vshll.u32 %v5246, 16
      %v5284 = vrot.slane %v5282, 6
      %v5285 = vor.u32 %v5281, %v5284
      %v5286 = vsel %vm723, %v5277, %v5285
      %v5287 = vrot.slane %v5285, 4
      %v5289 = vshrl.u32 %v5247, 16
      %v5291 = vrot.slane %v5289, 5
      %v5292 = vshll.u32 %v5247, 16
      %v5294 = vrot.slane %v5292, 6
      %v5295 = vor.u32 %v5291, %v5294
      %v5296 = vsel %vm723, %v5287, %v5295
      %v5298 = vshrl.u32 %v5248, 16
      %v5300 = vrot.slane %v5298, 5
      %v5301 = vshll.u32 %v5248, 16
      %v5303 = vrot.slane %v5301, 6
      %v5304 = vor.u32 %v5300, %v5303
      %v5305 = vrot.slane %v5304, 4
      %v5307 = vshrl.u32 %v5249, 16
      %v5309 = vrot.slane %v5307, 5
      %v5310 = vshll.u32 %v5249, 16
      %v5312 = vrot.slane %v5310, 6
      %v5313 = vor.u32 %v5309, %v5312
      %v5314 = vsel %vm723, %v5305, %v5313
      %v5315 = vrot.slane %v5313, 4
      %v5317 = vshrl.u32 %v5250, 16
      %v5319 = vrot.slane %v5317, 5
      %v5320 = vshll.u32 %v5250, 16
      %v5322 = vrot.slane %v5320, 6
      %v5323 = vor.u32 %v5319, %v5322
      %v5324 = vsel %vm723, %v5315, %v5323
      %v5326 = vshrl.u32 %v5251, 16
      %v5328 = vrot.slane %v5326, 5
      %v5329 = vshll.u32 %v5251, 16
      %v5331 = vrot.slane %v5329, 6
      %v5332 = vor.u32 %v5328, %v5331
      %v5333 = vrot.slane %v5332, 4
      %v5335 = vshrl.u32 %v5252, 16
      %v5337 = vrot.slane %v5335, 5
      %v5338 = vshll.u32 %v5252, 16
      %v5340 = vrot.slane %v5338, 6
      %v5341 = vor.u32 %v5337, %v5340
      %v5342 = vsel %vm723, %v5333, %v5341
      %v5343 = vrot.slane %v5341, 4
      %v5345 = vshrl.u32 %v5253, 16
      %v5347 = vrot.slane %v5345, 5
      %v5348 = vshll.u32 %v5253, 16
      %v5350 = vrot.slane %v5348, 6
      %v5351 = vor.u32 %v5347, %v5350
      %v5352 = vsel %vm723, %v5343, %v5351
      %v5354 = vshrl.u32 %v5254, 16
      %v5356 = vrot.slane %v5354, 5
      %v5357 = vshll.u32 %v5254, 16
      %v5359 = vrot.slane %v5357, 6
      %v5360 = vor.u32 %v5356, %v5359
      %v5361 = vrot.slane %v5360, 4
      %v5363 = vshrl.u32 %v5255, 16
      %v5365 = vrot.slane %v5363, 5
      %v5366 = vshll.u32 %v5255, 16
      %v5368 = vrot.slane %v5366, 6
      %v5369 = vor.u32 %v5365, %v5368
      %v5370 = vsel %vm723, %v5361, %v5369
      %v5371 = vrot.slane %v5369, 4
      %v5373 = vshrl.u32 %v5256, 16
      %v5375 = vrot.slane %v5373, 5
      %v5376 = vshll.u32 %v5256, 16
      %v5378 = vrot.slane %v5376, 6
      %v5379 = vor.u32 %v5375, %v5378
      %v5380 = vsel %vm723, %v5371, %v5379
      %v5382 = vshrl.u32 %v5257, 16
      %v5384 = vrot.slane %v5382, 5
      %v5385 = vshll.u32 %v5257, 16
      %v5387 = vrot.slane %v5385, 6
      %v5388 = vor.u32 %v5384, %v5387
      %v5389 = vrot.slane %v5388, 4
      %v5391 = vshrl.u32 %v5258, 16
      %v5393 = vrot.slane %v5391, 5
      %v5394 = vshll.u32 %v5258, 16
      %v5396 = vrot.slane %v5394, 6
      %v5397 = vor.u32 %v5393, %v5396
      %v5398 = vsel %vm723, %v5389, %v5397
      %v5399 = vrot.slane %v5397, 4
      %v5401 = vshrl.u32 %v5259, 16
      %v5403 = vrot.slane %v5401, 5
      %v5404 = vshll.u32 %v5259, 16
      %v5406 = vrot.slane %v5404, 6
      %v5407 = vor.u32 %v5403, %v5406
      %v5408 = vsel %vm723, %v5399, %v5407
      %v5410 = vshrl.u32 %v5260, 16
      %v5412 = vrot.slane %v5410, 5
      %v5413 = vshll.u32 %v5260, 16
      %v5415 = vrot.slane %v5413, 6
      %v5416 = vor.u32 %v5412, %v5415
      %v5417 = vrot.slane %v5416, 4
      %v5419 = vshrl.u32 %v5261, 16
      %v5421 = vrot.slane %v5419, 5
      %v5422 = vshll.u32 %v5261, 16
      %v5424 = vrot.slane %v5422, 6
      %v5425 = vor.u32 %v5421, %v5424
      %v5426 = vsel %vm723, %v5417, %v5425
      %v5427 = vrot.slane %v5425, 4
      %v5429 = vshrl.u32 %v5262, 16
      %v5431 = vrot.slane %v5429, 5
      %v5432 = vshll.u32 %v5262, 16
      %v5434 = vrot.slane %v5432, 6
      %v5435 = vor.u32 %v5431, %v5434
      %v5436 = vsel %vm723, %v5427, %v5435
      %v5438 = vshrl.u32 %v5263, 16
      %v5440 = vrot.slane %v5438, 5
      %v5441 = vshll.u32 %v5263, 16
      %v5443 = vrot.slane %v5441, 6
      %v5444 = vor.u32 %v5440, %v5443
      %v5445 = vrot.slane %v5444, 4
      %v5447 = vshrl.u32 %v5264, 16
      %v5449 = vrot.slane %v5447, 5
      %v5450 = vshll.u32 %v5264, 16
      %v5452 = vrot.slane %v5450, 6
      %v5453 = vor.u32 %v5449, %v5452
      %v5454 = vsel %vm723, %v5445, %v5453
      %v5455 = vrot.slane %v5453, 4
      %v5457 = vshrl.u32 %v5265, 16
      %v5459 = vrot.slane %v5457, 5
      %v5460 = vshll.u32 %v5265, 16
      %v5462 = vrot.slane %v5460, 6
      %v5463 = vor.u32 %v5459, %v5462
      %v5464 = vsel %vm723, %v5455, %v5463
      %v5466 = vshrl.u32 %v5266, 16
      %v5468 = vrot.slane %v5466, 5
      %v5469 = vshll.u32 %v5266, 16
      %v5471 = vrot.slane %v5469, 6
      %v5472 = vor.u32 %v5468, %v5471
      %v5473 = vrot.slane %v5472, 4
      %v5475 = vshrl.u32 %v5267, 16
      %v5477 = vrot.slane %v5475, 5
      %v5478 = vshll.u32 %v5267, 16
      %v5480 = vrot.slane %v5478, 6
      %v5481 = vor.u32 %v5477, %v5480
      %v5482 = vsel %vm723, %v5473, %v5481
      %v5483 = vrot.slane %v5481, 4
      %v5485 = vshrl.u32 %v5268, 16
      %v5487 = vrot.slane %v5485, 5
      %v5488 = vshll.u32 %v5268, 16
      %v5490 = vrot.slane %v5488, 6
      %v5491 = vor.u32 %v5487, %v5490
      %v5492 = vsel %vm723, %v5483, %v5491
      %5493 = vrot.lane.b32.xlu0 %v5286, 96
      %v5494 = vpop.permute.xlu0 %5493
      %5495 = vrot.lane.b32.xlu0 %v5296, 96
      %v5496 = vpop.permute.xlu0 %5495
      %5497 = vrot.lane.b32.xlu0 %v5314, 96
      %v5498 = vpop.permute.xlu0 %5497
      %5499 = vrot.lane.b32.xlu0 %v5324, 96
      %v5500 = vpop.permute.xlu0 %5499
      %5501 = vrot.lane.b32.xlu0 %v5342, 96
      %v5502 = vpop.permute.xlu0 %5501
      %5503 = vrot.lane.b32.xlu0 %v5352, 96
      %v5504 = vpop.permute.xlu0 %5503
      %5505 = vrot.lane.b32.xlu0 %v5370, 96
      %v5506 = vpop.permute.xlu0 %5505
      %5507 = vrot.lane.b32.xlu0 %v5380, 96
      %v5508 = vpop.permute.xlu0 %5507
      %5509 = vrot.lane.b32.xlu0 %v5398, 96
      %v5510 = vpop.permute.xlu0 %5509
      %5511 = vrot.lane.b32.xlu0 %v5408, 96
      %v5512 = vpop.permute.xlu0 %5511
      %5513 = vrot.lane.b32.xlu0 %v5426, 96
      %v5514 = vpop.permute.xlu0 %5513
      %5515 = vrot.lane.b32.xlu0 %v5436, 96
      %v5516 = vpop.permute.xlu0 %5515
      %5517 = vrot.lane.b32.xlu0 %v5454, 96
      %v5518 = vpop.permute.xlu0 %5517
      %5519 = vrot.lane.b32.xlu0 %v5464, 96
      %v5520 = vpop.permute.xlu0 %5519
      %5521 = vrot.lane.b32.xlu0 %v5482, 96
      %v5522 = vpop.permute.xlu0 %5521
      %5523 = vrot.lane.b32.xlu0 %v5492, 96
      %v5524 = vpop.permute.xlu0 %5523
      %vm5541 = vcmask 814848
      %5542 = vst.msk [vmem:[#allocation2] sm:$0xf] %vm5541, %v5494
      %5543 = vst.msk [vmem:[#allocation2 + $0x8] sm:$0xf] %vm5541, %v5496
      %5544 = vst.msk [vmem:[#allocation2 + $0x10] sm:$0xf] %vm5541, %v5498
      %5545 = vst.msk [vmem:[#allocation2 + $0x18] sm:$0xf] %vm5541, %v5500
      %5546 = vst.msk [vmem:[#allocation2 + $0x20] sm:$0xf] %vm5541, %v5502
      %5547 = vst.msk [vmem:[#allocation2 + $0x28] sm:$0xf] %vm5541, %v5504
      %5548 = vst.msk [vmem:[#allocation2 + $0x30] sm:$0xf] %vm5541, %v5506
      %5549 = vst.msk [vmem:[#allocation2 + $0x38] sm:$0xf] %vm5541, %v5508
      %5550 = vst.msk [vmem:[#allocation2 + $0x40] sm:$0xf] %vm5541, %v5510
      %5551 = vst.msk [vmem:[#allocation2 + $0x48] sm:$0xf] %vm5541, %v5512
      %5552 = vst.msk [vmem:[#allocation2 + $0x50] sm:$0xf] %vm5541, %v5514
      %5553 = vst.msk [vmem:[#allocation2 + $0x58] sm:$0xf] %vm5541, %v5516
      %5554 = vst.msk [vmem:[#allocation2 + $0x60] sm:$0xf] %vm5541, %v5518
      %5555 = vst.msk [vmem:[#allocation2 + $0x68] sm:$0xf] %vm5541, %v5520
      %5556 = vst.msk [vmem:[#allocation2 + $0x70] sm:$0xf] %vm5541, %v5522
      %5557 = vst.msk [vmem:[#allocation2 + $0x78] sm:$0xf] %vm5541, %v5524
      %v5558 = vld [vmem:[%s4697] sm:$0xc]
      %v5559 = vld [vmem:[%s4697 + $0x4] sm:$0xf]
      %v5560 = vld [vmem:[%s4697 + $0x8] sm:$0x3]
      %v5561 = vld [vmem:[%s4697 + $0xc] sm:$0xc]
      %v5562 = vld [vmem:[%s4697 + $0x10] sm:$0xf]
      %v5563 = vld [vmem:[%s4697 + $0x14] sm:$0x3]
      %v5564 = vld [vmem:[%s4697 + $0x18] sm:$0xc]
      %v5565 = vld [vmem:[%s4697 + $0x1c] sm:$0xf]
      %v5566 = vld [vmem:[%s4697 + $0x20] sm:$0x3]
      %v5567 = vld [vmem:[%s4697 + $0x24] sm:$0xc]
      %v5568 = vld [vmem:[%s4697 + $0x28] sm:$0xf]
      %v5569 = vld [vmem:[%s4697 + $0x2c] sm:$0x3]
      %v5570 = vld [vmem:[%s4697 + $0x30] sm:$0xc]
      %v5571 = vld [vmem:[%s4697 + $0x34] sm:$0xf]
      %v5572 = vld [vmem:[%s4697 + $0x38] sm:$0x3]
      %v5573 = vld [vmem:[%s4697 + $0x3c] sm:$0xc]
      %v5574 = vld [vmem:[%s4697 + $0x40] sm:$0xf]
      %v5575 = vld [vmem:[%s4697 + $0x44] sm:$0x3]
      %v5576 = vld [vmem:[%s4697 + $0x48] sm:$0xc]
      %v5577 = vld [vmem:[%s4697 + $0x4c] sm:$0xf]
      %v5578 = vld [vmem:[%s4697 + $0x50] sm:$0x3]
      %v5579 = vld [vmem:[%s4697 + $0x54] sm:$0xc]
      %v5580 = vld [vmem:[%s4697 + $0x58] sm:$0xf]
      %v5581 = vld [vmem:[%s4697 + $0x5c] sm:$0x3]
      %v5606 = vrot.slane %v5558, 6
      %v5607 = vrot.slane %v5606, 4
      %v5608 = vrot.slane %v5559, 6
      %v5609 = vsel %vm1063, %v5607, %v5608
      %v5610 = vrot.slane %v5608, 4
      %v5611 = vrot.slane %v5560, 6
      %v5612 = vsel %vm1063, %v5610, %v5611
      %v5613 = vrot.slane %v5561, 6
      %v5614 = vrot.slane %v5613, 4
      %v5615 = vrot.slane %v5562, 6
      %v5616 = vsel %vm1063, %v5614, %v5615
      %v5617 = vrot.slane %v5615, 4
      %v5618 = vrot.slane %v5563, 6
      %v5619 = vsel %vm1063, %v5617, %v5618
      %v5620 = vrot.slane %v5564, 6
      %v5621 = vrot.slane %v5620, 4
      %v5622 = vrot.slane %v5565, 6
      %v5623 = vsel %vm1063, %v5621, %v5622
      %v5624 = vrot.slane %v5622, 4
      %v5625 = vrot.slane %v5566, 6
      %v5626 = vsel %vm1063, %v5624, %v5625
      %v5627 = vrot.slane %v5567, 6
      %v5628 = vrot.slane %v5627, 4
      %v5629 = vrot.slane %v5568, 6
      %v5630 = vsel %vm1063, %v5628, %v5629
      %v5631 = vrot.slane %v5629, 4
      %v5632 = vrot.slane %v5569, 6
      %v5633 = vsel %vm1063, %v5631, %v5632
      %v5634 = vrot.slane %v5570, 6
      %v5635 = vrot.slane %v5634, 4
      %v5636 = vrot.slane %v5571, 6
      %v5637 = vsel %vm1063, %v5635, %v5636
      %v5638 = vrot.slane %v5636, 4
      %v5639 = vrot.slane %v5572, 6
      %v5640 = vsel %vm1063, %v5638, %v5639
      %v5641 = vrot.slane %v5573, 6
      %v5642 = vrot.slane %v5641, 4
      %v5643 = vrot.slane %v5574, 6
      %v5644 = vsel %vm1063, %v5642, %v5643
      %v5645 = vrot.slane %v5643, 4
      %v5646 = vrot.slane %v5575, 6
      %v5647 = vsel %vm1063, %v5645, %v5646
      %v5648 = vrot.slane %v5576, 6
      %v5649 = vrot.slane %v5648, 4
      %v5650 = vrot.slane %v5577, 6
      %v5651 = vsel %vm1063, %v5649, %v5650
      %v5652 = vrot.slane %v5650, 4
      %v5653 = vrot.slane %v5578, 6
      %v5654 = vsel %vm1063, %v5652, %v5653
      %v5655 = vrot.slane %v5579, 6
      %v5656 = vrot.slane %v5655, 4
      %v5657 = vrot.slane %v5580, 6
      %v5658 = vsel %vm1063, %v5656, %v5657
      %v5659 = vrot.slane %v5657, 4
      %v5660 = vrot.slane %v5581, 6
      %v5661 = vsel %vm1063, %v5659, %v5660
      %5662 = vrot.lane.b32.xlu0 %v5609, 100
      %v5663 = vpop.permute.xlu0 %5662
      %5664 = vrot.lane.b32.xlu0 %v5612, 100
      %v5665 = vpop.permute.xlu0 %5664
      %5666 = vrot.lane.b32.xlu0 %v5616, 100
      %v5667 = vpop.permute.xlu0 %5666
      %5668 = vrot.lane.b32.xlu0 %v5619, 100
      %v5669 = vpop.permute.xlu0 %5668
      %5670 = vrot.lane.b32.xlu0 %v5623, 100
      %v5671 = vpop.permute.xlu0 %5670
      %5672 = vrot.lane.b32.xlu0 %v5626, 100
      %v5673 = vpop.permute.xlu0 %5672
      %5674 = vrot.lane.b32.xlu0 %v5630, 100
      %v5675 = vpop.permute.xlu0 %5674
      %5676 = vrot.lane.b32.xlu0 %v5633, 100
      %v5677 = vpop.permute.xlu0 %5676
      %5678 = vrot.lane.b32.xlu0 %v5637, 100
      %v5679 = vpop.permute.xlu0 %5678
      %5680 = vrot.lane.b32.xlu0 %v5640, 100
      %v5681 = vpop.permute.xlu0 %5680
      %5682 = vrot.lane.b32.xlu0 %v5644, 100
      %v5683 = vpop.permute.xlu0 %5682
      %5684 = vrot.lane.b32.xlu0 %v5647, 100
      %v5685 = vpop.permute.xlu0 %5684
      %5686 = vrot.lane.b32.xlu0 %v5651, 100
      %v5687 = vpop.permute.xlu0 %5686
      %5688 = vrot.lane.b32.xlu0 %v5654, 100
      %v5689 = vpop.permute.xlu0 %5688
      %5690 = vrot.lane.b32.xlu0 %v5658, 100
      %v5691 = vpop.permute.xlu0 %5690
      %5692 = vrot.lane.b32.xlu0 %v5661, 100
      %v5693 = vpop.permute.xlu0 %5692
      %vm5710 = vcmask 847648
      %5711 = vst.msk [vmem:[#allocation2] sm:$0xf] %vm5710, %v5663
      %5712 = vst.msk [vmem:[#allocation2 + $0x8] sm:$0xf] %vm5710, %v5665
      %5713 = vst.msk [vmem:[#allocation2 + $0x10] sm:$0xf] %vm5710, %v5667
      %5714 = vst.msk [vmem:[#allocation2 + $0x18] sm:$0xf] %vm5710, %v5669
      %5715 = vst.msk [vmem:[#allocation2 + $0x20] sm:$0xf] %vm5710, %v5671
      %5716 = vst.msk [vmem:[#allocation2 + $0x28] sm:$0xf] %vm5710, %v5673
      %5717 = vst.msk [vmem:[#allocation2 + $0x30] sm:$0xf] %vm5710, %v5675
      %5718 = vst.msk [vmem:[#allocation2 + $0x38] sm:$0xf] %vm5710, %v5677
      %5719 = vst.msk [vmem:[#allocation2 + $0x40] sm:$0xf] %vm5710, %v5679
      %5720 = vst.msk [vmem:[#allocation2 + $0x48] sm:$0xf] %vm5710, %v5681
      %5721 = vst.msk [vmem:[#allocation2 + $0x50] sm:$0xf] %vm5710, %v5683
      %5722 = vst.msk [vmem:[#allocation2 + $0x58] sm:$0xf] %vm5710, %v5685
      %5723 = vst.msk [vmem:[#allocation2 + $0x60] sm:$0xf] %vm5710, %v5687
      %5724 = vst.msk [vmem:[#allocation2 + $0x68] sm:$0xf] %vm5710, %v5689
      %5725 = vst.msk [vmem:[#allocation2 + $0x70] sm:$0xf] %vm5710, %v5691
      %5726 = vst.msk [vmem:[#allocation2 + $0x78] sm:$0xf] %vm5710, %v5693
      %v5727 = vld [vmem:[%s4697] sm:$0xc]
      %v5728 = vld [vmem:[%s4697 + $0x4] sm:$0xf]
      %v5729 = vld [vmem:[%s4697 + $0x8] sm:$0x7]
      %v5730 = vld [vmem:[%s4697 + $0xc] sm:$0xc]
      %v5731 = vld [vmem:[%s4697 + $0x10] sm:$0xf]
      %v5732 = vld [vmem:[%s4697 + $0x14] sm:$0x7]
      %v5733 = vld [vmem:[%s4697 + $0x18] sm:$0xc]
      %v5734 = vld [vmem:[%s4697 + $0x1c] sm:$0xf]
      %v5735 = vld [vmem:[%s4697 + $0x20] sm:$0x7]
      %v5736 = vld [vmem:[%s4697 + $0x24] sm:$0xc]
      %v5737 = vld [vmem:[%s4697 + $0x28] sm:$0xf]
      %v5738 = vld [vmem:[%s4697 + $0x2c] sm:$0x7]
      %v5739 = vld [vmem:[%s4697 + $0x30] sm:$0xc]
      %v5740 = vld [vmem:[%s4697 + $0x34] sm:$0xf]
      %v5741 = vld [vmem:[%s4697 + $0x38] sm:$0x7]
      %v5742 = vld [vmem:[%s4697 + $0x3c] sm:$0xc]
      %v5743 = vld [vmem:[%s4697 + $0x40] sm:$0xf]
      %v5744 = vld [vmem:[%s4697 + $0x44] sm:$0x7]
      %v5745 = vld [vmem:[%s4697 + $0x48] sm:$0xc]
      %v5746 = vld [vmem:[%s4697 + $0x4c] sm:$0xf]
      %v5747 = vld [vmem:[%s4697 + $0x50] sm:$0x7]
      %v5748 = vld [vmem:[%s4697 + $0x54] sm:$0xc]
      %v5749 = vld [vmem:[%s4697 + $0x58] sm:$0xf]
      %v5750 = vld [vmem:[%s4697 + $0x5c] sm:$0x7]
      %v5752 = vshrl.u32 %v5727, 16
      %v5754 = vrot.slane %v5752, 6
      %v5755 = vshll.u32 %v5727, 16
      %v5757 = vrot.slane %v5755, 7
      %v5758 = vor.u32 %v5754, %v5757
      %v5759 = vrot.slane %v5758, 4
      %v5761 = vshrl.u32 %v5728, 16
      %v5763 = vrot.slane %v5761, 6
      %v5764 = vshll.u32 %v5728, 16
      %v5766 = vrot.slane %v5764, 7
      %v5767 = vor.u32 %v5763, %v5766
      %v5768 = vsel %vm1211, %v5759, %v5767
      %v5769 = vrot.slane %v5767, 4
      %v5771 = vshrl.u32 %v5729, 16
      %v5773 = vrot.slane %v5771, 6
      %v5774 = vshll.u32 %v5729, 16
      %v5776 = vrot.slane %v5774, 7
      %v5777 = vor.u32 %v5773, %v5776
      %v5778 = vsel %vm1211, %v5769, %v5777
      %v5780 = vshrl.u32 %v5730, 16
      %v5782 = vrot.slane %v5780, 6
      %v5783 = vshll.u32 %v5730, 16
      %v5785 = vrot.slane %v5783, 7
      %v5786 = vor.u32 %v5782, %v5785
      %v5787 = vrot.slane %v5786, 4
      %v5789 = vshrl.u32 %v5731, 16
      %v5791 = vrot.slane %v5789, 6
      %v5792 = vshll.u32 %v5731, 16
      %v5794 = vrot.slane %v5792, 7
      %v5795 = vor.u32 %v5791, %v5794
      %v5796 = vsel %vm1211, %v5787, %v5795
      %v5797 = vrot.slane %v5795, 4
      %v5799 = vshrl.u32 %v5732, 16
      %v5801 = vrot.slane %v5799, 6
      %v5802 = vshll.u32 %v5732, 16
      %v5804 = vrot.slane %v5802, 7
      %v5805 = vor.u32 %v5801, %v5804
      %v5806 = vsel %vm1211, %v5797, %v5805
      %v5808 = vshrl.u32 %v5733, 16
      %v5810 = vrot.slane %v5808, 6
      %v5811 = vshll.u32 %v5733, 16
      %v5813 = vrot.slane %v5811, 7
      %v5814 = vor.u32 %v5810, %v5813
      %v5815 = vrot.slane %v5814, 4
      %v5817 = vshrl.u32 %v5734, 16
      %v5819 = vrot.slane %v5817, 6
      %v5820 = vshll.u32 %v5734, 16
      %v5822 = vrot.slane %v5820, 7
      %v5823 = vor.u32 %v5819, %v5822
      %v5824 = vsel %vm1211, %v5815, %v5823
      %v5825 = vrot.slane %v5823, 4
      %v5827 = vshrl.u32 %v5735, 16
      %v5829 = vrot.slane %v5827, 6
      %v5830 = vshll.u32 %v5735, 16
      %v5832 = vrot.slane %v5830, 7
      %v5833 = vor.u32 %v5829, %v5832
      %v5834 = vsel %vm1211, %v5825, %v5833
      %v5836 = vshrl.u32 %v5736, 16
      %v5838 = vrot.slane %v5836, 6
      %v5839 = vshll.u32 %v5736, 16
      %v5841 = vrot.slane %v5839, 7
      %v5842 = vor.u32 %v5838, %v5841
      %v5843 = vrot.slane %v5842, 4
      %v5845 = vshrl.u32 %v5737, 16
      %v5847 = vrot.slane %v5845, 6
      %v5848 = vshll.u32 %v5737, 16
      %v5850 = vrot.slane %v5848, 7
      %v5851 = vor.u32 %v5847, %v5850
      %v5852 = vsel %vm1211, %v5843, %v5851
      %v5853 = vrot.slane %v5851, 4
      %v5855 = vshrl.u32 %v5738, 16
      %v5857 = vrot.slane %v5855, 6
      %v5858 = vshll.u32 %v5738, 16
      %v5860 = vrot.slane %v5858, 7
      %v5861 = vor.u32 %v5857, %v5860
      %v5862 = vsel %vm1211, %v5853, %v5861
      %v5864 = vshrl.u32 %v5739, 16
      %v5866 = vrot.slane %v5864, 6
      %v5867 = vshll.u32 %v5739, 16
      %v5869 = vrot.slane %v5867, 7
      %v5870 = vor.u32 %v5866, %v5869
      %v5871 = vrot.slane %v5870, 4
      %v5873 = vshrl.u32 %v5740, 16
      %v5875 = vrot.slane %v5873, 6
      %v5876 = vshll.u32 %v5740, 16
      %v5878 = vrot.slane %v5876, 7
      %v5879 = vor.u32 %v5875, %v5878
      %v5880 = vsel %vm1211, %v5871, %v5879
      %v5881 = vrot.slane %v5879, 4
      %v5883 = vshrl.u32 %v5741, 16
      %v5885 = vrot.slane %v5883, 6
      %v5886 = vshll.u32 %v5741, 16
      %v5888 = vrot.slane %v5886, 7
      %v5889 = vor.u32 %v5885, %v5888
      %v5890 = vsel %vm1211, %v5881, %v5889
      %v5892 = vshrl.u32 %v5742, 16
      %v5894 = vrot.slane %v5892, 6
      %v5895 = vshll.u32 %v5742, 16
      %v5897 = vrot.slane %v5895, 7
      %v5898 = vor.u32 %v5894, %v5897
      %v5899 = vrot.slane %v5898, 4
      %v5901 = vshrl.u32 %v5743, 16
      %v5903 = vrot.slane %v5901, 6
      %v5904 = vshll.u32 %v5743, 16
      %v5906 = vrot.slane %v5904, 7
      %v5907 = vor.u32 %v5903, %v5906
      %v5908 = vsel %vm1211, %v5899, %v5907
      %v5909 = vrot.slane %v5907, 4
      %v5911 = vshrl.u32 %v5744, 16
      %v5913 = vrot.slane %v5911, 6
      %v5914 = vshll.u32 %v5744, 16
      %v5916 = vrot.slane %v5914, 7
      %v5917 = vor.u32 %v5913, %v5916
      %v5918 = vsel %vm1211, %v5909, %v5917
      %v5920 = vshrl.u32 %v5745, 16
      %v5922 = vrot.slane %v5920, 6
      %v5923 = vshll.u32 %v5745, 16
      %v5925 = vrot.slane %v5923, 7
      %v5926 = vor.u32 %v5922, %v5925
      %v5927 = vrot.slane %v5926, 4
      %v5929 = vshrl.u32 %v5746, 16
      %v5931 = vrot.slane %v5929, 6
      %v5932 = vshll.u32 %v5746, 16
      %v5934 = vrot.slane %v5932, 7
      %v5935 = vor.u32 %v5931, %v5934
      %v5936 = vsel %vm1211, %v5927, %v5935
      %v5937 = vrot.slane %v5935, 4
      %v5939 = vshrl.u32 %v5747, 16
      %v5941 = vrot.slane %v5939, 6
      %v5942 = vshll.u32 %v5747, 16
      %v5944 = vrot.slane %v5942, 7
      %v5945 = vor.u32 %v5941, %v5944
      %v5946 = vsel %vm1211, %v5937, %v5945
      %v5948 = vshrl.u32 %v5748, 16
      %v5950 = vrot.slane %v5948, 6
      %v5951 = vshll.u32 %v5748, 16
      %v5953 = vrot.slane %v5951, 7
      %v5954 = vor.u32 %v5950, %v5953
      %v5955 = vrot.slane %v5954, 4
      %v5957 = vshrl.u32 %v5749, 16
      %v5959 = vrot.slane %v5957, 6
      %v5960 = vshll.u32 %v5749, 16
      %v5962 = vrot.slane %v5960, 7
      %v5963 = vor.u32 %v5959, %v5962
      %v5964 = vsel %vm1211, %v5955, %v5963
      %v5965 = vrot.slane %v5963, 4
      %v5967 = vshrl.u32 %v5750, 16
      %v5969 = vrot.slane %v5967, 6
      %v5970 = vshll.u32 %v5750, 16
      %v5972 = vrot.slane %v5970, 7
      %v5973 = vor.u32 %v5969, %v5972
      %v5974 = vsel %vm1211, %v5965, %v5973
      %5975 = vrot.lane.b32.xlu0 %v5768, 104
      %v5976 = vpop.permute.xlu0 %5975
      %5977 = vrot.lane.b32.xlu0 %v5778, 104
      %v5978 = vpop.permute.xlu0 %5977
      %5979 = vrot.lane.b32.xlu0 %v5796, 104
      %v5980 = vpop.permute.xlu0 %5979
      %5981 = vrot.lane.b32.xlu0 %v5806, 104
      %v5982 = vpop.permute.xlu0 %5981
      %5983 = vrot.lane.b32.xlu0 %v5824, 104
      %v5984 = vpop.permute.xlu0 %5983
      %5985 = vrot.lane.b32.xlu0 %v5834, 104
      %v5986 = vpop.permute.xlu0 %5985
      %5987 = vrot.lane.b32.xlu0 %v5852, 104
      %v5988 = vpop.permute.xlu0 %5987
      %5989 = vrot.lane.b32.xlu0 %v5862, 104
      %v5990 = vpop.permute.xlu0 %5989
      %5991 = vrot.lane.b32.xlu0 %v5880, 104
      %v5992 = vpop.permute.xlu0 %5991
      %5993 = vrot.lane.b32.xlu0 %v5890, 104
      %v5994 = vpop.permute.xlu0 %5993
      %5995 = vrot.lane.b32.xlu0 %v5908, 104
      %v5996 = vpop.permute.xlu0 %5995
      %5997 = vrot.lane.b32.xlu0 %v5918, 104
      %v5998 = vpop.permute.xlu0 %5997
      %5999 = vrot.lane.b32.xlu0 %v5936, 104
      %v6000 = vpop.permute.xlu0 %5999
      %6001 = vrot.lane.b32.xlu0 %v5946, 104
      %v6002 = vpop.permute.xlu0 %6001
      %6003 = vrot.lane.b32.xlu0 %v5964, 104
      %v6004 = vpop.permute.xlu0 %6003
      %6005 = vrot.lane.b32.xlu0 %v5974, 104
      %v6006 = vpop.permute.xlu0 %6005
      %vm6023 = vcmask 880448
      %6024 = vst.msk [vmem:[#allocation2] sm:$0xf] %vm6023, %v5976
      %6025 = vst.msk [vmem:[#allocation2 + $0x8] sm:$0xf] %vm6023, %v5978
      %6026 = vst.msk [vmem:[#allocation2 + $0x10] sm:$0xf] %vm6023, %v5980
      %6027 = vst.msk [vmem:[#allocation2 + $0x18] sm:$0xf] %vm6023, %v5982
      %6028 = vst.msk [vmem:[#allocation2 + $0x20] sm:$0xf] %vm6023, %v5984
      %6029 = vst.msk [vmem:[#allocation2 + $0x28] sm:$0xf] %vm6023, %v5986
      %6030 = vst.msk [vmem:[#allocation2 + $0x30] sm:$0xf] %vm6023, %v5988
      %6031 = vst.msk [vmem:[#allocation2 + $0x38] sm:$0xf] %vm6023, %v5990
      %6032 = vst.msk [vmem:[#allocation2 + $0x40] sm:$0xf] %vm6023, %v5992
      %6033 = vst.msk [vmem:[#allocation2 + $0x48] sm:$0xf] %vm6023, %v5994
      %6034 = vst.msk [vmem:[#allocation2 + $0x50] sm:$0xf] %vm6023, %v5996
      %6035 = vst.msk [vmem:[#allocation2 + $0x58] sm:$0xf] %vm6023, %v5998
      %6036 = vst.msk [vmem:[#allocation2 + $0x60] sm:$0xf] %vm6023, %v6000
      %6037 = vst.msk [vmem:[#allocation2 + $0x68] sm:$0xf] %vm6023, %v6002
      %6038 = vst.msk [vmem:[#allocation2 + $0x70] sm:$0xf] %vm6023, %v6004
      %6039 = vst.msk [vmem:[#allocation2 + $0x78] sm:$0xf] %vm6023, %v6006
      %v6040 = vld [vmem:[%s4697] sm:$0x8]
      %v6041 = vld [vmem:[%s4697 + $0x4] sm:$0xf]
      %v6042 = vld [vmem:[%s4697 + $0x8] sm:$0x7]
      %v6043 = vld [vmem:[%s4697 + $0xc] sm:$0x8]
      %v6044 = vld [vmem:[%s4697 + $0x10] sm:$0xf]
      %v6045 = vld [vmem:[%s4697 + $0x14] sm:$0x7]
      %v6046 = vld [vmem:[%s4697 + $0x18] sm:$0x8]
      %v6047 = vld [vmem:[%s4697 + $0x1c] sm:$0xf]
      %v6048 = vld [vmem:[%s4697 + $0x20] sm:$0x7]
      %v6049 = vld [vmem:[%s4697 + $0x24] sm:$0x8]
      %v6050 = vld [vmem:[%s4697 + $0x28] sm:$0xf]
      %v6051 = vld [vmem:[%s4697 + $0x2c] sm:$0x7]
      %v6052 = vld [vmem:[%s4697 + $0x30] sm:$0x8]
      %v6053 = vld [vmem:[%s4697 + $0x34] sm:$0xf]
      %v6054 = vld [vmem:[%s4697 + $0x38] sm:$0x7]
      %v6055 = vld [vmem:[%s4697 + $0x3c] sm:$0x8]
      %v6056 = vld [vmem:[%s4697 + $0x40] sm:$0xf]
      %v6057 = vld [vmem:[%s4697 + $0x44] sm:$0x7]
      %v6058 = vld [vmem:[%s4697 + $0x48] sm:$0x8]
      %v6059 = vld [vmem:[%s4697 + $0x4c] sm:$0xf]
      %v6060 = vld [vmem:[%s4697 + $0x50] sm:$0x7]
      %v6061 = vld [vmem:[%s4697 + $0x54] sm:$0x8]
      %v6062 = vld [vmem:[%s4697 + $0x58] sm:$0xf]
      %v6063 = vld [vmem:[%s4697 + $0x5c] sm:$0x7]
      %v6088 = vrot.slane %v6040, 7
      %v6089 = vrot.slane %v6088, 4
      %v6090 = vrot.slane %v6041, 7
      %v6091 = vsel %vm1551, %v6089, %v6090
      %v6092 = vrot.slane %v6090, 4
      %v6093 = vrot.slane %v6042, 7
      %v6094 = vsel %vm1551, %v6092, %v6093
      %v6095 = vrot.slane %v6043, 7
      %v6096 = vrot.slane %v6095, 4
      %v6097 = vrot.slane %v6044, 7
      %v6098 = vsel %vm1551, %v6096, %v6097
      %v6099 = vrot.slane %v6097, 4
      %v6100 = vrot.slane %v6045, 7
      %v6101 = vsel %vm1551, %v6099, %v6100
      %v6102 = vrot.slane %v6046, 7
      %v6103 = vrot.slane %v6102, 4
      %v6104 = vrot.slane %v6047, 7
      %v6105 = vsel %vm1551, %v6103, %v6104
      %v6106 = vrot.slane %v6104, 4
      %v6107 = vrot.slane %v6048, 7
      %v6108 = vsel %vm1551, %v6106, %v6107
      %v6109 = vrot.slane %v6049, 7
      %v6110 = vrot.slane %v6109, 4
      %v6111 = vrot.slane %v6050, 7
      %v6112 = vsel %vm1551, %v6110, %v6111
      %v6113 = vrot.slane %v6111, 4
      %v6114 = vrot.slane %v6051, 7
      %v6115 = vsel %vm1551, %v6113, %v6114
      %v6116 = vrot.slane %v6052, 7
      %v6117 = vrot.slane %v6116, 4
      %v6118 = vrot.slane %v6053, 7
      %v6119 = vsel %vm1551, %v6117, %v6118
      %v6120 = vrot.slane %v6118, 4
      %v6121 = vrot.slane %v6054, 7
      %v6122 = vsel %vm1551, %v6120, %v6121
      %v6123 = vrot.slane %v6055, 7
      %v6124 = vrot.slane %v6123, 4
      %v6125 = vrot.slane %v6056, 7
      %v6126 = vsel %vm1551, %v6124, %v6125
      %v6127 = vrot.slane %v6125, 4
      %v6128 = vrot.slane %v6057, 7
      %v6129 = vsel %vm1551, %v6127, %v6128
      %v6130 = vrot.slane %v6058, 7
      %v6131 = vrot.slane %v6130, 4
      %v6132 = vrot.slane %v6059, 7
      %v6133 = vsel %vm1551, %v6131, %v6132
      %v6134 = vrot.slane %v6132, 4
      %v6135 = vrot.slane %v6060, 7
      %v6136 = vsel %vm1551, %v6134, %v6135
      %v6137 = vrot.slane %v6061, 7
      %v6138 = vrot.slane %v6137, 4
      %v6139 = vrot.slane %v6062, 7
      %v6140 = vsel %vm1551, %v6138, %v6139
      %v6141 = vrot.slane %v6139, 4
      %v6142 = vrot.slane %v6063, 7
      %v6143 = vsel %vm1551, %v6141, %v6142
      %6144 = vrot.lane.b32.xlu0 %v6091, 108
      %v6145 = vpop.permute.xlu0 %6144
      %6146 = vrot.lane.b32.xlu0 %v6094, 108
      %v6147 = vpop.permute.xlu0 %6146
      %6148 = vrot.lane.b32.xlu0 %v6098, 108
      %v6149 = vpop.permute.xlu0 %6148
      %6150 = vrot.lane.b32.xlu0 %v6101, 108
      %v6151 = vpop.permute.xlu0 %6150
      %6152 = vrot.lane.b32.xlu0 %v6105, 108
      %v6153 = vpop.permute.xlu0 %6152
      %6154 = vrot.lane.b32.xlu0 %v6108, 108
      %v6155 = vpop.permute.xlu0 %6154
      %6156 = vrot.lane.b32.xlu0 %v6112, 108
      %v6157 = vpop.permute.xlu0 %6156
      %6158 = vrot.lane.b32.xlu0 %v6115, 108
      %v6159 = vpop.permute.xlu0 %6158
      %6160 = vrot.lane.b32.xlu0 %v6119, 108
      %v6161 = vpop.permute.xlu0 %6160
      %6162 = vrot.lane.b32.xlu0 %v6122, 108
      %v6163 = vpop.permute.xlu0 %6162
      %6164 = vrot.lane.b32.xlu0 %v6126, 108
      %v6165 = vpop.permute.xlu0 %6164
      %6166 = vrot.lane.b32.xlu0 %v6129, 108
      %v6167 = vpop.permute.xlu0 %6166
      %6168 = vrot.lane.b32.xlu0 %v6133, 108
      %v6169 = vpop.permute.xlu0 %6168
      %6170 = vrot.lane.b32.xlu0 %v6136, 108
      %v6171 = vpop.permute.xlu0 %6170
      %6172 = vrot.lane.b32.xlu0 %v6140, 108
      %v6173 = vpop.permute.xlu0 %6172
      %6174 = vrot.lane.b32.xlu0 %v6143, 108
      %v6175 = vpop.permute.xlu0 %6174
      %vm6192 = vcmask 913248
      %6193 = vst.msk [vmem:[#allocation2] sm:$0xf] %vm6192, %v6145
      %6194 = vst.msk [vmem:[#allocation2 + $0x8] sm:$0xf] %vm6192, %v6147
      %6195 = vst.msk [vmem:[#allocation2 + $0x10] sm:$0xf] %vm6192, %v6149
      %6196 = vst.msk [vmem:[#allocation2 + $0x18] sm:$0xf] %vm6192, %v6151
      %6197 = vst.msk [vmem:[#allocation2 + $0x20] sm:$0xf] %vm6192, %v6153
      %6198 = vst.msk [vmem:[#allocation2 + $0x28] sm:$0xf] %vm6192, %v6155
      %6199 = vst.msk [vmem:[#allocation2 + $0x30] sm:$0xf] %vm6192, %v6157
      %6200 = vst.msk [vmem:[#allocation2 + $0x38] sm:$0xf] %vm6192, %v6159
      %6201 = vst.msk [vmem:[#allocation2 + $0x40] sm:$0xf] %vm6192, %v6161
      %6202 = vst.msk [vmem:[#allocation2 + $0x48] sm:$0xf] %vm6192, %v6163
      %6203 = vst.msk [vmem:[#allocation2 + $0x50] sm:$0xf] %vm6192, %v6165
      %6204 = vst.msk [vmem:[#allocation2 + $0x58] sm:$0xf] %vm6192, %v6167
      %6205 = vst.msk [vmem:[#allocation2 + $0x60] sm:$0xf] %vm6192, %v6169
      %6206 = vst.msk [vmem:[#allocation2 + $0x68] sm:$0xf] %vm6192, %v6171
      %6207 = vst.msk [vmem:[#allocation2 + $0x70] sm:$0xf] %vm6192, %v6173
      %6208 = vst.msk [vmem:[#allocation2 + $0x78] sm:$0xf] %vm6192, %v6175
      %s6209 = scalar_lea.vmem %s197, 48
      %v6210 = vld [vmem:[%s6209] sm:$0xf]
      %v6211 = vld [vmem:[%s6209 + $0x4] sm:$0xf]
      %v6212 = vld [vmem:[%s6209 + $0xc] sm:$0xf]
      %v6213 = vld [vmem:[%s6209 + $0x10] sm:$0xf]
      %v6214 = vld [vmem:[%s6209 + $0x18] sm:$0xf]
      %v6215 = vld [vmem:[%s6209 + $0x1c] sm:$0xf]
      %v6216 = vld [vmem:[%s6209 + $0x24] sm:$0xf]
      %v6217 = vld [vmem:[%s6209 + $0x28] sm:$0xf]
      %v6218 = vld [vmem:[%s6209 + $0x30] sm:$0xf]
      %v6219 = vld [vmem:[%s6209 + $0x34] sm:$0xf]
      %v6220 = vld [vmem:[%s6209 + $0x3c] sm:$0xf]
      %v6221 = vld [vmem:[%s6209 + $0x40] sm:$0xf]
      %v6222 = vld [vmem:[%s6209 + $0x48] sm:$0xf]
      %v6223 = vld [vmem:[%s6209 + $0x4c] sm:$0xf]
      %v6224 = vld [vmem:[%s6209 + $0x54] sm:$0xf]
      %v6225 = vld [vmem:[%s6209 + $0x58] sm:$0xf]
      %6242 = vrot.lane.b32.xlu0 %v6210, 112
      %v6243 = vpop.permute.xlu0 %6242
      %6244 = vrot.lane.b32.xlu0 %v6211, 112
      %v6245 = vpop.permute.xlu0 %6244
      %6246 = vrot.lane.b32.xlu0 %v6212, 112
      %v6247 = vpop.permute.xlu0 %6246
      %6248 = vrot.lane.b32.xlu0 %v6213, 112
      %v6249 = vpop.permute.xlu0 %6248
      %6250 = vrot.lane.b32.xlu0 %v6214, 112
      %v6251 = vpop.permute.xlu0 %6250
      %6252 = vrot.lane.b32.xlu0 %v6215, 112
      %v6253 = vpop.permute.xlu0 %6252
      %6254 = vrot.lane.b32.xlu0 %v6216, 112
      %v6255 = vpop.permute.xlu0 %6254
      %6256 = vrot.lane.b32.xlu0 %v6217, 112
      %v6257 = vpop.permute.xlu0 %6256
      %6258 = vrot.lane.b32.xlu0 %v6218, 112
      %v6259 = vpop.permute.xlu0 %6258
      %6260 = vrot.lane.b32.xlu0 %v6219, 112
      %v6261 = vpop.permute.xlu0 %6260
      %6262 = vrot.lane.b32.xlu0 %v6220, 112
      %v6263 = vpop.permute.xlu0 %6262
      %6264 = vrot.lane.b32.xlu0 %v6221, 112
      %v6265 = vpop.permute.xlu0 %6264
      %6266 = vrot.lane.b32.xlu0 %v6222, 112
      %v6267 = vpop.permute.xlu0 %6266
      %6268 = vrot.lane.b32.xlu0 %v6223, 112
      %v6269 = vpop.permute.xlu0 %6268
      %6270 = vrot.lane.b32.xlu0 %v6224, 112
      %v6271 = vpop.permute.xlu0 %6270
      %6272 = vrot.lane.b32.xlu0 %v6225, 112
      %v6273 = vpop.permute.xlu0 %6272
      %vm6290 = vcmask 946048
      %6291 = vst.msk [vmem:[#allocation2] sm:$0xf] %vm6290, %v6243
      %6292 = vst.msk [vmem:[#allocation2 + $0x8] sm:$0xf] %vm6290, %v6245
      %6293 = vst.msk [vmem:[#allocation2 + $0x10] sm:$0xf] %vm6290, %v6247
      %6294 = vst.msk [vmem:[#allocation2 + $0x18] sm:$0xf] %vm6290, %v6249
      %6295 = vst.msk [vmem:[#allocation2 + $0x20] sm:$0xf] %vm6290, %v6251
      %6296 = vst.msk [vmem:[#allocation2 + $0x28] sm:$0xf] %vm6290, %v6253
      %6297 = vst.msk [vmem:[#allocation2 + $0x30] sm:$0xf] %vm6290, %v6255
      %6298 = vst.msk [vmem:[#allocation2 + $0x38] sm:$0xf] %vm6290, %v6257
      %6299 = vst.msk [vmem:[#allocation2 + $0x40] sm:$0xf] %vm6290, %v6259
      %6300 = vst.msk [vmem:[#allocation2 + $0x48] sm:$0xf] %vm6290, %v6261
      %6301 = vst.msk [vmem:[#allocation2 + $0x50] sm:$0xf] %vm6290, %v6263
      %6302 = vst.msk [vmem:[#allocation2 + $0x58] sm:$0xf] %vm6290, %v6265
      %6303 = vst.msk [vmem:[#allocation2 + $0x60] sm:$0xf] %vm6290, %v6267
      %6304 = vst.msk [vmem:[#allocation2 + $0x68] sm:$0xf] %vm6290, %v6269
      %6305 = vst.msk [vmem:[#allocation2 + $0x70] sm:$0xf] %vm6290, %v6271
      %6306 = vst.msk [vmem:[#allocation2 + $0x78] sm:$0xf] %vm6290, %v6273
      %v6307 = vld [vmem:[%s6209] sm:$0xf]
      %v6308 = vld [vmem:[%s6209 + $0x4] sm:$0xf]
      %v6309 = vld [vmem:[%s6209 + $0x8] sm:$0x1]
      %v6310 = vld [vmem:[%s6209 + $0xc] sm:$0xf]
      %v6311 = vld [vmem:[%s6209 + $0x10] sm:$0xf]
      %v6312 = vld [vmem:[%s6209 + $0x14] sm:$0x1]
      %v6313 = vld [vmem:[%s6209 + $0x18] sm:$0xf]
      %v6314 = vld [vmem:[%s6209 + $0x1c] sm:$0xf]
      %v6315 = vld [vmem:[%s6209 + $0x20] sm:$0x1]
      %v6316 = vld [vmem:[%s6209 + $0x24] sm:$0xf]
      %v6317 = vld [vmem:[%s6209 + $0x28] sm:$0xf]
      %v6318 = vld [vmem:[%s6209 + $0x2c] sm:$0x1]
      %v6319 = vld [vmem:[%s6209 + $0x30] sm:$0xf]
      %v6320 = vld [vmem:[%s6209 + $0x34] sm:$0xf]
      %v6321 = vld [vmem:[%s6209 + $0x38] sm:$0x1]
      %v6322 = vld [vmem:[%s6209 + $0x3c] sm:$0xf]
      %v6323 = vld [vmem:[%s6209 + $0x40] sm:$0xf]
      %v6324 = vld [vmem:[%s6209 + $0x44] sm:$0x1]
      %v6325 = vld [vmem:[%s6209 + $0x48] sm:$0xf]
      %v6326 = vld [vmem:[%s6209 + $0x4c] sm:$0xf]
      %v6327 = vld [vmem:[%s6209 + $0x50] sm:$0x1]
      %v6328 = vld [vmem:[%s6209 + $0x54] sm:$0xf]
      %v6329 = vld [vmem:[%s6209 + $0x58] sm:$0xf]
      %v6330 = vld [vmem:[%s6209 + $0x5c] sm:$0x1]
      %v6332 = vshrl.u32 %v6307, 16
      %v6334 = vrot.slane %v6332, 4
      %v6335 = vshll.u32 %v6307, 16
      %v6337 = vrot.slane %v6335, 5
      %v6338 = vor.u32 %v6334, %v6337
      %v6339 = vrot.slane %v6338, 4
      %v6341 = vshll.u32 %v6308, 16
      %v6343 = vrot.slane %v6341, 5
      %v6344 = vsel %vm267, %v6339, %v6343
      %v6345 = vshrl.u32 %v6308, 16
      %v6347 = vrot.slane %v6345, 4
      %v6348 = vor.u32 %v6347, %v6343
      %v6349 = vrot.slane %v6348, 4
      %v6351 = vshll.u32 %v6309, 16
      %v6353 = vrot.slane %v6351, 5
      %v6354 = vsel %vm267, %v6349, %v6353
      %v6356 = vshrl.u32 %v6310, 16
      %v6358 = vrot.slane %v6356, 4
      %v6359 = vshll.u32 %v6310, 16
      %v6361 = vrot.slane %v6359, 5
      %v6362 = vor.u32 %v6358, %v6361
      %v6363 = vrot.slane %v6362, 4
      %v6365 = vshll.u32 %v6311, 16
      %v6367 = vrot.slane %v6365, 5
      %v6368 = vsel %vm267, %v6363, %v6367
      %v6369 = vshrl.u32 %v6311, 16
      %v6371 = vrot.slane %v6369, 4
      %v6372 = vor.u32 %v6371, %v6367
      %v6373 = vrot.slane %v6372, 4
      %v6375 = vshll.u32 %v6312, 16
      %v6377 = vrot.slane %v6375, 5
      %v6378 = vsel %vm267, %v6373, %v6377
      %v6380 = vshrl.u32 %v6313, 16
      %v6382 = vrot.slane %v6380, 4
      %v6383 = vshll.u32 %v6313, 16
      %v6385 = vrot.slane %v6383, 5
      %v6386 = vor.u32 %v6382, %v6385
      %v6387 = vrot.slane %v6386, 4
      %v6389 = vshll.u32 %v6314, 16
      %v6391 = vrot.slane %v6389, 5
      %v6392 = vsel %vm267, %v6387, %v6391
      %v6393 = vshrl.u32 %v6314, 16
      %v6395 = vrot.slane %v6393, 4
      %v6396 = vor.u32 %v6395, %v6391
      %v6397 = vrot.slane %v6396, 4
      %v6399 = vshll.u32 %v6315, 16
      %v6401 = vrot.slane %v6399, 5
      %v6402 = vsel %vm267, %v6397, %v6401
      %v6404 = vshrl.u32 %v6316, 16
      %v6406 = vrot.slane %v6404, 4
      %v6407 = vshll.u32 %v6316, 16
      %v6409 = vrot.slane %v6407, 5
      %v6410 = vor.u32 %v6406, %v6409
      %v6411 = vrot.slane %v6410, 4
      %v6413 = vshll.u32 %v6317, 16
      %v6415 = vrot.slane %v6413, 5
      %v6416 = vsel %vm267, %v6411, %v6415
      %v6417 = vshrl.u32 %v6317, 16
      %v6419 = vrot.slane %v6417, 4
      %v6420 = vor.u32 %v6419, %v6415
      %v6421 = vrot.slane %v6420, 4
      %v6423 = vshll.u32 %v6318, 16
      %v6425 = vrot.slane %v6423, 5
      %v6426 = vsel %vm267, %v6421, %v6425
      %v6428 = vshrl.u32 %v6319, 16
      %v6430 = vrot.slane %v6428, 4
      %v6431 = vshll.u32 %v6319, 16
      %v6433 = vrot.slane %v6431, 5
      %v6434 = vor.u32 %v6430, %v6433
      %v6435 = vrot.slane %v6434, 4
      %v6437 = vshll.u32 %v6320, 16
      %v6439 = vrot.slane %v6437, 5
      %v6440 = vsel %vm267, %v6435, %v6439
      %v6441 = vshrl.u32 %v6320, 16
      %v6443 = vrot.slane %v6441, 4
      %v6444 = vor.u32 %v6443, %v6439
      %v6445 = vrot.slane %v6444, 4
      %v6447 = vshll.u32 %v6321, 16
      %v6449 = vrot.slane %v6447, 5
      %v6450 = vsel %vm267, %v6445, %v6449
      %v6452 = vshrl.u32 %v6322, 16
      %v6454 = vrot.slane %v6452, 4
      %v6455 = vshll.u32 %v6322, 16
      %v6457 = vrot.slane %v6455, 5
      %v6458 = vor.u32 %v6454, %v6457
      %v6459 = vrot.slane %v6458, 4
      %v6461 = vshll.u32 %v6323, 16
      %v6463 = vrot.slane %v6461, 5
      %v6464 = vsel %vm267, %v6459, %v6463
      %v6465 = vshrl.u32 %v6323, 16
      %v6467 = vrot.slane %v6465, 4
      %v6468 = vor.u32 %v6467, %v6463
      %v6469 = vrot.slane %v6468, 4
      %v6471 = vshll.u32 %v6324, 16
      %v6473 = vrot.slane %v6471, 5
      %v6474 = vsel %vm267, %v6469, %v6473
      %v6476 = vshrl.u32 %v6325, 16
      %v6478 = vrot.slane %v6476, 4
      %v6479 = vshll.u32 %v6325, 16
      %v6481 = vrot.slane %v6479, 5
      %v6482 = vor.u32 %v6478, %v6481
      %v6483 = vrot.slane %v6482, 4
      %v6485 = vshll.u32 %v6326, 16
      %v6487 = vrot.slane %v6485, 5
      %v6488 = vsel %vm267, %v6483, %v6487
      %v6489 = vshrl.u32 %v6326, 16
      %v6491 = vrot.slane %v6489, 4
      %v6492 = vor.u32 %v6491, %v6487
      %v6493 = vrot.slane %v6492, 4
      %v6495 = vshll.u32 %v6327, 16
      %v6497 = vrot.slane %v6495, 5
      %v6498 = vsel %vm267, %v6493, %v6497
      %v6500 = vshrl.u32 %v6328, 16
      %v6502 = vrot.slane %v6500, 4
      %v6503 = vshll.u32 %v6328, 16
      %v6505 = vrot.slane %v6503, 5
      %v6506 = vor.u32 %v6502, %v6505
      %v6507 = vrot.slane %v6506, 4
      %v6509 = vshll.u32 %v6329, 16
      %v6511 = vrot.slane %v6509, 5
      %v6512 = vsel %vm267, %v6507, %v6511
      %v6513 = vshrl.u32 %v6329, 16
      %v6515 = vrot.slane %v6513, 4
      %v6516 = vor.u32 %v6515, %v6511
      %v6517 = vrot.slane %v6516, 4
      %v6519 = vshll.u32 %v6330, 16
      %v6521 = vrot.slane %v6519, 5
      %v6522 = vsel %vm267, %v6517, %v6521
      %6523 = vrot.lane.b32.xlu0 %v6344, 116
      %v6524 = vpop.permute.xlu0 %6523
      %6525 = vrot.lane.b32.xlu0 %v6354, 116
      %v6526 = vpop.permute.xlu0 %6525
      %6527 = vrot.lane.b32.xlu0 %v6368, 116
      %v6528 = vpop.permute.xlu0 %6527
      %6529 = vrot.lane.b32.xlu0 %v6378, 116
      %v6530 = vpop.permute.xlu0 %6529
      %6531 = vrot.lane.b32.xlu0 %v6392, 116
      %v6532 = vpop.permute.xlu0 %6531
      %6533 = vrot.lane.b32.xlu0 %v6402, 116
      %v6534 = vpop.permute.xlu0 %6533
      %6535 = vrot.lane.b32.xlu0 %v6416, 116
      %v6536 = vpop.permute.xlu0 %6535
      %6537 = vrot.lane.b32.xlu0 %v6426, 116
      %v6538 = vpop.permute.xlu0 %6537
      %6539 = vrot.lane.b32.xlu0 %v6440, 116
      %v6540 = vpop.permute.xlu0 %6539
      %6541 = vrot.lane.b32.xlu0 %v6450, 116
      %v6542 = vpop.permute.xlu0 %6541
      %6543 = vrot.lane.b32.xlu0 %v6464, 116
      %v6544 = vpop.permute.xlu0 %6543
      %6545 = vrot.lane.b32.xlu0 %v6474, 116
      %v6546 = vpop.permute.xlu0 %6545
      %6547 = vrot.lane.b32.xlu0 %v6488, 116
      %v6548 = vpop.permute.xlu0 %6547
      %6549 = vrot.lane.b32.xlu0 %v6498, 116
      %v6550 = vpop.permute.xlu0 %6549
      %6551 = vrot.lane.b32.xlu0 %v6512, 116
      %v6552 = vpop.permute.xlu0 %6551
      %6553 = vrot.lane.b32.xlu0 %v6522, 116
      %v6554 = vpop.permute.xlu0 %6553
      %vm6571 = vcmask 978848
      %6572 = vst.msk [vmem:[#allocation2] sm:$0xf] %vm6571, %v6524
      %6573 = vst.msk [vmem:[#allocation2 + $0x8] sm:$0xf] %vm6571, %v6526
      %6574 = vst.msk [vmem:[#allocation2 + $0x10] sm:$0xf] %vm6571, %v6528
      %6575 = vst.msk [vmem:[#allocation2 + $0x18] sm:$0xf] %vm6571, %v6530
      %6576 = vst.msk [vmem:[#allocation2 + $0x20] sm:$0xf] %vm6571, %v6532
      %6577 = vst.msk [vmem:[#allocation2 + $0x28] sm:$0xf] %vm6571, %v6534
      %6578 = vst.msk [vmem:[#allocation2 + $0x30] sm:$0xf] %vm6571, %v6536
      %6579 = vst.msk [vmem:[#allocation2 + $0x38] sm:$0xf] %vm6571, %v6538
      %6580 = vst.msk [vmem:[#allocation2 + $0x40] sm:$0xf] %vm6571, %v6540
      %6581 = vst.msk [vmem:[#allocation2 + $0x48] sm:$0xf] %vm6571, %v6542
      %6582 = vst.msk [vmem:[#allocation2 + $0x50] sm:$0xf] %vm6571, %v6544
      %6583 = vst.msk [vmem:[#allocation2 + $0x58] sm:$0xf] %vm6571, %v6546
      %6584 = vst.msk [vmem:[#allocation2 + $0x60] sm:$0xf] %vm6571, %v6548
      %6585 = vst.msk [vmem:[#allocation2 + $0x68] sm:$0xf] %vm6571, %v6550
      %6586 = vst.msk [vmem:[#allocation2 + $0x70] sm:$0xf] %vm6571, %v6552
      %6587 = vst.msk [vmem:[#allocation2 + $0x78] sm:$0xf] %vm6571, %v6554
      %v6588 = vld [vmem:[%s6209] sm:$0xe]
      %v6589 = vld [vmem:[%s6209 + $0x4] sm:$0xf]
      %v6590 = vld [vmem:[%s6209 + $0x8] sm:$0x1]
      %v6591 = vld [vmem:[%s6209 + $0xc] sm:$0xe]
      %v6592 = vld [vmem:[%s6209 + $0x10] sm:$0xf]
      %v6593 = vld [vmem:[%s6209 + $0x14] sm:$0x1]
      %v6594 = vld [vmem:[%s6209 + $0x18] sm:$0xe]
      %v6595 = vld [vmem:[%s6209 + $0x1c] sm:$0xf]
      %v6596 = vld [vmem:[%s6209 + $0x20] sm:$0x1]
      %v6597 = vld [vmem:[%s6209 + $0x24] sm:$0xe]
      %v6598 = vld [vmem:[%s6209 + $0x28] sm:$0xf]
      %v6599 = vld [vmem:[%s6209 + $0x2c] sm:$0x1]
      %v6600 = vld [vmem:[%s6209 + $0x30] sm:$0xe]
      %v6601 = vld [vmem:[%s6209 + $0x34] sm:$0xf]
      %v6602 = vld [vmem:[%s6209 + $0x38] sm:$0x1]
      %v6603 = vld [vmem:[%s6209 + $0x3c] sm:$0xe]
      %v6604 = vld [vmem:[%s6209 + $0x40] sm:$0xf]
      %v6605 = vld [vmem:[%s6209 + $0x44] sm:$0x1]
      %v6606 = vld [vmem:[%s6209 + $0x48] sm:$0xe]
      %v6607 = vld [vmem:[%s6209 + $0x4c] sm:$0xf]
      %v6608 = vld [vmem:[%s6209 + $0x50] sm:$0x1]
      %v6609 = vld [vmem:[%s6209 + $0x54] sm:$0xe]
      %v6610 = vld [vmem:[%s6209 + $0x58] sm:$0xf]
      %v6611 = vld [vmem:[%s6209 + $0x5c] sm:$0x1]
      %v6636 = vrot.slane %v6588, 5
      %v6637 = vrot.slane %v6636, 4
      %v6638 = vrot.slane %v6589, 5
      %v6639 = vsel %vm575, %v6637, %v6638
      %v6640 = vrot.slane %v6638, 4
      %v6641 = vrot.slane %v6590, 5
      %v6642 = vsel %vm575, %v6640, %v6641
      %v6643 = vrot.slane %v6591, 5
      %v6644 = vrot.slane %v6643, 4
      %v6645 = vrot.slane %v6592, 5
      %v6646 = vsel %vm575, %v6644, %v6645
      %v6647 = vrot.slane %v6645, 4
      %v6648 = vrot.slane %v6593, 5
      %v6649 = vsel %vm575, %v6647, %v6648
      %v6650 = vrot.slane %v6594, 5
      %v6651 = vrot.slane %v6650, 4
      %v6652 = vrot.slane %v6595, 5
      %v6653 = vsel %vm575, %v6651, %v6652
      %v6654 = vrot.slane %v6652, 4
      %v6655 = vrot.slane %v6596, 5
      %v6656 = vsel %vm575, %v6654, %v6655
      %v6657 = vrot.slane %v6597, 5
      %v6658 = vrot.slane %v6657, 4
      %v6659 = vrot.slane %v6598, 5
      %v6660 = vsel %vm575, %v6658, %v6659
      %v6661 = vrot.slane %v6659, 4
      %v6662 = vrot.slane %v6599, 5
      %v6663 = vsel %vm575, %v6661, %v6662
      %v6664 = vrot.slane %v6600, 5
      %v6665 = vrot.slane %v6664, 4
      %v6666 = vrot.slane %v6601, 5
      %v6667 = vsel %vm575, %v6665, %v6666
      %v6668 = vrot.slane %v6666, 4
      %v6669 = vrot.slane %v6602, 5
      %v6670 = vsel %vm575, %v6668, %v6669
      %v6671 = vrot.slane %v6603, 5
      %v6672 = vrot.slane %v6671, 4
      %v6673 = vrot.slane %v6604, 5
      %v6674 = vsel %vm575, %v6672, %v6673
      %v6675 = vrot.slane %v6673, 4
      %v6676 = vrot.slane %v6605, 5
      %v6677 = vsel %vm575, %v6675, %v6676
      %v6678 = vrot.slane %v6606, 5
      %v6679 = vrot.slane %v6678, 4
      %v6680 = vrot.slane %v6607, 5
      %v6681 = vsel %vm575, %v6679, %v6680
      %v6682 = vrot.slane %v6680, 4
      %v6683 = vrot.slane %v6608, 5
      %v6684 = vsel %vm575, %v6682, %v6683
      %v6685 = vrot.slane %v6609, 5
      %v6686 = vrot.slane %v6685, 4
      %v6687 = vrot.slane %v6610, 5
      %v6688 = vsel %vm575, %v6686, %v6687
      %v6689 = vrot.slane %v6687, 4
      %v6690 = vrot.slane %v6611, 5
      %v6691 = vsel %vm575, %v6689, %v6690
      %6692 = vrot.lane.b32.xlu0 %v6639, 120
      %v6693 = vpop.permute.xlu0 %6692
      %6694 = vrot.lane.b32.xlu0 %v6642, 120
      %v6695 = vpop.permute.xlu0 %6694
      %6696 = vrot.lane.b32.xlu0 %v6646, 120
      %v6697 = vpop.permute.xlu0 %6696
      %6698 = vrot.lane.b32.xlu0 %v6649, 120
      %v6699 = vpop.permute.xlu0 %6698
      %6700 = vrot.lane.b32.xlu0 %v6653, 120
      %v6701 = vpop.permute.xlu0 %6700
      %6702 = vrot.lane.b32.xlu0 %v6656, 120
      %v6703 = vpop.permute.xlu0 %6702
      %6704 = vrot.lane.b32.xlu0 %v6660, 120
      %v6705 = vpop.permute.xlu0 %6704
      %6706 = vrot.lane.b32.xlu0 %v6663, 120
      %v6707 = vpop.permute.xlu0 %6706
      %6708 = vrot.lane.b32.xlu0 %v6667, 120
      %v6709 = vpop.permute.xlu0 %6708
      %6710 = vrot.lane.b32.xlu0 %v6670, 120
      %v6711 = vpop.permute.xlu0 %6710
      %6712 = vrot.lane.b32.xlu0 %v6674, 120
      %v6713 = vpop.permute.xlu0 %6712
      %6714 = vrot.lane.b32.xlu0 %v6677, 120
      %v6715 = vpop.permute.xlu0 %6714
      %6716 = vrot.lane.b32.xlu0 %v6681, 120
      %v6717 = vpop.permute.xlu0 %6716
      %6718 = vrot.lane.b32.xlu0 %v6684, 120
      %v6719 = vpop.permute.xlu0 %6718
      %6720 = vrot.lane.b32.xlu0 %v6688, 120
      %v6721 = vpop.permute.xlu0 %6720
      %6722 = vrot.lane.b32.xlu0 %v6691, 120
      %v6723 = vpop.permute.xlu0 %6722
      %vm6740 = vcmask 1011648
      %6741 = vst.msk [vmem:[#allocation2] sm:$0xf] %vm6740, %v6693
      %6742 = vst.msk [vmem:[#allocation2 + $0x8] sm:$0xf] %vm6740, %v6695
      %6743 = vst.msk [vmem:[#allocation2 + $0x10] sm:$0xf] %vm6740, %v6697
      %6744 = vst.msk [vmem:[#allocation2 + $0x18] sm:$0xf] %vm6740, %v6699
      %6745 = vst.msk [vmem:[#allocation2 + $0x20] sm:$0xf] %vm6740, %v6701
      %6746 = vst.msk [vmem:[#allocation2 + $0x28] sm:$0xf] %vm6740, %v6703
      %6747 = vst.msk [vmem:[#allocation2 + $0x30] sm:$0xf] %vm6740, %v6705
      %6748 = vst.msk [vmem:[#allocation2 + $0x38] sm:$0xf] %vm6740, %v6707
      %6749 = vst.msk [vmem:[#allocation2 + $0x40] sm:$0xf] %vm6740, %v6709
      %6750 = vst.msk [vmem:[#allocation2 + $0x48] sm:$0xf] %vm6740, %v6711
      %6751 = vst.msk [vmem:[#allocation2 + $0x50] sm:$0xf] %vm6740, %v6713
      %6752 = vst.msk [vmem:[#allocation2 + $0x58] sm:$0xf] %vm6740, %v6715
      %6753 = vst.msk [vmem:[#allocation2 + $0x60] sm:$0xf] %vm6740, %v6717
      %6754 = vst.msk [vmem:[#allocation2 + $0x68] sm:$0xf] %vm6740, %v6719
      %6755 = vst.msk [vmem:[#allocation2 + $0x70] sm:$0xf] %vm6740, %v6721
      %6756 = vst.msk [vmem:[#allocation2 + $0x78] sm:$0xf] %vm6740, %v6723
      %v6757 = vld [vmem:[%s6209] sm:$0xe]
      %v6758 = vld [vmem:[%s6209 + $0x4] sm:$0xf]
      %v6759 = vld [vmem:[%s6209 + $0x8] sm:$0x3]
      %v6760 = vld [vmem:[%s6209 + $0xc] sm:$0xe]
      %v6761 = vld [vmem:[%s6209 + $0x10] sm:$0xf]
      %v6762 = vld [vmem:[%s6209 + $0x14] sm:$0x3]
      %v6763 = vld [vmem:[%s6209 + $0x18] sm:$0xe]
      %v6764 = vld [vmem:[%s6209 + $0x1c] sm:$0xf]
      %v6765 = vld [vmem:[%s6209 + $0x20] sm:$0x3]
      %v6766 = vld [vmem:[%s6209 + $0x24] sm:$0xe]
      %v6767 = vld [vmem:[%s6209 + $0x28] sm:$0xf]
      %v6768 = vld [vmem:[%s6209 + $0x2c] sm:$0x3]
      %v6769 = vld [vmem:[%s6209 + $0x30] sm:$0xe]
      %v6770 = vld [vmem:[%s6209 + $0x34] sm:$0xf]
      %v6771 = vld [vmem:[%s6209 + $0x38] sm:$0x3]
      %v6772 = vld [vmem:[%s6209 + $0x3c] sm:$0xe]
      %v6773 = vld [vmem:[%s6209 + $0x40] sm:$0xf]
      %v6774 = vld [vmem:[%s6209 + $0x44] sm:$0x3]
      %v6775 = vld [vmem:[%s6209 + $0x48] sm:$0xe]
      %v6776 = vld [vmem:[%s6209 + $0x4c] sm:$0xf]
      %v6777 = vld [vmem:[%s6209 + $0x50] sm:$0x3]
      %v6778 = vld [vmem:[%s6209 + $0x54] sm:$0xe]
      %v6779 = vld [vmem:[%s6209 + $0x58] sm:$0xf]
      %v6780 = vld [vmem:[%s6209 + $0x5c] sm:$0x3]
      %v6782 = vshrl.u32 %v6757, 16
      %v6784 = vrot.slane %v6782, 5
      %v6785 = vshll.u32 %v6757, 16
      %v6787 = vrot.slane %v6785, 6
      %v6788 = vor.u32 %v6784, %v6787
      %v6789 = vrot.slane %v6788, 4
      %v6791 = vshrl.u32 %v6758, 16
      %v6793 = vrot.slane %v6791, 5
      %v6794 = vshll.u32 %v6758, 16
      %v6796 = vrot.slane %v6794, 6
      %v6797 = vor.u32 %v6793, %v6796
      %v6798 = vsel %vm723, %v6789, %v6797
      %v6799 = vrot.slane %v6797, 4
      %v6801 = vshrl.u32 %v6759, 16
      %v6803 = vrot.slane %v6801, 5
      %v6804 = vshll.u32 %v6759, 16
      %v6806 = vrot.slane %v6804, 6
      %v6807 = vor.u32 %v6803, %v6806
      %v6808 = vsel %vm723, %v6799, %v6807
      %v6810 = vshrl.u32 %v6760, 16
      %v6812 = vrot.slane %v6810, 5
      %v6813 = vshll.u32 %v6760, 16
      %v6815 = vrot.slane %v6813, 6
      %v6816 = vor.u32 %v6812, %v6815
      %v6817 = vrot.slane %v6816, 4
      %v6819 = vshrl.u32 %v6761, 16
      %v6821 = vrot.slane %v6819, 5
      %v6822 = vshll.u32 %v6761, 16
      %v6824 = vrot.slane %v6822, 6
      %v6825 = vor.u32 %v6821, %v6824
      %v6826 = vsel %vm723, %v6817, %v6825
      %v6827 = vrot.slane %v6825, 4
      %v6829 = vshrl.u32 %v6762, 16
      %v6831 = vrot.slane %v6829, 5
      %v6832 = vshll.u32 %v6762, 16
      %v6834 = vrot.slane %v6832, 6
      %v6835 = vor.u32 %v6831, %v6834
      %v6836 = vsel %vm723, %v6827, %v6835
      %v6838 = vshrl.u32 %v6763, 16
      %v6840 = vrot.slane %v6838, 5
      %v6841 = vshll.u32 %v6763, 16
      %v6843 = vrot.slane %v6841, 6
      %v6844 = vor.u32 %v6840, %v6843
      %v6845 = vrot.slane %v6844, 4
      %v6847 = vshrl.u32 %v6764, 16
      %v6849 = vrot.slane %v6847, 5
      %v6850 = vshll.u32 %v6764, 16
      %v6852 = vrot.slane %v6850, 6
      %v6853 = vor.u32 %v6849, %v6852
      %v6854 = vsel %vm723, %v6845, %v6853
      %v6855 = vrot.slane %v6853, 4
      %v6857 = vshrl.u32 %v6765, 16
      %v6859 = vrot.slane %v6857, 5
      %v6860 = vshll.u32 %v6765, 16
      %v6862 = vrot.slane %v6860, 6
      %v6863 = vor.u32 %v6859, %v6862
      %v6864 = vsel %vm723, %v6855, %v6863
      %v6866 = vshrl.u32 %v6766, 16
      %v6868 = vrot.slane %v6866, 5
      %v6869 = vshll.u32 %v6766, 16
      %v6871 = vrot.slane %v6869, 6
      %v6872 = vor.u32 %v6868, %v6871
      %v6873 = vrot.slane %v6872, 4
      %v6875 = vshrl.u32 %v6767, 16
      %v6877 = vrot.slane %v6875, 5
      %v6878 = vshll.u32 %v6767, 16
      %v6880 = vrot.slane %v6878, 6
      %v6881 = vor.u32 %v6877, %v6880
      %v6882 = vsel %vm723, %v6873, %v6881
      %v6883 = vrot.slane %v6881, 4
      %v6885 = vshrl.u32 %v6768, 16
      %v6887 = vrot.slane %v6885, 5
      %v6888 = vshll.u32 %v6768, 16
      %v6890 = vrot.slane %v6888, 6
      %v6891 = vor.u32 %v6887, %v6890
      %v6892 = vsel %vm723, %v6883, %v6891
      %v6894 = vshrl.u32 %v6769, 16
      %v6896 = vrot.slane %v6894, 5
      %v6897 = vshll.u32 %v6769, 16
      %v6899 = vrot.slane %v6897, 6
      %v6900 = vor.u32 %v6896, %v6899
      %v6901 = vrot.slane %v6900, 4
      %v6903 = vshrl.u32 %v6770, 16
      %v6905 = vrot.slane %v6903, 5
      %v6906 = vshll.u32 %v6770, 16
      %v6908 = vrot.slane %v6906, 6
      %v6909 = vor.u32 %v6905, %v6908
      %v6910 = vsel %vm723, %v6901, %v6909
      %v6911 = vrot.slane %v6909, 4
      %v6913 = vshrl.u32 %v6771, 16
      %v6915 = vrot.slane %v6913, 5
      %v6916 = vshll.u32 %v6771, 16
      %v6918 = vrot.slane %v6916, 6
      %v6919 = vor.u32 %v6915, %v6918
      %v6920 = vsel %vm723, %v6911, %v6919
      %v6922 = vshrl.u32 %v6772, 16
      %v6924 = vrot.slane %v6922, 5
      %v6925 = vshll.u32 %v6772, 16
      %v6927 = vrot.slane %v6925, 6
      %v6928 = vor.u32 %v6924, %v6927
      %v6929 = vrot.slane %v6928, 4
      %v6931 = vshrl.u32 %v6773, 16
      %v6933 = vrot.slane %v6931, 5
      %v6934 = vshll.u32 %v6773, 16
      %v6936 = vrot.slane %v6934, 6
      %v6937 = vor.u32 %v6933, %v6936
      %v6938 = vsel %vm723, %v6929, %v6937
      %v6939 = vrot.slane %v6937, 4
      %v6941 = vshrl.u32 %v6774, 16
      %v6943 = vrot.slane %v6941, 5
      %v6944 = vshll.u32 %v6774, 16
      %v6946 = vrot.slane %v6944, 6
      %v6947 = vor.u32 %v6943, %v6946
      %v6948 = vsel %vm723, %v6939, %v6947
      %v6950 = vshrl.u32 %v6775, 16
      %v6952 = vrot.slane %v6950, 5
      %v6953 = vshll.u32 %v6775, 16
      %v6955 = vrot.slane %v6953, 6
      %v6956 = vor.u32 %v6952, %v6955
      %v6957 = vrot.slane %v6956, 4
      %v6959 = vshrl.u32 %v6776, 16
      %v6961 = vrot.slane %v6959, 5
      %v6962 = vshll.u32 %v6776, 16
      %v6964 = vrot.slane %v6962, 6
      %v6965 = vor.u32 %v6961, %v6964
      %v6966 = vsel %vm723, %v6957, %v6965
      %v6967 = vrot.slane %v6965, 4
      %v6969 = vshrl.u32 %v6777, 16
      %v6971 = vrot.slane %v6969, 5
      %v6972 = vshll.u32 %v6777, 16
      %v6974 = vrot.slane %v6972, 6
      %v6975 = vor.u32 %v6971, %v6974
      %v6976 = vsel %vm723, %v6967, %v6975
      %v6978 = vshrl.u32 %v6778, 16
      %v6980 = vrot.slane %v6978, 5
      %v6981 = vshll.u32 %v6778, 16
      %v6983 = vrot.slane %v6981, 6
      %v6984 = vor.u32 %v6980, %v6983
      %v6985 = vrot.slane %v6984, 4
      %v6987 = vshrl.u32 %v6779, 16
      %v6989 = vrot.slane %v6987, 5
      %v6990 = vshll.u32 %v6779, 16
      %v6992 = vrot.slane %v6990, 6
      %v6993 = vor.u32 %v6989, %v6992
      %v6994 = vsel %vm723, %v6985, %v6993
      %v6995 = vrot.slane %v6993, 4
      %v6997 = vshrl.u32 %v6780, 16
      %v6999 = vrot.slane %v6997, 5
      %v7000 = vshll.u32 %v6780, 16
      %v7002 = vrot.slane %v7000, 6
      %v7003 = vor.u32 %v6999, %v7002
      %v7004 = vsel %vm723, %v6995, %v7003
      %7005 = vrot.lane.b32.xlu0 %v6798, 124
      %v7006 = vpop.permute.xlu0 %7005
      %7007 = vrot.lane.b32.xlu0 %v6808, 124
      %v7008 = vpop.permute.xlu0 %7007
      %7009 = vrot.lane.b32.xlu0 %v6826, 124
      %v7010 = vpop.permute.xlu0 %7009
      %7011 = vrot.lane.b32.xlu0 %v6836, 124
      %v7012 = vpop.permute.xlu0 %7011
      %7013 = vrot.lane.b32.xlu0 %v6854, 124
      %v7014 = vpop.permute.xlu0 %7013
      %7015 = vrot.lane.b32.xlu0 %v6864, 124
      %v7016 = vpop.permute.xlu0 %7015
      %7017 = vrot.lane.b32.xlu0 %v6882, 124
      %v7018 = vpop.permute.xlu0 %7017
      %7019 = vrot.lane.b32.xlu0 %v6892, 124
      %v7020 = vpop.permute.xlu0 %7019
      %7021 = vrot.lane.b32.xlu0 %v6910, 124
      %v7022 = vpop.permute.xlu0 %7021
      %7023 = vrot.lane.b32.xlu0 %v6920, 124
      %v7024 = vpop.permute.xlu0 %7023
      %7025 = vrot.lane.b32.xlu0 %v6938, 124
      %v7026 = vpop.permute.xlu0 %7025
      %7027 = vrot.lane.b32.xlu0 %v6948, 124
      %v7028 = vpop.permute.xlu0 %7027
      %7029 = vrot.lane.b32.xlu0 %v6966, 124
      %v7030 = vpop.permute.xlu0 %7029
      %7031 = vrot.lane.b32.xlu0 %v6976, 124
      %v7032 = vpop.permute.xlu0 %7031
      %7033 = vrot.lane.b32.xlu0 %v6994, 124
      %v7034 = vpop.permute.xlu0 %7033
      %7035 = vrot.lane.b32.xlu0 %v7004, 124
      %v7036 = vpop.permute.xlu0 %7035
      %vm7053 = vcmask 1044448
      %7054 = vst.msk [vmem:[#allocation2] sm:$0xf] %vm7053, %v7006
      %7055 = vst.msk [vmem:[#allocation2 + $0x8] sm:$0xf] %vm7053, %v7008
      %7056 = vst.msk [vmem:[#allocation2 + $0x10] sm:$0xf] %vm7053, %v7010
      %7057 = vst.msk [vmem:[#allocation2 + $0x18] sm:$0xf] %vm7053, %v7012
      %7058 = vst.msk [vmem:[#allocation2 + $0x20] sm:$0xf] %vm7053, %v7014
      %7059 = vst.msk [vmem:[#allocation2 + $0x28] sm:$0xf] %vm7053, %v7016
      %7060 = vst.msk [vmem:[#allocation2 + $0x30] sm:$0xf] %vm7053, %v7018
      %7061 = vst.msk [vmem:[#allocation2 + $0x38] sm:$0xf] %vm7053, %v7020
      %7062 = vst.msk [vmem:[#allocation2 + $0x40] sm:$0xf] %vm7053, %v7022
      %7063 = vst.msk [vmem:[#allocation2 + $0x48] sm:$0xf] %vm7053, %v7024
      %7064 = vst.msk [vmem:[#allocation2 + $0x50] sm:$0xf] %vm7053, %v7026
      %7065 = vst.msk [vmem:[#allocation2 + $0x58] sm:$0xf] %vm7053, %v7028
      %7066 = vst.msk [vmem:[#allocation2 + $0x60] sm:$0xf] %vm7053, %v7030
      %7067 = vst.msk [vmem:[#allocation2 + $0x68] sm:$0xf] %vm7053, %v7032
      %7068 = vst.msk [vmem:[#allocation2 + $0x70] sm:$0xf] %vm7053, %v7034
      %7069 = vst.msk [vmem:[#allocation2 + $0x78] sm:$0xf] %vm7053, %v7036
      %v7070 = vld [vmem:[%s6209] sm:$0xc]
      %v7071 = vld [vmem:[%s6209 + $0x4] sm:$0xf]
      %v7072 = vld [vmem:[%s6209 + $0x8] sm:$0x3]
      %v7073 = vld [vmem:[%s6209 + $0xc] sm:$0xc]
      %v7074 = vld [vmem:[%s6209 + $0x10] sm:$0xf]
      %v7075 = vld [vmem:[%s6209 + $0x14] sm:$0x3]
      %v7076 = vld [vmem:[%s6209 + $0x18] sm:$0xc]
      %v7077 = vld [vmem:[%s6209 + $0x1c] sm:$0xf]
      %v7078 = vld [vmem:[%s6209 + $0x20] sm:$0x3]
      %v7079 = vld [vmem:[%s6209 + $0x24] sm:$0xc]
      %v7080 = vld [vmem:[%s6209 + $0x28] sm:$0xf]
      %v7081 = vld [vmem:[%s6209 + $0x2c] sm:$0x3]
      %v7082 = vld [vmem:[%s6209 + $0x30] sm:$0xc]
      %v7083 = vld [vmem:[%s6209 + $0x34] sm:$0xf]
      %v7084 = vld [vmem:[%s6209 + $0x38] sm:$0x3]
      %v7085 = vld [vmem:[%s6209 + $0x3c] sm:$0xc]
      %v7086 = vld [vmem:[%s6209 + $0x40] sm:$0xf]
      %v7087 = vld [vmem:[%s6209 + $0x44] sm:$0x3]
      %v7088 = vld [vmem:[%s6209 + $0x48] sm:$0xc]
      %v7089 = vld [vmem:[%s6209 + $0x4c] sm:$0xf]
      %v7090 = vld [vmem:[%s6209 + $0x50] sm:$0x3]
      %v7091 = vld [vmem:[%s6209 + $0x54] sm:$0xc]
      %v7092 = vld [vmem:[%s6209 + $0x58] sm:$0xf]
      %v7093 = vld [vmem:[%s6209 + $0x5c] sm:$0x3]
      %v7118 = vrot.slane %v7070, 6
      %v7119 = vrot.slane %v7118, 4
      %v7120 = vrot.slane %v7071, 6
      %v7121 = vsel %vm1063, %v7119, %v7120
      %v7122 = vrot.slane %v7120, 4
      %v7123 = vrot.slane %v7072, 6
      %v7124 = vsel %vm1063, %v7122, %v7123
      %v7125 = vrot.slane %v7073, 6
      %v7126 = vrot.slane %v7125, 4
      %v7127 = vrot.slane %v7074, 6
      %v7128 = vsel %vm1063, %v7126, %v7127
      %v7129 = vrot.slane %v7127, 4
      %v7130 = vrot.slane %v7075, 6
      %v7131 = vsel %vm1063, %v7129, %v7130
      %v7132 = vrot.slane %v7076, 6
      %v7133 = vrot.slane %v7132, 4
      %v7134 = vrot.slane %v7077, 6
      %v7135 = vsel %vm1063, %v7133, %v7134
      %v7136 = vrot.slane %v7134, 4
      %v7137 = vrot.slane %v7078, 6
      %v7138 = vsel %vm1063, %v7136, %v7137
      %v7139 = vrot.slane %v7079, 6
      %v7140 = vrot.slane %v7139, 4
      %v7141 = vrot.slane %v7080, 6
      %v7142 = vsel %vm1063, %v7140, %v7141
      %v7143 = vrot.slane %v7141, 4
      %v7144 = vrot.slane %v7081, 6
      %v7145 = vsel %vm1063, %v7143, %v7144
      %v7146 = vrot.slane %v7082, 6
      %v7147 = vrot.slane %v7146, 4
      %v7148 = vrot.slane %v7083, 6
      %v7149 = vsel %vm1063, %v7147, %v7148
      %v7150 = vrot.slane %v7148, 4
      %v7151 = vrot.slane %v7084, 6
      %v7152 = vsel %vm1063, %v7150, %v7151
      %v7153 = vrot.slane %v7085, 6
      %v7154 = vrot.slane %v7153, 4
      %v7155 = vrot.slane %v7086, 6
      %v7156 = vsel %vm1063, %v7154, %v7155
      %v7157 = vrot.slane %v7155, 4
      %v7158 = vrot.slane %v7087, 6
      %v7159 = vsel %vm1063, %v7157, %v7158
      %v7160 = vrot.slane %v7088, 6
      %v7161 = vrot.slane %v7160, 4
      %v7162 = vrot.slane %v7089, 6
      %v7163 = vsel %vm1063, %v7161, %v7162
      %v7164 = vrot.slane %v7162, 4
      %v7165 = vrot.slane %v7090, 6
      %v7166 = vsel %vm1063, %v7164, %v7165
      %v7167 = vrot.slane %v7091, 6
      %v7168 = vrot.slane %v7167, 4
      %v7169 = vrot.slane %v7092, 6
      %v7170 = vsel %vm1063, %v7168, %v7169
      %v7171 = vrot.slane %v7169, 4
      %v7172 = vrot.slane %v7093, 6
      %v7173 = vsel %vm1063, %v7171, %v7172
      %7190 = vst.msk [vmem:[#allocation2 + $0x4] sm:$0xf] %vm224, %v7121
      %7191 = vst.msk [vmem:[#allocation2 + $0xc] sm:$0xf] %vm224, %v7124
      %7192 = vst.msk [vmem:[#allocation2 + $0x14] sm:$0xf] %vm224, %v7128
      %7193 = vst.msk [vmem:[#allocation2 + $0x1c] sm:$0xf] %vm224, %v7131
      %7194 = vst.msk [vmem:[#allocation2 + $0x24] sm:$0xf] %vm224, %v7135
      %7195 = vst.msk [vmem:[#allocation2 + $0x2c] sm:$0xf] %vm224, %v7138
      %7196 = vst.msk [vmem:[#allocation2 + $0x34] sm:$0xf] %vm224, %v7142
      %7197 = vst.msk [vmem:[#allocation2 + $0x3c] sm:$0xf] %vm224, %v7145
      %7198 = vst.msk [vmem:[#allocation2 + $0x44] sm:$0xf] %vm224, %v7149
      %7199 = vst.msk [vmem:[#allocation2 + $0x4c] sm:$0xf] %vm224, %v7152
      %7200 = vst.msk [vmem:[#allocation2 + $0x54] sm:$0xf] %vm224, %v7156
      %7201 = vst.msk [vmem:[#allocation2 + $0x5c] sm:$0xf] %vm224, %v7159
      %7202 = vst.msk [vmem:[#allocation2 + $0x64] sm:$0xf] %vm224, %v7163
      %7203 = vst.msk [vmem:[#allocation2 + $0x6c] sm:$0xf] %vm224, %v7166
      %7204 = vst.msk [vmem:[#allocation2 + $0x74] sm:$0xf] %vm224, %v7170
      %7205 = vst.msk [vmem:[#allocation2 + $0x7c] sm:$0xf] %vm224, %v7173
      %v7206 = vld [vmem:[%s6209] sm:$0xc]
      %v7207 = vld [vmem:[%s6209 + $0x4] sm:$0xf]
      %v7208 = vld [vmem:[%s6209 + $0x8] sm:$0x7]
      %v7209 = vld [vmem:[%s6209 + $0xc] sm:$0xc]
      %v7210 = vld [vmem:[%s6209 + $0x10] sm:$0xf]
      %v7211 = vld [vmem:[%s6209 + $0x14] sm:$0x7]
      %v7212 = vld [vmem:[%s6209 + $0x18] sm:$0xc]
      %v7213 = vld [vmem:[%s6209 + $0x1c] sm:$0xf]
      %v7214 = vld [vmem:[%s6209 + $0x20] sm:$0x7]
      %v7215 = vld [vmem:[%s6209 + $0x24] sm:$0xc]
      %v7216 = vld [vmem:[%s6209 + $0x28] sm:$0xf]
      %v7217 = vld [vmem:[%s6209 + $0x2c] sm:$0x7]
      %v7218 = vld [vmem:[%s6209 + $0x30] sm:$0xc]
      %v7219 = vld [vmem:[%s6209 + $0x34] sm:$0xf]
      %v7220 = vld [vmem:[%s6209 + $0x38] sm:$0x7]
      %v7221 = vld [vmem:[%s6209 + $0x3c] sm:$0xc]
      %v7222 = vld [vmem:[%s6209 + $0x40] sm:$0xf]
      %v7223 = vld [vmem:[%s6209 + $0x44] sm:$0x7]
      %v7224 = vld [vmem:[%s6209 + $0x48] sm:$0xc]
      %v7225 = vld [vmem:[%s6209 + $0x4c] sm:$0xf]
      %v7226 = vld [vmem:[%s6209 + $0x50] sm:$0x7]
      %v7227 = vld [vmem:[%s6209 + $0x54] sm:$0xc]
      %v7228 = vld [vmem:[%s6209 + $0x58] sm:$0xf]
      %v7229 = vld [vmem:[%s6209 + $0x5c] sm:$0x7]
      %v7231 = vshrl.u32 %v7206, 16
      %v7233 = vrot.slane %v7231, 6
      %v7234 = vshll.u32 %v7206, 16
      %v7236 = vrot.slane %v7234, 7
      %v7237 = vor.u32 %v7233, %v7236
      %v7238 = vrot.slane %v7237, 4
      %v7240 = vshrl.u32 %v7207, 16
      %v7242 = vrot.slane %v7240, 6
      %v7243 = vshll.u32 %v7207, 16
      %v7245 = vrot.slane %v7243, 7
      %v7246 = vor.u32 %v7242, %v7245
      %v7247 = vsel %vm1211, %v7238, %v7246
      %v7248 = vrot.slane %v7246, 4
      %v7250 = vshrl.u32 %v7208, 16
      %v7252 = vrot.slane %v7250, 6
      %v7253 = vshll.u32 %v7208, 16
      %v7255 = vrot.slane %v7253, 7
      %v7256 = vor.u32 %v7252, %v7255
      %v7257 = vsel %vm1211, %v7248, %v7256
      %v7259 = vshrl.u32 %v7209, 16
      %v7261 = vrot.slane %v7259, 6
      %v7262 = vshll.u32 %v7209, 16
      %v7264 = vrot.slane %v7262, 7
      %v7265 = vor.u32 %v7261, %v7264
      %v7266 = vrot.slane %v7265, 4
      %v7268 = vshrl.u32 %v7210, 16
      %v7270 = vrot.slane %v7268, 6
      %v7271 = vshll.u32 %v7210, 16
      %v7273 = vrot.slane %v7271, 7
      %v7274 = vor.u32 %v7270, %v7273
      %v7275 = vsel %vm1211, %v7266, %v7274
      %v7276 = vrot.slane %v7274, 4
      %v7278 = vshrl.u32 %v7211, 16
      %v7280 = vrot.slane %v7278, 6
      %v7281 = vshll.u32 %v7211, 16
      %v7283 = vrot.slane %v7281, 7
      %v7284 = vor.u32 %v7280, %v7283
      %v7285 = vsel %vm1211, %v7276, %v7284
      %v7287 = vshrl.u32 %v7212, 16
      %v7289 = vrot.slane %v7287, 6
      %v7290 = vshll.u32 %v7212, 16
      %v7292 = vrot.slane %v7290, 7
      %v7293 = vor.u32 %v7289, %v7292
      %v7294 = vrot.slane %v7293, 4
      %v7296 = vshrl.u32 %v7213, 16
      %v7298 = vrot.slane %v7296, 6
      %v7299 = vshll.u32 %v7213, 16
      %v7301 = vrot.slane %v7299, 7
      %v7302 = vor.u32 %v7298, %v7301
      %v7303 = vsel %vm1211, %v7294, %v7302
      %v7304 = vrot.slane %v7302, 4
      %v7306 = vshrl.u32 %v7214, 16
      %v7308 = vrot.slane %v7306, 6
      %v7309 = vshll.u32 %v7214, 16
      %v7311 = vrot.slane %v7309, 7
      %v7312 = vor.u32 %v7308, %v7311
      %v7313 = vsel %vm1211, %v7304, %v7312
      %v7315 = vshrl.u32 %v7215, 16
      %v7317 = vrot.slane %v7315, 6
      %v7318 = vshll.u32 %v7215, 16
      %v7320 = vrot.slane %v7318, 7
      %v7321 = vor.u32 %v7317, %v7320
      %v7322 = vrot.slane %v7321, 4
      %v7324 = vshrl.u32 %v7216, 16
      %v7326 = vrot.slane %v7324, 6
      %v7327 = vshll.u32 %v7216, 16
      %v7329 = vrot.slane %v7327, 7
      %v7330 = vor.u32 %v7326, %v7329
      %v7331 = vsel %vm1211, %v7322, %v7330
      %v7332 = vrot.slane %v7330, 4
      %v7334 = vshrl.u32 %v7217, 16
      %v7336 = vrot.slane %v7334, 6
      %v7337 = vshll.u32 %v7217, 16
      %v7339 = vrot.slane %v7337, 7
      %v7340 = vor.u32 %v7336, %v7339
      %v7341 = vsel %vm1211, %v7332, %v7340
      %v7343 = vshrl.u32 %v7218, 16
      %v7345 = vrot.slane %v7343, 6
      %v7346 = vshll.u32 %v7218, 16
      %v7348 = vrot.slane %v7346, 7
      %v7349 = vor.u32 %v7345, %v7348
      %v7350 = vrot.slane %v7349, 4
      %v7352 = vshrl.u32 %v7219, 16
      %v7354 = vrot.slane %v7352, 6
      %v7355 = vshll.u32 %v7219, 16
      %v7357 = vrot.slane %v7355, 7
      %v7358 = vor.u32 %v7354, %v7357
      %v7359 = vsel %vm1211, %v7350, %v7358
      %v7360 = vrot.slane %v7358, 4
      %v7362 = vshrl.u32 %v7220, 16
      %v7364 = vrot.slane %v7362, 6
      %v7365 = vshll.u32 %v7220, 16
      %v7367 = vrot.slane %v7365, 7
      %v7368 = vor.u32 %v7364, %v7367
      %v7369 = vsel %vm1211, %v7360, %v7368
      %v7371 = vshrl.u32 %v7221, 16
      %v7373 = vrot.slane %v7371, 6
      %v7374 = vshll.u32 %v7221, 16
      %v7376 = vrot.slane %v7374, 7
      %v7377 = vor.u32 %v7373, %v7376
      %v7378 = vrot.slane %v7377, 4
      %v7380 = vshrl.u32 %v7222, 16
      %v7382 = vrot.slane %v7380, 6
      %v7383 = vshll.u32 %v7222, 16
      %v7385 = vrot.slane %v7383, 7
      %v7386 = vor.u32 %v7382, %v7385
      %v7387 = vsel %vm1211, %v7378, %v7386
      %v7388 = vrot.slane %v7386, 4
      %v7390 = vshrl.u32 %v7223, 16
      %v7392 = vrot.slane %v7390, 6
      %v7393 = vshll.u32 %v7223, 16
      %v7395 = vrot.slane %v7393, 7
      %v7396 = vor.u32 %v7392, %v7395
      %v7397 = vsel %vm1211, %v7388, %v7396
      %v7399 = vshrl.u32 %v7224, 16
      %v7401 = vrot.slane %v7399, 6
      %v7402 = vshll.u32 %v7224, 16
      %v7404 = vrot.slane %v7402, 7
      %v7405 = vor.u32 %v7401, %v7404
      %v7406 = vrot.slane %v7405, 4
      %v7408 = vshrl.u32 %v7225, 16
      %v7410 = vrot.slane %v7408, 6
      %v7411 = vshll.u32 %v7225, 16
      %v7413 = vrot.slane %v7411, 7
      %v7414 = vor.u32 %v7410, %v7413
      %v7415 = vsel %vm1211, %v7406, %v7414
      %v7416 = vrot.slane %v7414, 4
      %v7418 = vshrl.u32 %v7226, 16
      %v7420 = vrot.slane %v7418, 6
      %v7421 = vshll.u32 %v7226, 16
      %v7423 = vrot.slane %v7421, 7
      %v7424 = vor.u32 %v7420, %v7423
      %v7425 = vsel %vm1211, %v7416, %v7424
      %v7427 = vshrl.u32 %v7227, 16
      %v7429 = vrot.slane %v7427, 6
      %v7430 = vshll.u32 %v7227, 16
      %v7432 = vrot.slane %v7430, 7
      %v7433 = vor.u32 %v7429, %v7432
      %v7434 = vrot.slane %v7433, 4
      %v7436 = vshrl.u32 %v7228, 16
      %v7438 = vrot.slane %v7436, 6
      %v7439 = vshll.u32 %v7228, 16
      %v7441 = vrot.slane %v7439, 7
      %v7442 = vor.u32 %v7438, %v7441
      %v7443 = vsel %vm1211, %v7434, %v7442
      %v7444 = vrot.slane %v7442, 4
      %v7446 = vshrl.u32 %v7229, 16
      %v7448 = vrot.slane %v7446, 6
      %v7449 = vshll.u32 %v7229, 16
      %v7451 = vrot.slane %v7449, 7
      %v7452 = vor.u32 %v7448, %v7451
      %v7453 = vsel %vm1211, %v7444, %v7452
      %7454 = vrot.lane.b32.xlu0 %v7247, 4
      %v7455 = vpop.permute.xlu0 %7454
      %7456 = vrot.lane.b32.xlu0 %v7257, 4
      %v7457 = vpop.permute.xlu0 %7456
      %7458 = vrot.lane.b32.xlu0 %v7275, 4
      %v7459 = vpop.permute.xlu0 %7458
      %7460 = vrot.lane.b32.xlu0 %v7285, 4
      %v7461 = vpop.permute.xlu0 %7460
      %7462 = vrot.lane.b32.xlu0 %v7303, 4
      %v7463 = vpop.permute.xlu0 %7462
      %7464 = vrot.lane.b32.xlu0 %v7313, 4
      %v7465 = vpop.permute.xlu0 %7464
      %7466 = vrot.lane.b32.xlu0 %v7331, 4
      %v7467 = vpop.permute.xlu0 %7466
      %7468 = vrot.lane.b32.xlu0 %v7341, 4
      %v7469 = vpop.permute.xlu0 %7468
      %7470 = vrot.lane.b32.xlu0 %v7359, 4
      %v7471 = vpop.permute.xlu0 %7470
      %7472 = vrot.lane.b32.xlu0 %v7369, 4
      %v7473 = vpop.permute.xlu0 %7472
      %7474 = vrot.lane.b32.xlu0 %v7387, 4
      %v7475 = vpop.permute.xlu0 %7474
      %7476 = vrot.lane.b32.xlu0 %v7397, 4
      %v7477 = vpop.permute.xlu0 %7476
      %7478 = vrot.lane.b32.xlu0 %v7415, 4
      %v7479 = vpop.permute.xlu0 %7478
      %7480 = vrot.lane.b32.xlu0 %v7425, 4
      %v7481 = vpop.permute.xlu0 %7480
      %7482 = vrot.lane.b32.xlu0 %v7443, 4
      %v7483 = vpop.permute.xlu0 %7482
      %7484 = vrot.lane.b32.xlu0 %v7453, 4
      %v7485 = vpop.permute.xlu0 %7484
      %7502 = vst.msk [vmem:[#allocation2 + $0x4] sm:$0xf] %vm508, %v7455
      %7503 = vst.msk [vmem:[#allocation2 + $0xc] sm:$0xf] %vm508, %v7457
      %7504 = vst.msk [vmem:[#allocation2 + $0x14] sm:$0xf] %vm508, %v7459
      %7505 = vst.msk [vmem:[#allocation2 + $0x1c] sm:$0xf] %vm508, %v7461
      %7506 = vst.msk [vmem:[#allocation2 + $0x24] sm:$0xf] %vm508, %v7463
      %7507 = vst.msk [vmem:[#allocation2 + $0x2c] sm:$0xf] %vm508, %v7465
      %7508 = vst.msk [vmem:[#allocation2 + $0x34] sm:$0xf] %vm508, %v7467
      %7509 = vst.msk [vmem:[#allocation2 + $0x3c] sm:$0xf] %vm508, %v7469
      %7510 = vst.msk [vmem:[#allocation2 + $0x44] sm:$0xf] %vm508, %v7471
      %7511 = vst.msk [vmem:[#allocation2 + $0x4c] sm:$0xf] %vm508, %v7473
      %7512 = vst.msk [vmem:[#allocation2 + $0x54] sm:$0xf] %vm508, %v7475
      %7513 = vst.msk [vmem:[#allocation2 + $0x5c] sm:$0xf] %vm508, %v7477
      %7514 = vst.msk [vmem:[#allocation2 + $0x64] sm:$0xf] %vm508, %v7479
      %7515 = vst.msk [vmem:[#allocation2 + $0x6c] sm:$0xf] %vm508, %v7481
      %7516 = vst.msk [vmem:[#allocation2 + $0x74] sm:$0xf] %vm508, %v7483
      %7517 = vst.msk [vmem:[#allocation2 + $0x7c] sm:$0xf] %vm508, %v7485
      %v7518 = vld [vmem:[%s6209] sm:$0x8]
      %v7519 = vld [vmem:[%s6209 + $0x4] sm:$0xf]
      %v7520 = vld [vmem:[%s6209 + $0x8] sm:$0x7]
      %v7521 = vld [vmem:[%s6209 + $0xc] sm:$0x8]
      %v7522 = vld [vmem:[%s6209 + $0x10] sm:$0xf]
      %v7523 = vld [vmem:[%s6209 + $0x14] sm:$0x7]
      %v7524 = vld [vmem:[%s6209 + $0x18] sm:$0x8]
      %v7525 = vld [vmem:[%s6209 + $0x1c] sm:$0xf]
      %v7526 = vld [vmem:[%s6209 + $0x20] sm:$0x7]
      %v7527 = vld [vmem:[%s6209 + $0x24] sm:$0x8]
      %v7528 = vld [vmem:[%s6209 + $0x28] sm:$0xf]
      %v7529 = vld [vmem:[%s6209 + $0x2c] sm:$0x7]
      %v7530 = vld [vmem:[%s6209 + $0x30] sm:$0x8]
      %v7531 = vld [vmem:[%s6209 + $0x34] sm:$0xf]
      %v7532 = vld [vmem:[%s6209 + $0x38] sm:$0x7]
      %v7533 = vld [vmem:[%s6209 + $0x3c] sm:$0x8]
      %v7534 = vld [vmem:[%s6209 + $0x40] sm:$0xf]
      %v7535 = vld [vmem:[%s6209 + $0x44] sm:$0x7]
      %v7536 = vld [vmem:[%s6209 + $0x48] sm:$0x8]
      %v7537 = vld [vmem:[%s6209 + $0x4c] sm:$0xf]
      %v7538 = vld [vmem:[%s6209 + $0x50] sm:$0x7]
      %v7539 = vld [vmem:[%s6209 + $0x54] sm:$0x8]
      %v7540 = vld [vmem:[%s6209 + $0x58] sm:$0xf]
      %v7541 = vld [vmem:[%s6209 + $0x5c] sm:$0x7]
      %v7566 = vrot.slane %v7518, 7
      %v7567 = vrot.slane %v7566, 4
      %v7568 = vrot.slane %v7519, 7
      %v7569 = vsel %vm1551, %v7567, %v7568
      %v7570 = vrot.slane %v7568, 4
      %v7571 = vrot.slane %v7520, 7
      %v7572 = vsel %vm1551, %v7570, %v7571
      %v7573 = vrot.slane %v7521, 7
      %v7574 = vrot.slane %v7573, 4
      %v7575 = vrot.slane %v7522, 7
      %v7576 = vsel %vm1551, %v7574, %v7575
      %v7577 = vrot.slane %v7575, 4
      %v7578 = vrot.slane %v7523, 7
      %v7579 = vsel %vm1551, %v7577, %v7578
      %v7580 = vrot.slane %v7524, 7
      %v7581 = vrot.slane %v7580, 4
      %v7582 = vrot.slane %v7525, 7
      %v7583 = vsel %vm1551, %v7581, %v7582
      %v7584 = vrot.slane %v7582, 4
      %v7585 = vrot.slane %v7526, 7
      %v7586 = vsel %vm1551, %v7584, %v7585
      %v7587 = vrot.slane %v7527, 7
      %v7588 = vrot.slane %v7587, 4
      %v7589 = vrot.slane %v7528, 7
      %v7590 = vsel %vm1551, %v7588, %v7589
      %v7591 = vrot.slane %v7589, 4
      %v7592 = vrot.slane %v7529, 7
      %v7593 = vsel %vm1551, %v7591, %v7592
      %v7594 = vrot.slane %v7530, 7
      %v7595 = vrot.slane %v7594, 4
      %v7596 = vrot.slane %v7531, 7
      %v7597 = vsel %vm1551, %v7595, %v7596
      %v7598 = vrot.slane %v7596, 4
      %v7599 = vrot.slane %v7532, 7
      %v7600 = vsel %vm1551, %v7598, %v7599
      %v7601 = vrot.slane %v7533, 7
      %v7602 = vrot.slane %v7601, 4
      %v7603 = vrot.slane %v7534, 7
      %v7604 = vsel %vm1551, %v7602, %v7603
      %v7605 = vrot.slane %v7603, 4
      %v7606 = vrot.slane %v7535, 7
      %v7607 = vsel %vm1551, %v7605, %v7606
      %v7608 = vrot.slane %v7536, 7
      %v7609 = vrot.slane %v7608, 4
      %v7610 = vrot.slane %v7537, 7
      %v7611 = vsel %vm1551, %v7609, %v7610
      %v7612 = vrot.slane %v7610, 4
      %v7613 = vrot.slane %v7538, 7
      %v7614 = vsel %vm1551, %v7612, %v7613
      %v7615 = vrot.slane %v7539, 7
      %v7616 = vrot.slane %v7615, 4
      %v7617 = vrot.slane %v7540, 7
      %v7618 = vsel %vm1551, %v7616, %v7617
      %v7619 = vrot.slane %v7617, 4
      %v7620 = vrot.slane %v7541, 7
      %v7621 = vsel %vm1551, %v7619, %v7620
      %7622 = vrot.lane.b32.xlu0 %v7569, 8
      %v7623 = vpop.permute.xlu0 %7622
      %7624 = vrot.lane.b32.xlu0 %v7572, 8
      %v7625 = vpop.permute.xlu0 %7624
      %7626 = vrot.lane.b32.xlu0 %v7576, 8
      %v7627 = vpop.permute.xlu0 %7626
      %7628 = vrot.lane.b32.xlu0 %v7579, 8
      %v7629 = vpop.permute.xlu0 %7628
      %7630 = vrot.lane.b32.xlu0 %v7583, 8
      %v7631 = vpop.permute.xlu0 %7630
      %7632 = vrot.lane.b32.xlu0 %v7586, 8
      %v7633 = vpop.permute.xlu0 %7632
      %7634 = vrot.lane.b32.xlu0 %v7590, 8
      %v7635 = vpop.permute.xlu0 %7634
      %7636 = vrot.lane.b32.xlu0 %v7593, 8
      %v7637 = vpop.permute.xlu0 %7636
      %7638 = vrot.lane.b32.xlu0 %v7597, 8
      %v7639 = vpop.permute.xlu0 %7638
      %7640 = vrot.lane.b32.xlu0 %v7600, 8
      %v7641 = vpop.permute.xlu0 %7640
      %7642 = vrot.lane.b32.xlu0 %v7604, 8
      %v7643 = vpop.permute.xlu0 %7642
      %7644 = vrot.lane.b32.xlu0 %v7607, 8
      %v7645 = vpop.permute.xlu0 %7644
      %7646 = vrot.lane.b32.xlu0 %v7611, 8
      %v7647 = vpop.permute.xlu0 %7646
      %7648 = vrot.lane.b32.xlu0 %v7614, 8
      %v7649 = vpop.permute.xlu0 %7648
      %7650 = vrot.lane.b32.xlu0 %v7618, 8
      %v7651 = vpop.permute.xlu0 %7650
      %7652 = vrot.lane.b32.xlu0 %v7621, 8
      %v7653 = vpop.permute.xlu0 %7652
      %7670 = vst.msk [vmem:[#allocation2 + $0x4] sm:$0xf] %vm680, %v7623
      %7671 = vst.msk [vmem:[#allocation2 + $0xc] sm:$0xf] %vm680, %v7625
      %7672 = vst.msk [vmem:[#allocation2 + $0x14] sm:$0xf] %vm680, %v7627
      %7673 = vst.msk [vmem:[#allocation2 + $0x1c] sm:$0xf] %vm680, %v7629
      %7674 = vst.msk [vmem:[#allocation2 + $0x24] sm:$0xf] %vm680, %v7631
      %7675 = vst.msk [vmem:[#allocation2 + $0x2c] sm:$0xf] %vm680, %v7633
      %7676 = vst.msk [vmem:[#allocation2 + $0x34] sm:$0xf] %vm680, %v7635
      %7677 = vst.msk [vmem:[#allocation2 + $0x3c] sm:$0xf] %vm680, %v7637
      %7678 = vst.msk [vmem:[#allocation2 + $0x44] sm:$0xf] %vm680, %v7639
      %7679 = vst.msk [vmem:[#allocation2 + $0x4c] sm:$0xf] %vm680, %v7641
      %7680 = vst.msk [vmem:[#allocation2 + $0x54] sm:$0xf] %vm680, %v7643
      %7681 = vst.msk [vmem:[#allocation2 + $0x5c] sm:$0xf] %vm680, %v7645
      %7682 = vst.msk [vmem:[#allocation2 + $0x64] sm:$0xf] %vm680, %v7647
      %7683 = vst.msk [vmem:[#allocation2 + $0x6c] sm:$0xf] %vm680, %v7649
      %7684 = vst.msk [vmem:[#allocation2 + $0x74] sm:$0xf] %vm680, %v7651
      %7685 = vst.msk [vmem:[#allocation2 + $0x7c] sm:$0xf] %vm680, %v7653
      %s7686 = scalar_lea.vmem %s197, 60
      %v7687 = vld [vmem:[%s7686] sm:$0xf]
      %v7688 = vld [vmem:[%s7686 + $0x4] sm:$0xf]
      %v7689 = vld [vmem:[%s7686 + $0xc] sm:$0xf]
      %v7690 = vld [vmem:[%s7686 + $0x10] sm:$0xf]
      %v7691 = vld [vmem:[%s7686 + $0x18] sm:$0xf]
      %v7692 = vld [vmem:[%s7686 + $0x1c] sm:$0xf]
      %v7693 = vld [vmem:[%s7686 + $0x24] sm:$0xf]
      %v7694 = vld [vmem:[%s7686 + $0x28] sm:$0xf]
      %v7695 = vld [vmem:[%s7686 + $0x30] sm:$0xf]
      %v7696 = vld [vmem:[%s7686 + $0x34] sm:$0xf]
      %v7697 = vld [vmem:[%s7686 + $0x3c] sm:$0xf]
      %v7698 = vld [vmem:[%s7686 + $0x40] sm:$0xf]
      %v7699 = vld [vmem:[%s7686 + $0x48] sm:$0xf]
      %v7700 = vld [vmem:[%s7686 + $0x4c] sm:$0xf]
      %v7701 = vld [vmem:[%s7686 + $0x54] sm:$0xf]
      %v7702 = vld [vmem:[%s7686 + $0x58] sm:$0xf]
      %7719 = vrot.lane.b32.xlu0 %v7687, 12
      %v7720 = vpop.permute.xlu0 %7719
      %7721 = vrot.lane.b32.xlu0 %v7688, 12
      %v7722 = vpop.permute.xlu0 %7721
      %7723 = vrot.lane.b32.xlu0 %v7689, 12
      %v7724 = vpop.permute.xlu0 %7723
      %7725 = vrot.lane.b32.xlu0 %v7690, 12
      %v7726 = vpop.permute.xlu0 %7725
      %7727 = vrot.lane.b32.xlu0 %v7691, 12
      %v7728 = vpop.permute.xlu0 %7727
      %7729 = vrot.lane.b32.xlu0 %v7692, 12
      %v7730 = vpop.permute.xlu0 %7729
      %7731 = vrot.lane.b32.xlu0 %v7693, 12
      %v7732 = vpop.permute.xlu0 %7731
      %7733 = vrot.lane.b32.xlu0 %v7694, 12
      %v7734 = vpop.permute.xlu0 %7733
      %7735 = vrot.lane.b32.xlu0 %v7695, 12
      %v7736 = vpop.permute.xlu0 %7735
      %7737 = vrot.lane.b32.xlu0 %v7696, 12
      %v7738 = vpop.permute.xlu0 %7737
      %7739 = vrot.lane.b32.xlu0 %v7697, 12
      %v7740 = vpop.permute.xlu0 %7739
      %7741 = vrot.lane.b32.xlu0 %v7698, 12
      %v7742 = vpop.permute.xlu0 %7741
      %7743 = vrot.lane.b32.xlu0 %v7699, 12
      %v7744 = vpop.permute.xlu0 %7743
      %7745 = vrot.lane.b32.xlu0 %v7700, 12
      %v7746 = vpop.permute.xlu0 %7745
      %7747 = vrot.lane.b32.xlu0 %v7701, 12
      %v7748 = vpop.permute.xlu0 %7747
      %7749 = vrot.lane.b32.xlu0 %v7702, 12
      %v7750 = vpop.permute.xlu0 %7749
      %7767 = vst.msk [vmem:[#allocation2 + $0x4] sm:$0xf] %vm996, %v7720
      %7768 = vst.msk [vmem:[#allocation2 + $0xc] sm:$0xf] %vm996, %v7722
      %7769 = vst.msk [vmem:[#allocation2 + $0x14] sm:$0xf] %vm996, %v7724
      %7770 = vst.msk [vmem:[#allocation2 + $0x1c] sm:$0xf] %vm996, %v7726
      %7771 = vst.msk [vmem:[#allocation2 + $0x24] sm:$0xf] %vm996, %v7728
      %7772 = vst.msk [vmem:[#allocation2 + $0x2c] sm:$0xf] %vm996, %v7730
      %7773 = vst.msk [vmem:[#allocation2 + $0x34] sm:$0xf] %vm996, %v7732
      %7774 = vst.msk [vmem:[#allocation2 + $0x3c] sm:$0xf] %vm996, %v7734
      %7775 = vst.msk [vmem:[#allocation2 + $0x44] sm:$0xf] %vm996, %v7736
      %7776 = vst.msk [vmem:[#allocation2 + $0x4c] sm:$0xf] %vm996, %v7738
      %7777 = vst.msk [vmem:[#allocation2 + $0x54] sm:$0xf] %vm996, %v7740
      %7778 = vst.msk [vmem:[#allocation2 + $0x5c] sm:$0xf] %vm996, %v7742
      %7779 = vst.msk [vmem:[#allocation2 + $0x64] sm:$0xf] %vm996, %v7744
      %7780 = vst.msk [vmem:[#allocation2 + $0x6c] sm:$0xf] %vm996, %v7746
      %7781 = vst.msk [vmem:[#allocation2 + $0x74] sm:$0xf] %vm996, %v7748
      %7782 = vst.msk [vmem:[#allocation2 + $0x7c] sm:$0xf] %vm996, %v7750
      %v7783 = vld [vmem:[%s7686] sm:$0xf]
      %v7784 = vld [vmem:[%s7686 + $0x4] sm:$0xf]
      %v7785 = vld [vmem:[%s7686 + $0x8] sm:$0x1]
      %v7786 = vld [vmem:[%s7686 + $0xc] sm:$0xf]
      %v7787 = vld [vmem:[%s7686 + $0x10] sm:$0xf]
      %v7788 = vld [vmem:[%s7686 + $0x14] sm:$0x1]
      %v7789 = vld [vmem:[%s7686 + $0x18] sm:$0xf]
      %v7790 = vld [vmem:[%s7686 + $0x1c] sm:$0xf]
      %v7791 = vld [vmem:[%s7686 + $0x20] sm:$0x1]
      %v7792 = vld [vmem:[%s7686 + $0x24] sm:$0xf]
      %v7793 = vld [vmem:[%s7686 + $0x28] sm:$0xf]
      %v7794 = vld [vmem:[%s7686 + $0x2c] sm:$0x1]
      %v7795 = vld [vmem:[%s7686 + $0x30] sm:$0xf]
      %v7796 = vld [vmem:[%s7686 + $0x34] sm:$0xf]
      %v7797 = vld [vmem:[%s7686 + $0x38] sm:$0x1]
      %v7798 = vld [vmem:[%s7686 + $0x3c] sm:$0xf]
      %v7799 = vld [vmem:[%s7686 + $0x40] sm:$0xf]
      %v7800 = vld [vmem:[%s7686 + $0x44] sm:$0x1]
      %v7801 = vld [vmem:[%s7686 + $0x48] sm:$0xf]
      %v7802 = vld [vmem:[%s7686 + $0x4c] sm:$0xf]
      %v7803 = vld [vmem:[%s7686 + $0x50] sm:$0x1]
      %v7804 = vld [vmem:[%s7686 + $0x54] sm:$0xf]
      %v7805 = vld [vmem:[%s7686 + $0x58] sm:$0xf]
      %v7806 = vld [vmem:[%s7686 + $0x5c] sm:$0x1]
      %v7808 = vshrl.u32 %v7783, 16
      %v7810 = vrot.slane %v7808, 4
      %v7811 = vshll.u32 %v7783, 16
      %v7813 = vrot.slane %v7811, 5
      %v7814 = vor.u32 %v7810, %v7813
      %v7815 = vrot.slane %v7814, 4
      %v7817 = vshll.u32 %v7784, 16
      %v7819 = vrot.slane %v7817, 5
      %v7820 = vsel %vm267, %v7815, %v7819
      %v7821 = vshrl.u32 %v7784, 16
      %v7823 = vrot.slane %v7821, 4
      %v7824 = vor.u32 %v7823, %v7819
      %v7825 = vrot.slane %v7824, 4
      %v7827 = vshll.u32 %v7785, 16
      %v7829 = vrot.slane %v7827, 5
      %v7830 = vsel %vm267, %v7825, %v7829
      %v7832 = vshrl.u32 %v7786, 16
      %v7834 = vrot.slane %v7832, 4
      %v7835 = vshll.u32 %v7786, 16
      %v7837 = vrot.slane %v7835, 5
      %v7838 = vor.u32 %v7834, %v7837
      %v7839 = vrot.slane %v7838, 4
      %v7841 = vshll.u32 %v7787, 16
      %v7843 = vrot.slane %v7841, 5
      %v7844 = vsel %vm267, %v7839, %v7843
      %v7845 = vshrl.u32 %v7787, 16
      %v7847 = vrot.slane %v7845, 4
      %v7848 = vor.u32 %v7847, %v7843
      %v7849 = vrot.slane %v7848, 4
      %v7851 = vshll.u32 %v7788, 16
      %v7853 = vrot.slane %v7851, 5
      %v7854 = vsel %vm267, %v7849, %v7853
      %v7856 = vshrl.u32 %v7789, 16
      %v7858 = vrot.slane %v7856, 4
      %v7859 = vshll.u32 %v7789, 16
      %v7861 = vrot.slane %v7859, 5
      %v7862 = vor.u32 %v7858, %v7861
      %v7863 = vrot.slane %v7862, 4
      %v7865 = vshll.u32 %v7790, 16
      %v7867 = vrot.slane %v7865, 5
      %v7868 = vsel %vm267, %v7863, %v7867
      %v7869 = vshrl.u32 %v7790, 16
      %v7871 = vrot.slane %v7869, 4
      %v7872 = vor.u32 %v7871, %v7867
      %v7873 = vrot.slane %v7872, 4
      %v7875 = vshll.u32 %v7791, 16
      %v7877 = vrot.slane %v7875, 5
      %v7878 = vsel %vm267, %v7873, %v7877
      %v7880 = vshrl.u32 %v7792, 16
      %v7882 = vrot.slane %v7880, 4
      %v7883 = vshll.u32 %v7792, 16
      %v7885 = vrot.slane %v7883, 5
      %v7886 = vor.u32 %v7882, %v7885
      %v7887 = vrot.slane %v7886, 4
      %v7889 = vshll.u32 %v7793, 16
      %v7891 = vrot.slane %v7889, 5
      %v7892 = vsel %vm267, %v7887, %v7891
      %v7893 = vshrl.u32 %v7793, 16
      %v7895 = vrot.slane %v7893, 4
      %v7896 = vor.u32 %v7895, %v7891
      %v7897 = vrot.slane %v7896, 4
      %v7899 = vshll.u32 %v7794, 16
      %v7901 = vrot.slane %v7899, 5
      %v7902 = vsel %vm267, %v7897, %v7901
      %v7904 = vshrl.u32 %v7795, 16
      %v7906 = vrot.slane %v7904, 4
      %v7907 = vshll.u32 %v7795, 16
      %v7909 = vrot.slane %v7907, 5
      %v7910 = vor.u32 %v7906, %v7909
      %v7911 = vrot.slane %v7910, 4
      %v7913 = vshll.u32 %v7796, 16
      %v7915 = vrot.slane %v7913, 5
      %v7916 = vsel %vm267, %v7911, %v7915
      %v7917 = vshrl.u32 %v7796, 16
      %v7919 = vrot.slane %v7917, 4
      %v7920 = vor.u32 %v7919, %v7915
      %v7921 = vrot.slane %v7920, 4
      %v7923 = vshll.u32 %v7797, 16
      %v7925 = vrot.slane %v7923, 5
      %v7926 = vsel %vm267, %v7921, %v7925
      %v7928 = vshrl.u32 %v7798, 16
      %v7930 = vrot.slane %v7928, 4
      %v7931 = vshll.u32 %v7798, 16
      %v7933 = vrot.slane %v7931, 5
      %v7934 = vor.u32 %v7930, %v7933
      %v7935 = vrot.slane %v7934, 4
      %v7937 = vshll.u32 %v7799, 16
      %v7939 = vrot.slane %v7937, 5
      %v7940 = vsel %vm267, %v7935, %v7939
      %v7941 = vshrl.u32 %v7799, 16
      %v7943 = vrot.slane %v7941, 4
      %v7944 = vor.u32 %v7943, %v7939
      %v7945 = vrot.slane %v7944, 4
      %v7947 = vshll.u32 %v7800, 16
      %v7949 = vrot.slane %v7947, 5
      %v7950 = vsel %vm267, %v7945, %v7949
      %v7952 = vshrl.u32 %v7801, 16
      %v7954 = vrot.slane %v7952, 4
      %v7955 = vshll.u32 %v7801, 16
      %v7957 = vrot.slane %v7955, 5
      %v7958 = vor.u32 %v7954, %v7957
      %v7959 = vrot.slane %v7958, 4
      %v7961 = vshll.u32 %v7802, 16
      %v7963 = vrot.slane %v7961, 5
      %v7964 = vsel %vm267, %v7959, %v7963
      %v7965 = vshrl.u32 %v7802, 16
      %v7967 = vrot.slane %v7965, 4
      %v7968 = vor.u32 %v7967, %v7963
      %v7969 = vrot.slane %v7968, 4
      %v7971 = vshll.u32 %v7803, 16
      %v7973 = vrot.slane %v7971, 5
      %v7974 = vsel %vm267, %v7969, %v7973
      %v7976 = vshrl.u32 %v7804, 16
      %v7978 = vrot.slane %v7976, 4
      %v7979 = vshll.u32 %v7804, 16
      %v7981 = vrot.slane %v7979, 5
      %v7982 = vor.u32 %v7978, %v7981
      %v7983 = vrot.slane %v7982, 4
      %v7985 = vshll.u32 %v7805, 16
      %v7987 = vrot.slane %v7985, 5
      %v7988 = vsel %vm267, %v7983, %v7987
      %v7989 = vshrl.u32 %v7805, 16
      %v7991 = vrot.slane %v7989, 4
      %v7992 = vor.u32 %v7991, %v7987
      %v7993 = vrot.slane %v7992, 4
      %v7995 = vshll.u32 %v7806, 16
      %v7997 = vrot.slane %v7995, 5
      %v7998 = vsel %vm267, %v7993, %v7997
      %7999 = vrot.lane.b32.xlu0 %v7820, 16
      %v8000 = vpop.permute.xlu0 %7999
      %8001 = vrot.lane.b32.xlu0 %v7830, 16
      %v8002 = vpop.permute.xlu0 %8001
      %8003 = vrot.lane.b32.xlu0 %v7844, 16
      %v8004 = vpop.permute.xlu0 %8003
      %8005 = vrot.lane.b32.xlu0 %v7854, 16
      %v8006 = vpop.permute.xlu0 %8005
      %8007 = vrot.lane.b32.xlu0 %v7868, 16
      %v8008 = vpop.permute.xlu0 %8007
      %8009 = vrot.lane.b32.xlu0 %v7878, 16
      %v8010 = vpop.permute.xlu0 %8009
      %8011 = vrot.lane.b32.xlu0 %v7892, 16
      %v8012 = vpop.permute.xlu0 %8011
      %8013 = vrot.lane.b32.xlu0 %v7902, 16
      %v8014 = vpop.permute.xlu0 %8013
      %8015 = vrot.lane.b32.xlu0 %v7916, 16
      %v8016 = vpop.permute.xlu0 %8015
      %8017 = vrot.lane.b32.xlu0 %v7926, 16
      %v8018 = vpop.permute.xlu0 %8017
      %8019 = vrot.lane.b32.xlu0 %v7940, 16
      %v8020 = vpop.permute.xlu0 %8019
      %8021 = vrot.lane.b32.xlu0 %v7950, 16
      %v8022 = vpop.permute.xlu0 %8021
      %8023 = vrot.lane.b32.xlu0 %v7964, 16
      %v8024 = vpop.permute.xlu0 %8023
      %8025 = vrot.lane.b32.xlu0 %v7974, 16
      %v8026 = vpop.permute.xlu0 %8025
      %8027 = vrot.lane.b32.xlu0 %v7988, 16
      %v8028 = vpop.permute.xlu0 %8027
      %8029 = vrot.lane.b32.xlu0 %v7998, 16
      %v8030 = vpop.permute.xlu0 %8029
      %8047 = vst.msk [vmem:[#allocation2 + $0x4] sm:$0xf] %vm1168, %v8000
      %8048 = vst.msk [vmem:[#allocation2 + $0xc] sm:$0xf] %vm1168, %v8002
      %8049 = vst.msk [vmem:[#allocation2 + $0x14] sm:$0xf] %vm1168, %v8004
      %8050 = vst.msk [vmem:[#allocation2 + $0x1c] sm:$0xf] %vm1168, %v8006
      %8051 = vst.msk [vmem:[#allocation2 + $0x24] sm:$0xf] %vm1168, %v8008
      %8052 = vst.msk [vmem:[#allocation2 + $0x2c] sm:$0xf] %vm1168, %v8010
      %8053 = vst.msk [vmem:[#allocation2 + $0x34] sm:$0xf] %vm1168, %v8012
      %8054 = vst.msk [vmem:[#allocation2 + $0x3c] sm:$0xf] %vm1168, %v8014
      %8055 = vst.msk [vmem:[#allocation2 + $0x44] sm:$0xf] %vm1168, %v8016
      %8056 = vst.msk [vmem:[#allocation2 + $0x4c] sm:$0xf] %vm1168, %v8018
      %8057 = vst.msk [vmem:[#allocation2 + $0x54] sm:$0xf] %vm1168, %v8020
      %8058 = vst.msk [vmem:[#allocation2 + $0x5c] sm:$0xf] %vm1168, %v8022
      %8059 = vst.msk [vmem:[#allocation2 + $0x64] sm:$0xf] %vm1168, %v8024
      %8060 = vst.msk [vmem:[#allocation2 + $0x6c] sm:$0xf] %vm1168, %v8026
      %8061 = vst.msk [vmem:[#allocation2 + $0x74] sm:$0xf] %vm1168, %v8028
      %8062 = vst.msk [vmem:[#allocation2 + $0x7c] sm:$0xf] %vm1168, %v8030
      %v8063 = vld [vmem:[%s7686] sm:$0xe]
      %v8064 = vld [vmem:[%s7686 + $0x4] sm:$0xf]
      %v8065 = vld [vmem:[%s7686 + $0x8] sm:$0x1]
      %v8066 = vld [vmem:[%s7686 + $0xc] sm:$0xe]
      %v8067 = vld [vmem:[%s7686 + $0x10] sm:$0xf]
      %v8068 = vld [vmem:[%s7686 + $0x14] sm:$0x1]
      %v8069 = vld [vmem:[%s7686 + $0x18] sm:$0xe]
      %v8070 = vld [vmem:[%s7686 + $0x1c] sm:$0xf]
      %v8071 = vld [vmem:[%s7686 + $0x20] sm:$0x1]
      %v8072 = vld [vmem:[%s7686 + $0x24] sm:$0xe]
      %v8073 = vld [vmem:[%s7686 + $0x28] sm:$0xf]
      %v8074 = vld [vmem:[%s7686 + $0x2c] sm:$0x1]
      %v8075 = vld [vmem:[%s7686 + $0x30] sm:$0xe]
      %v8076 = vld [vmem:[%s7686 + $0x34] sm:$0xf]
      %v8077 = vld [vmem:[%s7686 + $0x38] sm:$0x1]
      %v8078 = vld [vmem:[%s7686 + $0x3c] sm:$0xe]
      %v8079 = vld [vmem:[%s7686 + $0x40] sm:$0xf]
      %v8080 = vld [vmem:[%s7686 + $0x44] sm:$0x1]
      %v8081 = vld [vmem:[%s7686 + $0x48] sm:$0xe]
      %v8082 = vld [vmem:[%s7686 + $0x4c] sm:$0xf]
      %v8083 = vld [vmem:[%s7686 + $0x50] sm:$0x1]
      %v8084 = vld [vmem:[%s7686 + $0x54] sm:$0xe]
      %v8085 = vld [vmem:[%s7686 + $0x58] sm:$0xf]
      %v8086 = vld [vmem:[%s7686 + $0x5c] sm:$0x1]
      %v8111 = vrot.slane %v8063, 5
      %v8112 = vrot.slane %v8111, 4
      %v8113 = vrot.slane %v8064, 5
      %v8114 = vsel %vm575, %v8112, %v8113
      %v8115 = vrot.slane %v8113, 4
      %v8116 = vrot.slane %v8065, 5
      %v8117 = vsel %vm575, %v8115, %v8116
      %v8118 = vrot.slane %v8066, 5
      %v8119 = vrot.slane %v8118, 4
      %v8120 = vrot.slane %v8067, 5
      %v8121 = vsel %vm575, %v8119, %v8120
      %v8122 = vrot.slane %v8120, 4
      %v8123 = vrot.slane %v8068, 5
      %v8124 = vsel %vm575, %v8122, %v8123
      %v8125 = vrot.slane %v8069, 5
      %v8126 = vrot.slane %v8125, 4
      %v8127 = vrot.slane %v8070, 5
      %v8128 = vsel %vm575, %v8126, %v8127
      %v8129 = vrot.slane %v8127, 4
      %v8130 = vrot.slane %v8071, 5
      %v8131 = vsel %vm575, %v8129, %v8130
      %v8132 = vrot.slane %v8072, 5
      %v8133 = vrot.slane %v8132, 4
      %v8134 = vrot.slane %v8073, 5
      %v8135 = vsel %vm575, %v8133, %v8134
      %v8136 = vrot.slane %v8134, 4
      %v8137 = vrot.slane %v8074, 5
      %v8138 = vsel %vm575, %v8136, %v8137
      %v8139 = vrot.slane %v8075, 5
      %v8140 = vrot.slane %v8139, 4
      %v8141 = vrot.slane %v8076, 5
      %v8142 = vsel %vm575, %v8140, %v8141
      %v8143 = vrot.slane %v8141, 4
      %v8144 = vrot.slane %v8077, 5
      %v8145 = vsel %vm575, %v8143, %v8144
      %v8146 = vrot.slane %v8078, 5
      %v8147 = vrot.slane %v8146, 4
      %v8148 = vrot.slane %v8079, 5
      %v8149 = vsel %vm575, %v8147, %v8148
      %v8150 = vrot.slane %v8148, 4
      %v8151 = vrot.slane %v8080, 5
      %v8152 = vsel %vm575, %v8150, %v8151
      %v8153 = vrot.slane %v8081, 5
      %v8154 = vrot.slane %v8153, 4
      %v8155 = vrot.slane %v8082, 5
      %v8156 = vsel %vm575, %v8154, %v8155
      %v8157 = vrot.slane %v8155, 4
      %v8158 = vrot.slane %v8083, 5
      %v8159 = vsel %vm575, %v8157, %v8158
      %v8160 = vrot.slane %v8084, 5
      %v8161 = vrot.slane %v8160, 4
      %v8162 = vrot.slane %v8085, 5
      %v8163 = vsel %vm575, %v8161, %v8162
      %v8164 = vrot.slane %v8162, 4
      %v8165 = vrot.slane %v8086, 5
      %v8166 = vsel %vm575, %v8164, %v8165
      %8167 = vrot.lane.b32.xlu0 %v8114, 20
      %v8168 = vpop.permute.xlu0 %8167
      %8169 = vrot.lane.b32.xlu0 %v8117, 20
      %v8170 = vpop.permute.xlu0 %8169
      %8171 = vrot.lane.b32.xlu0 %v8121, 20
      %v8172 = vpop.permute.xlu0 %8171
      %8173 = vrot.lane.b32.xlu0 %v8124, 20
      %v8174 = vpop.permute.xlu0 %8173
      %8175 = vrot.lane.b32.xlu0 %v8128, 20
      %v8176 = vpop.permute.xlu0 %8175
      %8177 = vrot.lane.b32.xlu0 %v8131, 20
      %v8178 = vpop.permute.xlu0 %8177
      %8179 = vrot.lane.b32.xlu0 %v8135, 20
      %v8180 = vpop.permute.xlu0 %8179
      %8181 = vrot.lane.b32.xlu0 %v8138, 20
      %v8182 = vpop.permute.xlu0 %8181
      %8183 = vrot.lane.b32.xlu0 %v8142, 20
      %v8184 = vpop.permute.xlu0 %8183
      %8185 = vrot.lane.b32.xlu0 %v8145, 20
      %v8186 = vpop.permute.xlu0 %8185
      %8187 = vrot.lane.b32.xlu0 %v8149, 20
      %v8188 = vpop.permute.xlu0 %8187
      %8189 = vrot.lane.b32.xlu0 %v8152, 20
      %v8190 = vpop.permute.xlu0 %8189
      %8191 = vrot.lane.b32.xlu0 %v8156, 20
      %v8192 = vpop.permute.xlu0 %8191
      %8193 = vrot.lane.b32.xlu0 %v8159, 20
      %v8194 = vpop.permute.xlu0 %8193
      %8195 = vrot.lane.b32.xlu0 %v8163, 20
      %v8196 = vpop.permute.xlu0 %8195
      %8197 = vrot.lane.b32.xlu0 %v8166, 20
      %v8198 = vpop.permute.xlu0 %8197
      %8215 = vst.msk [vmem:[#allocation2 + $0x4] sm:$0xf] %vm1484, %v8168
      %8216 = vst.msk [vmem:[#allocation2 + $0xc] sm:$0xf] %vm1484, %v8170
      %8217 = vst.msk [vmem:[#allocation2 + $0x14] sm:$0xf] %vm1484, %v8172
      %8218 = vst.msk [vmem:[#allocation2 + $0x1c] sm:$0xf] %vm1484, %v8174
      %8219 = vst.msk [vmem:[#allocation2 + $0x24] sm:$0xf] %vm1484, %v8176
      %8220 = vst.msk [vmem:[#allocation2 + $0x2c] sm:$0xf] %vm1484, %v8178
      %8221 = vst.msk [vmem:[#allocation2 + $0x34] sm:$0xf] %vm1484, %v8180
      %8222 = vst.msk [vmem:[#allocation2 + $0x3c] sm:$0xf] %vm1484, %v8182
      %8223 = vst.msk [vmem:[#allocation2 + $0x44] sm:$0xf] %vm1484, %v8184
      %8224 = vst.msk [vmem:[#allocation2 + $0x4c] sm:$0xf] %vm1484, %v8186
      %8225 = vst.msk [vmem:[#allocation2 + $0x54] sm:$0xf] %vm1484, %v8188
      %8226 = vst.msk [vmem:[#allocation2 + $0x5c] sm:$0xf] %vm1484, %v8190
      %8227 = vst.msk [vmem:[#allocation2 + $0x64] sm:$0xf] %vm1484, %v8192
      %8228 = vst.msk [vmem:[#allocation2 + $0x6c] sm:$0xf] %vm1484, %v8194
      %8229 = vst.msk [vmem:[#allocation2 + $0x74] sm:$0xf] %vm1484, %v8196
      %8230 = vst.msk [vmem:[#allocation2 + $0x7c] sm:$0xf] %vm1484, %v8198
      %v8231 = vld [vmem:[%s7686] sm:$0xe]
      %v8232 = vld [vmem:[%s7686 + $0x4] sm:$0xf]
      %v8233 = vld [vmem:[%s7686 + $0x8] sm:$0x3]
      %v8234 = vld [vmem:[%s7686 + $0xc] sm:$0xe]
      %v8235 = vld [vmem:[%s7686 + $0x10] sm:$0xf]
      %v8236 = vld [vmem:[%s7686 + $0x14] sm:$0x3]
      %v8237 = vld [vmem:[%s7686 + $0x18] sm:$0xe]
      %v8238 = vld [vmem:[%s7686 + $0x1c] sm:$0xf]
      %v8239 = vld [vmem:[%s7686 + $0x20] sm:$0x3]
      %v8240 = vld [vmem:[%s7686 + $0x24] sm:$0xe]
      %v8241 = vld [vmem:[%s7686 + $0x28] sm:$0xf]
      %v8242 = vld [vmem:[%s7686 + $0x2c] sm:$0x3]
      %v8243 = vld [vmem:[%s7686 + $0x30] sm:$0xe]
      %v8244 = vld [vmem:[%s7686 + $0x34] sm:$0xf]
      %v8245 = vld [vmem:[%s7686 + $0x38] sm:$0x3]
      %v8246 = vld [vmem:[%s7686 + $0x3c] sm:$0xe]
      %v8247 = vld [vmem:[%s7686 + $0x40] sm:$0xf]
      %v8248 = vld [vmem:[%s7686 + $0x44] sm:$0x3]
      %v8249 = vld [vmem:[%s7686 + $0x48] sm:$0xe]
      %v8250 = vld [vmem:[%s7686 + $0x4c] sm:$0xf]
      %v8251 = vld [vmem:[%s7686 + $0x50] sm:$0x3]
      %v8252 = vld [vmem:[%s7686 + $0x54] sm:$0xe]
      %v8253 = vld [vmem:[%s7686 + $0x58] sm:$0xf]
      %v8254 = vld [vmem:[%s7686 + $0x5c] sm:$0x3]
      %v8256 = vshrl.u32 %v8231, 16
      %v8258 = vrot.slane %v8256, 5
      %v8259 = vshll.u32 %v8231, 16
      %v8261 = vrot.slane %v8259, 6
      %v8262 = vor.u32 %v8258, %v8261
      %v8263 = vrot.slane %v8262, 4
      %v8265 = vshrl.u32 %v8232, 16
      %v8267 = vrot.slane %v8265, 5
      %v8268 = vshll.u32 %v8232, 16
      %v8270 = vrot.slane %v8268, 6
      %v8271 = vor.u32 %v8267, %v8270
      %v8272 = vsel %vm723, %v8263, %v8271
      %v8273 = vrot.slane %v8271, 4
      %v8275 = vshrl.u32 %v8233, 16
      %v8277 = vrot.slane %v8275, 5
      %v8278 = vshll.u32 %v8233, 16
      %v8280 = vrot.slane %v8278, 6
      %v8281 = vor.u32 %v8277, %v8280
      %v8282 = vsel %vm723, %v8273, %v8281
      %v8284 = vshrl.u32 %v8234, 16
      %v8286 = vrot.slane %v8284, 5
      %v8287 = vshll.u32 %v8234, 16
      %v8289 = vrot.slane %v8287, 6
      %v8290 = vor.u32 %v8286, %v8289
      %v8291 = vrot.slane %v8290, 4
      %v8293 = vshrl.u32 %v8235, 16
      %v8295 = vrot.slane %v8293, 5
      %v8296 = vshll.u32 %v8235, 16
      %v8298 = vrot.slane %v8296, 6
      %v8299 = vor.u32 %v8295, %v8298
      %v8300 = vsel %vm723, %v8291, %v8299
      %v8301 = vrot.slane %v8299, 4
      %v8303 = vshrl.u32 %v8236, 16
      %v8305 = vrot.slane %v8303, 5
      %v8306 = vshll.u32 %v8236, 16
      %v8308 = vrot.slane %v8306, 6
      %v8309 = vor.u32 %v8305, %v8308
      %v8310 = vsel %vm723, %v8301, %v8309
      %v8312 = vshrl.u32 %v8237, 16
      %v8314 = vrot.slane %v8312, 5
      %v8315 = vshll.u32 %v8237, 16
      %v8317 = vrot.slane %v8315, 6
      %v8318 = vor.u32 %v8314, %v8317
      %v8319 = vrot.slane %v8318, 4
      %v8321 = vshrl.u32 %v8238, 16
      %v8323 = vrot.slane %v8321, 5
      %v8324 = vshll.u32 %v8238, 16
      %v8326 = vrot.slane %v8324, 6
      %v8327 = vor.u32 %v8323, %v8326
      %v8328 = vsel %vm723, %v8319, %v8327
      %v8329 = vrot.slane %v8327, 4
      %v8331 = vshrl.u32 %v8239, 16
      %v8333 = vrot.slane %v8331, 5
      %v8334 = vshll.u32 %v8239, 16
      %v8336 = vrot.slane %v8334, 6
      %v8337 = vor.u32 %v8333, %v8336
      %v8338 = vsel %vm723, %v8329, %v8337
      %v8340 = vshrl.u32 %v8240, 16
      %v8342 = vrot.slane %v8340, 5
      %v8343 = vshll.u32 %v8240, 16
      %v8345 = vrot.slane %v8343, 6
      %v8346 = vor.u32 %v8342, %v8345
      %v8347 = vrot.slane %v8346, 4
      %v8349 = vshrl.u32 %v8241, 16
      %v8351 = vrot.slane %v8349, 5
      %v8352 = vshll.u32 %v8241, 16
      %v8354 = vrot.slane %v8352, 6
      %v8355 = vor.u32 %v8351, %v8354
      %v8356 = vsel %vm723, %v8347, %v8355
      %v8357 = vrot.slane %v8355, 4
      %v8359 = vshrl.u32 %v8242, 16
      %v8361 = vrot.slane %v8359, 5
      %v8362 = vshll.u32 %v8242, 16
      %v8364 = vrot.slane %v8362, 6
      %v8365 = vor.u32 %v8361, %v8364
      %v8366 = vsel %vm723, %v8357, %v8365
      %v8368 = vshrl.u32 %v8243, 16
      %v8370 = vrot.slane %v8368, 5
      %v8371 = vshll.u32 %v8243, 16
      %v8373 = vrot.slane %v8371, 6
      %v8374 = vor.u32 %v8370, %v8373
      %v8375 = vrot.slane %v8374, 4
      %v8377 = vshrl.u32 %v8244, 16
      %v8379 = vrot.slane %v8377, 5
      %v8380 = vshll.u32 %v8244, 16
      %v8382 = vrot.slane %v8380, 6
      %v8383 = vor.u32 %v8379, %v8382
      %v8384 = vsel %vm723, %v8375, %v8383
      %v8385 = vrot.slane %v8383, 4
      %v8387 = vshrl.u32 %v8245, 16
      %v8389 = vrot.slane %v8387, 5
      %v8390 = vshll.u32 %v8245, 16
      %v8392 = vrot.slane %v8390, 6
      %v8393 = vor.u32 %v8389, %v8392
      %v8394 = vsel %vm723, %v8385, %v8393
      %v8396 = vshrl.u32 %v8246, 16
      %v8398 = vrot.slane %v8396, 5
      %v8399 = vshll.u32 %v8246, 16
      %v8401 = vrot.slane %v8399, 6
      %v8402 = vor.u32 %v8398, %v8401
      %v8403 = vrot.slane %v8402, 4
      %v8405 = vshrl.u32 %v8247, 16
      %v8407 = vrot.slane %v8405, 5
      %v8408 = vshll.u32 %v8247, 16
      %v8410 = vrot.slane %v8408, 6
      %v8411 = vor.u32 %v8407, %v8410
      %v8412 = vsel %vm723, %v8403, %v8411
      %v8413 = vrot.slane %v8411, 4
      %v8415 = vshrl.u32 %v8248, 16
      %v8417 = vrot.slane %v8415, 5
      %v8418 = vshll.u32 %v8248, 16
      %v8420 = vrot.slane %v8418, 6
      %v8421 = vor.u32 %v8417, %v8420
      %v8422 = vsel %vm723, %v8413, %v8421
      %v8424 = vshrl.u32 %v8249, 16
      %v8426 = vrot.slane %v8424, 5
      %v8427 = vshll.u32 %v8249, 16
      %v8429 = vrot.slane %v8427, 6
      %v8430 = vor.u32 %v8426, %v8429
      %v8431 = vrot.slane %v8430, 4
      %v8433 = vshrl.u32 %v8250, 16
      %v8435 = vrot.slane %v8433, 5
      %v8436 = vshll.u32 %v8250, 16
      %v8438 = vrot.slane %v8436, 6
      %v8439 = vor.u32 %v8435, %v8438
      %v8440 = vsel %vm723, %v8431, %v8439
      %v8441 = vrot.slane %v8439, 4
      %v8443 = vshrl.u32 %v8251, 16
      %v8445 = vrot.slane %v8443, 5
      %v8446 = vshll.u32 %v8251, 16
      %v8448 = vrot.slane %v8446, 6
      %v8449 = vor.u32 %v8445, %v8448
      %v8450 = vsel %vm723, %v8441, %v8449
      %v8452 = vshrl.u32 %v8252, 16
      %v8454 = vrot.slane %v8452, 5
      %v8455 = vshll.u32 %v8252, 16
      %v8457 = vrot.slane %v8455, 6
      %v8458 = vor.u32 %v8454, %v8457
      %v8459 = vrot.slane %v8458, 4
      %v8461 = vshrl.u32 %v8253, 16
      %v8463 = vrot.slane %v8461, 5
      %v8464 = vshll.u32 %v8253, 16
      %v8466 = vrot.slane %v8464, 6
      %v8467 = vor.u32 %v8463, %v8466
      %v8468 = vsel %vm723, %v8459, %v8467
      %v8469 = vrot.slane %v8467, 4
      %v8471 = vshrl.u32 %v8254, 16
      %v8473 = vrot.slane %v8471, 5
      %v8474 = vshll.u32 %v8254, 16
      %v8476 = vrot.slane %v8474, 6
      %v8477 = vor.u32 %v8473, %v8476
      %v8478 = vsel %vm723, %v8469, %v8477
      %8479 = vrot.lane.b32.xlu0 %v8272, 24
      %v8480 = vpop.permute.xlu0 %8479
      %8481 = vrot.lane.b32.xlu0 %v8282, 24
      %v8482 = vpop.permute.xlu0 %8481
      %8483 = vrot.lane.b32.xlu0 %v8300, 24
      %v8484 = vpop.permute.xlu0 %8483
      %8485 = vrot.lane.b32.xlu0 %v8310, 24
      %v8486 = vpop.permute.xlu0 %8485
      %8487 = vrot.lane.b32.xlu0 %v8328, 24
      %v8488 = vpop.permute.xlu0 %8487
      %8489 = vrot.lane.b32.xlu0 %v8338, 24
      %v8490 = vpop.permute.xlu0 %8489
      %8491 = vrot.lane.b32.xlu0 %v8356, 24
      %v8492 = vpop.permute.xlu0 %8491
      %8493 = vrot.lane.b32.xlu0 %v8366, 24
      %v8494 = vpop.permute.xlu0 %8493
      %8495 = vrot.lane.b32.xlu0 %v8384, 24
      %v8496 = vpop.permute.xlu0 %8495
      %8497 = vrot.lane.b32.xlu0 %v8394, 24
      %v8498 = vpop.permute.xlu0 %8497
      %8499 = vrot.lane.b32.xlu0 %v8412, 24
      %v8500 = vpop.permute.xlu0 %8499
      %8501 = vrot.lane.b32.xlu0 %v8422, 24
      %v8502 = vpop.permute.xlu0 %8501
      %8503 = vrot.lane.b32.xlu0 %v8440, 24
      %v8504 = vpop.permute.xlu0 %8503
      %8505 = vrot.lane.b32.xlu0 %v8450, 24
      %v8506 = vpop.permute.xlu0 %8505
      %8507 = vrot.lane.b32.xlu0 %v8468, 24
      %v8508 = vpop.permute.xlu0 %8507
      %8509 = vrot.lane.b32.xlu0 %v8478, 24
      %v8510 = vpop.permute.xlu0 %8509
      %8527 = vst.msk [vmem:[#allocation2 + $0x4] sm:$0xf] %vm1656, %v8480
      %8528 = vst.msk [vmem:[#allocation2 + $0xc] sm:$0xf] %vm1656, %v8482
      %8529 = vst.msk [vmem:[#allocation2 + $0x14] sm:$0xf] %vm1656, %v8484
      %8530 = vst.msk [vmem:[#allocation2 + $0x1c] sm:$0xf] %vm1656, %v8486
      %8531 = vst.msk [vmem:[#allocation2 + $0x24] sm:$0xf] %vm1656, %v8488
      %8532 = vst.msk [vmem:[#allocation2 + $0x2c] sm:$0xf] %vm1656, %v8490
      %8533 = vst.msk [vmem:[#allocation2 + $0x34] sm:$0xf] %vm1656, %v8492
      %8534 = vst.msk [vmem:[#allocation2 + $0x3c] sm:$0xf] %vm1656, %v8494
      %8535 = vst.msk [vmem:[#allocation2 + $0x44] sm:$0xf] %vm1656, %v8496
      %8536 = vst.msk [vmem:[#allocation2 + $0x4c] sm:$0xf] %vm1656, %v8498
      %8537 = vst.msk [vmem:[#allocation2 + $0x54] sm:$0xf] %vm1656, %v8500
      %8538 = vst.msk [vmem:[#allocation2 + $0x5c] sm:$0xf] %vm1656, %v8502
      %8539 = vst.msk [vmem:[#allocation2 + $0x64] sm:$0xf] %vm1656, %v8504
      %8540 = vst.msk [vmem:[#allocation2 + $0x6c] sm:$0xf] %vm1656, %v8506
      %8541 = vst.msk [vmem:[#allocation2 + $0x74] sm:$0xf] %vm1656, %v8508
      %8542 = vst.msk [vmem:[#allocation2 + $0x7c] sm:$0xf] %vm1656, %v8510
      %v8543 = vld [vmem:[%s7686] sm:$0xc]
      %v8544 = vld [vmem:[%s7686 + $0x4] sm:$0xf]
      %v8545 = vld [vmem:[%s7686 + $0x8] sm:$0x3]
      %v8546 = vld [vmem:[%s7686 + $0xc] sm:$0xc]
      %v8547 = vld [vmem:[%s7686 + $0x10] sm:$0xf]
      %v8548 = vld [vmem:[%s7686 + $0x14] sm:$0x3]
      %v8549 = vld [vmem:[%s7686 + $0x18] sm:$0xc]
      %v8550 = vld [vmem:[%s7686 + $0x1c] sm:$0xf]
      %v8551 = vld [vmem:[%s7686 + $0x20] sm:$0x3]
      %v8552 = vld [vmem:[%s7686 + $0x24] sm:$0xc]
      %v8553 = vld [vmem:[%s7686 + $0x28] sm:$0xf]
      %v8554 = vld [vmem:[%s7686 + $0x2c] sm:$0x3]
      %v8555 = vld [vmem:[%s7686 + $0x30] sm:$0xc]
      %v8556 = vld [vmem:[%s7686 + $0x34] sm:$0xf]
      %v8557 = vld [vmem:[%s7686 + $0x38] sm:$0x3]
      %v8558 = vld [vmem:[%s7686 + $0x3c] sm:$0xc]
      %v8559 = vld [vmem:[%s7686 + $0x40] sm:$0xf]
      %v8560 = vld [vmem:[%s7686 + $0x44] sm:$0x3]
      %v8561 = vld [vmem:[%s7686 + $0x48] sm:$0xc]
      %v8562 = vld [vmem:[%s7686 + $0x4c] sm:$0xf]
      %v8563 = vld [vmem:[%s7686 + $0x50] sm:$0x3]
      %v8564 = vld [vmem:[%s7686 + $0x54] sm:$0xc]
      %v8565 = vld [vmem:[%s7686 + $0x58] sm:$0xf]
      %v8566 = vld [vmem:[%s7686 + $0x5c] sm:$0x3]
      %v8591 = vrot.slane %v8543, 6
      %v8592 = vrot.slane %v8591, 4
      %v8593 = vrot.slane %v8544, 6
      %v8594 = vsel %vm1063, %v8592, %v8593
      %v8595 = vrot.slane %v8593, 4
      %v8596 = vrot.slane %v8545, 6
      %v8597 = vsel %vm1063, %v8595, %v8596
      %v8598 = vrot.slane %v8546, 6
      %v8599 = vrot.slane %v8598, 4
      %v8600 = vrot.slane %v8547, 6
      %v8601 = vsel %vm1063, %v8599, %v8600
      %v8602 = vrot.slane %v8600, 4
      %v8603 = vrot.slane %v8548, 6
      %v8604 = vsel %vm1063, %v8602, %v8603
      %v8605 = vrot.slane %v8549, 6
      %v8606 = vrot.slane %v8605, 4
      %v8607 = vrot.slane %v8550, 6
      %v8608 = vsel %vm1063, %v8606, %v8607
      %v8609 = vrot.slane %v8607, 4
      %v8610 = vrot.slane %v8551, 6
      %v8611 = vsel %vm1063, %v8609, %v8610
      %v8612 = vrot.slane %v8552, 6
      %v8613 = vrot.slane %v8612, 4
      %v8614 = vrot.slane %v8553, 6
      %v8615 = vsel %vm1063, %v8613, %v8614
      %v8616 = vrot.slane %v8614, 4
      %v8617 = vrot.slane %v8554, 6
      %v8618 = vsel %vm1063, %v8616, %v8617
      %v8619 = vrot.slane %v8555, 6
      %v8620 = vrot.slane %v8619, 4
      %v8621 = vrot.slane %v8556, 6
      %v8622 = vsel %vm1063, %v8620, %v8621
      %v8623 = vrot.slane %v8621, 4
      %v8624 = vrot.slane %v8557, 6
      %v8625 = vsel %vm1063, %v8623, %v8624
      %v8626 = vrot.slane %v8558, 6
      %v8627 = vrot.slane %v8626, 4
      %v8628 = vrot.slane %v8559, 6
      %v8629 = vsel %vm1063, %v8627, %v8628
      %v8630 = vrot.slane %v8628, 4
      %v8631 = vrot.slane %v8560, 6
      %v8632 = vsel %vm1063, %v8630, %v8631
      %v8633 = vrot.slane %v8561, 6
      %v8634 = vrot.slane %v8633, 4
      %v8635 = vrot.slane %v8562, 6
      %v8636 = vsel %vm1063, %v8634, %v8635
      %v8637 = vrot.slane %v8635, 4
      %v8638 = vrot.slane %v8563, 6
      %v8639 = vsel %vm1063, %v8637, %v8638
      %v8640 = vrot.slane %v8564, 6
      %v8641 = vrot.slane %v8640, 4
      %v8642 = vrot.slane %v8565, 6
      %v8643 = vsel %vm1063, %v8641, %v8642
      %v8644 = vrot.slane %v8642, 4
      %v8645 = vrot.slane %v8566, 6
      %v8646 = vsel %vm1063, %v8644, %v8645
      %8647 = vrot.lane.b32.xlu0 %v8594, 28
      %v8648 = vpop.permute.xlu0 %8647
      %8649 = vrot.lane.b32.xlu0 %v8597, 28
      %v8650 = vpop.permute.xlu0 %8649
      %8651 = vrot.lane.b32.xlu0 %v8601, 28
      %v8652 = vpop.permute.xlu0 %8651
      %8653 = vrot.lane.b32.xlu0 %v8604, 28
      %v8654 = vpop.permute.xlu0 %8653
      %8655 = vrot.lane.b32.xlu0 %v8608, 28
      %v8656 = vpop.permute.xlu0 %8655
      %8657 = vrot.lane.b32.xlu0 %v8611, 28
      %v8658 = vpop.permute.xlu0 %8657
      %8659 = vrot.lane.b32.xlu0 %v8615, 28
      %v8660 = vpop.permute.xlu0 %8659
      %8661 = vrot.lane.b32.xlu0 %v8618, 28
      %v8662 = vpop.permute.xlu0 %8661
      %8663 = vrot.lane.b32.xlu0 %v8622, 28
      %v8664 = vpop.permute.xlu0 %8663
      %8665 = vrot.lane.b32.xlu0 %v8625, 28
      %v8666 = vpop.permute.xlu0 %8665
      %8667 = vrot.lane.b32.xlu0 %v8629, 28
      %v8668 = vpop.permute.xlu0 %8667
      %8669 = vrot.lane.b32.xlu0 %v8632, 28
      %v8670 = vpop.permute.xlu0 %8669
      %8671 = vrot.lane.b32.xlu0 %v8636, 28
      %v8672 = vpop.permute.xlu0 %8671
      %8673 = vrot.lane.b32.xlu0 %v8639, 28
      %v8674 = vpop.permute.xlu0 %8673
      %8675 = vrot.lane.b32.xlu0 %v8643, 28
      %v8676 = vpop.permute.xlu0 %8675
      %8677 = vrot.lane.b32.xlu0 %v8646, 28
      %v8678 = vpop.permute.xlu0 %8677
      %8695 = vst.msk [vmem:[#allocation2 + $0x4] sm:$0xf] %vm1754, %v8648
      %8696 = vst.msk [vmem:[#allocation2 + $0xc] sm:$0xf] %vm1754, %v8650
      %8697 = vst.msk [vmem:[#allocation2 + $0x14] sm:$0xf] %vm1754, %v8652
      %8698 = vst.msk [vmem:[#allocation2 + $0x1c] sm:$0xf] %vm1754, %v8654
      %8699 = vst.msk [vmem:[#allocation2 + $0x24] sm:$0xf] %vm1754, %v8656
      %8700 = vst.msk [vmem:[#allocation2 + $0x2c] sm:$0xf] %vm1754, %v8658
      %8701 = vst.msk [vmem:[#allocation2 + $0x34] sm:$0xf] %vm1754, %v8660
      %8702 = vst.msk [vmem:[#allocation2 + $0x3c] sm:$0xf] %vm1754, %v8662
      %8703 = vst.msk [vmem:[#allocation2 + $0x44] sm:$0xf] %vm1754, %v8664
      %8704 = vst.msk [vmem:[#allocation2 + $0x4c] sm:$0xf] %vm1754, %v8666
      %8705 = vst.msk [vmem:[#allocation2 + $0x54] sm:$0xf] %vm1754, %v8668
      %8706 = vst.msk [vmem:[#allocation2 + $0x5c] sm:$0xf] %vm1754, %v8670
      %8707 = vst.msk [vmem:[#allocation2 + $0x64] sm:$0xf] %vm1754, %v8672
      %8708 = vst.msk [vmem:[#allocation2 + $0x6c] sm:$0xf] %vm1754, %v8674
      %8709 = vst.msk [vmem:[#allocation2 + $0x74] sm:$0xf] %vm1754, %v8676
      %8710 = vst.msk [vmem:[#allocation2 + $0x7c] sm:$0xf] %vm1754, %v8678
      %v8711 = vld [vmem:[%s7686] sm:$0xc]
      %v8712 = vld [vmem:[%s7686 + $0x4] sm:$0xf]
      %v8713 = vld [vmem:[%s7686 + $0x8] sm:$0x7]
      %v8714 = vld [vmem:[%s7686 + $0xc] sm:$0xc]
      %v8715 = vld [vmem:[%s7686 + $0x10] sm:$0xf]
      %v8716 = vld [vmem:[%s7686 + $0x14] sm:$0x7]
      %v8717 = vld [vmem:[%s7686 + $0x18] sm:$0xc]
      %v8718 = vld [vmem:[%s7686 + $0x1c] sm:$0xf]
      %v8719 = vld [vmem:[%s7686 + $0x20] sm:$0x7]
      %v8720 = vld [vmem:[%s7686 + $0x24] sm:$0xc]
      %v8721 = vld [vmem:[%s7686 + $0x28] sm:$0xf]
      %v8722 = vld [vmem:[%s7686 + $0x2c] sm:$0x7]
      %v8723 = vld [vmem:[%s7686 + $0x30] sm:$0xc]
      %v8724 = vld [vmem:[%s7686 + $0x34] sm:$0xf]
      %v8725 = vld [vmem:[%s7686 + $0x38] sm:$0x7]
      %v8726 = vld [vmem:[%s7686 + $0x3c] sm:$0xc]
      %v8727 = vld [vmem:[%s7686 + $0x40] sm:$0xf]
      %v8728 = vld [vmem:[%s7686 + $0x44] sm:$0x7]
      %v8729 = vld [vmem:[%s7686 + $0x48] sm:$0xc]
      %v8730 = vld [vmem:[%s7686 + $0x4c] sm:$0xf]
      %v8731 = vld [vmem:[%s7686 + $0x50] sm:$0x7]
      %v8732 = vld [vmem:[%s7686 + $0x54] sm:$0xc]
      %v8733 = vld [vmem:[%s7686 + $0x58] sm:$0xf]
      %v8734 = vld [vmem:[%s7686 + $0x5c] sm:$0x7]
      %v8736 = vshrl.u32 %v8711, 16
      %v8738 = vrot.slane %v8736, 6
      %v8739 = vshll.u32 %v8711, 16
      %v8741 = vrot.slane %v8739, 7
      %v8742 = vor.u32 %v8738, %v8741
      %v8743 = vrot.slane %v8742, 4
      %v8745 = vshrl.u32 %v8712, 16
      %v8747 = vrot.slane %v8745, 6
      %v8748 = vshll.u32 %v8712, 16
      %v8750 = vrot.slane %v8748, 7
      %v8751 = vor.u32 %v8747, %v8750
      %v8752 = vsel %vm1211, %v8743, %v8751
      %v8753 = vrot.slane %v8751, 4
      %v8755 = vshrl.u32 %v8713, 16
      %v8757 = vrot.slane %v8755, 6
      %v8758 = vshll.u32 %v8713, 16
      %v8760 = vrot.slane %v8758, 7
      %v8761 = vor.u32 %v8757, %v8760
      %v8762 = vsel %vm1211, %v8753, %v8761
      %v8764 = vshrl.u32 %v8714, 16
      %v8766 = vrot.slane %v8764, 6
      %v8767 = vshll.u32 %v8714, 16
      %v8769 = vrot.slane %v8767, 7
      %v8770 = vor.u32 %v8766, %v8769
      %v8771 = vrot.slane %v8770, 4
      %v8773 = vshrl.u32 %v8715, 16
      %v8775 = vrot.slane %v8773, 6
      %v8776 = vshll.u32 %v8715, 16
      %v8778 = vrot.slane %v8776, 7
      %v8779 = vor.u32 %v8775, %v8778
      %v8780 = vsel %vm1211, %v8771, %v8779
      %v8781 = vrot.slane %v8779, 4
      %v8783 = vshrl.u32 %v8716, 16
      %v8785 = vrot.slane %v8783, 6
      %v8786 = vshll.u32 %v8716, 16
      %v8788 = vrot.slane %v8786, 7
      %v8789 = vor.u32 %v8785, %v8788
      %v8790 = vsel %vm1211, %v8781, %v8789
      %v8792 = vshrl.u32 %v8717, 16
      %v8794 = vrot.slane %v8792, 6
      %v8795 = vshll.u32 %v8717, 16
      %v8797 = vrot.slane %v8795, 7
      %v8798 = vor.u32 %v8794, %v8797
      %v8799 = vrot.slane %v8798, 4
      %v8801 = vshrl.u32 %v8718, 16
      %v8803 = vrot.slane %v8801, 6
      %v8804 = vshll.u32 %v8718, 16
      %v8806 = vrot.slane %v8804, 7
      %v8807 = vor.u32 %v8803, %v8806
      %v8808 = vsel %vm1211, %v8799, %v8807
      %v8809 = vrot.slane %v8807, 4
      %v8811 = vshrl.u32 %v8719, 16
      %v8813 = vrot.slane %v8811, 6
      %v8814 = vshll.u32 %v8719, 16
      %v8816 = vrot.slane %v8814, 7
      %v8817 = vor.u32 %v8813, %v8816
      %v8818 = vsel %vm1211, %v8809, %v8817
      %v8820 = vshrl.u32 %v8720, 16
      %v8822 = vrot.slane %v8820, 6
      %v8823 = vshll.u32 %v8720, 16
      %v8825 = vrot.slane %v8823, 7
      %v8826 = vor.u32 %v8822, %v8825
      %v8827 = vrot.slane %v8826, 4
      %v8829 = vshrl.u32 %v8721, 16
      %v8831 = vrot.slane %v8829, 6
      %v8832 = vshll.u32 %v8721, 16
      %v8834 = vrot.slane %v8832, 7
      %v8835 = vor.u32 %v8831, %v8834
      %v8836 = vsel %vm1211, %v8827, %v8835
      %v8837 = vrot.slane %v8835, 4
      %v8839 = vshrl.u32 %v8722, 16
      %v8841 = vrot.slane %v8839, 6
      %v8842 = vshll.u32 %v8722, 16
      %v8844 = vrot.slane %v8842, 7
      %v8845 = vor.u32 %v8841, %v8844
      %v8846 = vsel %vm1211, %v8837, %v8845
      %v8848 = vshrl.u32 %v8723, 16
      %v8850 = vrot.slane %v8848, 6
      %v8851 = vshll.u32 %v8723, 16
      %v8853 = vrot.slane %v8851, 7
      %v8854 = vor.u32 %v8850, %v8853
      %v8855 = vrot.slane %v8854, 4
      %v8857 = vshrl.u32 %v8724, 16
      %v8859 = vrot.slane %v8857, 6
      %v8860 = vshll.u32 %v8724, 16
      %v8862 = vrot.slane %v8860, 7
      %v8863 = vor.u32 %v8859, %v8862
      %v8864 = vsel %vm1211, %v8855, %v8863
      %v8865 = vrot.slane %v8863, 4
      %v8867 = vshrl.u32 %v8725, 16
      %v8869 = vrot.slane %v8867, 6
      %v8870 = vshll.u32 %v8725, 16
      %v8872 = vrot.slane %v8870, 7
      %v8873 = vor.u32 %v8869, %v8872
      %v8874 = vsel %vm1211, %v8865, %v8873
      %v8876 = vshrl.u32 %v8726, 16
      %v8878 = vrot.slane %v8876, 6
      %v8879 = vshll.u32 %v8726, 16
      %v8881 = vrot.slane %v8879, 7
      %v8882 = vor.u32 %v8878, %v8881
      %v8883 = vrot.slane %v8882, 4
      %v8885 = vshrl.u32 %v8727, 16
      %v8887 = vrot.slane %v8885, 6
      %v8888 = vshll.u32 %v8727, 16
      %v8890 = vrot.slane %v8888, 7
      %v8891 = vor.u32 %v8887, %v8890
      %v8892 = vsel %vm1211, %v8883, %v8891
      %v8893 = vrot.slane %v8891, 4
      %v8895 = vshrl.u32 %v8728, 16
      %v8897 = vrot.slane %v8895, 6
      %v8898 = vshll.u32 %v8728, 16
      %v8900 = vrot.slane %v8898, 7
      %v8901 = vor.u32 %v8897, %v8900
      %v8902 = vsel %vm1211, %v8893, %v8901
      %v8904 = vshrl.u32 %v8729, 16
      %v8906 = vrot.slane %v8904, 6
      %v8907 = vshll.u32 %v8729, 16
      %v8909 = vrot.slane %v8907, 7
      %v8910 = vor.u32 %v8906, %v8909
      %v8911 = vrot.slane %v8910, 4
      %v8913 = vshrl.u32 %v8730, 16
      %v8915 = vrot.slane %v8913, 6
      %v8916 = vshll.u32 %v8730, 16
      %v8918 = vrot.slane %v8916, 7
      %v8919 = vor.u32 %v8915, %v8918
      %v8920 = vsel %vm1211, %v8911, %v8919
      %v8921 = vrot.slane %v8919, 4
      %v8923 = vshrl.u32 %v8731, 16
      %v8925 = vrot.slane %v8923, 6
      %v8926 = vshll.u32 %v8731, 16
      %v8928 = vrot.slane %v8926, 7
      %v8929 = vor.u32 %v8925, %v8928
      %v8930 = vsel %vm1211, %v8921, %v8929
      %v8932 = vshrl.u32 %v8732, 16
      %v8934 = vrot.slane %v8932, 6
      %v8935 = vshll.u32 %v8732, 16
      %v8937 = vrot.slane %v8935, 7
      %v8938 = vor.u32 %v8934, %v8937
      %v8939 = vrot.slane %v8938, 4
      %v8941 = vshrl.u32 %v8733, 16
      %v8943 = vrot.slane %v8941, 6
      %v8944 = vshll.u32 %v8733, 16
      %v8946 = vrot.slane %v8944, 7
      %v8947 = vor.u32 %v8943, %v8946
      %v8948 = vsel %vm1211, %v8939, %v8947
      %v8949 = vrot.slane %v8947, 4
      %v8951 = vshrl.u32 %v8734, 16
      %v8953 = vrot.slane %v8951, 6
      %v8954 = vshll.u32 %v8734, 16
      %v8956 = vrot.slane %v8954, 7
      %v8957 = vor.u32 %v8953, %v8956
      %v8958 = vsel %vm1211, %v8949, %v8957
      %8959 = vrot.lane.b32.xlu0 %v8752, 32
      %v8960 = vpop.permute.xlu0 %8959
      %8961 = vrot.lane.b32.xlu0 %v8762, 32
      %v8962 = vpop.permute.xlu0 %8961
      %8963 = vrot.lane.b32.xlu0 %v8780, 32
      %v8964 = vpop.permute.xlu0 %8963
      %8965 = vrot.lane.b32.xlu0 %v8790, 32
      %v8966 = vpop.permute.xlu0 %8965
      %8967 = vrot.lane.b32.xlu0 %v8808, 32
      %v8968 = vpop.permute.xlu0 %8967
      %8969 = vrot.lane.b32.xlu0 %v8818, 32
      %v8970 = vpop.permute.xlu0 %8969
      %8971 = vrot.lane.b32.xlu0 %v8836, 32
      %v8972 = vpop.permute.xlu0 %8971
      %8973 = vrot.lane.b32.xlu0 %v8846, 32
      %v8974 = vpop.permute.xlu0 %8973
      %8975 = vrot.lane.b32.xlu0 %v8864, 32
      %v8976 = vpop.permute.xlu0 %8975
      %8977 = vrot.lane.b32.xlu0 %v8874, 32
      %v8978 = vpop.permute.xlu0 %8977
      %8979 = vrot.lane.b32.xlu0 %v8892, 32
      %v8980 = vpop.permute.xlu0 %8979
      %8981 = vrot.lane.b32.xlu0 %v8902, 32
      %v8982 = vpop.permute.xlu0 %8981
      %8983 = vrot.lane.b32.xlu0 %v8920, 32
      %v8984 = vpop.permute.xlu0 %8983
      %8985 = vrot.lane.b32.xlu0 %v8930, 32
      %v8986 = vpop.permute.xlu0 %8985
      %8987 = vrot.lane.b32.xlu0 %v8948, 32
      %v8988 = vpop.permute.xlu0 %8987
      %8989 = vrot.lane.b32.xlu0 %v8958, 32
      %v8990 = vpop.permute.xlu0 %8989
      %9007 = vst.msk [vmem:[#allocation2 + $0x4] sm:$0xf] %vm2035, %v8960
      %9008 = vst.msk [vmem:[#allocation2 + $0xc] sm:$0xf] %vm2035, %v8962
      %9009 = vst.msk [vmem:[#allocation2 + $0x14] sm:$0xf] %vm2035, %v8964
      %9010 = vst.msk [vmem:[#allocation2 + $0x1c] sm:$0xf] %vm2035, %v8966
      %9011 = vst.msk [vmem:[#allocation2 + $0x24] sm:$0xf] %vm2035, %v8968
      %9012 = vst.msk [vmem:[#allocation2 + $0x2c] sm:$0xf] %vm2035, %v8970
      %9013 = vst.msk [vmem:[#allocation2 + $0x34] sm:$0xf] %vm2035, %v8972
      %9014 = vst.msk [vmem:[#allocation2 + $0x3c] sm:$0xf] %vm2035, %v8974
      %9015 = vst.msk [vmem:[#allocation2 + $0x44] sm:$0xf] %vm2035, %v8976
      %9016 = vst.msk [vmem:[#allocation2 + $0x4c] sm:$0xf] %vm2035, %v8978
      %9017 = vst.msk [vmem:[#allocation2 + $0x54] sm:$0xf] %vm2035, %v8980
      %9018 = vst.msk [vmem:[#allocation2 + $0x5c] sm:$0xf] %vm2035, %v8982
      %9019 = vst.msk [vmem:[#allocation2 + $0x64] sm:$0xf] %vm2035, %v8984
      %9020 = vst.msk [vmem:[#allocation2 + $0x6c] sm:$0xf] %vm2035, %v8986
      %9021 = vst.msk [vmem:[#allocation2 + $0x74] sm:$0xf] %vm2035, %v8988
      %9022 = vst.msk [vmem:[#allocation2 + $0x7c] sm:$0xf] %vm2035, %v8990
      %v9023 = vld [vmem:[%s7686] sm:$0x8]
      %v9024 = vld [vmem:[%s7686 + $0x4] sm:$0xf]
      %v9025 = vld [vmem:[%s7686 + $0x8] sm:$0x7]
      %v9026 = vld [vmem:[%s7686 + $0xc] sm:$0x8]
      %v9027 = vld [vmem:[%s7686 + $0x10] sm:$0xf]
      %v9028 = vld [vmem:[%s7686 + $0x14] sm:$0x7]
      %v9029 = vld [vmem:[%s7686 + $0x18] sm:$0x8]
      %v9030 = vld [vmem:[%s7686 + $0x1c] sm:$0xf]
      %v9031 = vld [vmem:[%s7686 + $0x20] sm:$0x7]
      %v9032 = vld [vmem:[%s7686 + $0x24] sm:$0x8]
      %v9033 = vld [vmem:[%s7686 + $0x28] sm:$0xf]
      %v9034 = vld [vmem:[%s7686 + $0x2c] sm:$0x7]
      %v9035 = vld [vmem:[%s7686 + $0x30] sm:$0x8]
      %v9036 = vld [vmem:[%s7686 + $0x34] sm:$0xf]
      %v9037 = vld [vmem:[%s7686 + $0x38] sm:$0x7]
      %v9038 = vld [vmem:[%s7686 + $0x3c] sm:$0x8]
      %v9039 = vld [vmem:[%s7686 + $0x40] sm:$0xf]
      %v9040 = vld [vmem:[%s7686 + $0x44] sm:$0x7]
      %v9041 = vld [vmem:[%s7686 + $0x48] sm:$0x8]
      %v9042 = vld [vmem:[%s7686 + $0x4c] sm:$0xf]
      %v9043 = vld [vmem:[%s7686 + $0x50] sm:$0x7]
      %v9044 = vld [vmem:[%s7686 + $0x54] sm:$0x8]
      %v9045 = vld [vmem:[%s7686 + $0x58] sm:$0xf]
      %v9046 = vld [vmem:[%s7686 + $0x5c] sm:$0x7]
      %v9071 = vrot.slane %v9023, 7
      %v9072 = vrot.slane %v9071, 4
      %v9073 = vrot.slane %v9024, 7
      %v9074 = vsel %vm1551, %v9072, %v9073
      %v9075 = vrot.slane %v9073, 4
      %v9076 = vrot.slane %v9025, 7
      %v9077 = vsel %vm1551, %v9075, %v9076
      %v9078 = vrot.slane %v9026, 7
      %v9079 = vrot.slane %v9078, 4
      %v9080 = vrot.slane %v9027, 7
      %v9081 = vsel %vm1551, %v9079, %v9080
      %v9082 = vrot.slane %v9080, 4
      %v9083 = vrot.slane %v9028, 7
      %v9084 = vsel %vm1551, %v9082, %v9083
      %v9085 = vrot.slane %v9029, 7
      %v9086 = vrot.slane %v9085, 4
      %v9087 = vrot.slane %v9030, 7
      %v9088 = vsel %vm1551, %v9086, %v9087
      %v9089 = vrot.slane %v9087, 4
      %v9090 = vrot.slane %v9031, 7
      %v9091 = vsel %vm1551, %v9089, %v9090
      %v9092 = vrot.slane %v9032, 7
      %v9093 = vrot.slane %v9092, 4
      %v9094 = vrot.slane %v9033, 7
      %v9095 = vsel %vm1551, %v9093, %v9094
      %v9096 = vrot.slane %v9094, 4
      %v9097 = vrot.slane %v9034, 7
      %v9098 = vsel %vm1551, %v9096, %v9097
      %v9099 = vrot.slane %v9035, 7
      %v9100 = vrot.slane %v9099, 4
      %v9101 = vrot.slane %v9036, 7
      %v9102 = vsel %vm1551, %v9100, %v9101
      %v9103 = vrot.slane %v9101, 4
      %v9104 = vrot.slane %v9037, 7
      %v9105 = vsel %vm1551, %v9103, %v9104
      %v9106 = vrot.slane %v9038, 7
      %v9107 = vrot.slane %v9106, 4
      %v9108 = vrot.slane %v9039, 7
      %v9109 = vsel %vm1551, %v9107, %v9108
      %v9110 = vrot.slane %v9108, 4
      %v9111 = vrot.slane %v9040, 7
      %v9112 = vsel %vm1551, %v9110, %v9111
      %v9113 = vrot.slane %v9041, 7
      %v9114 = vrot.slane %v9113, 4
      %v9115 = vrot.slane %v9042, 7
      %v9116 = vsel %vm1551, %v9114, %v9115
      %v9117 = vrot.slane %v9115, 4
      %v9118 = vrot.slane %v9043, 7
      %v9119 = vsel %vm1551, %v9117, %v9118
      %v9120 = vrot.slane %v9044, 7
      %v9121 = vrot.slane %v9120, 4
      %v9122 = vrot.slane %v9045, 7
      %v9123 = vsel %vm1551, %v9121, %v9122
      %v9124 = vrot.slane %v9122, 4
      %v9125 = vrot.slane %v9046, 7
      %v9126 = vsel %vm1551, %v9124, %v9125
      %9127 = vrot.lane.b32.xlu0 %v9074, 36
      %v9128 = vpop.permute.xlu0 %9127
      %9129 = vrot.lane.b32.xlu0 %v9077, 36
      %v9130 = vpop.permute.xlu0 %9129
      %9131 = vrot.lane.b32.xlu0 %v9081, 36
      %v9132 = vpop.permute.xlu0 %9131
      %9133 = vrot.lane.b32.xlu0 %v9084, 36
      %v9134 = vpop.permute.xlu0 %9133
      %9135 = vrot.lane.b32.xlu0 %v9088, 36
      %v9136 = vpop.permute.xlu0 %9135
      %9137 = vrot.lane.b32.xlu0 %v9091, 36
      %v9138 = vpop.permute.xlu0 %9137
      %9139 = vrot.lane.b32.xlu0 %v9095, 36
      %v9140 = vpop.permute.xlu0 %9139
      %9141 = vrot.lane.b32.xlu0 %v9098, 36
      %v9142 = vpop.permute.xlu0 %9141
      %9143 = vrot.lane.b32.xlu0 %v9102, 36
      %v9144 = vpop.permute.xlu0 %9143
      %9145 = vrot.lane.b32.xlu0 %v9105, 36
      %v9146 = vpop.permute.xlu0 %9145
      %9147 = vrot.lane.b32.xlu0 %v9109, 36
      %v9148 = vpop.permute.xlu0 %9147
      %9149 = vrot.lane.b32.xlu0 %v9112, 36
      %v9150 = vpop.permute.xlu0 %9149
      %9151 = vrot.lane.b32.xlu0 %v9116, 36
      %v9152 = vpop.permute.xlu0 %9151
      %9153 = vrot.lane.b32.xlu0 %v9119, 36
      %v9154 = vpop.permute.xlu0 %9153
      %9155 = vrot.lane.b32.xlu0 %v9123, 36
      %v9156 = vpop.permute.xlu0 %9155
      %9157 = vrot.lane.b32.xlu0 %v9126, 36
      %v9158 = vpop.permute.xlu0 %9157
      %9175 = vst.msk [vmem:[#allocation2 + $0x4] sm:$0xf] %vm2204, %v9128
      %9176 = vst.msk [vmem:[#allocation2 + $0xc] sm:$0xf] %vm2204, %v9130
      %9177 = vst.msk [vmem:[#allocation2 + $0x14] sm:$0xf] %vm2204, %v9132
      %9178 = vst.msk [vmem:[#allocation2 + $0x1c] sm:$0xf] %vm2204, %v9134
      %9179 = vst.msk [vmem:[#allocation2 + $0x24] sm:$0xf] %vm2204, %v9136
      %9180 = vst.msk [vmem:[#allocation2 + $0x2c] sm:$0xf] %vm2204, %v9138
      %9181 = vst.msk [vmem:[#allocation2 + $0x34] sm:$0xf] %vm2204, %v9140
      %9182 = vst.msk [vmem:[#allocation2 + $0x3c] sm:$0xf] %vm2204, %v9142
      %9183 = vst.msk [vmem:[#allocation2 + $0x44] sm:$0xf] %vm2204, %v9144
      %9184 = vst.msk [vmem:[#allocation2 + $0x4c] sm:$0xf] %vm2204, %v9146
      %9185 = vst.msk [vmem:[#allocation2 + $0x54] sm:$0xf] %vm2204, %v9148
      %9186 = vst.msk [vmem:[#allocation2 + $0x5c] sm:$0xf] %vm2204, %v9150
      %9187 = vst.msk [vmem:[#allocation2 + $0x64] sm:$0xf] %vm2204, %v9152
      %9188 = vst.msk [vmem:[#allocation2 + $0x6c] sm:$0xf] %vm2204, %v9154
      %9189 = vst.msk [vmem:[#allocation2 + $0x74] sm:$0xf] %vm2204, %v9156
      %9190 = vst.msk [vmem:[#allocation2 + $0x7c] sm:$0xf] %vm2204, %v9158
      %s9191 = scalar_lea.vmem %s197, 72
      %v9192 = vld [vmem:[%s9191] sm:$0xf]
      %v9193 = vld [vmem:[%s9191 + $0x4] sm:$0xf]
      %v9194 = vld [vmem:[%s9191 + $0xc] sm:$0xf]
      %v9195 = vld [vmem:[%s9191 + $0x10] sm:$0xf]
      %v9196 = vld [vmem:[%s9191 + $0x18] sm:$0xf]
      %v9197 = vld [vmem:[%s9191 + $0x1c] sm:$0xf]
      %v9198 = vld [vmem:[%s9191 + $0x24] sm:$0xf]
      %v9199 = vld [vmem:[%s9191 + $0x28] sm:$0xf]
      %v9200 = vld [vmem:[%s9191 + $0x30] sm:$0xf]
      %v9201 = vld [vmem:[%s9191 + $0x34] sm:$0xf]
      %v9202 = vld [vmem:[%s9191 + $0x3c] sm:$0xf]
      %v9203 = vld [vmem:[%s9191 + $0x40] sm:$0xf]
      %v9204 = vld [vmem:[%s9191 + $0x48] sm:$0xf]
      %v9205 = vld [vmem:[%s9191 + $0x4c] sm:$0xf]
      %v9206 = vld [vmem:[%s9191 + $0x54] sm:$0xf]
      %v9207 = vld [vmem:[%s9191 + $0x58] sm:$0xf]
      %9224 = vrot.lane.b32.xlu0 %v9192, 40
      %v9225 = vpop.permute.xlu0 %9224
      %9226 = vrot.lane.b32.xlu0 %v9193, 40
      %v9227 = vpop.permute.xlu0 %9226
      %9228 = vrot.lane.b32.xlu0 %v9194, 40
      %v9229 = vpop.permute.xlu0 %9228
      %9230 = vrot.lane.b32.xlu0 %v9195, 40
      %v9231 = vpop.permute.xlu0 %9230
      %9232 = vrot.lane.b32.xlu0 %v9196, 40
      %v9233 = vpop.permute.xlu0 %9232
      %9234 = vrot.lane.b32.xlu0 %v9197, 40
      %v9235 = vpop.permute.xlu0 %9234
      %9236 = vrot.lane.b32.xlu0 %v9198, 40
      %v9237 = vpop.permute.xlu0 %9236
      %9238 = vrot.lane.b32.xlu0 %v9199, 40
      %v9239 = vpop.permute.xlu0 %9238
      %9240 = vrot.lane.b32.xlu0 %v9200, 40
      %v9241 = vpop.permute.xlu0 %9240
      %9242 = vrot.lane.b32.xlu0 %v9201, 40
      %v9243 = vpop.permute.xlu0 %9242
      %9244 = vrot.lane.b32.xlu0 %v9202, 40
      %v9245 = vpop.permute.xlu0 %9244
      %9246 = vrot.lane.b32.xlu0 %v9203, 40
      %v9247 = vpop.permute.xlu0 %9246
      %9248 = vrot.lane.b32.xlu0 %v9204, 40
      %v9249 = vpop.permute.xlu0 %9248
      %9250 = vrot.lane.b32.xlu0 %v9205, 40
      %v9251 = vpop.permute.xlu0 %9250
      %9252 = vrot.lane.b32.xlu0 %v9206, 40
      %v9253 = vpop.permute.xlu0 %9252
      %9254 = vrot.lane.b32.xlu0 %v9207, 40
      %v9255 = vpop.permute.xlu0 %9254
      %9272 = vst.msk [vmem:[#allocation2 + $0x4] sm:$0xf] %vm2517, %v9225
      %9273 = vst.msk [vmem:[#allocation2 + $0xc] sm:$0xf] %vm2517, %v9227
      %9274 = vst.msk [vmem:[#allocation2 + $0x14] sm:$0xf] %vm2517, %v9229
      %9275 = vst.msk [vmem:[#allocation2 + $0x1c] sm:$0xf] %vm2517, %v9231
      %9276 = vst.msk [vmem:[#allocation2 + $0x24] sm:$0xf] %vm2517, %v9233
      %9277 = vst.msk [vmem:[#allocation2 + $0x2c] sm:$0xf] %vm2517, %v9235
      %9278 = vst.msk [vmem:[#allocation2 + $0x34] sm:$0xf] %vm2517, %v9237
      %9279 = vst.msk [vmem:[#allocation2 + $0x3c] sm:$0xf] %vm2517, %v9239
      %9280 = vst.msk [vmem:[#allocation2 + $0x44] sm:$0xf] %vm2517, %v9241
      %9281 = vst.msk [vmem:[#allocation2 + $0x4c] sm:$0xf] %vm2517, %v9243
      %9282 = vst.msk [vmem:[#allocation2 + $0x54] sm:$0xf] %vm2517, %v9245
      %9283 = vst.msk [vmem:[#allocation2 + $0x5c] sm:$0xf] %vm2517, %v9247
      %9284 = vst.msk [vmem:[#allocation2 + $0x64] sm:$0xf] %vm2517, %v9249
      %9285 = vst.msk [vmem:[#allocation2 + $0x6c] sm:$0xf] %vm2517, %v9251
      %9286 = vst.msk [vmem:[#allocation2 + $0x74] sm:$0xf] %vm2517, %v9253
      %9287 = vst.msk [vmem:[#allocation2 + $0x7c] sm:$0xf] %vm2517, %v9255
      %v9288 = vld [vmem:[%s9191] sm:$0xf]
      %v9289 = vld [vmem:[%s9191 + $0x4] sm:$0xf]
      %v9290 = vld [vmem:[%s9191 + $0x8] sm:$0x1]
      %v9291 = vld [vmem:[%s9191 + $0xc] sm:$0xf]
      %v9292 = vld [vmem:[%s9191 + $0x10] sm:$0xf]
      %v9293 = vld [vmem:[%s9191 + $0x14] sm:$0x1]
      %v9294 = vld [vmem:[%s9191 + $0x18] sm:$0xf]
      %v9295 = vld [vmem:[%s9191 + $0x1c] sm:$0xf]
      %v9296 = vld [vmem:[%s9191 + $0x20] sm:$0x1]
      %v9297 = vld [vmem:[%s9191 + $0x24] sm:$0xf]
      %v9298 = vld [vmem:[%s9191 + $0x28] sm:$0xf]
      %v9299 = vld [vmem:[%s9191 + $0x2c] sm:$0x1]
      %v9300 = vld [vmem:[%s9191 + $0x30] sm:$0xf]
      %v9301 = vld [vmem:[%s9191 + $0x34] sm:$0xf]
      %v9302 = vld [vmem:[%s9191 + $0x38] sm:$0x1]
      %v9303 = vld [vmem:[%s9191 + $0x3c] sm:$0xf]
      %v9304 = vld [vmem:[%s9191 + $0x40] sm:$0xf]
      %v9305 = vld [vmem:[%s9191 + $0x44] sm:$0x1]
      %v9306 = vld [vmem:[%s9191 + $0x48] sm:$0xf]
      %v9307 = vld [vmem:[%s9191 + $0x4c] sm:$0xf]
      %v9308 = vld [vmem:[%s9191 + $0x50] sm:$0x1]
      %v9309 = vld [vmem:[%s9191 + $0x54] sm:$0xf]
      %v9310 = vld [vmem:[%s9191 + $0x58] sm:$0xf]
      %v9311 = vld [vmem:[%s9191 + $0x5c] sm:$0x1]
      %v9313 = vshrl.u32 %v9288, 16
      %v9315 = vrot.slane %v9313, 4
      %v9316 = vshll.u32 %v9288, 16
      %v9318 = vrot.slane %v9316, 5
      %v9319 = vor.u32 %v9315, %v9318
      %v9320 = vrot.slane %v9319, 4
      %v9322 = vshll.u32 %v9289, 16
      %v9324 = vrot.slane %v9322, 5
      %v9325 = vsel %vm267, %v9320, %v9324
      %v9326 = vshrl.u32 %v9289, 16
      %v9328 = vrot.slane %v9326, 4
      %v9329 = vor.u32 %v9328, %v9324
      %v9330 = vrot.slane %v9329, 4
      %v9332 = vshll.u32 %v9290, 16
      %v9334 = vrot.slane %v9332, 5
      %v9335 = vsel %vm267, %v9330, %v9334
      %v9337 = vshrl.u32 %v9291, 16
      %v9339 = vrot.slane %v9337, 4
      %v9340 = vshll.u32 %v9291, 16
      %v9342 = vrot.slane %v9340, 5
      %v9343 = vor.u32 %v9339, %v9342
      %v9344 = vrot.slane %v9343, 4
      %v9346 = vshll.u32 %v9292, 16
      %v9348 = vrot.slane %v9346, 5
      %v9349 = vsel %vm267, %v9344, %v9348
      %v9350 = vshrl.u32 %v9292, 16
      %v9352 = vrot.slane %v9350, 4
      %v9353 = vor.u32 %v9352, %v9348
      %v9354 = vrot.slane %v9353, 4
      %v9356 = vshll.u32 %v9293, 16
      %v9358 = vrot.slane %v9356, 5
      %v9359 = vsel %vm267, %v9354, %v9358
      %v9361 = vshrl.u32 %v9294, 16
      %v9363 = vrot.slane %v9361, 4
      %v9364 = vshll.u32 %v9294, 16
      %v9366 = vrot.slane %v9364, 5
      %v9367 = vor.u32 %v9363, %v9366
      %v9368 = vrot.slane %v9367, 4
      %v9370 = vshll.u32 %v9295, 16
      %v9372 = vrot.slane %v9370, 5
      %v9373 = vsel %vm267, %v9368, %v9372
      %v9374 = vshrl.u32 %v9295, 16
      %v9376 = vrot.slane %v9374, 4
      %v9377 = vor.u32 %v9376, %v9372
      %v9378 = vrot.slane %v9377, 4
      %v9380 = vshll.u32 %v9296, 16
      %v9382 = vrot.slane %v9380, 5
      %v9383 = vsel %vm267, %v9378, %v9382
      %v9385 = vshrl.u32 %v9297, 16
      %v9387 = vrot.slane %v9385, 4
      %v9388 = vshll.u32 %v9297, 16
      %v9390 = vrot.slane %v9388, 5
      %v9391 = vor.u32 %v9387, %v9390
      %v9392 = vrot.slane %v9391, 4
      %v9394 = vshll.u32 %v9298, 16
      %v9396 = vrot.slane %v9394, 5
      %v9397 = vsel %vm267, %v9392, %v9396
      %v9398 = vshrl.u32 %v9298, 16
      %v9400 = vrot.slane %v9398, 4
      %v9401 = vor.u32 %v9400, %v9396
      %v9402 = vrot.slane %v9401, 4
      %v9404 = vshll.u32 %v9299, 16
      %v9406 = vrot.slane %v9404, 5
      %v9407 = vsel %vm267, %v9402, %v9406
      %v9409 = vshrl.u32 %v9300, 16
      %v9411 = vrot.slane %v9409, 4
      %v9412 = vshll.u32 %v9300, 16
      %v9414 = vrot.slane %v9412, 5
      %v9415 = vor.u32 %v9411, %v9414
      %v9416 = vrot.slane %v9415, 4
      %v9418 = vshll.u32 %v9301, 16
      %v9420 = vrot.slane %v9418, 5
      %v9421 = vsel %vm267, %v9416, %v9420
      %v9422 = vshrl.u32 %v9301, 16
      %v9424 = vrot.slane %v9422, 4
      %v9425 = vor.u32 %v9424, %v9420
      %v9426 = vrot.slane %v9425, 4
      %v9428 = vshll.u32 %v9302, 16
      %v9430 = vrot.slane %v9428, 5
      %v9431 = vsel %vm267, %v9426, %v9430
      %v9433 = vshrl.u32 %v9303, 16
      %v9435 = vrot.slane %v9433, 4
      %v9436 = vshll.u32 %v9303, 16
      %v9438 = vrot.slane %v9436, 5
      %v9439 = vor.u32 %v9435, %v9438
      %v9440 = vrot.slane %v9439, 4
      %v9442 = vshll.u32 %v9304, 16
      %v9444 = vrot.slane %v9442, 5
      %v9445 = vsel %vm267, %v9440, %v9444
      %v9446 = vshrl.u32 %v9304, 16
      %v9448 = vrot.slane %v9446, 4
      %v9449 = vor.u32 %v9448, %v9444
      %v9450 = vrot.slane %v9449, 4
      %v9452 = vshll.u32 %v9305, 16
      %v9454 = vrot.slane %v9452, 5
      %v9455 = vsel %vm267, %v9450, %v9454
      %v9457 = vshrl.u32 %v9306, 16
      %v9459 = vrot.slane %v9457, 4
      %v9460 = vshll.u32 %v9306, 16
      %v9462 = vrot.slane %v9460, 5
      %v9463 = vor.u32 %v9459, %v9462
      %v9464 = vrot.slane %v9463, 4
      %v9466 = vshll.u32 %v9307, 16
      %v9468 = vrot.slane %v9466, 5
      %v9469 = vsel %vm267, %v9464, %v9468
      %v9470 = vshrl.u32 %v9307, 16
      %v9472 = vrot.slane %v9470, 4
      %v9473 = vor.u32 %v9472, %v9468
      %v9474 = vrot.slane %v9473, 4
      %v9476 = vshll.u32 %v9308, 16
      %v9478 = vrot.slane %v9476, 5
      %v9479 = vsel %vm267, %v9474, %v9478
      %v9481 = vshrl.u32 %v9309, 16
      %v9483 = vrot.slane %v9481, 4
      %v9484 = vshll.u32 %v9309, 16
      %v9486 = vrot.slane %v9484, 5
      %v9487 = vor.u32 %v9483, %v9486
      %v9488 = vrot.slane %v9487, 4
      %v9490 = vshll.u32 %v9310, 16
      %v9492 = vrot.slane %v9490, 5
      %v9493 = vsel %vm267, %v9488, %v9492
      %v9494 = vshrl.u32 %v9310, 16
      %v9496 = vrot.slane %v9494, 4
      %v9497 = vor.u32 %v9496, %v9492
      %v9498 = vrot.slane %v9497, 4
      %v9500 = vshll.u32 %v9311, 16
      %v9502 = vrot.slane %v9500, 5
      %v9503 = vsel %vm267, %v9498, %v9502
      %9504 = vrot.lane.b32.xlu0 %v9325, 44
      %v9505 = vpop.permute.xlu0 %9504
      %9506 = vrot.lane.b32.xlu0 %v9335, 44
      %v9507 = vpop.permute.xlu0 %9506
      %9508 = vrot.lane.b32.xlu0 %v9349, 44
      %v9509 = vpop.permute.xlu0 %9508
      %9510 = vrot.lane.b32.xlu0 %v9359, 44
      %v9511 = vpop.permute.xlu0 %9510
      %9512 = vrot.lane.b32.xlu0 %v9373, 44
      %v9513 = vpop.permute.xlu0 %9512
      %9514 = vrot.lane.b32.xlu0 %v9383, 44
      %v9515 = vpop.permute.xlu0 %9514
      %9516 = vrot.lane.b32.xlu0 %v9397, 44
      %v9517 = vpop.permute.xlu0 %9516
      %9518 = vrot.lane.b32.xlu0 %v9407, 44
      %v9519 = vpop.permute.xlu0 %9518
      %9520 = vrot.lane.b32.xlu0 %v9421, 44
      %v9521 = vpop.permute.xlu0 %9520
      %9522 = vrot.lane.b32.xlu0 %v9431, 44
      %v9523 = vpop.permute.xlu0 %9522
      %9524 = vrot.lane.b32.xlu0 %v9445, 44
      %v9525 = vpop.permute.xlu0 %9524
      %9526 = vrot.lane.b32.xlu0 %v9455, 44
      %v9527 = vpop.permute.xlu0 %9526
      %9528 = vrot.lane.b32.xlu0 %v9469, 44
      %v9529 = vpop.permute.xlu0 %9528
      %9530 = vrot.lane.b32.xlu0 %v9479, 44
      %v9531 = vpop.permute.xlu0 %9530
      %9532 = vrot.lane.b32.xlu0 %v9493, 44
      %v9533 = vpop.permute.xlu0 %9532
      %9534 = vrot.lane.b32.xlu0 %v9503, 44
      %v9535 = vpop.permute.xlu0 %9534
      %9552 = vst.msk [vmem:[#allocation2 + $0x4] sm:$0xf] %vm2686, %v9505
      %9553 = vst.msk [vmem:[#allocation2 + $0xc] sm:$0xf] %vm2686, %v9507
      %9554 = vst.msk [vmem:[#allocation2 + $0x14] sm:$0xf] %vm2686, %v9509
      %9555 = vst.msk [vmem:[#allocation2 + $0x1c] sm:$0xf] %vm2686, %v9511
      %9556 = vst.msk [vmem:[#allocation2 + $0x24] sm:$0xf] %vm2686, %v9513
      %9557 = vst.msk [vmem:[#allocation2 + $0x2c] sm:$0xf] %vm2686, %v9515
      %9558 = vst.msk [vmem:[#allocation2 + $0x34] sm:$0xf] %vm2686, %v9517
      %9559 = vst.msk [vmem:[#allocation2 + $0x3c] sm:$0xf] %vm2686, %v9519
      %9560 = vst.msk [vmem:[#allocation2 + $0x44] sm:$0xf] %vm2686, %v9521
      %9561 = vst.msk [vmem:[#allocation2 + $0x4c] sm:$0xf] %vm2686, %v9523
      %9562 = vst.msk [vmem:[#allocation2 + $0x54] sm:$0xf] %vm2686, %v9525
      %9563 = vst.msk [vmem:[#allocation2 + $0x5c] sm:$0xf] %vm2686, %v9527
      %9564 = vst.msk [vmem:[#allocation2 + $0x64] sm:$0xf] %vm2686, %v9529
      %9565 = vst.msk [vmem:[#allocation2 + $0x6c] sm:$0xf] %vm2686, %v9531
      %9566 = vst.msk [vmem:[#allocation2 + $0x74] sm:$0xf] %vm2686, %v9533
      %9567 = vst.msk [vmem:[#allocation2 + $0x7c] sm:$0xf] %vm2686, %v9535
      %v9568 = vld [vmem:[%s9191] sm:$0xe]
      %v9569 = vld [vmem:[%s9191 + $0x4] sm:$0xf]
      %v9570 = vld [vmem:[%s9191 + $0x8] sm:$0x1]
      %v9571 = vld [vmem:[%s9191 + $0xc] sm:$0xe]
      %v9572 = vld [vmem:[%s9191 + $0x10] sm:$0xf]
      %v9573 = vld [vmem:[%s9191 + $0x14] sm:$0x1]
      %v9574 = vld [vmem:[%s9191 + $0x18] sm:$0xe]
      %v9575 = vld [vmem:[%s9191 + $0x1c] sm:$0xf]
      %v9576 = vld [vmem:[%s9191 + $0x20] sm:$0x1]
      %v9577 = vld [vmem:[%s9191 + $0x24] sm:$0xe]
      %v9578 = vld [vmem:[%s9191 + $0x28] sm:$0xf]
      %v9579 = vld [vmem:[%s9191 + $0x2c] sm:$0x1]
      %v9580 = vld [vmem:[%s9191 + $0x30] sm:$0xe]
      %v9581 = vld [vmem:[%s9191 + $0x34] sm:$0xf]
      %v9582 = vld [vmem:[%s9191 + $0x38] sm:$0x1]
      %v9583 = vld [vmem:[%s9191 + $0x3c] sm:$0xe]
      %v9584 = vld [vmem:[%s9191 + $0x40] sm:$0xf]
      %v9585 = vld [vmem:[%s9191 + $0x44] sm:$0x1]
      %v9586 = vld [vmem:[%s9191 + $0x48] sm:$0xe]
      %v9587 = vld [vmem:[%s9191 + $0x4c] sm:$0xf]
      %v9588 = vld [vmem:[%s9191 + $0x50] sm:$0x1]
      %v9589 = vld [vmem:[%s9191 + $0x54] sm:$0xe]
      %v9590 = vld [vmem:[%s9191 + $0x58] sm:$0xf]
      %v9591 = vld [vmem:[%s9191 + $0x5c] sm:$0x1]
      %v9616 = vrot.slane %v9568, 5
      %v9617 = vrot.slane %v9616, 4
      %v9618 = vrot.slane %v9569, 5
      %v9619 = vsel %vm575, %v9617, %v9618
      %v9620 = vrot.slane %v9618, 4
      %v9621 = vrot.slane %v9570, 5
      %v9622 = vsel %vm575, %v9620, %v9621
      %v9623 = vrot.slane %v9571, 5
      %v9624 = vrot.slane %v9623, 4
      %v9625 = vrot.slane %v9572, 5
      %v9626 = vsel %vm575, %v9624, %v9625
      %v9627 = vrot.slane %v9625, 4
      %v9628 = vrot.slane %v9573, 5
      %v9629 = vsel %vm575, %v9627, %v9628
      %v9630 = vrot.slane %v9574, 5
      %v9631 = vrot.slane %v9630, 4
      %v9632 = vrot.slane %v9575, 5
      %v9633 = vsel %vm575, %v9631, %v9632
      %v9634 = vrot.slane %v9632, 4
      %v9635 = vrot.slane %v9576, 5
      %v9636 = vsel %vm575, %v9634, %v9635
      %v9637 = vrot.slane %v9577, 5
      %v9638 = vrot.slane %v9637, 4
      %v9639 = vrot.slane %v9578, 5
      %v9640 = vsel %vm575, %v9638, %v9639
      %v9641 = vrot.slane %v9639, 4
      %v9642 = vrot.slane %v9579, 5
      %v9643 = vsel %vm575, %v9641, %v9642
      %v9644 = vrot.slane %v9580, 5
      %v9645 = vrot.slane %v9644, 4
      %v9646 = vrot.slane %v9581, 5
      %v9647 = vsel %vm575, %v9645, %v9646
      %v9648 = vrot.slane %v9646, 4
      %v9649 = vrot.slane %v9582, 5
      %v9650 = vsel %vm575, %v9648, %v9649
      %v9651 = vrot.slane %v9583, 5
      %v9652 = vrot.slane %v9651, 4
      %v9653 = vrot.slane %v9584, 5
      %v9654 = vsel %vm575, %v9652, %v9653
      %v9655 = vrot.slane %v9653, 4
      %v9656 = vrot.slane %v9585, 5
      %v9657 = vsel %vm575, %v9655, %v9656
      %v9658 = vrot.slane %v9586, 5
      %v9659 = vrot.slane %v9658, 4
      %v9660 = vrot.slane %v9587, 5
      %v9661 = vsel %vm575, %v9659, %v9660
      %v9662 = vrot.slane %v9660, 4
      %v9663 = vrot.slane %v9588, 5
      %v9664 = vsel %vm575, %v9662, %v9663
      %v9665 = vrot.slane %v9589, 5
      %v9666 = vrot.slane %v9665, 4
      %v9667 = vrot.slane %v9590, 5
      %v9668 = vsel %vm575, %v9666, %v9667
      %v9669 = vrot.slane %v9667, 4
      %v9670 = vrot.slane %v9591, 5
      %v9671 = vsel %vm575, %v9669, %v9670
      %9672 = vrot.lane.b32.xlu0 %v9619, 48
      %v9673 = vpop.permute.xlu0 %9672
      %9674 = vrot.lane.b32.xlu0 %v9622, 48
      %v9675 = vpop.permute.xlu0 %9674
      %9676 = vrot.lane.b32.xlu0 %v9626, 48
      %v9677 = vpop.permute.xlu0 %9676
      %9678 = vrot.lane.b32.xlu0 %v9629, 48
      %v9679 = vpop.permute.xlu0 %9678
      %9680 = vrot.lane.b32.xlu0 %v9633, 48
      %v9681 = vpop.permute.xlu0 %9680
      %9682 = vrot.lane.b32.xlu0 %v9636, 48
      %v9683 = vpop.permute.xlu0 %9682
      %9684 = vrot.lane.b32.xlu0 %v9640, 48
      %v9685 = vpop.permute.xlu0 %9684
      %9686 = vrot.lane.b32.xlu0 %v9643, 48
      %v9687 = vpop.permute.xlu0 %9686
      %9688 = vrot.lane.b32.xlu0 %v9647, 48
      %v9689 = vpop.permute.xlu0 %9688
      %9690 = vrot.lane.b32.xlu0 %v9650, 48
      %v9691 = vpop.permute.xlu0 %9690
      %9692 = vrot.lane.b32.xlu0 %v9654, 48
      %v9693 = vpop.permute.xlu0 %9692
      %9694 = vrot.lane.b32.xlu0 %v9657, 48
      %v9695 = vpop.permute.xlu0 %9694
      %9696 = vrot.lane.b32.xlu0 %v9661, 48
      %v9697 = vpop.permute.xlu0 %9696
      %9698 = vrot.lane.b32.xlu0 %v9664, 48
      %v9699 = vpop.permute.xlu0 %9698
      %9700 = vrot.lane.b32.xlu0 %v9668, 48
      %v9701 = vpop.permute.xlu0 %9700
      %9702 = vrot.lane.b32.xlu0 %v9671, 48
      %v9703 = vpop.permute.xlu0 %9702
      %9720 = vst.msk [vmem:[#allocation2 + $0x4] sm:$0xf] %vm2999, %v9673
      %9721 = vst.msk [vmem:[#allocation2 + $0xc] sm:$0xf] %vm2999, %v9675
      %9722 = vst.msk [vmem:[#allocation2 + $0x14] sm:$0xf] %vm2999, %v9677
      %9723 = vst.msk [vmem:[#allocation2 + $0x1c] sm:$0xf] %vm2999, %v9679
      %9724 = vst.msk [vmem:[#allocation2 + $0x24] sm:$0xf] %vm2999, %v9681
      %9725 = vst.msk [vmem:[#allocation2 + $0x2c] sm:$0xf] %vm2999, %v9683
      %9726 = vst.msk [vmem:[#allocation2 + $0x34] sm:$0xf] %vm2999, %v9685
      %9727 = vst.msk [vmem:[#allocation2 + $0x3c] sm:$0xf] %vm2999, %v9687
      %9728 = vst.msk [vmem:[#allocation2 + $0x44] sm:$0xf] %vm2999, %v9689
      %9729 = vst.msk [vmem:[#allocation2 + $0x4c] sm:$0xf] %vm2999, %v9691
      %9730 = vst.msk [vmem:[#allocation2 + $0x54] sm:$0xf] %vm2999, %v9693
      %9731 = vst.msk [vmem:[#allocation2 + $0x5c] sm:$0xf] %vm2999, %v9695
      %9732 = vst.msk [vmem:[#allocation2 + $0x64] sm:$0xf] %vm2999, %v9697
      %9733 = vst.msk [vmem:[#allocation2 + $0x6c] sm:$0xf] %vm2999, %v9699
      %9734 = vst.msk [vmem:[#allocation2 + $0x74] sm:$0xf] %vm2999, %v9701
      %9735 = vst.msk [vmem:[#allocation2 + $0x7c] sm:$0xf] %vm2999, %v9703
      %v9736 = vld [vmem:[%s9191] sm:$0xe]
      %v9737 = vld [vmem:[%s9191 + $0x4] sm:$0xf]
      %v9738 = vld [vmem:[%s9191 + $0x8] sm:$0x3]
      %v9739 = vld [vmem:[%s9191 + $0xc] sm:$0xe]
      %v9740 = vld [vmem:[%s9191 + $0x10] sm:$0xf]
      %v9741 = vld [vmem:[%s9191 + $0x14] sm:$0x3]
      %v9742 = vld [vmem:[%s9191 + $0x18] sm:$0xe]
      %v9743 = vld [vmem:[%s9191 + $0x1c] sm:$0xf]
      %v9744 = vld [vmem:[%s9191 + $0x20] sm:$0x3]
      %v9745 = vld [vmem:[%s9191 + $0x24] sm:$0xe]
      %v9746 = vld [vmem:[%s9191 + $0x28] sm:$0xf]
      %v9747 = vld [vmem:[%s9191 + $0x2c] sm:$0x3]
      %v9748 = vld [vmem:[%s9191 + $0x30] sm:$0xe]
      %v9749 = vld [vmem:[%s9191 + $0x34] sm:$0xf]
      %v9750 = vld [vmem:[%s9191 + $0x38] sm:$0x3]
      %v9751 = vld [vmem:[%s9191 + $0x3c] sm:$0xe]
      %v9752 = vld [vmem:[%s9191 + $0x40] sm:$0xf]
      %v9753 = vld [vmem:[%s9191 + $0x44] sm:$0x3]
      %v9754 = vld [vmem:[%s9191 + $0x48] sm:$0xe]
      %v9755 = vld [vmem:[%s9191 + $0x4c] sm:$0xf]
      %v9756 = vld [vmem:[%s9191 + $0x50] sm:$0x3]
      %v9757 = vld [vmem:[%s9191 + $0x54] sm:$0xe]
      %v9758 = vld [vmem:[%s9191 + $0x58] sm:$0xf]
      %v9759 = vld [vmem:[%s9191 + $0x5c] sm:$0x3]
      %v9761 = vshrl.u32 %v9736, 16
      %v9763 = vrot.slane %v9761, 5
      %v9764 = vshll.u32 %v9736, 16
      %v9766 = vrot.slane %v9764, 6
      %v9767 = vor.u32 %v9763, %v9766
      %v9768 = vrot.slane %v9767, 4
      %v9770 = vshrl.u32 %v9737, 16
      %v9772 = vrot.slane %v9770, 5
      %v9773 = vshll.u32 %v9737, 16
      %v9775 = vrot.slane %v9773, 6
      %v9776 = vor.u32 %v9772, %v9775
      %v9777 = vsel %vm723, %v9768, %v9776
      %v9778 = vrot.slane %v9776, 4
      %v9780 = vshrl.u32 %v9738, 16
      %v9782 = vrot.slane %v9780, 5
      %v9783 = vshll.u32 %v9738, 16
      %v9785 = vrot.slane %v9783, 6
      %v9786 = vor.u32 %v9782, %v9785
      %v9787 = vsel %vm723, %v9778, %v9786
      %v9789 = vshrl.u32 %v9739, 16
      %v9791 = vrot.slane %v9789, 5
      %v9792 = vshll.u32 %v9739, 16
      %v9794 = vrot.slane %v9792, 6
      %v9795 = vor.u32 %v9791, %v9794
      %v9796 = vrot.slane %v9795, 4
      %v9798 = vshrl.u32 %v9740, 16
      %v9800 = vrot.slane %v9798, 5
      %v9801 = vshll.u32 %v9740, 16
      %v9803 = vrot.slane %v9801, 6
      %v9804 = vor.u32 %v9800, %v9803
      %v9805 = vsel %vm723, %v9796, %v9804
      %v9806 = vrot.slane %v9804, 4
      %v9808 = vshrl.u32 %v9741, 16
      %v9810 = vrot.slane %v9808, 5
      %v9811 = vshll.u32 %v9741, 16
      %v9813 = vrot.slane %v9811, 6
      %v9814 = vor.u32 %v9810, %v9813
      %v9815 = vsel %vm723, %v9806, %v9814
      %v9817 = vshrl.u32 %v9742, 16
      %v9819 = vrot.slane %v9817, 5
      %v9820 = vshll.u32 %v9742, 16
      %v9822 = vrot.slane %v9820, 6
      %v9823 = vor.u32 %v9819, %v9822
      %v9824 = vrot.slane %v9823, 4
      %v9826 = vshrl.u32 %v9743, 16
      %v9828 = vrot.slane %v9826, 5
      %v9829 = vshll.u32 %v9743, 16
      %v9831 = vrot.slane %v9829, 6
      %v9832 = vor.u32 %v9828, %v9831
      %v9833 = vsel %vm723, %v9824, %v9832
      %v9834 = vrot.slane %v9832, 4
      %v9836 = vshrl.u32 %v9744, 16
      %v9838 = vrot.slane %v9836, 5
      %v9839 = vshll.u32 %v9744, 16
      %v9841 = vrot.slane %v9839, 6
      %v9842 = vor.u32 %v9838, %v9841
      %v9843 = vsel %vm723, %v9834, %v9842
      %v9845 = vshrl.u32 %v9745, 16
      %v9847 = vrot.slane %v9845, 5
      %v9848 = vshll.u32 %v9745, 16
      %v9850 = vrot.slane %v9848, 6
      %v9851 = vor.u32 %v9847, %v9850
      %v9852 = vrot.slane %v9851, 4
      %v9854 = vshrl.u32 %v9746, 16
      %v9856 = vrot.slane %v9854, 5
      %v9857 = vshll.u32 %v9746, 16
      %v9859 = vrot.slane %v9857, 6
      %v9860 = vor.u32 %v9856, %v9859
      %v9861 = vsel %vm723, %v9852, %v9860
      %v9862 = vrot.slane %v9860, 4
      %v9864 = vshrl.u32 %v9747, 16
      %v9866 = vrot.slane %v9864, 5
      %v9867 = vshll.u32 %v9747, 16
      %v9869 = vrot.slane %v9867, 6
      %v9870 = vor.u32 %v9866, %v9869
      %v9871 = vsel %vm723, %v9862, %v9870
      %v9873 = vshrl.u32 %v9748, 16
      %v9875 = vrot.slane %v9873, 5
      %v9876 = vshll.u32 %v9748, 16
      %v9878 = vrot.slane %v9876, 6
      %v9879 = vor.u32 %v9875, %v9878
      %v9880 = vrot.slane %v9879, 4
      %v9882 = vshrl.u32 %v9749, 16
      %v9884 = vrot.slane %v9882, 5
      %v9885 = vshll.u32 %v9749, 16
      %v9887 = vrot.slane %v9885, 6
      %v9888 = vor.u32 %v9884, %v9887
      %v9889 = vsel %vm723, %v9880, %v9888
      %v9890 = vrot.slane %v9888, 4
      %v9892 = vshrl.u32 %v9750, 16
      %v9894 = vrot.slane %v9892, 5
      %v9895 = vshll.u32 %v9750, 16
      %v9897 = vrot.slane %v9895, 6
      %v9898 = vor.u32 %v9894, %v9897
      %v9899 = vsel %vm723, %v9890, %v9898
      %v9901 = vshrl.u32 %v9751, 16
      %v9903 = vrot.slane %v9901, 5
      %v9904 = vshll.u32 %v9751, 16
      %v9906 = vrot.slane %v9904, 6
      %v9907 = vor.u32 %v9903, %v9906
      %v9908 = vrot.slane %v9907, 4
      %v9910 = vshrl.u32 %v9752, 16
      %v9912 = vrot.slane %v9910, 5
      %v9913 = vshll.u32 %v9752, 16
      %v9915 = vrot.slane %v9913, 6
      %v9916 = vor.u32 %v9912, %v9915
      %v9917 = vsel %vm723, %v9908, %v9916
      %v9918 = vrot.slane %v9916, 4
      %v9920 = vshrl.u32 %v9753, 16
      %v9922 = vrot.slane %v9920, 5
      %v9923 = vshll.u32 %v9753, 16
      %v9925 = vrot.slane %v9923, 6
      %v9926 = vor.u32 %v9922, %v9925
      %v9927 = vsel %vm723, %v9918, %v9926
      %v9929 = vshrl.u32 %v9754, 16
      %v9931 = vrot.slane %v9929, 5
      %v9932 = vshll.u32 %v9754, 16
      %v9934 = vrot.slane %v9932, 6
      %v9935 = vor.u32 %v9931, %v9934
      %v9936 = vrot.slane %v9935, 4
      %v9938 = vshrl.u32 %v9755, 16
      %v9940 = vrot.slane %v9938, 5
      %v9941 = vshll.u32 %v9755, 16
      %v9943 = vrot.slane %v9941, 6
      %v9944 = vor.u32 %v9940, %v9943
      %v9945 = vsel %vm723, %v9936, %v9944
      %v9946 = vrot.slane %v9944, 4
      %v9948 = vshrl.u32 %v9756, 16
      %v9950 = vrot.slane %v9948, 5
      %v9951 = vshll.u32 %v9756, 16
      %v9953 = vrot.slane %v9951, 6
      %v9954 = vor.u32 %v9950, %v9953
      %v9955 = vsel %vm723, %v9946, %v9954
      %v9957 = vshrl.u32 %v9757, 16
      %v9959 = vrot.slane %v9957, 5
      %v9960 = vshll.u32 %v9757, 16
      %v9962 = vrot.slane %v9960, 6
      %v9963 = vor.u32 %v9959, %v9962
      %v9964 = vrot.slane %v9963, 4
      %v9966 = vshrl.u32 %v9758, 16
      %v9968 = vrot.slane %v9966, 5
      %v9969 = vshll.u32 %v9758, 16
      %v9971 = vrot.slane %v9969, 6
      %v9972 = vor.u32 %v9968, %v9971
      %v9973 = vsel %vm723, %v9964, %v9972
      %v9974 = vrot.slane %v9972, 4
      %v9976 = vshrl.u32 %v9759, 16
      %v9978 = vrot.slane %v9976, 5
      %v9979 = vshll.u32 %v9759, 16
      %v9981 = vrot.slane %v9979, 6
      %v9982 = vor.u32 %v9978, %v9981
      %v9983 = vsel %vm723, %v9974, %v9982
      %9984 = vrot.lane.b32.xlu0 %v9777, 52
      %v9985 = vpop.permute.xlu0 %9984
      %9986 = vrot.lane.b32.xlu0 %v9787, 52
      %v9987 = vpop.permute.xlu0 %9986
      %9988 = vrot.lane.b32.xlu0 %v9805, 52
      %v9989 = vpop.permute.xlu0 %9988
      %9990 = vrot.lane.b32.xlu0 %v9815, 52
      %v9991 = vpop.permute.xlu0 %9990
      %9992 = vrot.lane.b32.xlu0 %v9833, 52
      %v9993 = vpop.permute.xlu0 %9992
      %9994 = vrot.lane.b32.xlu0 %v9843, 52
      %v9995 = vpop.permute.xlu0 %9994
      %9996 = vrot.lane.b32.xlu0 %v9861, 52
      %v9997 = vpop.permute.xlu0 %9996
      %9998 = vrot.lane.b32.xlu0 %v9871, 52
      %v9999 = vpop.permute.xlu0 %9998
      %10000 = vrot.lane.b32.xlu0 %v9889, 52
      %v10001 = vpop.permute.xlu0 %10000
      %10002 = vrot.lane.b32.xlu0 %v9899, 52
      %v10003 = vpop.permute.xlu0 %10002
      %10004 = vrot.lane.b32.xlu0 %v9917, 52
      %v10005 = vpop.permute.xlu0 %10004
      %10006 = vrot.lane.b32.xlu0 %v9927, 52
      %v10007 = vpop.permute.xlu0 %10006
      %10008 = vrot.lane.b32.xlu0 %v9945, 52
      %v10009 = vpop.permute.xlu0 %10008
      %10010 = vrot.lane.b32.xlu0 %v9955, 52
      %v10011 = vpop.permute.xlu0 %10010
      %10012 = vrot.lane.b32.xlu0 %v9973, 52
      %v10013 = vpop.permute.xlu0 %10012
      %10014 = vrot.lane.b32.xlu0 %v9983, 52
      %v10015 = vpop.permute.xlu0 %10014
      %10032 = vst.msk [vmem:[#allocation2 + $0x4] sm:$0xf] %vm3168, %v9985
      %10033 = vst.msk [vmem:[#allocation2 + $0xc] sm:$0xf] %vm3168, %v9987
      %10034 = vst.msk [vmem:[#allocation2 + $0x14] sm:$0xf] %vm3168, %v9989
      %10035 = vst.msk [vmem:[#allocation2 + $0x1c] sm:$0xf] %vm3168, %v9991
      %10036 = vst.msk [vmem:[#allocation2 + $0x24] sm:$0xf] %vm3168, %v9993
      %10037 = vst.msk [vmem:[#allocation2 + $0x2c] sm:$0xf] %vm3168, %v9995
      %10038 = vst.msk [vmem:[#allocation2 + $0x34] sm:$0xf] %vm3168, %v9997
      %10039 = vst.msk [vmem:[#allocation2 + $0x3c] sm:$0xf] %vm3168, %v9999
      %10040 = vst.msk [vmem:[#allocation2 + $0x44] sm:$0xf] %vm3168, %v10001
      %10041 = vst.msk [vmem:[#allocation2 + $0x4c] sm:$0xf] %vm3168, %v10003
      %10042 = vst.msk [vmem:[#allocation2 + $0x54] sm:$0xf] %vm3168, %v10005
      %10043 = vst.msk [vmem:[#allocation2 + $0x5c] sm:$0xf] %vm3168, %v10007
      %10044 = vst.msk [vmem:[#allocation2 + $0x64] sm:$0xf] %vm3168, %v10009
      %10045 = vst.msk [vmem:[#allocation2 + $0x6c] sm:$0xf] %vm3168, %v10011
      %10046 = vst.msk [vmem:[#allocation2 + $0x74] sm:$0xf] %vm3168, %v10013
      %10047 = vst.msk [vmem:[#allocation2 + $0x7c] sm:$0xf] %vm3168, %v10015
      %v10048 = vld [vmem:[%s9191] sm:$0xc]
      %v10049 = vld [vmem:[%s9191 + $0x4] sm:$0xf]
      %v10050 = vld [vmem:[%s9191 + $0x8] sm:$0x3]
      %v10051 = vld [vmem:[%s9191 + $0xc] sm:$0xc]
      %v10052 = vld [vmem:[%s9191 + $0x10] sm:$0xf]
      %v10053 = vld [vmem:[%s9191 + $0x14] sm:$0x3]
      %v10054 = vld [vmem:[%s9191 + $0x18] sm:$0xc]
      %v10055 = vld [vmem:[%s9191 + $0x1c] sm:$0xf]
      %v10056 = vld [vmem:[%s9191 + $0x20] sm:$0x3]
      %v10057 = vld [vmem:[%s9191 + $0x24] sm:$0xc]
      %v10058 = vld [vmem:[%s9191 + $0x28] sm:$0xf]
      %v10059 = vld [vmem:[%s9191 + $0x2c] sm:$0x3]
      %v10060 = vld [vmem:[%s9191 + $0x30] sm:$0xc]
      %v10061 = vld [vmem:[%s9191 + $0x34] sm:$0xf]
      %v10062 = vld [vmem:[%s9191 + $0x38] sm:$0x3]
      %v10063 = vld [vmem:[%s9191 + $0x3c] sm:$0xc]
      %v10064 = vld [vmem:[%s9191 + $0x40] sm:$0xf]
      %v10065 = vld [vmem:[%s9191 + $0x44] sm:$0x3]
      %v10066 = vld [vmem:[%s9191 + $0x48] sm:$0xc]
      %v10067 = vld [vmem:[%s9191 + $0x4c] sm:$0xf]
      %v10068 = vld [vmem:[%s9191 + $0x50] sm:$0x3]
      %v10069 = vld [vmem:[%s9191 + $0x54] sm:$0xc]
      %v10070 = vld [vmem:[%s9191 + $0x58] sm:$0xf]
      %v10071 = vld [vmem:[%s9191 + $0x5c] sm:$0x3]
      %v10096 = vrot.slane %v10048, 6
      %v10097 = vrot.slane %v10096, 4
      %v10098 = vrot.slane %v10049, 6
      %v10099 = vsel %vm1063, %v10097, %v10098
      %v10100 = vrot.slane %v10098, 4
      %v10101 = vrot.slane %v10050, 6
      %v10102 = vsel %vm1063, %v10100, %v10101
      %v10103 = vrot.slane %v10051, 6
      %v10104 = vrot.slane %v10103, 4
      %v10105 = vrot.slane %v10052, 6
      %v10106 = vsel %vm1063, %v10104, %v10105
      %v10107 = vrot.slane %v10105, 4
      %v10108 = vrot.slane %v10053, 6
      %v10109 = vsel %vm1063, %v10107, %v10108
      %v10110 = vrot.slane %v10054, 6
      %v10111 = vrot.slane %v10110, 4
      %v10112 = vrot.slane %v10055, 6
      %v10113 = vsel %vm1063, %v10111, %v10112
      %v10114 = vrot.slane %v10112, 4
      %v10115 = vrot.slane %v10056, 6
      %v10116 = vsel %vm1063, %v10114, %v10115
      %v10117 = vrot.slane %v10057, 6
      %v10118 = vrot.slane %v10117, 4
      %v10119 = vrot.slane %v10058, 6
      %v10120 = vsel %vm1063, %v10118, %v10119
      %v10121 = vrot.slane %v10119, 4
      %v10122 = vrot.slane %v10059, 6
      %v10123 = vsel %vm1063, %v10121, %v10122
      %v10124 = vrot.slane %v10060, 6
      %v10125 = vrot.slane %v10124, 4
      %v10126 = vrot.slane %v10061, 6
      %v10127 = vsel %vm1063, %v10125, %v10126
      %v10128 = vrot.slane %v10126, 4
      %v10129 = vrot.slane %v10062, 6
      %v10130 = vsel %vm1063, %v10128, %v10129
      %v10131 = vrot.slane %v10063, 6
      %v10132 = vrot.slane %v10131, 4
      %v10133 = vrot.slane %v10064, 6
      %v10134 = vsel %vm1063, %v10132, %v10133
      %v10135 = vrot.slane %v10133, 4
      %v10136 = vrot.slane %v10065, 6
      %v10137 = vsel %vm1063, %v10135, %v10136
      %v10138 = vrot.slane %v10066, 6
      %v10139 = vrot.slane %v10138, 4
      %v10140 = vrot.slane %v10067, 6
      %v10141 = vsel %vm1063, %v10139, %v10140
      %v10142 = vrot.slane %v10140, 4
      %v10143 = vrot.slane %v10068, 6
      %v10144 = vsel %vm1063, %v10142, %v10143
      %v10145 = vrot.slane %v10069, 6
      %v10146 = vrot.slane %v10145, 4
      %v10147 = vrot.slane %v10070, 6
      %v10148 = vsel %vm1063, %v10146, %v10147
      %v10149 = vrot.slane %v10147, 4
      %v10150 = vrot.slane %v10071, 6
      %v10151 = vsel %vm1063, %v10149, %v10150
      %10152 = vrot.lane.b32.xlu0 %v10099, 56
      %v10153 = vpop.permute.xlu0 %10152
      %10154 = vrot.lane.b32.xlu0 %v10102, 56
      %v10155 = vpop.permute.xlu0 %10154
      %10156 = vrot.lane.b32.xlu0 %v10106, 56
      %v10157 = vpop.permute.xlu0 %10156
      %10158 = vrot.lane.b32.xlu0 %v10109, 56
      %v10159 = vpop.permute.xlu0 %10158
      %10160 = vrot.lane.b32.xlu0 %v10113, 56
      %v10161 = vpop.permute.xlu0 %10160
      %10162 = vrot.lane.b32.xlu0 %v10116, 56
      %v10163 = vpop.permute.xlu0 %10162
      %10164 = vrot.lane.b32.xlu0 %v10120, 56
      %v10165 = vpop.permute.xlu0 %10164
      %10166 = vrot.lane.b32.xlu0 %v10123, 56
      %v10167 = vpop.permute.xlu0 %10166
      %10168 = vrot.lane.b32.xlu0 %v10127, 56
      %v10169 = vpop.permute.xlu0 %10168
      %10170 = vrot.lane.b32.xlu0 %v10130, 56
      %v10171 = vpop.permute.xlu0 %10170
      %10172 = vrot.lane.b32.xlu0 %v10134, 56
      %v10173 = vpop.permute.xlu0 %10172
      %10174 = vrot.lane.b32.xlu0 %v10137, 56
      %v10175 = vpop.permute.xlu0 %10174
      %10176 = vrot.lane.b32.xlu0 %v10141, 56
      %v10177 = vpop.permute.xlu0 %10176
      %10178 = vrot.lane.b32.xlu0 %v10144, 56
      %v10179 = vpop.permute.xlu0 %10178
      %10180 = vrot.lane.b32.xlu0 %v10148, 56
      %v10181 = vpop.permute.xlu0 %10180
      %10182 = vrot.lane.b32.xlu0 %v10151, 56
      %v10183 = vpop.permute.xlu0 %10182
      %10200 = vst.msk [vmem:[#allocation2 + $0x4] sm:$0xf] %vm3266, %v10153
      %10201 = vst.msk [vmem:[#allocation2 + $0xc] sm:$0xf] %vm3266, %v10155
      %10202 = vst.msk [vmem:[#allocation2 + $0x14] sm:$0xf] %vm3266, %v10157
      %10203 = vst.msk [vmem:[#allocation2 + $0x1c] sm:$0xf] %vm3266, %v10159
      %10204 = vst.msk [vmem:[#allocation2 + $0x24] sm:$0xf] %vm3266, %v10161
      %10205 = vst.msk [vmem:[#allocation2 + $0x2c] sm:$0xf] %vm3266, %v10163
      %10206 = vst.msk [vmem:[#allocation2 + $0x34] sm:$0xf] %vm3266, %v10165
      %10207 = vst.msk [vmem:[#allocation2 + $0x3c] sm:$0xf] %vm3266, %v10167
      %10208 = vst.msk [vmem:[#allocation2 + $0x44] sm:$0xf] %vm3266, %v10169
      %10209 = vst.msk [vmem:[#allocation2 + $0x4c] sm:$0xf] %vm3266, %v10171
      %10210 = vst.msk [vmem:[#allocation2 + $0x54] sm:$0xf] %vm3266, %v10173
      %10211 = vst.msk [vmem:[#allocation2 + $0x5c] sm:$0xf] %vm3266, %v10175
      %10212 = vst.msk [vmem:[#allocation2 + $0x64] sm:$0xf] %vm3266, %v10177
      %10213 = vst.msk [vmem:[#allocation2 + $0x6c] sm:$0xf] %vm3266, %v10179
      %10214 = vst.msk [vmem:[#allocation2 + $0x74] sm:$0xf] %vm3266, %v10181
      %10215 = vst.msk [vmem:[#allocation2 + $0x7c] sm:$0xf] %vm3266, %v10183
      %v10216 = vld [vmem:[%s9191] sm:$0xc]
      %v10217 = vld [vmem:[%s9191 + $0x4] sm:$0xf]
      %v10218 = vld [vmem:[%s9191 + $0x8] sm:$0x7]
      %v10219 = vld [vmem:[%s9191 + $0xc] sm:$0xc]
      %v10220 = vld [vmem:[%s9191 + $0x10] sm:$0xf]
      %v10221 = vld [vmem:[%s9191 + $0x14] sm:$0x7]
      %v10222 = vld [vmem:[%s9191 + $0x18] sm:$0xc]
      %v10223 = vld [vmem:[%s9191 + $0x1c] sm:$0xf]
      %v10224 = vld [vmem:[%s9191 + $0x20] sm:$0x7]
      %v10225 = vld [vmem:[%s9191 + $0x24] sm:$0xc]
      %v10226 = vld [vmem:[%s9191 + $0x28] sm:$0xf]
      %v10227 = vld [vmem:[%s9191 + $0x2c] sm:$0x7]
      %v10228 = vld [vmem:[%s9191 + $0x30] sm:$0xc]
      %v10229 = vld [vmem:[%s9191 + $0x34] sm:$0xf]
      %v10230 = vld [vmem:[%s9191 + $0x38] sm:$0x7]
      %v10231 = vld [vmem:[%s9191 + $0x3c] sm:$0xc]
      %v10232 = vld [vmem:[%s9191 + $0x40] sm:$0xf]
      %v10233 = vld [vmem:[%s9191 + $0x44] sm:$0x7]
      %v10234 = vld [vmem:[%s9191 + $0x48] sm:$0xc]
      %v10235 = vld [vmem:[%s9191 + $0x4c] sm:$0xf]
      %v10236 = vld [vmem:[%s9191 + $0x50] sm:$0x7]
      %v10237 = vld [vmem:[%s9191 + $0x54] sm:$0xc]
      %v10238 = vld [vmem:[%s9191 + $0x58] sm:$0xf]
      %v10239 = vld [vmem:[%s9191 + $0x5c] sm:$0x7]
      %v10241 = vshrl.u32 %v10216, 16
      %v10243 = vrot.slane %v10241, 6
      %v10244 = vshll.u32 %v10216, 16
      %v10246 = vrot.slane %v10244, 7
      %v10247 = vor.u32 %v10243, %v10246
      %v10248 = vrot.slane %v10247, 4
      %v10250 = vshrl.u32 %v10217, 16
      %v10252 = vrot.slane %v10250, 6
      %v10253 = vshll.u32 %v10217, 16
      %v10255 = vrot.slane %v10253, 7
      %v10256 = vor.u32 %v10252, %v10255
      %v10257 = vsel %vm1211, %v10248, %v10256
      %v10258 = vrot.slane %v10256, 4
      %v10260 = vshrl.u32 %v10218, 16
      %v10262 = vrot.slane %v10260, 6
      %v10263 = vshll.u32 %v10218, 16
      %v10265 = vrot.slane %v10263, 7
      %v10266 = vor.u32 %v10262, %v10265
      %v10267 = vsel %vm1211, %v10258, %v10266
      %v10269 = vshrl.u32 %v10219, 16
      %v10271 = vrot.slane %v10269, 6
      %v10272 = vshll.u32 %v10219, 16
      %v10274 = vrot.slane %v10272, 7
      %v10275 = vor.u32 %v10271, %v10274
      %v10276 = vrot.slane %v10275, 4
      %v10278 = vshrl.u32 %v10220, 16
      %v10280 = vrot.slane %v10278, 6
      %v10281 = vshll.u32 %v10220, 16
      %v10283 = vrot.slane %v10281, 7
      %v10284 = vor.u32 %v10280, %v10283
      %v10285 = vsel %vm1211, %v10276, %v10284
      %v10286 = vrot.slane %v10284, 4
      %v10288 = vshrl.u32 %v10221, 16
      %v10290 = vrot.slane %v10288, 6
      %v10291 = vshll.u32 %v10221, 16
      %v10293 = vrot.slane %v10291, 7
      %v10294 = vor.u32 %v10290, %v10293
      %v10295 = vsel %vm1211, %v10286, %v10294
      %v10297 = vshrl.u32 %v10222, 16
      %v10299 = vrot.slane %v10297, 6
      %v10300 = vshll.u32 %v10222, 16
      %v10302 = vrot.slane %v10300, 7
      %v10303 = vor.u32 %v10299, %v10302
      %v10304 = vrot.slane %v10303, 4
      %v10306 = vshrl.u32 %v10223, 16
      %v10308 = vrot.slane %v10306, 6
      %v10309 = vshll.u32 %v10223, 16
      %v10311 = vrot.slane %v10309, 7
      %v10312 = vor.u32 %v10308, %v10311
      %v10313 = vsel %vm1211, %v10304, %v10312
      %v10314 = vrot.slane %v10312, 4
      %v10316 = vshrl.u32 %v10224, 16
      %v10318 = vrot.slane %v10316, 6
      %v10319 = vshll.u32 %v10224, 16
      %v10321 = vrot.slane %v10319, 7
      %v10322 = vor.u32 %v10318, %v10321
      %v10323 = vsel %vm1211, %v10314, %v10322
      %v10325 = vshrl.u32 %v10225, 16
      %v10327 = vrot.slane %v10325, 6
      %v10328 = vshll.u32 %v10225, 16
      %v10330 = vrot.slane %v10328, 7
      %v10331 = vor.u32 %v10327, %v10330
      %v10332 = vrot.slane %v10331, 4
      %v10334 = vshrl.u32 %v10226, 16
      %v10336 = vrot.slane %v10334, 6
      %v10337 = vshll.u32 %v10226, 16
      %v10339 = vrot.slane %v10337, 7
      %v10340 = vor.u32 %v10336, %v10339
      %v10341 = vsel %vm1211, %v10332, %v10340
      %v10342 = vrot.slane %v10340, 4
      %v10344 = vshrl.u32 %v10227, 16
      %v10346 = vrot.slane %v10344, 6
      %v10347 = vshll.u32 %v10227, 16
      %v10349 = vrot.slane %v10347, 7
      %v10350 = vor.u32 %v10346, %v10349
      %v10351 = vsel %vm1211, %v10342, %v10350
      %v10353 = vshrl.u32 %v10228, 16
      %v10355 = vrot.slane %v10353, 6
      %v10356 = vshll.u32 %v10228, 16
      %v10358 = vrot.slane %v10356, 7
      %v10359 = vor.u32 %v10355, %v10358
      %v10360 = vrot.slane %v10359, 4
      %v10362 = vshrl.u32 %v10229, 16
      %v10364 = vrot.slane %v10362, 6
      %v10365 = vshll.u32 %v10229, 16
      %v10367 = vrot.slane %v10365, 7
      %v10368 = vor.u32 %v10364, %v10367
      %v10369 = vsel %vm1211, %v10360, %v10368
      %v10370 = vrot.slane %v10368, 4
      %v10372 = vshrl.u32 %v10230, 16
      %v10374 = vrot.slane %v10372, 6
      %v10375 = vshll.u32 %v10230, 16
      %v10377 = vrot.slane %v10375, 7
      %v10378 = vor.u32 %v10374, %v10377
      %v10379 = vsel %vm1211, %v10370, %v10378
      %v10381 = vshrl.u32 %v10231, 16
      %v10383 = vrot.slane %v10381, 6
      %v10384 = vshll.u32 %v10231, 16
      %v10386 = vrot.slane %v10384, 7
      %v10387 = vor.u32 %v10383, %v10386
      %v10388 = vrot.slane %v10387, 4
      %v10390 = vshrl.u32 %v10232, 16
      %v10392 = vrot.slane %v10390, 6
      %v10393 = vshll.u32 %v10232, 16
      %v10395 = vrot.slane %v10393, 7
      %v10396 = vor.u32 %v10392, %v10395
      %v10397 = vsel %vm1211, %v10388, %v10396
      %v10398 = vrot.slane %v10396, 4
      %v10400 = vshrl.u32 %v10233, 16
      %v10402 = vrot.slane %v10400, 6
      %v10403 = vshll.u32 %v10233, 16
      %v10405 = vrot.slane %v10403, 7
      %v10406 = vor.u32 %v10402, %v10405
      %v10407 = vsel %vm1211, %v10398, %v10406
      %v10409 = vshrl.u32 %v10234, 16
      %v10411 = vrot.slane %v10409, 6
      %v10412 = vshll.u32 %v10234, 16
      %v10414 = vrot.slane %v10412, 7
      %v10415 = vor.u32 %v10411, %v10414
      %v10416 = vrot.slane %v10415, 4
      %v10418 = vshrl.u32 %v10235, 16
      %v10420 = vrot.slane %v10418, 6
      %v10421 = vshll.u32 %v10235, 16
      %v10423 = vrot.slane %v10421, 7
      %v10424 = vor.u32 %v10420, %v10423
      %v10425 = vsel %vm1211, %v10416, %v10424
      %v10426 = vrot.slane %v10424, 4
      %v10428 = vshrl.u32 %v10236, 16
      %v10430 = vrot.slane %v10428, 6
      %v10431 = vshll.u32 %v10236, 16
      %v10433 = vrot.slane %v10431, 7
      %v10434 = vor.u32 %v10430, %v10433
      %v10435 = vsel %vm1211, %v10426, %v10434
      %v10437 = vshrl.u32 %v10237, 16
      %v10439 = vrot.slane %v10437, 6
      %v10440 = vshll.u32 %v10237, 16
      %v10442 = vrot.slane %v10440, 7
      %v10443 = vor.u32 %v10439, %v10442
      %v10444 = vrot.slane %v10443, 4
      %v10446 = vshrl.u32 %v10238, 16
      %v10448 = vrot.slane %v10446, 6
      %v10449 = vshll.u32 %v10238, 16
      %v10451 = vrot.slane %v10449, 7
      %v10452 = vor.u32 %v10448, %v10451
      %v10453 = vsel %vm1211, %v10444, %v10452
      %v10454 = vrot.slane %v10452, 4
      %v10456 = vshrl.u32 %v10239, 16
      %v10458 = vrot.slane %v10456, 6
      %v10459 = vshll.u32 %v10239, 16
      %v10461 = vrot.slane %v10459, 7
      %v10462 = vor.u32 %v10458, %v10461
      %v10463 = vsel %vm1211, %v10454, %v10462
      %10464 = vrot.lane.b32.xlu0 %v10257, 60
      %v10465 = vpop.permute.xlu0 %10464
      %10466 = vrot.lane.b32.xlu0 %v10267, 60
      %v10467 = vpop.permute.xlu0 %10466
      %10468 = vrot.lane.b32.xlu0 %v10285, 60
      %v10469 = vpop.permute.xlu0 %10468
      %10470 = vrot.lane.b32.xlu0 %v10295, 60
      %v10471 = vpop.permute.xlu0 %10470
      %10472 = vrot.lane.b32.xlu0 %v10313, 60
      %v10473 = vpop.permute.xlu0 %10472
      %10474 = vrot.lane.b32.xlu0 %v10323, 60
      %v10475 = vpop.permute.xlu0 %10474
      %10476 = vrot.lane.b32.xlu0 %v10341, 60
      %v10477 = vpop.permute.xlu0 %10476
      %10478 = vrot.lane.b32.xlu0 %v10351, 60
      %v10479 = vpop.permute.xlu0 %10478
      %10480 = vrot.lane.b32.xlu0 %v10369, 60
      %v10481 = vpop.permute.xlu0 %10480
      %10482 = vrot.lane.b32.xlu0 %v10379, 60
      %v10483 = vpop.permute.xlu0 %10482
      %10484 = vrot.lane.b32.xlu0 %v10397, 60
      %v10485 = vpop.permute.xlu0 %10484
      %10486 = vrot.lane.b32.xlu0 %v10407, 60
      %v10487 = vpop.permute.xlu0 %10486
      %10488 = vrot.lane.b32.xlu0 %v10425, 60
      %v10489 = vpop.permute.xlu0 %10488
      %10490 = vrot.lane.b32.xlu0 %v10435, 60
      %v10491 = vpop.permute.xlu0 %10490
      %10492 = vrot.lane.b32.xlu0 %v10453, 60
      %v10493 = vpop.permute.xlu0 %10492
      %10494 = vrot.lane.b32.xlu0 %v10463, 60
      %v10495 = vpop.permute.xlu0 %10494
      %10512 = vst.msk [vmem:[#allocation2 + $0x4] sm:$0xf] %vm3547, %v10465
      %10513 = vst.msk [vmem:[#allocation2 + $0xc] sm:$0xf] %vm3547, %v10467
      %10514 = vst.msk [vmem:[#allocation2 + $0x14] sm:$0xf] %vm3547, %v10469
      %10515 = vst.msk [vmem:[#allocation2 + $0x1c] sm:$0xf] %vm3547, %v10471
      %10516 = vst.msk [vmem:[#allocation2 + $0x24] sm:$0xf] %vm3547, %v10473
      %10517 = vst.msk [vmem:[#allocation2 + $0x2c] sm:$0xf] %vm3547, %v10475
      %10518 = vst.msk [vmem:[#allocation2 + $0x34] sm:$0xf] %vm3547, %v10477
      %10519 = vst.msk [vmem:[#allocation2 + $0x3c] sm:$0xf] %vm3547, %v10479
      %10520 = vst.msk [vmem:[#allocation2 + $0x44] sm:$0xf] %vm3547, %v10481
      %10521 = vst.msk [vmem:[#allocation2 + $0x4c] sm:$0xf] %vm3547, %v10483
      %10522 = vst.msk [vmem:[#allocation2 + $0x54] sm:$0xf] %vm3547, %v10485
      %10523 = vst.msk [vmem:[#allocation2 + $0x5c] sm:$0xf] %vm3547, %v10487
      %10524 = vst.msk [vmem:[#allocation2 + $0x64] sm:$0xf] %vm3547, %v10489
      %10525 = vst.msk [vmem:[#allocation2 + $0x6c] sm:$0xf] %vm3547, %v10491
      %10526 = vst.msk [vmem:[#allocation2 + $0x74] sm:$0xf] %vm3547, %v10493
      %10527 = vst.msk [vmem:[#allocation2 + $0x7c] sm:$0xf] %vm3547, %v10495
      %v10528 = vld [vmem:[%s9191] sm:$0x8]
      %v10529 = vld [vmem:[%s9191 + $0x4] sm:$0xf]
      %v10530 = vld [vmem:[%s9191 + $0x8] sm:$0x7]
      %v10531 = vld [vmem:[%s9191 + $0xc] sm:$0x8]
      %v10532 = vld [vmem:[%s9191 + $0x10] sm:$0xf]
      %v10533 = vld [vmem:[%s9191 + $0x14] sm:$0x7]
      %v10534 = vld [vmem:[%s9191 + $0x18] sm:$0x8]
      %v10535 = vld [vmem:[%s9191 + $0x1c] sm:$0xf]
      %v10536 = vld [vmem:[%s9191 + $0x20] sm:$0x7]
      %v10537 = vld [vmem:[%s9191 + $0x24] sm:$0x8]
      %v10538 = vld [vmem:[%s9191 + $0x28] sm:$0xf]
      %v10539 = vld [vmem:[%s9191 + $0x2c] sm:$0x7]
      %v10540 = vld [vmem:[%s9191 + $0x30] sm:$0x8]
      %v10541 = vld [vmem:[%s9191 + $0x34] sm:$0xf]
      %v10542 = vld [vmem:[%s9191 + $0x38] sm:$0x7]
      %v10543 = vld [vmem:[%s9191 + $0x3c] sm:$0x8]
      %v10544 = vld [vmem:[%s9191 + $0x40] sm:$0xf]
      %v10545 = vld [vmem:[%s9191 + $0x44] sm:$0x7]
      %v10546 = vld [vmem:[%s9191 + $0x48] sm:$0x8]
      %v10547 = vld [vmem:[%s9191 + $0x4c] sm:$0xf]
      %v10548 = vld [vmem:[%s9191 + $0x50] sm:$0x7]
      %v10549 = vld [vmem:[%s9191 + $0x54] sm:$0x8]
      %v10550 = vld [vmem:[%s9191 + $0x58] sm:$0xf]
      %v10551 = vld [vmem:[%s9191 + $0x5c] sm:$0x7]
      %v10576 = vrot.slane %v10528, 7
      %v10577 = vrot.slane %v10576, 4
      %v10578 = vrot.slane %v10529, 7
      %v10579 = vsel %vm1551, %v10577, %v10578
      %v10580 = vrot.slane %v10578, 4
      %v10581 = vrot.slane %v10530, 7
      %v10582 = vsel %vm1551, %v10580, %v10581
      %v10583 = vrot.slane %v10531, 7
      %v10584 = vrot.slane %v10583, 4
      %v10585 = vrot.slane %v10532, 7
      %v10586 = vsel %vm1551, %v10584, %v10585
      %v10587 = vrot.slane %v10585, 4
      %v10588 = vrot.slane %v10533, 7
      %v10589 = vsel %vm1551, %v10587, %v10588
      %v10590 = vrot.slane %v10534, 7
      %v10591 = vrot.slane %v10590, 4
      %v10592 = vrot.slane %v10535, 7
      %v10593 = vsel %vm1551, %v10591, %v10592
      %v10594 = vrot.slane %v10592, 4
      %v10595 = vrot.slane %v10536, 7
      %v10596 = vsel %vm1551, %v10594, %v10595
      %v10597 = vrot.slane %v10537, 7
      %v10598 = vrot.slane %v10597, 4
      %v10599 = vrot.slane %v10538, 7
      %v10600 = vsel %vm1551, %v10598, %v10599
      %v10601 = vrot.slane %v10599, 4
      %v10602 = vrot.slane %v10539, 7
      %v10603 = vsel %vm1551, %v10601, %v10602
      %v10604 = vrot.slane %v10540, 7
      %v10605 = vrot.slane %v10604, 4
      %v10606 = vrot.slane %v10541, 7
      %v10607 = vsel %vm1551, %v10605, %v10606
      %v10608 = vrot.slane %v10606, 4
      %v10609 = vrot.slane %v10542, 7
      %v10610 = vsel %vm1551, %v10608, %v10609
      %v10611 = vrot.slane %v10543, 7
      %v10612 = vrot.slane %v10611, 4
      %v10613 = vrot.slane %v10544, 7
      %v10614 = vsel %vm1551, %v10612, %v10613
      %v10615 = vrot.slane %v10613, 4
      %v10616 = vrot.slane %v10545, 7
      %v10617 = vsel %vm1551, %v10615, %v10616
      %v10618 = vrot.slane %v10546, 7
      %v10619 = vrot.slane %v10618, 4
      %v10620 = vrot.slane %v10547, 7
      %v10621 = vsel %vm1551, %v10619, %v10620
      %v10622 = vrot.slane %v10620, 4
      %v10623 = vrot.slane %v10548, 7
      %v10624 = vsel %vm1551, %v10622, %v10623
      %v10625 = vrot.slane %v10549, 7
      %v10626 = vrot.slane %v10625, 4
      %v10627 = vrot.slane %v10550, 7
      %v10628 = vsel %vm1551, %v10626, %v10627
      %v10629 = vrot.slane %v10627, 4
      %v10630 = vrot.slane %v10551, 7
      %v10631 = vsel %vm1551, %v10629, %v10630
      %10632 = vrot.lane.b32.xlu0 %v10579, 64
      %v10633 = vpop.permute.xlu0 %10632
      %10634 = vrot.lane.b32.xlu0 %v10582, 64
      %v10635 = vpop.permute.xlu0 %10634
      %10636 = vrot.lane.b32.xlu0 %v10586, 64
      %v10637 = vpop.permute.xlu0 %10636
      %10638 = vrot.lane.b32.xlu0 %v10589, 64
      %v10639 = vpop.permute.xlu0 %10638
      %10640 = vrot.lane.b32.xlu0 %v10593, 64
      %v10641 = vpop.permute.xlu0 %10640
      %10642 = vrot.lane.b32.xlu0 %v10596, 64
      %v10643 = vpop.permute.xlu0 %10642
      %10644 = vrot.lane.b32.xlu0 %v10600, 64
      %v10645 = vpop.permute.xlu0 %10644
      %10646 = vrot.lane.b32.xlu0 %v10603, 64
      %v10647 = vpop.permute.xlu0 %10646
      %10648 = vrot.lane.b32.xlu0 %v10607, 64
      %v10649 = vpop.permute.xlu0 %10648
      %10650 = vrot.lane.b32.xlu0 %v10610, 64
      %v10651 = vpop.permute.xlu0 %10650
      %10652 = vrot.lane.b32.xlu0 %v10614, 64
      %v10653 = vpop.permute.xlu0 %10652
      %10654 = vrot.lane.b32.xlu0 %v10617, 64
      %v10655 = vpop.permute.xlu0 %10654
      %10656 = vrot.lane.b32.xlu0 %v10621, 64
      %v10657 = vpop.permute.xlu0 %10656
      %10658 = vrot.lane.b32.xlu0 %v10624, 64
      %v10659 = vpop.permute.xlu0 %10658
      %10660 = vrot.lane.b32.xlu0 %v10628, 64
      %v10661 = vpop.permute.xlu0 %10660
      %10662 = vrot.lane.b32.xlu0 %v10631, 64
      %v10663 = vpop.permute.xlu0 %10662
      %10680 = vst.msk [vmem:[#allocation2 + $0x4] sm:$0xf] %vm3716, %v10633
      %10681 = vst.msk [vmem:[#allocation2 + $0xc] sm:$0xf] %vm3716, %v10635
      %10682 = vst.msk [vmem:[#allocation2 + $0x14] sm:$0xf] %vm3716, %v10637
      %10683 = vst.msk [vmem:[#allocation2 + $0x1c] sm:$0xf] %vm3716, %v10639
      %10684 = vst.msk [vmem:[#allocation2 + $0x24] sm:$0xf] %vm3716, %v10641
      %10685 = vst.msk [vmem:[#allocation2 + $0x2c] sm:$0xf] %vm3716, %v10643
      %10686 = vst.msk [vmem:[#allocation2 + $0x34] sm:$0xf] %vm3716, %v10645
      %10687 = vst.msk [vmem:[#allocation2 + $0x3c] sm:$0xf] %vm3716, %v10647
      %10688 = vst.msk [vmem:[#allocation2 + $0x44] sm:$0xf] %vm3716, %v10649
      %10689 = vst.msk [vmem:[#allocation2 + $0x4c] sm:$0xf] %vm3716, %v10651
      %10690 = vst.msk [vmem:[#allocation2 + $0x54] sm:$0xf] %vm3716, %v10653
      %10691 = vst.msk [vmem:[#allocation2 + $0x5c] sm:$0xf] %vm3716, %v10655
      %10692 = vst.msk [vmem:[#allocation2 + $0x64] sm:$0xf] %vm3716, %v10657
      %10693 = vst.msk [vmem:[#allocation2 + $0x6c] sm:$0xf] %vm3716, %v10659
      %10694 = vst.msk [vmem:[#allocation2 + $0x74] sm:$0xf] %vm3716, %v10661
      %10695 = vst.msk [vmem:[#allocation2 + $0x7c] sm:$0xf] %vm3716, %v10663
      %v10696 = vld [vmem:[#allocation2] sm:$0xff]
      %v10697 = vld [vmem:[#allocation2 + $0x8] sm:$0xff]
      %v10698 = vld [vmem:[#allocation2 + $0x10] sm:$0xff]
      %v10699 = vld [vmem:[#allocation2 + $0x18] sm:$0xff]
      %v10700 = vld [vmem:[#allocation2 + $0x20] sm:$0xff]
      %v10701 = vld [vmem:[#allocation2 + $0x28] sm:$0xff]
      %v10702 = vld [vmem:[#allocation2 + $0x30] sm:$0xff]
      %v10703 = vld [vmem:[#allocation2 + $0x38] sm:$0xff]
      %v10704 = vld [vmem:[#allocation2 + $0x40] sm:$0xff]
      %v10705 = vld [vmem:[#allocation2 + $0x48] sm:$0xff]
      %v10706 = vld [vmem:[#allocation2 + $0x50] sm:$0xff]
      %v10707 = vld [vmem:[#allocation2 + $0x58] sm:$0xff]
      %v10708 = vld [vmem:[#allocation2 + $0x60] sm:$0xff]
      %v10709 = vld [vmem:[#allocation2 + $0x68] sm:$0xff]
      %v10710 = vld [vmem:[#allocation2 + $0x70] sm:$0xff]
      %v10711 = vld [vmem:[#allocation2 + $0x78] sm:$0xff]
      %v10712 = vld [vmem:[%s1] sm:$0xf]
      %v10713 = vld [vmem:[%s1 + $0x4] sm:$0xf]
      %v10714 = vld [vmem:[%s1 + $0x8] sm:$0xf]
      %v10715 = vld [vmem:[%s1 + $0xc] sm:$0xf]
      %v10716 = vld [vmem:[%s1 + $0x10] sm:$0xf]
      %v10717 = vld [vmem:[%s1 + $0x14] sm:$0xf]
      %v10718 = vld [vmem:[%s1 + $0x18] sm:$0xf]
      %v10719 = vld [vmem:[%s1 + $0x1c] sm:$0xf]
      %v10720 = vld [vmem:[%s1 + $0x20] sm:$0xf]
      %v10721 = vld [vmem:[%s1 + $0x24] sm:$0xf]
      %v10722 = vld [vmem:[%s1 + $0x28] sm:$0xf]
      %v10723 = vld [vmem:[%s1 + $0x2c] sm:$0xf]
      %v10724 = vld [vmem:[%s1 + $0x30] sm:$0xf]
      %v10725 = vld [vmem:[%s1 + $0x34] sm:$0xf]
      %v10726 = vld [vmem:[%s1 + $0x38] sm:$0xf]
      %v10727 = vld [vmem:[%s1 + $0x3c] sm:$0xf]
      %v10728 = vld [vmem:[%s1 + $0x40] sm:$0xf]
      %v10729 = vld [vmem:[%s1 + $0x44] sm:$0xf]
      %v10730 = vld [vmem:[%s1 + $0x48] sm:$0xf]
      %v10731 = vld [vmem:[%s1 + $0x4c] sm:$0xf]
      %v10732 = vld [vmem:[%s1 + $0x50] sm:$0xf]
      %v10733 = vld [vmem:[%s1 + $0x54] sm:$0xf]
      %v10734 = vld [vmem:[%s1 + $0x58] sm:$0xf]
      %v10735 = vld [vmem:[%s1 + $0x5c] sm:$0xf]
      %v10736 = vld [vmem:[%s1 + $0x60] sm:$0x3]
      %v10737 = vld [vmem:[%s2] sm:$0x1]
      %v10739 = vperm.slane %v10737, 0
      %v10757 = vunpack.c.l.b16 %v10696
      %v10758 = vunpack.c.h.b16 %v10696
      %v10759 = vunpack.c.l.b16 %v10697
      %v10760 = vunpack.c.h.b16 %v10697
      %v10761 = vunpack.c.l.b16 %v10698
      %v10762 = vunpack.c.h.b16 %v10698
      %v10763 = vunpack.c.l.b16 %v10699
      %v10764 = vunpack.c.h.b16 %v10699
      %v10765 = vunpack.c.l.b16 %v10700
      %v10766 = vunpack.c.h.b16 %v10700
      %v10767 = vunpack.c.l.b16 %v10701
      %v10768 = vunpack.c.h.b16 %v10701
      %v10769 = vunpack.c.l.b16 %v10702
      %v10770 = vunpack.c.h.b16 %v10702
      %v10771 = vunpack.c.l.b16 %v10703
      %v10772 = vunpack.c.h.b16 %v10703
      %v10773 = vunpack.c.l.b16 %v10704
      %v10774 = vunpack.c.h.b16 %v10704
      %v10775 = vunpack.c.l.b16 %v10705
      %v10776 = vunpack.c.h.b16 %v10705
      %v10777 = vunpack.c.l.b16 %v10706
      %v10778 = vunpack.c.h.b16 %v10706
      %v10779 = vunpack.c.l.b16 %v10707
      %v10780 = vunpack.c.h.b16 %v10707
      %v10781 = vunpack.c.l.b16 %v10708
      %v10782 = vunpack.c.h.b16 %v10708
      %v10783 = vunpack.c.l.b16 %v10709
      %v10784 = vunpack.c.h.b16 %v10709
      %v10785 = vunpack.c.l.b16 %v10710
      %v10786 = vunpack.c.h.b16 %v10710
      %v10787 = vunpack.c.l.b16 %v10711
      %v10788 = vunpack.c.h.b16 %v10711
      %v10789 = vpack.c.b16 %v10759, %v10757
      %v10790 = vpack.c.b16 %v10760, %v10758
      %v10791 = vpack.c.b16 %v10763, %v10761
      %v10792 = vpack.c.b16 %v10764, %v10762
      %v10793 = vpack.c.b16 %v10767, %v10765
      %v10794 = vpack.c.b16 %v10768, %v10766
      %v10795 = vpack.c.b16 %v10771, %v10769
      %v10796 = vpack.c.b16 %v10772, %v10770
      %v10797 = vpack.c.b16 %v10775, %v10773
      %v10798 = vpack.c.b16 %v10776, %v10774
      %v10799 = vpack.c.b16 %v10779, %v10777
      %v10800 = vpack.c.b16 %v10780, %v10778
      %v10801 = vpack.c.b16 %v10783, %v10781
      %v10802 = vpack.c.b16 %v10784, %v10782
      %v10803 = vpack.c.b16 %v10787, %v10785
      %v10804 = vpack.c.b16 %v10788, %v10786
      %v10838 = vunpack.c.l.b16 %v10712
      %v10839 = vunpack.c.l.b16 %v10713
      %v10840 = vunpack.c.l.b16 %v10714
      %v10841 = vunpack.c.l.b16 %v10715
      %v10842 = vunpack.c.l.b16 %v10716
      %v10843 = vunpack.c.l.b16 %v10717
      %v10844 = vunpack.c.l.b16 %v10718
      %v10845 = vunpack.c.l.b16 %v10719
      %v10846 = vunpack.c.l.b16 %v10720
      %v10847 = vunpack.c.l.b16 %v10721
      %v10848 = vunpack.c.l.b16 %v10722
      %v10849 = vunpack.c.l.b16 %v10723
      %v10850 = vunpack.c.l.b16 %v10724
      %v10851 = vunpack.c.l.b16 %v10725
      %v10852 = vunpack.c.l.b16 %v10726
      %v10853 = vunpack.c.l.b16 %v10727
      %v10854 = vunpack.c.l.b16 %v10728
      %v10855 = vunpack.c.l.b16 %v10729
      %v10856 = vunpack.c.l.b16 %v10730
      %v10857 = vunpack.c.l.b16 %v10731
      %v10858 = vunpack.c.l.b16 %v10732
      %v10859 = vunpack.c.l.b16 %v10733
      %v10860 = vunpack.c.l.b16 %v10734
      %v10861 = vunpack.c.l.b16 %v10735
      %v10862 = vunpack.c.l.b16 %v10736
      %v10863 = vpack.c.b16 %v10839, %v10838
      %v10864 = vpack.c.b16 %v10841, %v10840
      %v10865 = vpack.c.b16 %v10843, %v10842
      %v10866 = vpack.c.b16 %v10845, %v10844
      %v10867 = vpack.c.b16 %v10847, %v10846
      %v10868 = vpack.c.b16 %v10849, %v10848
      %v10869 = vpack.c.b16 %v10851, %v10850
      %v10870 = vpack.c.b16 %v10853, %v10852
      %v10871 = vpack.c.b16 %v10855, %v10854
      %v10872 = vpack.c.b16 %v10857, %v10856
      %v10873 = vpack.c.b16 %v10859, %v10858
      %v10874 = vpack.c.b16 %v10861, %v10860
      %v10875 = vpack.c.b16 %v10862, %v10862
      %vm10888 = vcmask 556032
      %v10890 = vsel %vm10888, %v10790, 0
      %v10893 = vsel %vm10888, %v10792, 0
      %v10896 = vsel %vm10888, %v10794, 0
      %v10899 = vsel %vm10888, %v10796, 0
      %v10902 = vsel %vm10888, %v10798, 0
      %v10905 = vsel %vm10888, %v10800, 0
      %v10908 = vsel %vm10888, %v10802, 0
      %v10911 = vsel %vm10888, %v10804, 0
      %vm10913 = vcmask 1041408
      %v10915 = vsel %vm10913, %v10875, 0
      %10917 = vmatpush.bf16.msra.mxu0 %v10870
      %10918 = vmatpush.bf16.msra.mxu0 %v10869
      %10919 = vmatpush.bf16.msra.mxu0 %v10868
      %10920 = vmatpush.bf16.msra.mxu0 %v10867
      %10921 = vmatpush.bf16.msra.mxu0 %v10866
      %10922 = vmatpush.bf16.msra.mxu0 %v10865
      %10923 = vmatpush.bf16.msra.mxu0 %v10864
      %10924 = vmatpush.bf16.msra.mxu0 %v10863
      %10925 = vmatmul.bf16.gmra.mxu0 %v10789
      %v10926 = vpop.f32.mrf.mxu0
      %v10927 = vadd.f32 %v10739, %v10926
      %v10928 = vpop.f32.mrf.mxu0
      %v10929 = vadd.f32 %v10739, %v10928
      %10930 = vmatmul.bf16.gmra.mxu0 %v10791
      %v10931 = vpop.f32.mrf.mxu0
      %v10932 = vadd.f32 %v10739, %v10931
      %v10933 = vpop.f32.mrf.mxu0
      %v10934 = vadd.f32 %v10739, %v10933
      %10935 = vmatmul.bf16.gmra.mxu0 %v10793
      %v10936 = vpop.f32.mrf.mxu0
      %v10937 = vadd.f32 %v10739, %v10936
      %v10938 = vpop.f32.mrf.mxu0
      %v10939 = vadd.f32 %v10739, %v10938
      %10940 = vmatmul.bf16.gmra.mxu0 %v10795
      %v10941 = vpop.f32.mrf.mxu0
      %v10942 = vadd.f32 %v10739, %v10941
      %v10943 = vpop.f32.mrf.mxu0
      %v10944 = vadd.f32 %v10739, %v10943
      %10945 = vmatmul.bf16.gmra.mxu0 %v10797
      %v10946 = vpop.f32.mrf.mxu0
      %v10947 = vadd.f32 %v10739, %v10946
      %v10948 = vpop.f32.mrf.mxu0
      %v10949 = vadd.f32 %v10739, %v10948
      %10950 = vmatmul.bf16.gmra.mxu0 %v10799
      %v10951 = vpop.f32.mrf.mxu0
      %v10952 = vadd.f32 %v10739, %v10951
      %v10953 = vpop.f32.mrf.mxu0
      %v10954 = vadd.f32 %v10739, %v10953
      %10955 = vmatmul.bf16.gmra.mxu0 %v10801
      %v10956 = vpop.f32.mrf.mxu0
      %v10957 = vadd.f32 %v10739, %v10956
      %v10958 = vpop.f32.mrf.mxu0
      %v10959 = vadd.f32 %v10739, %v10958
      %10960 = vmatmul.bf16.gmra.mxu0 %v10803
      %v10961 = vpop.f32.mrf.mxu0
      %v10962 = vadd.f32 %v10739, %v10961
      %v10963 = vpop.f32.mrf.mxu0
      %v10964 = vadd.f32 %v10739, %v10963
      %10965 = vdwg.mxu0
      %10966 = vmatpush.bf16.msra.mxu0 0
      %10967 = vmatpush.bf16.msra.mxu0 0
      %10968 = vmatpush.bf16.msra.mxu0 0
      %10969 = vmatpush.bf16.msra.mxu0 %v10915
      %10970 = vmatpush.bf16.msra.mxu0 %v10874
      %10971 = vmatpush.bf16.msra.mxu0 %v10873
      %10972 = vmatpush.bf16.msra.mxu0 %v10872
      %10973 = vmatpush.bf16.msra.mxu0 %v10871
      %10974 = vmatmul.bf16.gmra.mxu0 %v10890
      %v10975 = vpop.f32.mrf.mxu0
      %v10976 = vadd.f32 %v10927, %v10975
      %v10977 = vpop.f32.mrf.mxu0
      %v10978 = vadd.f32 %v10929, %v10977
      %10979 = vmatmul.bf16.gmra.mxu0 %v10893
      %v10980 = vpop.f32.mrf.mxu0
      %v10981 = vadd.f32 %v10932, %v10980
      %v10982 = vpop.f32.mrf.mxu0
      %v10983 = vadd.f32 %v10934, %v10982
      %10984 = vmatmul.bf16.gmra.mxu0 %v10896
      %v10985 = vpop.f32.mrf.mxu0
      %v10986 = vadd.f32 %v10937, %v10985
      %v10987 = vpop.f32.mrf.mxu0
      %v10988 = vadd.f32 %v10939, %v10987
      %10989 = vmatmul.bf16.gmra.mxu0 %v10899
      %v10990 = vpop.f32.mrf.mxu0
      %v10991 = vadd.f32 %v10942, %v10990
      %v10992 = vpop.f32.mrf.mxu0
      %v10993 = vadd.f32 %v10944, %v10992
      %10994 = vmatmul.bf16.gmra.mxu0 %v10902
      %v10995 = vpop.f32.mrf.mxu0
      %v10996 = vadd.f32 %v10947, %v10995
      %v10997 = vpop.f32.mrf.mxu0
      %v10998 = vadd.f32 %v10949, %v10997
      %10999 = vmatmul.bf16.gmra.mxu0 %v10905
      %v11000 = vpop.f32.mrf.mxu0
      %v11001 = vadd.f32 %v10952, %v11000
      %v11002 = vpop.f32.mrf.mxu0
      %v11003 = vadd.f32 %v10954, %v11002
      %11004 = vmatmul.bf16.gmra.mxu0 %v10908
      %v11005 = vpop.f32.mrf.mxu0
      %v11006 = vadd.f32 %v10957, %v11005
      %v11007 = vpop.f32.mrf.mxu0
      %v11008 = vadd.f32 %v10959, %v11007
      %11009 = vmatmul.bf16.gmra.mxu0 %v10911
      %v11010 = vpop.f32.mrf.mxu0
      %v11011 = vadd.f32 %v10962, %v11010
      %v11012 = vpop.f32.mrf.mxu0
      %v11013 = vadd.f32 %v10964, %v11012
      %11014 = vdwg.mxu0
      %vm11015 = vcmask 31744
      %11016 = vst.msk [vmem:[%s206] sm:$0xff] %vm11015, %v10976
      %11017 = vst.msk [vmem:[%s206 + $0x8] sm:$0xff] %vm11015, %v10978
      %11018 = vst.msk [vmem:[%s206 + $0x10] sm:$0xff] %vm11015, %v10981
      %11019 = vst.msk [vmem:[%s206 + $0x18] sm:$0xff] %vm11015, %v10983
      %11020 = vst.msk [vmem:[%s206 + $0x20] sm:$0xff] %vm11015, %v10986
      %11021 = vst.msk [vmem:[%s206 + $0x28] sm:$0xff] %vm11015, %v10988
      %11022 = vst.msk [vmem:[%s206 + $0x30] sm:$0xff] %vm11015, %v10991
      %11023 = vst.msk [vmem:[%s206 + $0x38] sm:$0xff] %vm11015, %v10993
      %11024 = vst.msk [vmem:[%s206 + $0x40] sm:$0xff] %vm11015, %v10996
      %11025 = vst.msk [vmem:[%s206 + $0x48] sm:$0xff] %vm11015, %v10998
      %11026 = vst.msk [vmem:[%s206 + $0x50] sm:$0xff] %vm11015, %v11001
      %11027 = vst.msk [vmem:[%s206 + $0x58] sm:$0xff] %vm11015, %v11003
      %11028 = vst.msk [vmem:[%s206 + $0x60] sm:$0xff] %vm11015, %v11006
      %11029 = vst.msk [vmem:[%s206 + $0x68] sm:$0xff] %vm11015, %v11008
      %11030 = vst.msk [vmem:[%s206 + $0x70] sm:$0xff] %vm11015, %v11011
      %11031 = vst.msk [vmem:[%s206 + $0x78] sm:$0xff] %vm11015, %v11013
      %p11032 = scmp.lt.s32.totalorder %s18, 1
      %s11033 = scalar_select %p11032, %s18, 1
      %p11034 = scmp.lt.s32.totalorder %s19, 1
      %s11035 = scalar_select %p11034, %s19, 1
      %s11036 = smul.addr %s11035, 16
      %s11037 = smul.addr %s11033, 32
      %s11038 = sadd.s32 %s11036, %s11037
      %s11039 = smul.addr %s11038, 8
      %s11040 = scalar_lea.vmem %s3, %s11039
      // Predicated region
      $region33: #{tpu_custom_call.1} parent=31 // pred_check
        %p11041 = pneg %p116
      $region34: #{tpu_custom_call.1} parent=31 // pred_check_branch
        %11043 = sbr.rel (%p11041) target = $region36
      $region35: #{tpu_custom_call.1} parent=31 // pred_region
        _
      $region36: #{tpu_custom_call.1} parent=31 // pred_fallthru
        _
    $region32: #{tpu_custom_call.1} parent=5 // pred_fallthru
      _
    %p11044 = scmp.le.s32.totalorder 2, %s9
    // Predicated region
    $region37: #{tpu_custom_call.1} parent=5 // pred_check
      %p11045 = pneg %p11044
    $region38: #{tpu_custom_call.1} parent=5 // pred_check_branch
      %11047 = sbr.rel (%p11045) target = $region40
    $region39: #{tpu_custom_call.1} parent=5 // pred_region
      %s11048 = ssub.s32 %s9, 2
      // Predicated region
      $region41: #{tpu_custom_call.1} parent=39 // pred_check
        %p11049 = pneg %p122
      $region42: #{tpu_custom_call.1} parent=39 // pred_check_branch
        %11051 = sbr.rel (%p11049) target = $region44
      $region43: #{tpu_custom_call.1} parent=39 // pred_region
        %p11052 = scmp.lt.s32.totalorder %s20, 1
        %s11053 = scalar_select %p11052, %s20, 1
        %p11054 = scmp.lt.s32.totalorder %s21, 1
        %s11055 = scalar_select %p11054, %s21, 1
        %s11056 = smul.addr %s11055, 16
        %s11057 = smul.addr %s11053, 32
        %s11058 = sadd.s32 %s11056, %s11057
        %s11059 = smul.addr %s11058, 8
        %s11060 = scalar_lea.vmem %s3, %s11059
      $region44: #{tpu_custom_call.1} parent=39 // pred_fallthru
        _
    $region40: #{tpu_custom_call.1} parent=5 // pred_fallthru
      _
  $region6: #{tpu_custom_call.1} parent=0 // loop_footer
    %s13 = sadd.s32 1, %s9
  $region7: #{tpu_custom_call.1} parent=0 // loop_footer_branch
    %8 = sbr.rel target = $region3
  $region8: #{tpu_custom_call.1} parent=0 // loop_exit
    _

</llo_original>
